<compile_context>
chip_gen: v5e
topology: v5e:2x2
jax: 0.10.0
libtpu: 0.0.40
codegen_flags: <defaults>
</compile_context>

<pallas_src>
import functools

import jax
import jax.numpy as jnp
from jax.experimental import pallas as pl
from jax.experimental.pallas import tpu as pltpu


# -----------------------------------------------------------------------------
# Kernel 1: per-series-block stacked LSTM + autoregressive rollout (tau steps)
# -----------------------------------------------------------------------------
def _lstm_kernel(x_ref, w_ih0_ref, *rest, n_layers, d_hidden, tau, seq,
                 n_series, batch):
    if n_layers > 1:
        w_ih_hi_ref, w_hh_ref, bias_ref, lin_w_ref, lin_b_ref, out_ref = rest
    else:
        w_hh_ref, bias_ref, lin_w_ref, lin_b_ref, out_ref = rest
        w_ih_hi_ref = None

    H = d_hidden
    S = n_series

    w_ih0 = w_ih0_ref[...]                  # (S, 4H)  layer-0 input weight (input dim == 1)
    w_hh = w_hh_ref[...]                    # (S, n_layers, H, 4H)  (f32 or bf16)
    bias = bias_ref[...]                    # (S, n_layers, 4H)     b_ih + b_hh combined
    lin_w = lin_w_ref[...]                  # (S, H)
    lin_b = lin_b_ref[...]                  # (S, 1)
    mxu_dt = w_hh.dtype                     # bf16 only when use_bf16_matmul is set

    # Hoist per-layer slices / broadcast views out of the (unrolled) recurrent loops
    # (JAX does not CSE broadcast_in_dim across unrolled iterations).
    w_hh_l = [w_hh[:, l] for l in range(n_layers)]                 # each (S, H, 4H)
    bias_l = [bias[:, l][:, None, :] for l in range(n_layers)]     # each (S, 1, 4H)
    if n_layers > 1:
        w_ih_hi = w_ih_hi_ref[...]                                 # (S, n_layers-1, H, 4H)
        w_ih_l = [w_ih_hi[:, l] for l in range(n_layers - 1)]
    else:
        w_ih_l = []
    w_ih0_b = w_ih0[:, None, :]                                    # (S, 1, 4H)
    lin_w_b = lin_w[None, :, :]                                    # (1, S, H)
    lin_b_b = lin_b[None, :, :]                                    # (1, S, 1)

    def multi_step(g_in0, hs, cs):
        # g_in0: (S, batch, 4H) layer-0 input-gate contribution (natural batch-major
        # dot order).  Carried state hs/cs: (batch, S, H) -> dense vreg packing for
        # all VPU/EUP work.
        new_hs, new_cs = [], []
        layer_in = None
        for l in range(n_layers):
            if l == 0:
                g_in = g_in0
            else:
                g_in = jnp.einsum('bsh,shg->sbg', layer_in.astype(mxu_dt),
                                  w_ih_l[l - 1],
                                  preferred_element_type=jnp.float32)
            g_rec = jnp.einsum('bsh,shg->sbg', hs[l].astype(mxu_dt), w_hh_l[l],
                               preferred_element_type=jnp.float32)
            # Single leading-dims relayout per layer-step; the gate nonlinearities
            # and state update below run on densely packed (batch, S, 4H) vregs.
            gates = jnp.transpose(g_in + g_rec + bias_l[l], (1, 0, 2))
            i_g = jax.nn.sigmoid(gates[..., 0:H])
            f_g = jax.nn.sigmoid(gates[..., H:2 * H])
            g_g = jnp.tanh(gates[..., 2 * H:3 * H])
            o_g = jax.nn.sigmoid(gates[..., 3 * H:4 * H])
            c_new = f_g * cs[l] + i_g * g_g
            h_new = o_g * jnp.tanh(c_new)
            new_hs.append(h_new)
            new_cs.append(c_new)
            layer_in = h_new
        return tuple(new_hs), tuple(new_cs)

    zeros = jnp.zeros((batch, S, H), jnp.float32)
    hs0 = tuple(zeros for _ in range(n_layers))
    cs0 = tuple(zeros for _ in range(n_layers))

    def enc_body(t, carry):
        hs, cs = carry
        x_t = x_ref[t]                                    # (S, batch)
        g_in0 = x_t[:, :, None] * w_ih0_b                 # (S, batch, 4H)
        return multi_step(g_in0, hs, cs)

    # The recurrence is latency-bound: unroll so the scheduler can interleave gate
    # matmuls / EUP pushes of adjacent steps (partial unroll for long sequences).
    hs, cs = jax.lax.fori_loop(0, seq, enc_body, (hs0, cs0),
                               unroll=(seq if seq <= 16 else 8))

    # State is already (batch, S, H) == the output block slice: no transpose needed.
    # NOTE: trailing dim is H (<128 lanes) -> masked stores, but the store volume is
    # negligible vs. the seq+tau-1 recurrent chain, so we keep the 4-D layout rather
    # than risk an in-kernel (S, H) -> (S*H) lane-merge relayout.
    out_ref[:, 0] = hs[-1]

    # Autoregressive rollout: tau - 1 extra steps (tau is small -> static unroll).
    for step in range(1, tau):
        z = jnp.sum(hs[-1] * lin_w_b, axis=-1, keepdims=True) + lin_b_b   # (batch, S, 1)
        g_in0 = jnp.transpose(z, (1, 0, 2)) * w_ih0_b                     # (S, batch, 4H)
        hs, cs = multi_step(g_in0, hs, cs)
        out_ref[:, step] = hs[-1]


# -----------------------------------------------------------------------------
# Kernel 2: fused mu / d / v projections and sigma = diag(softplus(d)) + v v^T
# -----------------------------------------------------------------------------
def _proj_kernel(h_ref, w_all_ref, mu_ref, sigma_ref, *, bt_tile, d_input, beta,
                 use_sigmoid):
    h = h_ref[...]                          # (bt_tile * d_input, H)
    w_all = w_all_ref[...]                  # (H, 2 + rank)  columns: [mu | d | v...]

    # One fused MXU matmul for all (b, t, i) rows and all three projections.
    proj = jnp.dot(h, w_all, preferred_element_type=jnp.float32)    # (R, 2 + rank)

    mu = proj[:, 0:1]
    if use_sigmoid:                         # norm == 'min-max'
        mu = jax.nn.sigmoid(mu)
    d_raw = proj[:, 1:2]
    bx = beta * d_raw
    d = jnp.where(bx > 20.0, d_raw,
                  jnp.log1p(jnp.exp(jnp.minimum(bx, 20.0))) / beta)  # Softplus(beta, thr=20)
    v = proj[:, 2:]                                                  # (R, rank)

    # mu is <=0.2% of kernel-2 HBM traffic (sigma writeback dominates), so a narrow
    # (R, 1) store is fine; the wrapper reshape back to (batch, tau, d_input, 1) is free.
    mu_ref[...] = mu

    # Diagonal built in-kernel: no eye input, no extra DMA / resident VMEM copy.
    row = jax.lax.broadcasted_iota(jnp.int32, (d_input, d_input), 0)
    col = jax.lax.broadcasted_iota(jnp.int32, (d_input, d_input), 1)
    diag = row == col

    # Per-(b, t) outer product v v^T.  bt_tile is VMEM-budgeted (small), so a static
    # loop avoids an in-kernel (R, rank) -> (bt, d_input, rank) sublane relayout.
    for t in range(bt_tile):
        v_t = v[t * d_input:(t + 1) * d_input, :]                    # (d_input, rank)
        d_t = d[t * d_input:(t + 1) * d_input, :]                    # (d_input, 1)
        sigma_ref[t] = (jnp.dot(v_t, v_t.T, preferred_element_type=jnp.float32)
                        + jnp.where(diag, d_t, 0.0))


# -----------------------------------------------------------------------------
# Tile-size selection from an explicit VMEM budget (double-buffered f32 blocks).
# Budget default 12 MiB: safe under v5e's 16 MiB scoped default and v6e/v7x's 32 MiB.
# -----------------------------------------------------------------------------
def _pick_series_block(d_input, batch, seq, tau, H, n_layers, budget_bytes):
    cands = sorted({d_input} | {s for s in range(8, d_input, 8) if d_input % s == 0})

    def blk_bytes(s):
        w = s * n_layers * H * 4 * H                       # w_hh
        w += s * max(n_layers - 1, 0) * H * 4 * H          # w_ih (layers >= 1)
        w += s * (4 * H + n_layers * 4 * H + H + 1)        # w_ih0 + bias + lin_w + lin_b
        x_blk = seq * s * batch
        out_blk = batch * tau * s * H
        return 8 * (w + x_blk + out_blk)                   # f32, 2x buffered

    fitting = [s for s in cands if blk_bytes(s) <= budget_bytes] or [cands[0]]
    multi = [s for s in fitting if d_input // s >= 2]      # give both v7x TCs work
    return max(multi) if multi else max(fitting)


def _pick_bt_tile(BT, d_input, H, budget_bytes):
    # (bt * d_input) is the sublane dim of the hidden / mu blocks -> must be %8
    # whenever bt < BT.
    cands = [t for t in range(1, BT + 1)
             if BT % t == 0 and (t == BT or (t * d_input) % 8 == 0)]

    def blk_bytes(t):
        return 8 * (t * d_input * d_input + t * d_input * max(H, 128) + t * d_input)

    fitting = [t for t in cands if blk_bytes(t) <= budget_bytes] or [min(cands)]
    multi = [t for t in fitting if BT // t >= 2]           # pipelining + v7x 2 TCs
    return max(multi) if multi else max(fitting)


# -----------------------------------------------------------------------------
# Wrapper
# -----------------------------------------------------------------------------
def gp_copula_forward(x, params, *, tau, beta, n_layers, d_hidden, rank,
                      norm='standard', series_per_step=None, bt_tile=None,
                      use_bf16_matmul=False, vmem_budget_bytes=12 << 20):
    batch, seq, d_input = x.shape
    H = d_hidden

    # ---------------- kernel 1: stacked LSTM + AR rollout ----------------
    if series_per_step is None:
        S = _pick_series_block(d_input, batch, seq, tau, H, n_layers,
                               vmem_budget_bytes)
    else:
        S = series_per_step
    assert d_input % S == 0 and (S == d_input or S % 8 == 0)

    # (seq, d_input, batch): no trailing size-1 dim (avoids ~512x (8,128) padding of
    # the x block); S sits on the sublane dim so only the %8-or-full rule applies.
    x_t = jnp.transpose(x, (1, 2, 0))

    w_hh = params['w_hh']
    w_ih_hi = params['w_ih_hi']
    if use_bf16_matmul:
        # v6e/v7x: halve recurrent-weight DMA and use the bf16 MXU path; h/c carry,
        # biases and accumulation stay f32.  Off by default: recurrent bf16 rounding
        # can exceed the 1e-4 parity tolerance vs. the fp32 reference.
        w_hh = w_hh.astype(jnp.bfloat16)
        w_ih_hi = w_ih_hi.astype(jnp.bfloat16)

    in_specs = [
        pl.BlockSpec((seq, S, batch), lambda g: (0, g, 0)),               # x
        pl.BlockSpec((S, 4 * H), lambda g: (g, 0)),                       # layer-0 w_ih
    ]
    operands = [x_t, params['w_ih0']]
    if n_layers > 1:                                                      # skip dummy DMA when n_layers == 1
        n_hi = w_ih_hi.shape[1]
        in_specs.append(pl.BlockSpec((S, n_hi, H, 4 * H), lambda g: (g, 0, 0, 0)))
        operands.append(w_ih_hi)
    in_specs += [
        pl.BlockSpec((S, n_layers, H, 4 * H), lambda g: (g, 0, 0, 0)),    # w_hh
        pl.BlockSpec((S, n_layers, 4 * H), lambda g: (g, 0, 0)),          # b_ih + b_hh
        pl.BlockSpec((S, H), lambda g: (g, 0)),                           # linear_list[i].weight
        pl.BlockSpec((S, 1), lambda g: (g, 0)),                           # linear_list[i].bias
    ]
    operands += [w_hh, params['bias'], params['lin_w'], params['lin_b']]

    steps = seq + tau - 1
    cells = d_input * steps * n_layers
    cost1 = pl.CostEstimate(
        flops=int(cells * 2 * batch * H * 4 * H
                  + d_input * steps * max(n_layers - 1, 0) * 2 * batch * H * 4 * H
                  + cells * batch * 12 * H),
        transcendentals=int(cells * batch * 5 * H),
        bytes_accessed=int(4 * (x_t.size + sum(int(p.size) for p in operands[1:])
                                + batch * tau * d_input * H)))

    hidden = pl.pallas_call(
        functools.partial(_lstm_kernel, n_layers=n_layers, d_hidden=H, tau=tau,
                          seq=seq, n_series=S, batch=batch),
        out_shape=jax.ShapeDtypeStruct((batch, tau, d_input, H), jnp.float32),
        grid=(d_input // S,),
        in_specs=in_specs,
        out_specs=pl.BlockSpec((batch, tau, S, H), lambda g: (0, 0, g, 0)),
        compiler_params=pltpu.CompilerParams(dimension_semantics=("parallel",)),
        cost_estimate=cost1,
    )(*operands)

    # ---------------- kernel 2: fused projections + sigma assembly ----------------
    BT = batch * tau
    if bt_tile is None:
        bt = _pick_bt_tile(BT, d_input, H, vmem_budget_bytes)
    else:
        bt = bt_tile
    assert BT % bt == 0 and (bt == BT or (bt * d_input) % 8 == 0)

    hidden_flat = hidden.reshape(BT * d_input, H)           # free (contiguous merge)
    w_all = jnp.concatenate([params['mu_w'], params['d_w'], params['v_w']], axis=1)

    cost2 = pl.CostEstimate(
        flops=int(BT * (2 * d_input * H * (2 + rank)
                        + 2 * d_input * d_input * rank + 2 * d_input * d_input)),
        transcendentals=int(BT * d_input * 2),
        bytes_accessed=int(4 * (BT * d_input * H + H * (2 + rank)
                                + BT * d_input + BT * d_input * d_input)))

    mu_flat, sigma_flat = pl.pallas_call(
        functools.partial(_proj_kernel, bt_tile=bt, d_input=d_input,
                          beta=float(beta), use_sigmoid=(norm == 'min-max')),
        out_shape=(jax.ShapeDtypeStruct((BT * d_input, 1), jnp.float32),
                   jax.ShapeDtypeStruct((BT, d_input, d_input), jnp.float32)),
        grid=(BT // bt,),
        in_specs=[
            pl.BlockSpec((bt * d_input, H), lambda g: (g, 0)),
            pl.BlockSpec((H, 2 + rank), lambda g: (0, 0)),
        ],
        out_specs=(pl.BlockSpec((bt * d_input, 1), lambda g: (g, 0)),
                   pl.BlockSpec((bt, d_input, d_input), lambda g: (g, 0, 0))),
        compiler_params=pltpu.CompilerParams(dimension_semantics=("parallel",)),
        cost_estimate=cost2,
    )(hidden_flat, w_all)

    mu = mu_flat.reshape(batch, tau, d_input, 1)             # free wrapper reshapes
    sigma = sigma_flat.reshape(batch, tau, d_input, d_input)
    return mu, sigma


# -----------------------------------------------------------------------------
# Pure-JAX reference (same math, no Pallas) for validation
# -----------------------------------------------------------------------------
def gp_copula_reference(x, params, *, tau, beta, n_layers, d_hidden, rank,
                        norm='standard'):
    batch, seq, d_input = x.shape
    H = d_hidden
    series_hiddens = []
    for i in range(d_input):
        w_ih0 = params['w_ih0'][i]          # (4H,)
        bias = params['bias'][i]            # (n_layers, 4H)
        lin_w = params['lin_w'][i]          # (H,)
        lin_b = params['lin_b'][i, 0]

        def step(inp, hs, cs):
            new_hs, new_cs = [], []
            cur = inp
            for l in range(n_layers):
                if l == 0:
                    g_ih = cur * w_ih0[None, :]
                else:
                    g_ih = cur @ params['w_ih_hi'][i, l - 1]
                gates = g_ih + hs[l] @ params['w_hh'][i, l] + bias[l][None, :]
                ig = jax.nn.sigmoid(gates[:, :H])
                fg = jax.nn.sigmoid(gates[:, H:2 * H])
                gg = jnp.tanh(gates[:, 2 * H:3 * H])
                og = jax.nn.sigmoid(gates[:, 3 * H:])
                c_new = fg * cs[l] + ig * gg
                h_new = og * jnp.tanh(c_new)
                new_hs.append(h_new)
                new_cs.append(c_new)
                cur = h_new
            return new_hs, new_cs

        hs = [jnp.zeros((batch, H), jnp.float32) for _ in range(n_layers)]
        cs = [jnp.zeros((batch, H), jnp.float32) for _ in range(n_layers)]
        for t in range(seq):
            hs, cs = step(x[:, t:t + 1, i], hs, cs)
        outs = [hs[-1]]
        for _ in range(tau - 1):
            z = hs[-1] @ lin_w[:, None] + lin_b
            hs, cs = step(z, hs, cs)
            outs.append(hs[-1])
        series_hiddens.append(jnp.stack(outs, axis=0))   # (tau, batch, H)

    _hidden = jnp.stack(series_hiddens, axis=0)          # (d_input, tau, batch, H)
    _hidden = jnp.transpose(_hidden, (2, 1, 0, 3))       # (batch, tau, d_input, H)

    mu = _hidden @ params['mu_w']
    if norm == 'min-max':
        mu = jax.nn.sigmoid(mu)
    d_raw = _hidden @ params['d_w']
    bx = beta * d_raw
    d = jnp.where(bx > 20.0, d_raw,
                  jnp.log1p(jnp.exp(jnp.minimum(bx, 20.0))) / beta)
    v = _hidden @ params['v_w']
    sigma = (jnp.matmul(v, jnp.swapaxes(v, -1, -2))
             + d[..., 0][..., :, None] * jnp.eye(d_input, dtype=jnp.float32))
    return mu, sigma


# -----------------------------------------------------------------------------
# Main
# -----------------------------------------------------------------------------
if __name__ == "__main__":
    batch, seq = 2, 8
    d_input, d_hidden, rank, n_layers = 4, 32, 4, 2
    tau, beta = 3, 1.0
    norm = 'standard'

    key = jax.random.PRNGKey(0)
    keys = jax.random.split(key, 10)
    bound = 1.0 / float(jnp.sqrt(d_hidden))

    def uni(k, shape):
        return jax.random.uniform(k, shape, jnp.float32, -bound, bound)

    # Weights stored pre-transposed (input-dim first) so kernels compute h @ W.
    params = dict(
        w_ih0=uni(keys[0], (d_input, 4 * d_hidden)),                              # LSTM layer-0 input weights
        w_ih_hi=uni(keys[1], (d_input, max(n_layers - 1, 1), d_hidden, 4 * d_hidden)),
        w_hh=uni(keys[2], (d_input, n_layers, d_hidden, 4 * d_hidden)),
        bias=uni(keys[3], (d_input, n_layers, 4 * d_hidden)),                     # b_ih + b_hh combined
        lin_w=uni(keys[4], (d_input, d_hidden)),                                  # linear_list[i].weight
        lin_b=uni(keys[5], (d_input, 1)),                                         # linear_list[i].bias
        mu_w=uni(keys[6], (d_hidden, 1)),                                         # mu_map.weight^T
        d_w=uni(keys[7], (d_hidden, 1)),                                          # d_map.weight^T
        v_w=uni(keys[8], (d_hidden, rank)),                                       # v_map.weight^T
    )
    x = jax.random.normal(keys[9], (batch, seq, d_input), jnp.float32)

    mu, sigma = gp_copula_forward(x, params, tau=tau, beta=beta,
                                  n_layers=n_layers, d_hidden=d_hidden,
                                  rank=rank, norm=norm)
    jax.block_until_ready((mu, sigma))

    mu_ref, sigma_ref = gp_copula_reference(x, params, tau=tau, beta=beta,
                                            n_layers=n_layers, d_hidden=d_hidden,
                                            rank=rank, norm=norm)

    assert mu.shape == (batch, tau, d_input, 1), mu.shape
    assert sigma.shape == (batch, tau, d_input, d_input), sigma.shape
    assert jnp.allclose(mu, mu_ref, atol=1e-4, rtol=1e-4), "mu mismatch"
    assert jnp.allclose(sigma, sigma_ref, atol=1e-4, rtol=1e-4), "sigma mismatch"

    print("KERNEL_OK")
</pallas_src>

<mosaic_0001>
module attributes {stable_mosaic.version = 11 : i64} {
  func.func @_lstm_kernel(%arg0: i32, %arg1: memref<8x4x2xf32, #tpu.memory_space<vmem>>, %arg2: memref<4x128xf32, #tpu.memory_space<vmem>>, %arg3: memref<4x1x32x128xf32, #tpu.memory_space<vmem>>, %arg4: memref<4x2x32x128xf32, #tpu.memory_space<vmem>>, %arg5: memref<4x2x128xf32, #tpu.memory_space<vmem>>, %arg6: memref<4x32xf32, #tpu.memory_space<vmem>>, %arg7: memref<4x1xf32, #tpu.memory_space<vmem>>, %arg8: memref<2x3x4x32xf32, #tpu.memory_space<vmem>>) attributes {dimension_semantics = [#tpu.dimension_semantics<parallel>], iteration_bounds = array<i64: 1>, scalar_prefetch = 0 : i64, scratch_operands = 0 : i64, tpu.core_type = #tpu.core_type<tc>, window_params = [{transform_indices = @transform_0, window_bounds = array<i64: 8, 4, 2>}, {transform_indices = @transform_1, window_bounds = array<i64: 4, 128>}, {transform_indices = @transform_2, window_bounds = array<i64: 4, 1, 32, 128>}, {transform_indices = @transform_3, window_bounds = array<i64: 4, 2, 32, 128>}, {transform_indices = @transform_4, window_bounds = array<i64: 4, 2, 128>}, {transform_indices = @transform_5, window_bounds = array<i64: 4, 32>}, {transform_indices = @transform_6, window_bounds = array<i64: 4, 1>}, {transform_indices = @transform_7, window_bounds = array<i64: 2, 3, 4, 32>}]} {
    %c0 = arith.constant 0 : index
    %c0_0 = arith.constant 0 : index
    %0 = vector.load %arg2[%c0, %c0_0] : memref<4x128xf32, #tpu.memory_space<vmem>>, vector<4x128xf32>
    %c0_1 = arith.constant 0 : index
    %c0_2 = arith.constant 0 : index
    %c0_3 = arith.constant 0 : index
    %c0_4 = arith.constant 0 : index
    %1 = vector.load %arg4[%c0_1, %c0_2, %c0_3, %c0_4] : memref<4x2x32x128xf32, #tpu.memory_space<vmem>>, vector<4x2x32x128xf32>
    %c0_5 = arith.constant 0 : index
    %c0_6 = arith.constant 0 : index
    %c0_7 = arith.constant 0 : index
    %2 = vector.load %arg5[%c0_5, %c0_6, %c0_7] : memref<4x2x128xf32, #tpu.memory_space<vmem>>, vector<4x2x128xf32>
    %c0_8 = arith.constant 0 : index
    %c0_9 = arith.constant 0 : index
    %3 = vector.load %arg6[%c0_8, %c0_9] : memref<4x32xf32, #tpu.memory_space<vmem>>, vector<4x32xf32>
    %c0_10 = arith.constant 0 : index
    %c0_11 = arith.constant 0 : index
    %4 = vector.load %arg7[%c0_10, %c0_11] : memref<4x1xf32, #tpu.memory_space<vmem>>, vector<4x1xf32>
    %5 = vector.extract_strided_slice %1 {offsets = [0, 0, 0, 0], sizes = [4, 1, 32, 128], strides = [1, 1, 1, 1]} : vector<4x2x32x128xf32> to vector<4x1x32x128xf32>
    %6 = vector.shape_cast %5 : vector<4x1x32x128xf32> to vector<4x32x128xf32>
    %7 = vector.extract_strided_slice %1 {offsets = [0, 1, 0, 0], sizes = [4, 1, 32, 128], strides = [1, 1, 1, 1]} : vector<4x2x32x128xf32> to vector<4x1x32x128xf32>
    %8 = vector.shape_cast %7 : vector<4x1x32x128xf32> to vector<4x32x128xf32>
    %9 = vector.extract_strided_slice %2 {offsets = [0, 0, 0], sizes = [4, 1, 128], strides = [1, 1, 1]} : vector<4x2x128xf32> to vector<4x1x128xf32>
    %10 = vector.shape_cast %9 : vector<4x1x128xf32> to vector<4x128xf32>
    %11 = vector.shape_cast %10 : vector<4x128xf32> to vector<4x1x128xf32>
    %12 = vector.extract_strided_slice %2 {offsets = [0, 1, 0], sizes = [4, 1, 128], strides = [1, 1, 1]} : vector<4x2x128xf32> to vector<4x1x128xf32>
    %13 = vector.shape_cast %12 : vector<4x1x128xf32> to vector<4x128xf32>
    %14 = vector.shape_cast %13 : vector<4x128xf32> to vector<4x1x128xf32>
    %c0_12 = arith.constant 0 : index
    %c0_13 = arith.constant 0 : index
    %c0_14 = arith.constant 0 : index
    %c0_15 = arith.constant 0 : index
    %15 = vector.load %arg3[%c0_12, %c0_13, %c0_14, %c0_15] : memref<4x1x32x128xf32, #tpu.memory_space<vmem>>, vector<4x1x32x128xf32>
    %16 = vector.shape_cast %15 : vector<4x1x32x128xf32> to vector<4x32x128xf32>
    %17 = vector.shape_cast %0 : vector<4x128xf32> to vector<4x1x128xf32>
    %18 = vector.shape_cast %3 : vector<4x32xf32> to vector<1x4x32xf32>
    %19 = vector.shape_cast %4 : vector<4x1xf32> to vector<1x4x1xf32>
    %cst = arith.constant 0.000000e+00 : f32
    %20 = vector.broadcast %cst : f32 to vector<2x4x32xf32>
    %c0_i32 = arith.constant 0 : i32
    %21 = arith.index_cast %c0_i32 : i32 to index
    %c0_16 = arith.constant 0 : index
    %c0_17 = arith.constant 0 : index
    %22 = vector.load %arg1[%21, %c0_16, %c0_17] : memref<8x4x2xf32, #tpu.memory_space<vmem>>, vector<1x4x2xf32>
    %23 = vector.shape_cast %22 : vector<1x4x2xf32> to vector<4x2xf32>
    %24 = vector.shape_cast %23 : vector<4x2xf32> to vector<4x2x1xf32>
    %25 = vector.broadcast %24 : vector<4x2x1xf32> to vector<4x2x128xf32>
    %26 = vector.broadcast %17 : vector<4x1x128xf32> to vector<4x2x128xf32>
    %27 = arith.mulf %25, %26 : vector<4x2x128xf32>
    "tpu.trace_start"() <{level = 10 : i32, message = "bsh,shg->sbg"}> : () -> ()
    %cst_18 = arith.constant dense<0.000000e+00> : vector<4x2x128xf32>
    %28 = tpu.matmul %20, %6, %cst_18 {dimension_numbers = #tpu.dot_dimension_numbers<[2], [1], [0], [2], [0, 1, 0, 0, 1, 2], [1], [0]>} : vector<2x4x32xf32>, vector<4x32x128xf32>, vector<4x2x128xf32> -> vector<4x2x128xf32>
    "tpu.trace_stop"() : () -> ()
    %29 = arith.addf %27, %28 : vector<4x2x128xf32>
    %30 = vector.broadcast %11 : vector<4x1x128xf32> to vector<4x2x128xf32>
    %31 = arith.addf %29, %30 : vector<4x2x128xf32>
    %32 = tpu.transpose %31, [1, 0, 2] : vector<4x2x128xf32> -> vector<2x4x128xf32>
    %33 = vector.extract_strided_slice %32 {offsets = [0, 0, 0], sizes = [2, 4, 32], strides = [1, 1, 1]} : vector<2x4x128xf32> to vector<2x4x32xf32>
    %34 = arith.negf %33 : vector<2x4x32xf32>
    %35 = math.exp %34 : vector<2x4x32xf32>
    %cst_19 = arith.constant 1.000000e+00 : f32
    %36 = vector.broadcast %cst_19 : f32 to vector<2x4x32xf32>
    %37 = arith.addf %36, %35 : vector<2x4x32xf32>
    %38 = arith.divf %36, %37 : vector<2x4x32xf32>
    %39 = vector.extract_strided_slice %32 {offsets = [0, 0, 32], sizes = [2, 4, 32], strides = [1, 1, 1]} : vector<2x4x128xf32> to vector<2x4x32xf32>
    %40 = arith.negf %39 : vector<2x4x32xf32>
    %41 = math.exp %40 : vector<2x4x32xf32>
    %cst_20 = arith.constant 1.000000e+00 : f32
    %42 = vector.broadcast %cst_20 : f32 to vector<2x4x32xf32>
    %43 = arith.addf %42, %41 : vector<2x4x32xf32>
    %44 = arith.divf %42, %43 : vector<2x4x32xf32>
    %45 = vector.extract_strided_slice %32 {offsets = [0, 0, 64], sizes = [2, 4, 32], strides = [1, 1, 1]} : vector<2x4x128xf32> to vector<2x4x32xf32>
    %46 = math.tanh %45 : vector<2x4x32xf32>
    %47 = vector.extract_strided_slice %32 {offsets = [0, 0, 96], sizes = [2, 4, 32], strides = [1, 1, 1]} : vector<2x4x128xf32> to vector<2x4x32xf32>
    %48 = arith.negf %47 : vector<2x4x32xf32>
    %49 = math.exp %48 : vector<2x4x32xf32>
    %cst_21 = arith.constant 1.000000e+00 : f32
    %50 = vector.broadcast %cst_21 : f32 to vector<2x4x32xf32>
    %51 = arith.addf %50, %49 : vector<2x4x32xf32>
    %52 = arith.divf %50, %51 : vector<2x4x32xf32>
    %53 = arith.mulf %44, %20 : vector<2x4x32xf32>
    %54 = arith.mulf %38, %46 : vector<2x4x32xf32>
    %55 = arith.addf %53, %54 : vector<2x4x32xf32>
    %56 = math.tanh %55 : vector<2x4x32xf32>
    %57 = arith.mulf %52, %56 : vector<2x4x32xf32>
    "tpu.trace_start"() <{level = 10 : i32, message = "bsh,shg->sbg"}> : () -> ()
    %cst_22 = arith.constant dense<0.000000e+00> : vector<4x2x128xf32>
    %58 = tpu.matmul %57, %16, %cst_22 {dimension_numbers = #tpu.dot_dimension_numbers<[2], [1], [0], [2], [0, 1, 0, 0, 1, 2], [1], [0]>} : vector<2x4x32xf32>, vector<4x32x128xf32>, vector<4x2x128xf32> -> vector<4x2x128xf32>
    %cst_23 = arith.constant dense<0.000000e+00> : vector<4x2x128xf32>
    %59 = tpu.matmul %20, %8, %cst_23 {dimension_numbers = #tpu.dot_dimension_numbers<[2], [1], [0], [2], [0, 1, 0, 0, 1, 2], [1], [0]>} : vector<2x4x32xf32>, vector<4x32x128xf32>, vector<4x2x128xf32> -> vector<4x2x128xf32>
    "tpu.trace_stop"() : () -> ()
    %60 = arith.addf %58, %59 : vector<4x2x128xf32>
    %61 = vector.broadcast %14 : vector<4x1x128xf32> to vector<4x2x128xf32>
    %62 = arith.addf %60, %61 : vector<4x2x128xf32>
    %63 = tpu.transpose %62, [1, 0, 2] : vector<4x2x128xf32> -> vector<2x4x128xf32>
    %64 = vector.extract_strided_slice %63 {offsets = [0, 0, 0], sizes = [2, 4, 32], strides = [1, 1, 1]} : vector<2x4x128xf32> to vector<2x4x32xf32>
    %65 = arith.negf %64 : vector<2x4x32xf32>
    %66 = math.exp %65 : vector<2x4x32xf32>
    %cst_24 = arith.constant 1.000000e+00 : f32
    %67 = vector.broadcast %cst_24 : f32 to vector<2x4x32xf32>
    %68 = arith.addf %67, %66 : vector<2x4x32xf32>
    %69 = arith.divf %67, %68 : vector<2x4x32xf32>
    %70 = vector.extract_strided_slice %63 {offsets = [0, 0, 32], sizes = [2, 4, 32], strides = [1, 1, 1]} : vector<2x4x128xf32> to vector<2x4x32xf32>
    %71 = arith.negf %70 : vector<2x4x32xf32>
    %72 = math.exp %71 : vector<2x4x32xf32>
    %cst_25 = arith.constant 1.000000e+00 : f32
    %73 = vector.broadcast %cst_25 : f32 to vector<2x4x32xf32>
    %74 = arith.addf %73, %72 : vector<2x4x32xf32>
    %75 = arith.divf %73, %74 : vector<2x4x32xf32>
    %76 = vector.extract_strided_slice %63 {offsets = [0, 0, 64], sizes = [2, 4, 32], strides = [1, 1, 1]} : vector<2x4x128xf32> to vector<2x4x32xf32>
    %77 = math.tanh %76 : vector<2x4x32xf32>
    %78 = vector.extract_strided_slice %63 {offsets = [0, 0, 96], sizes = [2, 4, 32], strides = [1, 1, 1]} : vector<2x4x128xf32> to vector<2x4x32xf32>
    %79 = arith.negf %78 : vector<2x4x32xf32>
    %80 = math.exp %79 : vector<2x4x32xf32>
    %cst_26 = arith.constant 1.000000e+00 : f32
    %81 = vector.broadcast %cst_26 : f32 to vector<2x4x32xf32>
    %82 = arith.addf %81, %80 : vector<2x4x32xf32>
    %83 = arith.divf %81, %82 : vector<2x4x32xf32>
    %84 = arith.mulf %75, %20 : vector<2x4x32xf32>
    %85 = arith.mulf %69, %77 : vector<2x4x32xf32>
    %86 = arith.addf %84, %85 : vector<2x4x32xf32>
    %87 = math.tanh %86 : vector<2x4x32xf32>
    %88 = arith.mulf %83, %87 : vector<2x4x32xf32>
    %c1_i32 = arith.constant 1 : i32
    %89 = arith.index_cast %c1_i32 : i32 to index
    %c0_27 = arith.constant 0 : index
    %c0_28 = arith.constant 0 : index
    %90 = vector.load %arg1[%89, %c0_27, %c0_28] : memref<8x4x2xf32, #tpu.memory_space<vmem>>, vector<1x4x2xf32>
    %91 = vector.shape_cast %90 : vector<1x4x2xf32> to vector<4x2xf32>
    %92 = vector.shape_cast %91 : vector<4x2xf32> to vector<4x2x1xf32>
    %93 = vector.broadcast %92 : vector<4x2x1xf32> to vector<4x2x128xf32>
    %94 = vector.broadcast %17 : vector<4x1x128xf32> to vector<4x2x128xf32>
    %95 = arith.mulf %93, %94 : vector<4x2x128xf32>
    "tpu.trace_start"() <{level = 10 : i32, message = "bsh,shg->sbg"}> : () -> ()
    %cst_29 = arith.constant dense<0.000000e+00> : vector<4x2x128xf32>
    %96 = tpu.matmul %57, %6, %cst_29 {dimension_numbers = #tpu.dot_dimension_numbers<[2], [1], [0], [2], [0, 1, 0, 0, 1, 2], [1], [0]>} : vector<2x4x32xf32>, vector<4x32x128xf32>, vector<4x2x128xf32> -> vector<4x2x128xf32>
    "tpu.trace_stop"() : () -> ()
    %97 = arith.addf %95, %96 : vector<4x2x128xf32>
    %98 = vector.broadcast %11 : vector<4x1x128xf32> to vector<4x2x128xf32>
    %99 = arith.addf %97, %98 : vector<4x2x128xf32>
    %100 = tpu.transpose %99, [1, 0, 2] : vector<4x2x128xf32> -> vector<2x4x128xf32>
    %101 = vector.extract_strided_slice %100 {offsets = [0, 0, 0], sizes = [2, 4, 32], strides = [1, 1, 1]} : vector<2x4x128xf32> to vector<2x4x32xf32>
    %102 = arith.negf %101 : vector<2x4x32xf32>
    %103 = math.exp %102 : vector<2x4x32xf32>
    %cst_30 = arith.constant 1.000000e+00 : f32
    %104 = vector.broadcast %cst_30 : f32 to vector<2x4x32xf32>
    %105 = arith.addf %104, %103 : vector<2x4x32xf32>
    %106 = arith.divf %104, %105 : vector<2x4x32xf32>
    %107 = vector.extract_strided_slice %100 {offsets = [0, 0, 32], sizes = [2, 4, 32], strides = [1, 1, 1]} : vector<2x4x128xf32> to vector<2x4x32xf32>
    %108 = arith.negf %107 : vector<2x4x32xf32>
    %109 = math.exp %108 : vector<2x4x32xf32>
    %cst_31 = arith.constant 1.000000e+00 : f32
    %110 = vector.broadcast %cst_31 : f32 to vector<2x4x32xf32>
    %111 = arith.addf %110, %109 : vector<2x4x32xf32>
    %112 = arith.divf %110, %111 : vector<2x4x32xf32>
    %113 = vector.extract_strided_slice %100 {offsets = [0, 0, 64], sizes = [2, 4, 32], strides = [1, 1, 1]} : vector<2x4x128xf32> to vector<2x4x32xf32>
    %114 = math.tanh %113 : vector<2x4x32xf32>
    %115 = vector.extract_strided_slice %100 {offsets = [0, 0, 96], sizes = [2, 4, 32], strides = [1, 1, 1]} : vector<2x4x128xf32> to vector<2x4x32xf32>
    %116 = arith.negf %115 : vector<2x4x32xf32>
    %117 = math.exp %116 : vector<2x4x32xf32>
    %cst_32 = arith.constant 1.000000e+00 : f32
    %118 = vector.broadcast %cst_32 : f32 to vector<2x4x32xf32>
    %119 = arith.addf %118, %117 : vector<2x4x32xf32>
    %120 = arith.divf %118, %119 : vector<2x4x32xf32>
    %121 = arith.mulf %112, %55 : vector<2x4x32xf32>
    %122 = arith.mulf %106, %114 : vector<2x4x32xf32>
    %123 = arith.addf %121, %122 : vector<2x4x32xf32>
    %124 = math.tanh %123 : vector<2x4x32xf32>
    %125 = arith.mulf %120, %124 : vector<2x4x32xf32>
    "tpu.trace_start"() <{level = 10 : i32, message = "bsh,shg->sbg"}> : () -> ()
    %cst_33 = arith.constant dense<0.000000e+00> : vector<4x2x128xf32>
    %126 = tpu.matmul %125, %16, %cst_33 {dimension_numbers = #tpu.dot_dimension_numbers<[2], [1], [0], [2], [0, 1, 0, 0, 1, 2], [1], [0]>} : vector<2x4x32xf32>, vector<4x32x128xf32>, vector<4x2x128xf32> -> vector<4x2x128xf32>
    %cst_34 = arith.constant dense<0.000000e+00> : vector<4x2x128xf32>
    %127 = tpu.matmul %88, %8, %cst_34 {dimension_numbers = #tpu.dot_dimension_numbers<[2], [1], [0], [2], [0, 1, 0, 0, 1, 2], [1], [0]>} : vector<2x4x32xf32>, vector<4x32x128xf32>, vector<4x2x128xf32> -> vector<4x2x128xf32>
    "tpu.trace_stop"() : () -> ()
    %128 = arith.addf %126, %127 : vector<4x2x128xf32>
    %129 = vector.broadcast %14 : vector<4x1x128xf32> to vector<4x2x128xf32>
    %130 = arith.addf %128, %129 : vector<4x2x128xf32>
    %131 = tpu.transpose %130, [1, 0, 2] : vector<4x2x128xf32> -> vector<2x4x128xf32>
    %132 = vector.extract_strided_slice %131 {offsets = [0, 0, 0], sizes = [2, 4, 32], strides = [1, 1, 1]} : vector<2x4x128xf32> to vector<2x4x32xf32>
    %133 = arith.negf %132 : vector<2x4x32xf32>
    %134 = math.exp %133 : vector<2x4x32xf32>
    %cst_35 = arith.constant 1.000000e+00 : f32
    %135 = vector.broadcast %cst_35 : f32 to vector<2x4x32xf32>
    %136 = arith.addf %135, %134 : vector<2x4x32xf32>
    %137 = arith.divf %135, %136 : vector<2x4x32xf32>
    %138 = vector.extract_strided_slice %131 {offsets = [0, 0, 32], sizes = [2, 4, 32], strides = [1, 1, 1]} : vector<2x4x128xf32> to vector<2x4x32xf32>
    %139 = arith.negf %138 : vector<2x4x32xf32>
    %140 = math.exp %139 : vector<2x4x32xf32>
    %cst_36 = arith.constant 1.000000e+00 : f32
    %141 = vector.broadcast %cst_36 : f32 to vector<2x4x32xf32>
    %142 = arith.addf %141, %140 : vector<2x4x32xf32>
    %143 = arith.divf %141, %142 : vector<2x4x32xf32>
    %144 = vector.extract_strided_slice %131 {offsets = [0, 0, 64], sizes = [2, 4, 32], strides = [1, 1, 1]} : vector<2x4x128xf32> to vector<2x4x32xf32>
    %145 = math.tanh %144 : vector<2x4x32xf32>
    %146 = vector.extract_strided_slice %131 {offsets = [0, 0, 96], sizes = [2, 4, 32], strides = [1, 1, 1]} : vector<2x4x128xf32> to vector<2x4x32xf32>
    %147 = arith.negf %146 : vector<2x4x32xf32>
    %148 = math.exp %147 : vector<2x4x32xf32>
    %cst_37 = arith.constant 1.000000e+00 : f32
    %149 = vector.broadcast %cst_37 : f32 to vector<2x4x32xf32>
    %150 = arith.addf %149, %148 : vector<2x4x32xf32>
    %151 = arith.divf %149, %150 : vector<2x4x32xf32>
    %152 = arith.mulf %143, %86 : vector<2x4x32xf32>
    %153 = arith.mulf %137, %145 : vector<2x4x32xf32>
    %154 = arith.addf %152, %153 : vector<2x4x32xf32>
    %155 = math.tanh %154 : vector<2x4x32xf32>
    %156 = arith.mulf %151, %155 : vector<2x4x32xf32>
    %c2_i32 = arith.constant 2 : i32
    %157 = arith.index_cast %c2_i32 : i32 to index
    %c0_38 = arith.constant 0 : index
    %c0_39 = arith.constant 0 : index
    %158 = vector.load %arg1[%157, %c0_38, %c0_39] : memref<8x4x2xf32, #tpu.memory_space<vmem>>, vector<1x4x2xf32>
    %159 = vector.shape_cast %158 : vector<1x4x2xf32> to vector<4x2xf32>
    %160 = vector.shape_cast %159 : vector<4x2xf32> to vector<4x2x1xf32>
    %161 = vector.broadcast %160 : vector<4x2x1xf32> to vector<4x2x128xf32>
    %162 = vector.broadcast %17 : vector<4x1x128xf32> to vector<4x2x128xf32>
    %163 = arith.mulf %161, %162 : vector<4x2x128xf32>
    "tpu.trace_start"() <{level = 10 : i32, message = "bsh,shg->sbg"}> : () -> ()
    %cst_40 = arith.constant dense<0.000000e+00> : vector<4x2x128xf32>
    %164 = tpu.matmul %125, %6, %cst_40 {dimension_numbers = #tpu.dot_dimension_numbers<[2], [1], [0], [2], [0, 1, 0, 0, 1, 2], [1], [0]>} : vector<2x4x32xf32>, vector<4x32x128xf32>, vector<4x2x128xf32> -> vector<4x2x128xf32>
    "tpu.trace_stop"() : () -> ()
    %165 = arith.addf %163, %164 : vector<4x2x128xf32>
    %166 = vector.broadcast %11 : vector<4x1x128xf32> to vector<4x2x128xf32>
    %167 = arith.addf %165, %166 : vector<4x2x128xf32>
    %168 = tpu.transpose %167, [1, 0, 2] : vector<4x2x128xf32> -> vector<2x4x128xf32>
    %169 = vector.extract_strided_slice %168 {offsets = [0, 0, 0], sizes = [2, 4, 32], strides = [1, 1, 1]} : vector<2x4x128xf32> to vector<2x4x32xf32>
    %170 = arith.negf %169 : vector<2x4x32xf32>
    %171 = math.exp %170 : vector<2x4x32xf32>
    %cst_41 = arith.constant 1.000000e+00 : f32
    %172 = vector.broadcast %cst_41 : f32 to vector<2x4x32xf32>
    %173 = arith.addf %172, %171 : vector<2x4x32xf32>
    %174 = arith.divf %172, %173 : vector<2x4x32xf32>
    %175 = vector.extract_strided_slice %168 {offsets = [0, 0, 32], sizes = [2, 4, 32], strides = [1, 1, 1]} : vector<2x4x128xf32> to vector<2x4x32xf32>
    %176 = arith.negf %175 : vector<2x4x32xf32>
    %177 = math.exp %176 : vector<2x4x32xf32>
    %cst_42 = arith.constant 1.000000e+00 : f32
    %178 = vector.broadcast %cst_42 : f32 to vector<2x4x32xf32>
    %179 = arith.addf %178, %177 : vector<2x4x32xf32>
    %180 = arith.divf %178, %179 : vector<2x4x32xf32>
    %181 = vector.extract_strided_slice %168 {offsets = [0, 0, 64], sizes = [2, 4, 32], strides = [1, 1, 1]} : vector<2x4x128xf32> to vector<2x4x32xf32>
    %182 = math.tanh %181 : vector<2x4x32xf32>
    %183 = vector.extract_strided_slice %168 {offsets = [0, 0, 96], sizes = [2, 4, 32], strides = [1, 1, 1]} : vector<2x4x128xf32> to vector<2x4x32xf32>
    %184 = arith.negf %183 : vector<2x4x32xf32>
    %185 = math.exp %184 : vector<2x4x32xf32>
    %cst_43 = arith.constant 1.000000e+00 : f32
    %186 = vector.broadcast %cst_43 : f32 to vector<2x4x32xf32>
    %187 = arith.addf %186, %185 : vector<2x4x32xf32>
    %188 = arith.divf %186, %187 : vector<2x4x32xf32>
    %189 = arith.mulf %180, %123 : vector<2x4x32xf32>
    %190 = arith.mulf %174, %182 : vector<2x4x32xf32>
    %191 = arith.addf %189, %190 : vector<2x4x32xf32>
    %192 = math.tanh %191 : vector<2x4x32xf32>
    %193 = arith.mulf %188, %192 : vector<2x4x32xf32>
    "tpu.trace_start"() <{level = 10 : i32, message = "bsh,shg->sbg"}> : () -> ()
    %cst_44 = arith.constant dense<0.000000e+00> : vector<4x2x128xf32>
    %194 = tpu.matmul %193, %16, %cst_44 {dimension_numbers = #tpu.dot_dimension_numbers<[2], [1], [0], [2], [0, 1, 0, 0, 1, 2], [1], [0]>} : vector<2x4x32xf32>, vector<4x32x128xf32>, vector<4x2x128xf32> -> vector<4x2x128xf32>
    %cst_45 = arith.constant dense<0.000000e+00> : vector<4x2x128xf32>
    %195 = tpu.matmul %156, %8, %cst_45 {dimension_numbers = #tpu.dot_dimension_numbers<[2], [1], [0], [2], [0, 1, 0, 0, 1, 2], [1], [0]>} : vector<2x4x32xf32>, vector<4x32x128xf32>, vector<4x2x128xf32> -> vector<4x2x128xf32>
    "tpu.trace_stop"() : () -> ()
    %196 = arith.addf %194, %195 : vector<4x2x128xf32>
    %197 = vector.broadcast %14 : vector<4x1x128xf32> to vector<4x2x128xf32>
    %198 = arith.addf %196, %197 : vector<4x2x128xf32>
    %199 = tpu.transpose %198, [1, 0, 2] : vector<4x2x128xf32> -> vector<2x4x128xf32>
    %200 = vector.extract_strided_slice %199 {offsets = [0, 0, 0], sizes = [2, 4, 32], strides = [1, 1, 1]} : vector<2x4x128xf32> to vector<2x4x32xf32>
    %201 = arith.negf %200 : vector<2x4x32xf32>
    %202 = math.exp %201 : vector<2x4x32xf32>
    %cst_46 = arith.constant 1.000000e+00 : f32
    %203 = vector.broadcast %cst_46 : f32 to vector<2x4x32xf32>
    %204 = arith.addf %203, %202 : vector<2x4x32xf32>
    %205 = arith.divf %203, %204 : vector<2x4x32xf32>
    %206 = vector.extract_strided_slice %199 {offsets = [0, 0, 32], sizes = [2, 4, 32], strides = [1, 1, 1]} : vector<2x4x128xf32> to vector<2x4x32xf32>
    %207 = arith.negf %206 : vector<2x4x32xf32>
    %208 = math.exp %207 : vector<2x4x32xf32>
    %cst_47 = arith.constant 1.000000e+00 : f32
    %209 = vector.broadcast %cst_47 : f32 to vector<2x4x32xf32>
    %210 = arith.addf %209, %208 : vector<2x4x32xf32>
    %211 = arith.divf %209, %210 : vector<2x4x32xf32>
    %212 = vector.extract_strided_slice %199 {offsets = [0, 0, 64], sizes = [2, 4, 32], strides = [1, 1, 1]} : vector<2x4x128xf32> to vector<2x4x32xf32>
    %213 = math.tanh %212 : vector<2x4x32xf32>
    %214 = vector.extract_strided_slice %199 {offsets = [0, 0, 96], sizes = [2, 4, 32], strides = [1, 1, 1]} : vector<2x4x128xf32> to vector<2x4x32xf32>
    %215 = arith.negf %214 : vector<2x4x32xf32>
    %216 = math.exp %215 : vector<2x4x32xf32>
    %cst_48 = arith.constant 1.000000e+00 : f32
    %217 = vector.broadcast %cst_48 : f32 to vector<2x4x32xf32>
    %218 = arith.addf %217, %216 : vector<2x4x32xf32>
    %219 = arith.divf %217, %218 : vector<2x4x32xf32>
    %220 = arith.mulf %211, %154 : vector<2x4x32xf32>
    %221 = arith.mulf %205, %213 : vector<2x4x32xf32>
    %222 = arith.addf %220, %221 : vector<2x4x32xf32>
    %223 = math.tanh %222 : vector<2x4x32xf32>
    %224 = arith.mulf %219, %223 : vector<2x4x32xf32>
    %c3_i32 = arith.constant 3 : i32
    %225 = arith.index_cast %c3_i32 : i32 to index
    %c0_49 = arith.constant 0 : index
    %c0_50 = arith.constant 0 : index
    %226 = vector.load %arg1[%225, %c0_49, %c0_50] : memref<8x4x2xf32, #tpu.memory_space<vmem>>, vector<1x4x2xf32>
    %227 = vector.shape_cast %226 : vector<1x4x2xf32> to vector<4x2xf32>
    %228 = vector.shape_cast %227 : vector<4x2xf32> to vector<4x2x1xf32>
    %229 = vector.broadcast %228 : vector<4x2x1xf32> to vector<4x2x128xf32>
    %230 = vector.broadcast %17 : vector<4x1x128xf32> to vector<4x2x128xf32>
    %231 = arith.mulf %229, %230 : vector<4x2x128xf32>
    "tpu.trace_start"() <{level = 10 : i32, message = "bsh,shg->sbg"}> : () -> ()
    %cst_51 = arith.constant dense<0.000000e+00> : vector<4x2x128xf32>
    %232 = tpu.matmul %193, %6, %cst_51 {dimension_numbers = #tpu.dot_dimension_numbers<[2], [1], [0], [2], [0, 1, 0, 0, 1, 2], [1], [0]>} : vector<2x4x32xf32>, vector<4x32x128xf32>, vector<4x2x128xf32> -> vector<4x2x128xf32>
    "tpu.trace_stop"() : () -> ()
    %233 = arith.addf %231, %232 : vector<4x2x128xf32>
    %234 = vector.broadcast %11 : vector<4x1x128xf32> to vector<4x2x128xf32>
    %235 = arith.addf %233, %234 : vector<4x2x128xf32>
    %236 = tpu.transpose %235, [1, 0, 2] : vector<4x2x128xf32> -> vector<2x4x128xf32>
    %237 = vector.extract_strided_slice %236 {offsets = [0, 0, 0], sizes = [2, 4, 32], strides = [1, 1, 1]} : vector<2x4x128xf32> to vector<2x4x32xf32>
    %238 = arith.negf %237 : vector<2x4x32xf32>
    %239 = math.exp %238 : vector<2x4x32xf32>
    %cst_52 = arith.constant 1.000000e+00 : f32
    %240 = vector.broadcast %cst_52 : f32 to vector<2x4x32xf32>
    %241 = arith.addf %240, %239 : vector<2x4x32xf32>
    %242 = arith.divf %240, %241 : vector<2x4x32xf32>
    %243 = vector.extract_strided_slice %236 {offsets = [0, 0, 32], sizes = [2, 4, 32], strides = [1, 1, 1]} : vector<2x4x128xf32> to vector<2x4x32xf32>
    %244 = arith.negf %243 : vector<2x4x32xf32>
    %245 = math.exp %244 : vector<2x4x32xf32>
    %cst_53 = arith.constant 1.000000e+00 : f32
    %246 = vector.broadcast %cst_53 : f32 to vector<2x4x32xf32>
    %247 = arith.addf %246, %245 : vector<2x4x32xf32>
    %248 = arith.divf %246, %247 : vector<2x4x32xf32>
    %249 = vector.extract_strided_slice %236 {offsets = [0, 0, 64], sizes = [2, 4, 32], strides = [1, 1, 1]} : vector<2x4x128xf32> to vector<2x4x32xf32>
    %250 = math.tanh %249 : vector<2x4x32xf32>
    %251 = vector.extract_strided_slice %236 {offsets = [0, 0, 96], sizes = [2, 4, 32], strides = [1, 1, 1]} : vector<2x4x128xf32> to vector<2x4x32xf32>
    %252 = arith.negf %251 : vector<2x4x32xf32>
    %253 = math.exp %252 : vector<2x4x32xf32>
    %cst_54 = arith.constant 1.000000e+00 : f32
    %254 = vector.broadcast %cst_54 : f32 to vector<2x4x32xf32>
    %255 = arith.addf %254, %253 : vector<2x4x32xf32>
    %256 = arith.divf %254, %255 : vector<2x4x32xf32>
    %257 = arith.mulf %248, %191 : vector<2x4x32xf32>
    %258 = arith.mulf %242, %250 : vector<2x4x32xf32>
    %259 = arith.addf %257, %258 : vector<2x4x32xf32>
    %260 = math.tanh %259 : vector<2x4x32xf32>
    %261 = arith.mulf %256, %260 : vector<2x4x32xf32>
    "tpu.trace_start"() <{level = 10 : i32, message = "bsh,shg->sbg"}> : () -> ()
    %cst_55 = arith.constant dense<0.000000e+00> : vector<4x2x128xf32>
    %262 = tpu.matmul %261, %16, %cst_55 {dimension_numbers = #tpu.dot_dimension_numbers<[2], [1], [0], [2], [0, 1, 0, 0, 1, 2], [1], [0]>} : vector<2x4x32xf32>, vector<4x32x128xf32>, vector<4x2x128xf32> -> vector<4x2x128xf32>
    %cst_56 = arith.constant dense<0.000000e+00> : vector<4x2x128xf32>
    %263 = tpu.matmul %224, %8, %cst_56 {dimension_numbers = #tpu.dot_dimension_numbers<[2], [1], [0], [2], [0, 1, 0, 0, 1, 2], [1], [0]>} : vector<2x4x32xf32>, vector<4x32x128xf32>, vector<4x2x128xf32> -> vector<4x2x128xf32>
    "tpu.trace_stop"() : () -> ()
    %264 = arith.addf %262, %263 : vector<4x2x128xf32>
    %265 = vector.broadcast %14 : vector<4x1x128xf32> to vector<4x2x128xf32>
    %266 = arith.addf %264, %265 : vector<4x2x128xf32>
    %267 = tpu.transpose %266, [1, 0, 2] : vector<4x2x128xf32> -> vector<2x4x128xf32>
    %268 = vector.extract_strided_slice %267 {offsets = [0, 0, 0], sizes = [2, 4, 32], strides = [1, 1, 1]} : vector<2x4x128xf32> to vector<2x4x32xf32>
    %269 = arith.negf %268 : vector<2x4x32xf32>
    %270 = math.exp %269 : vector<2x4x32xf32>
    %cst_57 = arith.constant 1.000000e+00 : f32
    %271 = vector.broadcast %cst_57 : f32 to vector<2x4x32xf32>
    %272 = arith.addf %271, %270 : vector<2x4x32xf32>
    %273 = arith.divf %271, %272 : vector<2x4x32xf32>
    %274 = vector.extract_strided_slice %267 {offsets = [0, 0, 32], sizes = [2, 4, 32], strides = [1, 1, 1]} : vector<2x4x128xf32> to vector<2x4x32xf32>
    %275 = arith.negf %274 : vector<2x4x32xf32>
    %276 = math.exp %275 : vector<2x4x32xf32>
    %cst_58 = arith.constant 1.000000e+00 : f32
    %277 = vector.broadcast %cst_58 : f32 to vector<2x4x32xf32>
    %278 = arith.addf %277, %276 : vector<2x4x32xf32>
    %279 = arith.divf %277, %278 : vector<2x4x32xf32>
    %280 = vector.extract_strided_slice %267 {offsets = [0, 0, 64], sizes = [2, 4, 32], strides = [1, 1, 1]} : vector<2x4x128xf32> to vector<2x4x32xf32>
    %281 = math.tanh %280 : vector<2x4x32xf32>
    %282 = vector.extract_strided_slice %267 {offsets = [0, 0, 96], sizes = [2, 4, 32], strides = [1, 1, 1]} : vector<2x4x128xf32> to vector<2x4x32xf32>
    %283 = arith.negf %282 : vector<2x4x32xf32>
    %284 = math.exp %283 : vector<2x4x32xf32>
    %cst_59 = arith.constant 1.000000e+00 : f32
    %285 = vector.broadcast %cst_59 : f32 to vector<2x4x32xf32>
    %286 = arith.addf %285, %284 : vector<2x4x32xf32>
    %287 = arith.divf %285, %286 : vector<2x4x32xf32>
    %288 = arith.mulf %279, %222 : vector<2x4x32xf32>
    %289 = arith.mulf %273, %281 : vector<2x4x32xf32>
    %290 = arith.addf %288, %289 : vector<2x4x32xf32>
    %291 = math.tanh %290 : vector<2x4x32xf32>
    %292 = arith.mulf %287, %291 : vector<2x4x32xf32>
    %c4_i32 = arith.constant 4 : i32
    %293 = arith.index_cast %c4_i32 : i32 to index
    %c0_60 = arith.constant 0 : index
    %c0_61 = arith.constant 0 : index
    %294 = vector.load %arg1[%293, %c0_60, %c0_61] : memref<8x4x2xf32, #tpu.memory_space<vmem>>, vector<1x4x2xf32>
    %295 = vector.shape_cast %294 : vector<1x4x2xf32> to vector<4x2xf32>
    %296 = vector.shape_cast %295 : vector<4x2xf32> to vector<4x2x1xf32>
    %297 = vector.broadcast %296 : vector<4x2x1xf32> to vector<4x2x128xf32>
    %298 = vector.broadcast %17 : vector<4x1x128xf32> to vector<4x2x128xf32>
    %299 = arith.mulf %297, %298 : vector<4x2x128xf32>
    "tpu.trace_start"() <{level = 10 : i32, message = "bsh,shg->sbg"}> : () -> ()
    %cst_62 = arith.constant dense<0.000000e+00> : vector<4x2x128xf32>
    %300 = tpu.matmul %261, %6, %cst_62 {dimension_numbers = #tpu.dot_dimension_numbers<[2], [1], [0], [2], [0, 1, 0, 0, 1, 2], [1], [0]>} : vector<2x4x32xf32>, vector<4x32x128xf32>, vector<4x2x128xf32> -> vector<4x2x128xf32>
    "tpu.trace_stop"() : () -> ()
    %301 = arith.addf %299, %300 : vector<4x2x128xf32>
    %302 = vector.broadcast %11 : vector<4x1x128xf32> to vector<4x2x128xf32>
    %303 = arith.addf %301, %302 : vector<4x2x128xf32>
    %304 = tpu.transpose %303, [1, 0, 2] : vector<4x2x128xf32> -> vector<2x4x128xf32>
    %305 = vector.extract_strided_slice %304 {offsets = [0, 0, 0], sizes = [2, 4, 32], strides = [1, 1, 1]} : vector<2x4x128xf32> to vector<2x4x32xf32>
    %306 = arith.negf %305 : vector<2x4x32xf32>
    %307 = math.exp %306 : vector<2x4x32xf32>
    %cst_63 = arith.constant 1.000000e+00 : f32
    %308 = vector.broadcast %cst_63 : f32 to vector<2x4x32xf32>
    %309 = arith.addf %308, %307 : vector<2x4x32xf32>
    %310 = arith.divf %308, %309 : vector<2x4x32xf32>
    %311 = vector.extract_strided_slice %304 {offsets = [0, 0, 32], sizes = [2, 4, 32], strides = [1, 1, 1]} : vector<2x4x128xf32> to vector<2x4x32xf32>
    %312 = arith.negf %311 : vector<2x4x32xf32>
    %313 = math.exp %312 : vector<2x4x32xf32>
    %cst_64 = arith.constant 1.000000e+00 : f32
    %314 = vector.broadcast %cst_64 : f32 to vector<2x4x32xf32>
    %315 = arith.addf %314, %313 : vector<2x4x32xf32>
    %316 = arith.divf %314, %315 : vector<2x4x32xf32>
    %317 = vector.extract_strided_slice %304 {offsets = [0, 0, 64], sizes = [2, 4, 32], strides = [1, 1, 1]} : vector<2x4x128xf32> to vector<2x4x32xf32>
    %318 = math.tanh %317 : vector<2x4x32xf32>
    %319 = vector.extract_strided_slice %304 {offsets = [0, 0, 96], sizes = [2, 4, 32], strides = [1, 1, 1]} : vector<2x4x128xf32> to vector<2x4x32xf32>
    %320 = arith.negf %319 : vector<2x4x32xf32>
    %321 = math.exp %320 : vector<2x4x32xf32>
    %cst_65 = arith.constant 1.000000e+00 : f32
    %322 = vector.broadcast %cst_65 : f32 to vector<2x4x32xf32>
    %323 = arith.addf %322, %321 : vector<2x4x32xf32>
    %324 = arith.divf %322, %323 : vector<2x4x32xf32>
    %325 = arith.mulf %316, %259 : vector<2x4x32xf32>
    %326 = arith.mulf %310, %318 : vector<2x4x32xf32>
    %327 = arith.addf %325, %326 : vector<2x4x32xf32>
    %328 = math.tanh %327 : vector<2x4x32xf32>
    %329 = arith.mulf %324, %328 : vector<2x4x32xf32>
    "tpu.trace_start"() <{level = 10 : i32, message = "bsh,shg->sbg"}> : () -> ()
    %cst_66 = arith.constant dense<0.000000e+00> : vector<4x2x128xf32>
    %330 = tpu.matmul %329, %16, %cst_66 {dimension_numbers = #tpu.dot_dimension_numbers<[2], [1], [0], [2], [0, 1, 0, 0, 1, 2], [1], [0]>} : vector<2x4x32xf32>, vector<4x32x128xf32>, vector<4x2x128xf32> -> vector<4x2x128xf32>
    %cst_67 = arith.constant dense<0.000000e+00> : vector<4x2x128xf32>
    %331 = tpu.matmul %292, %8, %cst_67 {dimension_numbers = #tpu.dot_dimension_numbers<[2], [1], [0], [2], [0, 1, 0, 0, 1, 2], [1], [0]>} : vector<2x4x32xf32>, vector<4x32x128xf32>, vector<4x2x128xf32> -> vector<4x2x128xf32>
    "tpu.trace_stop"() : () -> ()
    %332 = arith.addf %330, %331 : vector<4x2x128xf32>
    %333 = vector.broadcast %14 : vector<4x1x128xf32> to vector<4x2x128xf32>
    %334 = arith.addf %332, %333 : vector<4x2x128xf32>
    %335 = tpu.transpose %334, [1, 0, 2] : vector<4x2x128xf32> -> vector<2x4x128xf32>
    %336 = vector.extract_strided_slice %335 {offsets = [0, 0, 0], sizes = [2, 4, 32], strides = [1, 1, 1]} : vector<2x4x128xf32> to vector<2x4x32xf32>
    %337 = arith.negf %336 : vector<2x4x32xf32>
    %338 = math.exp %337 : vector<2x4x32xf32>
    %cst_68 = arith.constant 1.000000e+00 : f32
    %339 = vector.broadcast %cst_68 : f32 to vector<2x4x32xf32>
    %340 = arith.addf %339, %338 : vector<2x4x32xf32>
    %341 = arith.divf %339, %340 : vector<2x4x32xf32>
    %342 = vector.extract_strided_slice %335 {offsets = [0, 0, 32], sizes = [2, 4, 32], strides = [1, 1, 1]} : vector<2x4x128xf32> to vector<2x4x32xf32>
    %343 = arith.negf %342 : vector<2x4x32xf32>
    %344 = math.exp %343 : vector<2x4x32xf32>
    %cst_69 = arith.constant 1.000000e+00 : f32
    %345 = vector.broadcast %cst_69 : f32 to vector<2x4x32xf32>
    %346 = arith.addf %345, %344 : vector<2x4x32xf32>
    %347 = arith.divf %345, %346 : vector<2x4x32xf32>
    %348 = vector.extract_strided_slice %335 {offsets = [0, 0, 64], sizes = [2, 4, 32], strides = [1, 1, 1]} : vector<2x4x128xf32> to vector<2x4x32xf32>
    %349 = math.tanh %348 : vector<2x4x32xf32>
    %350 = vector.extract_strided_slice %335 {offsets = [0, 0, 96], sizes = [2, 4, 32], strides = [1, 1, 1]} : vector<2x4x128xf32> to vector<2x4x32xf32>
    %351 = arith.negf %350 : vector<2x4x32xf32>
    %352 = math.exp %351 : vector<2x4x32xf32>
    %cst_70 = arith.constant 1.000000e+00 : f32
    %353 = vector.broadcast %cst_70 : f32 to vector<2x4x32xf32>
    %354 = arith.addf %353, %352 : vector<2x4x32xf32>
    %355 = arith.divf %353, %354 : vector<2x4x32xf32>
    %356 = arith.mulf %347, %290 : vector<2x4x32xf32>
    %357 = arith.mulf %341, %349 : vector<2x4x32xf32>
    %358 = arith.addf %356, %357 : vector<2x4x32xf32>
    %359 = math.tanh %358 : vector<2x4x32xf32>
    %360 = arith.mulf %355, %359 : vector<2x4x32xf32>
    %c5_i32 = arith.constant 5 : i32
    %361 = arith.index_cast %c5_i32 : i32 to index
    %c0_71 = arith.constant 0 : index
    %c0_72 = arith.constant 0 : index
    %362 = vector.load %arg1[%361, %c0_71, %c0_72] : memref<8x4x2xf32, #tpu.memory_space<vmem>>, vector<1x4x2xf32>
    %363 = vector.shape_cast %362 : vector<1x4x2xf32> to vector<4x2xf32>
    %364 = vector.shape_cast %363 : vector<4x2xf32> to vector<4x2x1xf32>
    %365 = vector.broadcast %364 : vector<4x2x1xf32> to vector<4x2x128xf32>
    %366 = vector.broadcast %17 : vector<4x1x128xf32> to vector<4x2x128xf32>
    %367 = arith.mulf %365, %366 : vector<4x2x128xf32>
    "tpu.trace_start"() <{level = 10 : i32, message = "bsh,shg->sbg"}> : () -> ()
    %cst_73 = arith.constant dense<0.000000e+00> : vector<4x2x128xf32>
    %368 = tpu.matmul %329, %6, %cst_73 {dimension_numbers = #tpu.dot_dimension_numbers<[2], [1], [0], [2], [0, 1, 0, 0, 1, 2], [1], [0]>} : vector<2x4x32xf32>, vector<4x32x128xf32>, vector<4x2x128xf32> -> vector<4x2x128xf32>
    "tpu.trace_stop"() : () -> ()
    %369 = arith.addf %367, %368 : vector<4x2x128xf32>
    %370 = vector.broadcast %11 : vector<4x1x128xf32> to vector<4x2x128xf32>
    %371 = arith.addf %369, %370 : vector<4x2x128xf32>
    %372 = tpu.transpose %371, [1, 0, 2] : vector<4x2x128xf32> -> vector<2x4x128xf32>
    %373 = vector.extract_strided_slice %372 {offsets = [0, 0, 0], sizes = [2, 4, 32], strides = [1, 1, 1]} : vector<2x4x128xf32> to vector<2x4x32xf32>
    %374 = arith.negf %373 : vector<2x4x32xf32>
    %375 = math.exp %374 : vector<2x4x32xf32>
    %cst_74 = arith.constant 1.000000e+00 : f32
    %376 = vector.broadcast %cst_74 : f32 to vector<2x4x32xf32>
    %377 = arith.addf %376, %375 : vector<2x4x32xf32>
    %378 = arith.divf %376, %377 : vector<2x4x32xf32>
    %379 = vector.extract_strided_slice %372 {offsets = [0, 0, 32], sizes = [2, 4, 32], strides = [1, 1, 1]} : vector<2x4x128xf32> to vector<2x4x32xf32>
    %380 = arith.negf %379 : vector<2x4x32xf32>
    %381 = math.exp %380 : vector<2x4x32xf32>
    %cst_75 = arith.constant 1.000000e+00 : f32
    %382 = vector.broadcast %cst_75 : f32 to vector<2x4x32xf32>
    %383 = arith.addf %382, %381 : vector<2x4x32xf32>
    %384 = arith.divf %382, %383 : vector<2x4x32xf32>
    %385 = vector.extract_strided_slice %372 {offsets = [0, 0, 64], sizes = [2, 4, 32], strides = [1, 1, 1]} : vector<2x4x128xf32> to vector<2x4x32xf32>
    %386 = math.tanh %385 : vector<2x4x32xf32>
    %387 = vector.extract_strided_slice %372 {offsets = [0, 0, 96], sizes = [2, 4, 32], strides = [1, 1, 1]} : vector<2x4x128xf32> to vector<2x4x32xf32>
    %388 = arith.negf %387 : vector<2x4x32xf32>
    %389 = math.exp %388 : vector<2x4x32xf32>
    %cst_76 = arith.constant 1.000000e+00 : f32
    %390 = vector.broadcast %cst_76 : f32 to vector<2x4x32xf32>
    %391 = arith.addf %390, %389 : vector<2x4x32xf32>
    %392 = arith.divf %390, %391 : vector<2x4x32xf32>
    %393 = arith.mulf %384, %327 : vector<2x4x32xf32>
    %394 = arith.mulf %378, %386 : vector<2x4x32xf32>
    %395 = arith.addf %393, %394 : vector<2x4x32xf32>
    %396 = math.tanh %395 : vector<2x4x32xf32>
    %397 = arith.mulf %392, %396 : vector<2x4x32xf32>
    "tpu.trace_start"() <{level = 10 : i32, message = "bsh,shg->sbg"}> : () -> ()
    %cst_77 = arith.constant dense<0.000000e+00> : vector<4x2x128xf32>
    %398 = tpu.matmul %397, %16, %cst_77 {dimension_numbers = #tpu.dot_dimension_numbers<[2], [1], [0], [2], [0, 1, 0, 0, 1, 2], [1], [0]>} : vector<2x4x32xf32>, vector<4x32x128xf32>, vector<4x2x128xf32> -> vector<4x2x128xf32>
    %cst_78 = arith.constant dense<0.000000e+00> : vector<4x2x128xf32>
    %399 = tpu.matmul %360, %8, %cst_78 {dimension_numbers = #tpu.dot_dimension_numbers<[2], [1], [0], [2], [0, 1, 0, 0, 1, 2], [1], [0]>} : vector<2x4x32xf32>, vector<4x32x128xf32>, vector<4x2x128xf32> -> vector<4x2x128xf32>
    "tpu.trace_stop"() : () -> ()
    %400 = arith.addf %398, %399 : vector<4x2x128xf32>
    %401 = vector.broadcast %14 : vector<4x1x128xf32> to vector<4x2x128xf32>
    %402 = arith.addf %400, %401 : vector<4x2x128xf32>
    %403 = tpu.transpose %402, [1, 0, 2] : vector<4x2x128xf32> -> vector<2x4x128xf32>
    %404 = vector.extract_strided_slice %403 {offsets = [0, 0, 0], sizes = [2, 4, 32], strides = [1, 1, 1]} : vector<2x4x128xf32> to vector<2x4x32xf32>
    %405 = arith.negf %404 : vector<2x4x32xf32>
    %406 = math.exp %405 : vector<2x4x32xf32>
    %cst_79 = arith.constant 1.000000e+00 : f32
    %407 = vector.broadcast %cst_79 : f32 to vector<2x4x32xf32>
    %408 = arith.addf %407, %406 : vector<2x4x32xf32>
    %409 = arith.divf %407, %408 : vector<2x4x32xf32>
    %410 = vector.extract_strided_slice %403 {offsets = [0, 0, 32], sizes = [2, 4, 32], strides = [1, 1, 1]} : vector<2x4x128xf32> to vector<2x4x32xf32>
    %411 = arith.negf %410 : vector<2x4x32xf32>
    %412 = math.exp %411 : vector<2x4x32xf32>
    %cst_80 = arith.constant 1.000000e+00 : f32
    %413 = vector.broadcast %cst_80 : f32 to vector<2x4x32xf32>
    %414 = arith.addf %413, %412 : vector<2x4x32xf32>
    %415 = arith.divf %413, %414 : vector<2x4x32xf32>
    %416 = vector.extract_strided_slice %403 {offsets = [0, 0, 64], sizes = [2, 4, 32], strides = [1, 1, 1]} : vector<2x4x128xf32> to vector<2x4x32xf32>
    %417 = math.tanh %416 : vector<2x4x32xf32>
    %418 = vector.extract_strided_slice %403 {offsets = [0, 0, 96], sizes = [2, 4, 32], strides = [1, 1, 1]} : vector<2x4x128xf32> to vector<2x4x32xf32>
    %419 = arith.negf %418 : vector<2x4x32xf32>
    %420 = math.exp %419 : vector<2x4x32xf32>
    %cst_81 = arith.constant 1.000000e+00 : f32
    %421 = vector.broadcast %cst_81 : f32 to vector<2x4x32xf32>
    %422 = arith.addf %421, %420 : vector<2x4x32xf32>
    %423 = arith.divf %421, %422 : vector<2x4x32xf32>
    %424 = arith.mulf %415, %358 : vector<2x4x32xf32>
    %425 = arith.mulf %409, %417 : vector<2x4x32xf32>
    %426 = arith.addf %424, %425 : vector<2x4x32xf32>
    %427 = math.tanh %426 : vector<2x4x32xf32>
    %428 = arith.mulf %423, %427 : vector<2x4x32xf32>
    %c6_i32 = arith.constant 6 : i32
    %429 = arith.index_cast %c6_i32 : i32 to index
    %c0_82 = arith.constant 0 : index
    %c0_83 = arith.constant 0 : index
    %430 = vector.load %arg1[%429, %c0_82, %c0_83] : memref<8x4x2xf32, #tpu.memory_space<vmem>>, vector<1x4x2xf32>
    %431 = vector.shape_cast %430 : vector<1x4x2xf32> to vector<4x2xf32>
    %432 = vector.shape_cast %431 : vector<4x2xf32> to vector<4x2x1xf32>
    %433 = vector.broadcast %432 : vector<4x2x1xf32> to vector<4x2x128xf32>
    %434 = vector.broadcast %17 : vector<4x1x128xf32> to vector<4x2x128xf32>
    %435 = arith.mulf %433, %434 : vector<4x2x128xf32>
    "tpu.trace_start"() <{level = 10 : i32, message = "bsh,shg->sbg"}> : () -> ()
    %cst_84 = arith.constant dense<0.000000e+00> : vector<4x2x128xf32>
    %436 = tpu.matmul %397, %6, %cst_84 {dimension_numbers = #tpu.dot_dimension_numbers<[2], [1], [0], [2], [0, 1, 0, 0, 1, 2], [1], [0]>} : vector<2x4x32xf32>, vector<4x32x128xf32>, vector<4x2x128xf32> -> vector<4x2x128xf32>
    "tpu.trace_stop"() : () -> ()
    %437 = arith.addf %435, %436 : vector<4x2x128xf32>
    %438 = vector.broadcast %11 : vector<4x1x128xf32> to vector<4x2x128xf32>
    %439 = arith.addf %437, %438 : vector<4x2x128xf32>
    %440 = tpu.transpose %439, [1, 0, 2] : vector<4x2x128xf32> -> vector<2x4x128xf32>
    %441 = vector.extract_strided_slice %440 {offsets = [0, 0, 0], sizes = [2, 4, 32], strides = [1, 1, 1]} : vector<2x4x128xf32> to vector<2x4x32xf32>
    %442 = arith.negf %441 : vector<2x4x32xf32>
    %443 = math.exp %442 : vector<2x4x32xf32>
    %cst_85 = arith.constant 1.000000e+00 : f32
    %444 = vector.broadcast %cst_85 : f32 to vector<2x4x32xf32>
    %445 = arith.addf %444, %443 : vector<2x4x32xf32>
    %446 = arith.divf %444, %445 : vector<2x4x32xf32>
    %447 = vector.extract_strided_slice %440 {offsets = [0, 0, 32], sizes = [2, 4, 32], strides = [1, 1, 1]} : vector<2x4x128xf32> to vector<2x4x32xf32>
    %448 = arith.negf %447 : vector<2x4x32xf32>
    %449 = math.exp %448 : vector<2x4x32xf32>
    %cst_86 = arith.constant 1.000000e+00 : f32
    %450 = vector.broadcast %cst_86 : f32 to vector<2x4x32xf32>
    %451 = arith.addf %450, %449 : vector<2x4x32xf32>
    %452 = arith.divf %450, %451 : vector<2x4x32xf32>
    %453 = vector.extract_strided_slice %440 {offsets = [0, 0, 64], sizes = [2, 4, 32], strides = [1, 1, 1]} : vector<2x4x128xf32> to vector<2x4x32xf32>
    %454 = math.tanh %453 : vector<2x4x32xf32>
    %455 = vector.extract_strided_slice %440 {offsets = [0, 0, 96], sizes = [2, 4, 32], strides = [1, 1, 1]} : vector<2x4x128xf32> to vector<2x4x32xf32>
    %456 = arith.negf %455 : vector<2x4x32xf32>
    %457 = math.exp %456 : vector<2x4x32xf32>
    %cst_87 = arith.constant 1.000000e+00 : f32
    %458 = vector.broadcast %cst_87 : f32 to vector<2x4x32xf32>
    %459 = arith.addf %458, %457 : vector<2x4x32xf32>
    %460 = arith.divf %458, %459 : vector<2x4x32xf32>
    %461 = arith.mulf %452, %395 : vector<2x4x32xf32>
    %462 = arith.mulf %446, %454 : vector<2x4x32xf32>
    %463 = arith.addf %461, %462 : vector<2x4x32xf32>
    %464 = math.tanh %463 : vector<2x4x32xf32>
    %465 = arith.mulf %460, %464 : vector<2x4x32xf32>
    "tpu.trace_start"() <{level = 10 : i32, message = "bsh,shg->sbg"}> : () -> ()
    %cst_88 = arith.constant dense<0.000000e+00> : vector<4x2x128xf32>
    %466 = tpu.matmul %465, %16, %cst_88 {dimension_numbers = #tpu.dot_dimension_numbers<[2], [1], [0], [2], [0, 1, 0, 0, 1, 2], [1], [0]>} : vector<2x4x32xf32>, vector<4x32x128xf32>, vector<4x2x128xf32> -> vector<4x2x128xf32>
    %cst_89 = arith.constant dense<0.000000e+00> : vector<4x2x128xf32>
    %467 = tpu.matmul %428, %8, %cst_89 {dimension_numbers = #tpu.dot_dimension_numbers<[2], [1], [0], [2], [0, 1, 0, 0, 1, 2], [1], [0]>} : vector<2x4x32xf32>, vector<4x32x128xf32>, vector<4x2x128xf32> -> vector<4x2x128xf32>
    "tpu.trace_stop"() : () -> ()
    %468 = arith.addf %466, %467 : vector<4x2x128xf32>
    %469 = vector.broadcast %14 : vector<4x1x128xf32> to vector<4x2x128xf32>
    %470 = arith.addf %468, %469 : vector<4x2x128xf32>
    %471 = tpu.transpose %470, [1, 0, 2] : vector<4x2x128xf32> -> vector<2x4x128xf32>
    %472 = vector.extract_strided_slice %471 {offsets = [0, 0, 0], sizes = [2, 4, 32], strides = [1, 1, 1]} : vector<2x4x128xf32> to vector<2x4x32xf32>
    %473 = arith.negf %472 : vector<2x4x32xf32>
    %474 = math.exp %473 : vector<2x4x32xf32>
    %cst_90 = arith.constant 1.000000e+00 : f32
    %475 = vector.broadcast %cst_90 : f32 to vector<2x4x32xf32>
    %476 = arith.addf %475, %474 : vector<2x4x32xf32>
    %477 = arith.divf %475, %476 : vector<2x4x32xf32>
    %478 = vector.extract_strided_slice %471 {offsets = [0, 0, 32], sizes = [2, 4, 32], strides = [1, 1, 1]} : vector<2x4x128xf32> to vector<2x4x32xf32>
    %479 = arith.negf %478 : vector<2x4x32xf32>
    %480 = math.exp %479 : vector<2x4x32xf32>
    %cst_91 = arith.constant 1.000000e+00 : f32
    %481 = vector.broadcast %cst_91 : f32 to vector<2x4x32xf32>
    %482 = arith.addf %481, %480 : vector<2x4x32xf32>
    %483 = arith.divf %481, %482 : vector<2x4x32xf32>
    %484 = vector.extract_strided_slice %471 {offsets = [0, 0, 64], sizes = [2, 4, 32], strides = [1, 1, 1]} : vector<2x4x128xf32> to vector<2x4x32xf32>
    %485 = math.tanh %484 : vector<2x4x32xf32>
    %486 = vector.extract_strided_slice %471 {offsets = [0, 0, 96], sizes = [2, 4, 32], strides = [1, 1, 1]} : vector<2x4x128xf32> to vector<2x4x32xf32>
    %487 = arith.negf %486 : vector<2x4x32xf32>
    %488 = math.exp %487 : vector<2x4x32xf32>
    %cst_92 = arith.constant 1.000000e+00 : f32
    %489 = vector.broadcast %cst_92 : f32 to vector<2x4x32xf32>
    %490 = arith.addf %489, %488 : vector<2x4x32xf32>
    %491 = arith.divf %489, %490 : vector<2x4x32xf32>
    %492 = arith.mulf %483, %426 : vector<2x4x32xf32>
    %493 = arith.mulf %477, %485 : vector<2x4x32xf32>
    %494 = arith.addf %492, %493 : vector<2x4x32xf32>
    %495 = math.tanh %494 : vector<2x4x32xf32>
    %496 = arith.mulf %491, %495 : vector<2x4x32xf32>
    %c7_i32 = arith.constant 7 : i32
    %497 = arith.index_cast %c7_i32 : i32 to index
    %c0_93 = arith.constant 0 : index
    %c0_94 = arith.constant 0 : index
    %498 = vector.load %arg1[%497, %c0_93, %c0_94] : memref<8x4x2xf32, #tpu.memory_space<vmem>>, vector<1x4x2xf32>
    %499 = vector.shape_cast %498 : vector<1x4x2xf32> to vector<4x2xf32>
    %500 = vector.shape_cast %499 : vector<4x2xf32> to vector<4x2x1xf32>
    %501 = vector.broadcast %500 : vector<4x2x1xf32> to vector<4x2x128xf32>
    %502 = vector.broadcast %17 : vector<4x1x128xf32> to vector<4x2x128xf32>
    %503 = arith.mulf %501, %502 : vector<4x2x128xf32>
    "tpu.trace_start"() <{level = 10 : i32, message = "bsh,shg->sbg"}> : () -> ()
    %cst_95 = arith.constant dense<0.000000e+00> : vector<4x2x128xf32>
    %504 = tpu.matmul %465, %6, %cst_95 {dimension_numbers = #tpu.dot_dimension_numbers<[2], [1], [0], [2], [0, 1, 0, 0, 1, 2], [1], [0]>} : vector<2x4x32xf32>, vector<4x32x128xf32>, vector<4x2x128xf32> -> vector<4x2x128xf32>
    "tpu.trace_stop"() : () -> ()
    %505 = arith.addf %503, %504 : vector<4x2x128xf32>
    %506 = vector.broadcast %11 : vector<4x1x128xf32> to vector<4x2x128xf32>
    %507 = arith.addf %505, %506 : vector<4x2x128xf32>
    %508 = tpu.transpose %507, [1, 0, 2] : vector<4x2x128xf32> -> vector<2x4x128xf32>
    %509 = vector.extract_strided_slice %508 {offsets = [0, 0, 0], sizes = [2, 4, 32], strides = [1, 1, 1]} : vector<2x4x128xf32> to vector<2x4x32xf32>
    %510 = arith.negf %509 : vector<2x4x32xf32>
    %511 = math.exp %510 : vector<2x4x32xf32>
    %cst_96 = arith.constant 1.000000e+00 : f32
    %512 = vector.broadcast %cst_96 : f32 to vector<2x4x32xf32>
    %513 = arith.addf %512, %511 : vector<2x4x32xf32>
    %514 = arith.divf %512, %513 : vector<2x4x32xf32>
    %515 = vector.extract_strided_slice %508 {offsets = [0, 0, 32], sizes = [2, 4, 32], strides = [1, 1, 1]} : vector<2x4x128xf32> to vector<2x4x32xf32>
    %516 = arith.negf %515 : vector<2x4x32xf32>
    %517 = math.exp %516 : vector<2x4x32xf32>
    %cst_97 = arith.constant 1.000000e+00 : f32
    %518 = vector.broadcast %cst_97 : f32 to vector<2x4x32xf32>
    %519 = arith.addf %518, %517 : vector<2x4x32xf32>
    %520 = arith.divf %518, %519 : vector<2x4x32xf32>
    %521 = vector.extract_strided_slice %508 {offsets = [0, 0, 64], sizes = [2, 4, 32], strides = [1, 1, 1]} : vector<2x4x128xf32> to vector<2x4x32xf32>
    %522 = math.tanh %521 : vector<2x4x32xf32>
    %523 = vector.extract_strided_slice %508 {offsets = [0, 0, 96], sizes = [2, 4, 32], strides = [1, 1, 1]} : vector<2x4x128xf32> to vector<2x4x32xf32>
    %524 = arith.negf %523 : vector<2x4x32xf32>
    %525 = math.exp %524 : vector<2x4x32xf32>
    %cst_98 = arith.constant 1.000000e+00 : f32
    %526 = vector.broadcast %cst_98 : f32 to vector<2x4x32xf32>
    %527 = arith.addf %526, %525 : vector<2x4x32xf32>
    %528 = arith.divf %526, %527 : vector<2x4x32xf32>
    %529 = arith.mulf %520, %463 : vector<2x4x32xf32>
    %530 = arith.mulf %514, %522 : vector<2x4x32xf32>
    %531 = arith.addf %529, %530 : vector<2x4x32xf32>
    %532 = math.tanh %531 : vector<2x4x32xf32>
    %533 = arith.mulf %528, %532 : vector<2x4x32xf32>
    "tpu.trace_start"() <{level = 10 : i32, message = "bsh,shg->sbg"}> : () -> ()
    %cst_99 = arith.constant dense<0.000000e+00> : vector<4x2x128xf32>
    %534 = tpu.matmul %533, %16, %cst_99 {dimension_numbers = #tpu.dot_dimension_numbers<[2], [1], [0], [2], [0, 1, 0, 0, 1, 2], [1], [0]>} : vector<2x4x32xf32>, vector<4x32x128xf32>, vector<4x2x128xf32> -> vector<4x2x128xf32>
    %cst_100 = arith.constant dense<0.000000e+00> : vector<4x2x128xf32>
    %535 = tpu.matmul %496, %8, %cst_100 {dimension_numbers = #tpu.dot_dimension_numbers<[2], [1], [0], [2], [0, 1, 0, 0, 1, 2], [1], [0]>} : vector<2x4x32xf32>, vector<4x32x128xf32>, vector<4x2x128xf32> -> vector<4x2x128xf32>
    "tpu.trace_stop"() : () -> ()
    %536 = arith.addf %534, %535 : vector<4x2x128xf32>
    %537 = vector.broadcast %14 : vector<4x1x128xf32> to vector<4x2x128xf32>
    %538 = arith.addf %536, %537 : vector<4x2x128xf32>
    %539 = tpu.transpose %538, [1, 0, 2] : vector<4x2x128xf32> -> vector<2x4x128xf32>
    %540 = vector.extract_strided_slice %539 {offsets = [0, 0, 0], sizes = [2, 4, 32], strides = [1, 1, 1]} : vector<2x4x128xf32> to vector<2x4x32xf32>
    %541 = arith.negf %540 : vector<2x4x32xf32>
    %542 = math.exp %541 : vector<2x4x32xf32>
    %cst_101 = arith.constant 1.000000e+00 : f32
    %543 = vector.broadcast %cst_101 : f32 to vector<2x4x32xf32>
    %544 = arith.addf %543, %542 : vector<2x4x32xf32>
    %545 = arith.divf %543, %544 : vector<2x4x32xf32>
    %546 = vector.extract_strided_slice %539 {offsets = [0, 0, 32], sizes = [2, 4, 32], strides = [1, 1, 1]} : vector<2x4x128xf32> to vector<2x4x32xf32>
    %547 = arith.negf %546 : vector<2x4x32xf32>
    %548 = math.exp %547 : vector<2x4x32xf32>
    %cst_102 = arith.constant 1.000000e+00 : f32
    %549 = vector.broadcast %cst_102 : f32 to vector<2x4x32xf32>
    %550 = arith.addf %549, %548 : vector<2x4x32xf32>
    %551 = arith.divf %549, %550 : vector<2x4x32xf32>
    %552 = vector.extract_strided_slice %539 {offsets = [0, 0, 64], sizes = [2, 4, 32], strides = [1, 1, 1]} : vector<2x4x128xf32> to vector<2x4x32xf32>
    %553 = math.tanh %552 : vector<2x4x32xf32>
    %554 = vector.extract_strided_slice %539 {offsets = [0, 0, 96], sizes = [2, 4, 32], strides = [1, 1, 1]} : vector<2x4x128xf32> to vector<2x4x32xf32>
    %555 = arith.negf %554 : vector<2x4x32xf32>
    %556 = math.exp %555 : vector<2x4x32xf32>
    %cst_103 = arith.constant 1.000000e+00 : f32
    %557 = vector.broadcast %cst_103 : f32 to vector<2x4x32xf32>
    %558 = arith.addf %557, %556 : vector<2x4x32xf32>
    %559 = arith.divf %557, %558 : vector<2x4x32xf32>
    %560 = arith.mulf %551, %494 : vector<2x4x32xf32>
    %561 = arith.mulf %545, %553 : vector<2x4x32xf32>
    %562 = arith.addf %560, %561 : vector<2x4x32xf32>
    %563 = math.tanh %562 : vector<2x4x32xf32>
    %564 = arith.mulf %559, %563 : vector<2x4x32xf32>
    %c8_i32 = arith.constant 8 : i32
    %c0_104 = arith.constant 0 : index
    %c0_105 = arith.constant 0 : index
    %c0_106 = arith.constant 0 : index
    %c0_107 = arith.constant 0 : index
    %565 = vector.load %arg8[%c0_104, %c0_105, %c0_106, %c0_107] : memref<2x3x4x32xf32, #tpu.memory_space<vmem>>, vector<2x1x4x32xf32>
    %566 = vector.shape_cast %565 : vector<2x1x4x32xf32> to vector<2x4x32xf32>
    %567 = vector.shape_cast %564 : vector<2x4x32xf32> to vector<2x1x4x32xf32>
    tpu.vector_store %arg8[%c0_104, %c0_105, %c0_106, %c0_107], %567 {strides = array<i32>} : memref<2x3x4x32xf32, #tpu.memory_space<vmem>>, vector<2x1x4x32xf32>,
    %568 = vector.broadcast %18 : vector<1x4x32xf32> to vector<2x4x32xf32>
    %569 = arith.mulf %564, %568 : vector<2x4x32xf32>
    %cst_108 = arith.constant dense<0.000000e+00> : vector<2x4xf32>
    %570 = vector.multi_reduction <add>, %569, %cst_108 [2] : vector<2x4x32xf32> to vector<2x4xf32>
    %571 = vector.shape_cast %570 : vector<2x4xf32> to vector<2x4x1xf32>
    %572 = vector.broadcast %19 : vector<1x4x1xf32> to vector<2x4x1xf32>
    %573 = arith.addf %571, %572 : vector<2x4x1xf32>
    %574 = tpu.transpose %573, [1, 0, 2] : vector<2x4x1xf32> -> vector<4x2x1xf32>
    %575 = vector.broadcast %574 : vector<4x2x1xf32> to vector<4x2x128xf32>
    %576 = vector.broadcast %17 : vector<4x1x128xf32> to vector<4x2x128xf32>
    %577 = arith.mulf %575, %576 : vector<4x2x128xf32>
    "tpu.trace_start"() <{level = 10 : i32, message = "bsh,shg->sbg"}> : () -> ()
    %cst_109 = arith.constant dense<0.000000e+00> : vector<4x2x128xf32>
    %578 = tpu.matmul %533, %6, %cst_109 {dimension_numbers = #tpu.dot_dimension_numbers<[2], [1], [0], [2], [0, 1, 0, 0, 1, 2], [1], [0]>} : vector<2x4x32xf32>, vector<4x32x128xf32>, vector<4x2x128xf32> -> vector<4x2x128xf32>
    "tpu.trace_stop"() : () -> ()
    %579 = arith.addf %577, %578 : vector<4x2x128xf32>
    %580 = vector.broadcast %11 : vector<4x1x128xf32> to vector<4x2x128xf32>
    %581 = arith.addf %579, %580 : vector<4x2x128xf32>
    %582 = tpu.transpose %581, [1, 0, 2] : vector<4x2x128xf32> -> vector<2x4x128xf32>
    %583 = vector.extract_strided_slice %582 {offsets = [0, 0, 0], sizes = [2, 4, 32], strides = [1, 1, 1]} : vector<2x4x128xf32> to vector<2x4x32xf32>
    %584 = arith.negf %583 : vector<2x4x32xf32>
    %585 = math.exp %584 : vector<2x4x32xf32>
    %cst_110 = arith.constant 1.000000e+00 : f32
    %586 = vector.broadcast %cst_110 : f32 to vector<2x4x32xf32>
    %587 = arith.addf %586, %585 : vector<2x4x32xf32>
    %588 = arith.divf %586, %587 : vector<2x4x32xf32>
    %589 = vector.extract_strided_slice %582 {offsets = [0, 0, 32], sizes = [2, 4, 32], strides = [1, 1, 1]} : vector<2x4x128xf32> to vector<2x4x32xf32>
    %590 = arith.negf %589 : vector<2x4x32xf32>
    %591 = math.exp %590 : vector<2x4x32xf32>
    %cst_111 = arith.constant 1.000000e+00 : f32
    %592 = vector.broadcast %cst_111 : f32 to vector<2x4x32xf32>
    %593 = arith.addf %592, %591 : vector<2x4x32xf32>
    %594 = arith.divf %592, %593 : vector<2x4x32xf32>
    %595 = vector.extract_strided_slice %582 {offsets = [0, 0, 64], sizes = [2, 4, 32], strides = [1, 1, 1]} : vector<2x4x128xf32> to vector<2x4x32xf32>
    %596 = math.tanh %595 : vector<2x4x32xf32>
    %597 = vector.extract_strided_slice %582 {offsets = [0, 0, 96], sizes = [2, 4, 32], strides = [1, 1, 1]} : vector<2x4x128xf32> to vector<2x4x32xf32>
    %598 = arith.negf %597 : vector<2x4x32xf32>
    %599 = math.exp %598 : vector<2x4x32xf32>
    %cst_112 = arith.constant 1.000000e+00 : f32
    %600 = vector.broadcast %cst_112 : f32 to vector<2x4x32xf32>
    %601 = arith.addf %600, %599 : vector<2x4x32xf32>
    %602 = arith.divf %600, %601 : vector<2x4x32xf32>
    %603 = arith.mulf %594, %531 : vector<2x4x32xf32>
    %604 = arith.mulf %588, %596 : vector<2x4x32xf32>
    %605 = arith.addf %603, %604 : vector<2x4x32xf32>
    %606 = math.tanh %605 : vector<2x4x32xf32>
    %607 = arith.mulf %602, %606 : vector<2x4x32xf32>
    "tpu.trace_start"() <{level = 10 : i32, message = "bsh,shg->sbg"}> : () -> ()
    %cst_113 = arith.constant dense<0.000000e+00> : vector<4x2x128xf32>
    %608 = tpu.matmul %607, %16, %cst_113 {dimension_numbers = #tpu.dot_dimension_numbers<[2], [1], [0], [2], [0, 1, 0, 0, 1, 2], [1], [0]>} : vector<2x4x32xf32>, vector<4x32x128xf32>, vector<4x2x128xf32> -> vector<4x2x128xf32>
    %cst_114 = arith.constant dense<0.000000e+00> : vector<4x2x128xf32>
    %609 = tpu.matmul %564, %8, %cst_114 {dimension_numbers = #tpu.dot_dimension_numbers<[2], [1], [0], [2], [0, 1, 0, 0, 1, 2], [1], [0]>} : vector<2x4x32xf32>, vector<4x32x128xf32>, vector<4x2x128xf32> -> vector<4x2x128xf32>
    "tpu.trace_stop"() : () -> ()
    %610 = arith.addf %608, %609 : vector<4x2x128xf32>
    %611 = vector.broadcast %14 : vector<4x1x128xf32> to vector<4x2x128xf32>
    %612 = arith.addf %610, %611 : vector<4x2x128xf32>
    %613 = tpu.transpose %612, [1, 0, 2] : vector<4x2x128xf32> -> vector<2x4x128xf32>
    %614 = vector.extract_strided_slice %613 {offsets = [0, 0, 0], sizes = [2, 4, 32], strides = [1, 1, 1]} : vector<2x4x128xf32> to vector<2x4x32xf32>
    %615 = arith.negf %614 : vector<2x4x32xf32>
    %616 = math.exp %615 : vector<2x4x32xf32>
    %cst_115 = arith.constant 1.000000e+00 : f32
    %617 = vector.broadcast %cst_115 : f32 to vector<2x4x32xf32>
    %618 = arith.addf %617, %616 : vector<2x4x32xf32>
    %619 = arith.divf %617, %618 : vector<2x4x32xf32>
    %620 = vector.extract_strided_slice %613 {offsets = [0, 0, 32], sizes = [2, 4, 32], strides = [1, 1, 1]} : vector<2x4x128xf32> to vector<2x4x32xf32>
    %621 = arith.negf %620 : vector<2x4x32xf32>
    %622 = math.exp %621 : vector<2x4x32xf32>
    %cst_116 = arith.constant 1.000000e+00 : f32
    %623 = vector.broadcast %cst_116 : f32 to vector<2x4x32xf32>
    %624 = arith.addf %623, %622 : vector<2x4x32xf32>
    %625 = arith.divf %623, %624 : vector<2x4x32xf32>
    %626 = vector.extract_strided_slice %613 {offsets = [0, 0, 64], sizes = [2, 4, 32], strides = [1, 1, 1]} : vector<2x4x128xf32> to vector<2x4x32xf32>
    %627 = math.tanh %626 : vector<2x4x32xf32>
    %628 = vector.extract_strided_slice %613 {offsets = [0, 0, 96], sizes = [2, 4, 32], strides = [1, 1, 1]} : vector<2x4x128xf32> to vector<2x4x32xf32>
    %629 = arith.negf %628 : vector<2x4x32xf32>
    %630 = math.exp %629 : vector<2x4x32xf32>
    %cst_117 = arith.constant 1.000000e+00 : f32
    %631 = vector.broadcast %cst_117 : f32 to vector<2x4x32xf32>
    %632 = arith.addf %631, %630 : vector<2x4x32xf32>
    %633 = arith.divf %631, %632 : vector<2x4x32xf32>
    %634 = arith.mulf %625, %562 : vector<2x4x32xf32>
    %635 = arith.mulf %619, %627 : vector<2x4x32xf32>
    %636 = arith.addf %634, %635 : vector<2x4x32xf32>
    %637 = math.tanh %636 : vector<2x4x32xf32>
    %638 = arith.mulf %633, %637 : vector<2x4x32xf32>
    %c0_118 = arith.constant 0 : index
    %c1 = arith.constant 1 : index
    %c0_119 = arith.constant 0 : index
    %c0_120 = arith.constant 0 : index
    %639 = vector.load %arg8[%c0_118, %c1, %c0_119, %c0_120] : memref<2x3x4x32xf32, #tpu.memory_space<vmem>>, vector<2x1x4x32xf32>
    %640 = vector.shape_cast %639 : vector<2x1x4x32xf32> to vector<2x4x32xf32>
    %641 = vector.shape_cast %638 : vector<2x4x32xf32> to vector<2x1x4x32xf32>
    tpu.vector_store %arg8[%c0_118, %c1, %c0_119, %c0_120], %641 {strides = array<i32>} : memref<2x3x4x32xf32, #tpu.memory_space<vmem>>, vector<2x1x4x32xf32>,
    %642 = vector.broadcast %18 : vector<1x4x32xf32> to vector<2x4x32xf32>
    %643 = arith.mulf %638, %642 : vector<2x4x32xf32>
    %cst_121 = arith.constant dense<0.000000e+00> : vector<2x4xf32>
    %644 = vector.multi_reduction <add>, %643, %cst_121 [2] : vector<2x4x32xf32> to vector<2x4xf32>
    %645 = vector.shape_cast %644 : vector<2x4xf32> to vector<2x4x1xf32>
    %646 = vector.broadcast %19 : vector<1x4x1xf32> to vector<2x4x1xf32>
    %647 = arith.addf %645, %646 : vector<2x4x1xf32>
    %648 = tpu.transpose %647, [1, 0, 2] : vector<2x4x1xf32> -> vector<4x2x1xf32>
    %649 = vector.broadcast %648 : vector<4x2x1xf32> to vector<4x2x128xf32>
    %650 = vector.broadcast %17 : vector<4x1x128xf32> to vector<4x2x128xf32>
    %651 = arith.mulf %649, %650 : vector<4x2x128xf32>
    "tpu.trace_start"() <{level = 10 : i32, message = "bsh,shg->sbg"}> : () -> ()
    %cst_122 = arith.constant dense<0.000000e+00> : vector<4x2x128xf32>
    %652 = tpu.matmul %607, %6, %cst_122 {dimension_numbers = #tpu.dot_dimension_numbers<[2], [1], [0], [2], [0, 1, 0, 0, 1, 2], [1], [0]>} : vector<2x4x32xf32>, vector<4x32x128xf32>, vector<4x2x128xf32> -> vector<4x2x128xf32>
    "tpu.trace_stop"() : () -> ()
    %653 = arith.addf %651, %652 : vector<4x2x128xf32>
    %654 = vector.broadcast %11 : vector<4x1x128xf32> to vector<4x2x128xf32>
    %655 = arith.addf %653, %654 : vector<4x2x128xf32>
    %656 = tpu.transpose %655, [1, 0, 2] : vector<4x2x128xf32> -> vector<2x4x128xf32>
    %657 = vector.extract_strided_slice %656 {offsets = [0, 0, 0], sizes = [2, 4, 32], strides = [1, 1, 1]} : vector<2x4x128xf32> to vector<2x4x32xf32>
    %658 = arith.negf %657 : vector<2x4x32xf32>
    %659 = math.exp %658 : vector<2x4x32xf32>
    %cst_123 = arith.constant 1.000000e+00 : f32
    %660 = vector.broadcast %cst_123 : f32 to vector<2x4x32xf32>
    %661 = arith.addf %660, %659 : vector<2x4x32xf32>
    %662 = arith.divf %660, %661 : vector<2x4x32xf32>
    %663 = vector.extract_strided_slice %656 {offsets = [0, 0, 32], sizes = [2, 4, 32], strides = [1, 1, 1]} : vector<2x4x128xf32> to vector<2x4x32xf32>
    %664 = arith.negf %663 : vector<2x4x32xf32>
    %665 = math.exp %664 : vector<2x4x32xf32>
    %cst_124 = arith.constant 1.000000e+00 : f32
    %666 = vector.broadcast %cst_124 : f32 to vector<2x4x32xf32>
    %667 = arith.addf %666, %665 : vector<2x4x32xf32>
    %668 = arith.divf %666, %667 : vector<2x4x32xf32>
    %669 = vector.extract_strided_slice %656 {offsets = [0, 0, 64], sizes = [2, 4, 32], strides = [1, 1, 1]} : vector<2x4x128xf32> to vector<2x4x32xf32>
    %670 = math.tanh %669 : vector<2x4x32xf32>
    %671 = vector.extract_strided_slice %656 {offsets = [0, 0, 96], sizes = [2, 4, 32], strides = [1, 1, 1]} : vector<2x4x128xf32> to vector<2x4x32xf32>
    %672 = arith.negf %671 : vector<2x4x32xf32>
    %673 = math.exp %672 : vector<2x4x32xf32>
    %cst_125 = arith.constant 1.000000e+00 : f32
    %674 = vector.broadcast %cst_125 : f32 to vector<2x4x32xf32>
    %675 = arith.addf %674, %673 : vector<2x4x32xf32>
    %676 = arith.divf %674, %675 : vector<2x4x32xf32>
    %677 = arith.mulf %668, %605 : vector<2x4x32xf32>
    %678 = arith.mulf %662, %670 : vector<2x4x32xf32>
    %679 = arith.addf %677, %678 : vector<2x4x32xf32>
    %680 = math.tanh %679 : vector<2x4x32xf32>
    %681 = arith.mulf %676, %680 : vector<2x4x32xf32>
    "tpu.trace_start"() <{level = 10 : i32, message = "bsh,shg->sbg"}> : () -> ()
    %cst_126 = arith.constant dense<0.000000e+00> : vector<4x2x128xf32>
    %682 = tpu.matmul %681, %16, %cst_126 {dimension_numbers = #tpu.dot_dimension_numbers<[2], [1], [0], [2], [0, 1, 0, 0, 1, 2], [1], [0]>} : vector<2x4x32xf32>, vector<4x32x128xf32>, vector<4x2x128xf32> -> vector<4x2x128xf32>
    %cst_127 = arith.constant dense<0.000000e+00> : vector<4x2x128xf32>
    %683 = tpu.matmul %638, %8, %cst_127 {dimension_numbers = #tpu.dot_dimension_numbers<[2], [1], [0], [2], [0, 1, 0, 0, 1, 2], [1], [0]>} : vector<2x4x32xf32>, vector<4x32x128xf32>, vector<4x2x128xf32> -> vector<4x2x128xf32>
    "tpu.trace_stop"() : () -> ()
    %684 = arith.addf %682, %683 : vector<4x2x128xf32>
    %685 = vector.broadcast %14 : vector<4x1x128xf32> to vector<4x2x128xf32>
    %686 = arith.addf %684, %685 : vector<4x2x128xf32>
    %687 = tpu.transpose %686, [1, 0, 2] : vector<4x2x128xf32> -> vector<2x4x128xf32>
    %688 = vector.extract_strided_slice %687 {offsets = [0, 0, 0], sizes = [2, 4, 32], strides = [1, 1, 1]} : vector<2x4x128xf32> to vector<2x4x32xf32>
    %689 = arith.negf %688 : vector<2x4x32xf32>
    %690 = math.exp %689 : vector<2x4x32xf32>
    %cst_128 = arith.constant 1.000000e+00 : f32
    %691 = vector.broadcast %cst_128 : f32 to vector<2x4x32xf32>
    %692 = arith.addf %691, %690 : vector<2x4x32xf32>
    %693 = arith.divf %691, %692 : vector<2x4x32xf32>
    %694 = vector.extract_strided_slice %687 {offsets = [0, 0, 32], sizes = [2, 4, 32], strides = [1, 1, 1]} : vector<2x4x128xf32> to vector<2x4x32xf32>
    %695 = arith.negf %694 : vector<2x4x32xf32>
    %696 = math.exp %695 : vector<2x4x32xf32>
    %cst_129 = arith.constant 1.000000e+00 : f32
    %697 = vector.broadcast %cst_129 : f32 to vector<2x4x32xf32>
    %698 = arith.addf %697, %696 : vector<2x4x32xf32>
    %699 = arith.divf %697, %698 : vector<2x4x32xf32>
    %700 = vector.extract_strided_slice %687 {offsets = [0, 0, 64], sizes = [2, 4, 32], strides = [1, 1, 1]} : vector<2x4x128xf32> to vector<2x4x32xf32>
    %701 = math.tanh %700 : vector<2x4x32xf32>
    %702 = vector.extract_strided_slice %687 {offsets = [0, 0, 96], sizes = [2, 4, 32], strides = [1, 1, 1]} : vector<2x4x128xf32> to vector<2x4x32xf32>
    %703 = arith.negf %702 : vector<2x4x32xf32>
    %704 = math.exp %703 : vector<2x4x32xf32>
    %cst_130 = arith.constant 1.000000e+00 : f32
    %705 = vector.broadcast %cst_130 : f32 to vector<2x4x32xf32>
    %706 = arith.addf %705, %704 : vector<2x4x32xf32>
    %707 = arith.divf %705, %706 : vector<2x4x32xf32>
    %708 = arith.mulf %699, %636 : vector<2x4x32xf32>
    %709 = arith.mulf %693, %701 : vector<2x4x32xf32>
    %710 = arith.addf %708, %709 : vector<2x4x32xf32>
    %711 = math.tanh %710 : vector<2x4x32xf32>
    %712 = arith.mulf %707, %711 : vector<2x4x32xf32>
    %c0_131 = arith.constant 0 : index
    %c2 = arith.constant 2 : index
    %c0_132 = arith.constant 0 : index
    %c0_133 = arith.constant 0 : index
    %713 = vector.load %arg8[%c0_131, %c2, %c0_132, %c0_133] : memref<2x3x4x32xf32, #tpu.memory_space<vmem>>, vector<2x1x4x32xf32>
    %714 = vector.shape_cast %713 : vector<2x1x4x32xf32> to vector<2x4x32xf32>
    %715 = vector.shape_cast %712 : vector<2x4x32xf32> to vector<2x1x4x32xf32>
    tpu.vector_store %arg8[%c0_131, %c2, %c0_132, %c0_133], %715 {strides = array<i32>} : memref<2x3x4x32xf32, #tpu.memory_space<vmem>>, vector<2x1x4x32xf32>,
    return
  }
  func.func @transform_0(%arg0: i32) -> (i32, i32, i32) {
    %c0_i32 = arith.constant 0 : i32
    %c0_i32_0 = arith.constant 0 : i32
    %c0_i32_1 = arith.constant 0 : i32
    return %c0_i32, %arg0, %c0_i32_0 : i32, i32, i32
  }
  func.func @transform_1(%arg0: i32) -> (i32, i32) {
    %c0_i32 = arith.constant 0 : i32
    %c0_i32_0 = arith.constant 0 : i32
    return %arg0, %c0_i32 : i32, i32
  }
  func.func @transform_2(%arg0: i32) -> (i32, i32, i32, i32) {
    %c0_i32 = arith.constant 0 : i32
    %c0_i32_0 = arith.constant 0 : i32
    %c0_i32_1 = arith.constant 0 : i32
    %c0_i32_2 = arith.constant 0 : i32
    return %arg0, %c0_i32, %c0_i32_0, %c0_i32_1 : i32, i32, i32, i32
  }
  func.func @transform_3(%arg0: i32) -> (i32, i32, i32, i32) {
    %c0_i32 = arith.constant 0 : i32
    %c0_i32_0 = arith.constant 0 : i32
    %c0_i32_1 = arith.constant 0 : i32
    %c0_i32_2 = arith.constant 0 : i32
    return %arg0, %c0_i32, %c0_i32_0, %c0_i32_1 : i32, i32, i32, i32
  }
  func.func @transform_4(%arg0: i32) -> (i32, i32, i32) {
    %c0_i32 = arith.constant 0 : i32
    %c0_i32_0 = arith.constant 0 : i32
    %c0_i32_1 = arith.constant 0 : i32
    return %arg0, %c0_i32, %c0_i32_0 : i32, i32, i32
  }
  func.func @transform_5(%arg0: i32) -> (i32, i32) {
    %c0_i32 = arith.constant 0 : i32
    %c0_i32_0 = arith.constant 0 : i32
    return %arg0, %c0_i32 : i32, i32
  }
  func.func @transform_6(%arg0: i32) -> (i32, i32) {
    %c0_i32 = arith.constant 0 : i32
    %c0_i32_0 = arith.constant 0 : i32
    return %arg0, %c0_i32 : i32, i32
  }
  func.func @transform_7(%arg0: i32) -> (i32, i32, i32, i32) {
    %c0_i32 = arith.constant 0 : i32
    %c0_i32_0 = arith.constant 0 : i32
    %c0_i32_1 = arith.constant 0 : i32
    %c0_i32_2 = arith.constant 0 : i32
    return %c0_i32, %c0_i32_0, %arg0, %c0_i32_1 : i32, i32, i32, i32
  }
}

</mosaic_0001>

<llo_original>
// kernel: tpu_custom_call.1
$region0: #{tpu_custom_call.1}
  #allocation0 [shape = 'u32[]', space=smem, size = 0x4, offset = 0x4, fixed_abs, tag = 'smem constant byte address 0x4 - core index']
  #allocation1 [shape = 'u32[72,128]{1,0:T(1,128)}', space=vmem, size = 0x9000, scoped, tag = 'internal scratch']
  %s0 = inlined_call_operand.vmem [shape: f32[8,4,2], index: 0, kind: input, shape index: {}]
  %s1 = inlined_call_operand.vmem [shape: f32[4,128], index: 1, kind: input, shape index: {}]
  %s2 = inlined_call_operand.hbm [shape: f32[4,1,32,128], index: 2, kind: input, shape index: {}]
  %s3 = inlined_call_operand.hbm [shape: f32[4,2,32,128], index: 3, kind: input, shape index: {}]
  %s4 = inlined_call_operand.vmem [shape: f32[4,2,128], index: 4, kind: input, shape index: {}]
  %s5 = inlined_call_operand.vmem [shape: f32[4,32], index: 5, kind: input, shape index: {}]
  %s6 = inlined_call_operand.vmem [shape: f32[4,1], index: 6, kind: input, shape index: {}]
  %s7 = inlined_call_operand.hbm [shape: f32[2,3,4,32], index: 7, kind: output, shape index: {}]
  %s8 = sld [smem:[#allocation0]]
  $region46: #{tpu_custom_call.1} parent=0
    _
  %s10 = ssub.s32 1, %s8
  %s11 = scalar_select 0, %s10, %s8
  $region1: #{tpu_custom_call.1} parent=0
    #allocation2 [shape = 'u8[65536]{0}', space=vmem, size = 0x10000, scoped, tag = 'input window, operand 2, single buffered']
    #allocation3 [shape = 's32[1]{0}', space=sflag, size = 0x4, scoped, tag = 'scoped memory for tpu_custom_call.1']
    #allocation4 [shape = 's32[1]{0}', space=sflag, size = 0x4, scoped, tag = 'scoped memory for tpu_custom_call.1']
    #allocation5 [shape = 'u8[131072]{0}', space=vmem, size = 0x20000, scoped, tag = 'input window, operand 3, single buffered']
    #allocation6 [shape = 's32[1]{0}', space=sflag, size = 0x4, scoped, tag = 'scoped memory for tpu_custom_call.1']
    #allocation7 [shape = 'u8[12288]{0}', space=vmem, size = 0x3000, scoped, tag = 'output window, operand 0, single buffered']
    %12 = vsyncpa [#allocation3], 0
    %13 = vsyncpa [#allocation6], 0
    %14 = vsyncpa [#allocation4], 0
    // Predicated region
    $region2: #{tpu_custom_call.1} parent=1 // pred_check
      _
    $region3: #{tpu_custom_call.1} parent=1 // pred_check_branch
      %16 = sbr.rel (0) target = $region5
    $region4: #{tpu_custom_call.1} parent=1 // pred_region
      _
    $region5: #{tpu_custom_call.1} parent=1 // pred_fallthru
      _
    // Predicated region
    $region6: #{tpu_custom_call.1} parent=1 // pred_check
      _
    $region7: #{tpu_custom_call.1} parent=1 // pred_check_branch
      %18 = sbr.rel (0) target = $region9
    $region8: #{tpu_custom_call.1} parent=1 // pred_region
      _
    $region9: #{tpu_custom_call.1} parent=1 // pred_fallthru
      _
    // Predicated region
    $region10: #{tpu_custom_call.1} parent=1 // pred_check
      _
    $region11: #{tpu_custom_call.1} parent=1 // pred_check_branch
      %20 = sbr.rel (0) target = $region13
    $region12: #{tpu_custom_call.1} parent=1 // pred_region
      %22 = vsyncadd [#allocation3], 0
      %s23 = sshll.u32 %s2, 4
      %s24 = int_to_ptr.hbm [resolvable:$true] %s23
      %s25 = sshll.u32 [#allocation2], 4
      %s26 = int_to_ptr.vmem [resolvable:$true] %s25
      %31 = dma.hbm_to_vmem [thread:$0]  %s24, 2048, %s26, [#allocation3], 128, 128, 8
    $region13: #{tpu_custom_call.1} parent=1 // pred_fallthru
      _
    // Predicated region
    $region14: #{tpu_custom_call.1} parent=1 // pred_check
      _
    $region15: #{tpu_custom_call.1} parent=1 // pred_check_branch
      %33 = sbr.rel (0) target = $region17
    $region16: #{tpu_custom_call.1} parent=1 // pred_region
      %35 = vsyncadd [#allocation6], 0
      %s36 = sshll.u32 %s3, 4
      %s37 = int_to_ptr.hbm [resolvable:$true] %s36
      %s38 = sshll.u32 [#allocation5], 4
      %s39 = int_to_ptr.vmem [resolvable:$true] %s38
      %44 = dma.hbm_to_vmem [thread:$0]  %s37, 4096, %s39, [#allocation6], 128, 128, 8
    $region17: #{tpu_custom_call.1} parent=1 // pred_fallthru
      _
    // Predicated region
    $region18: #{tpu_custom_call.1} parent=1 // pred_check
      _
    $region19: #{tpu_custom_call.1} parent=1 // pred_check_branch
      %46 = sbr.rel (0) target = $region21
    $region20: #{tpu_custom_call.1} parent=1 // pred_region
      _
    $region21: #{tpu_custom_call.1} parent=1 // pred_fallthru
      _
    // Predicated region
    $region22: #{tpu_custom_call.1} parent=1 // pred_check
      _
    $region23: #{tpu_custom_call.1} parent=1 // pred_check_branch
      %48 = sbr.rel (0) target = $region25
    $region24: #{tpu_custom_call.1} parent=1 // pred_region
      _
    $region25: #{tpu_custom_call.1} parent=1 // pred_fallthru
      _
    // Predicated region
    $region26: #{tpu_custom_call.1} parent=1 // pred_check
      _
    $region27: #{tpu_custom_call.1} parent=1 // pred_check_branch
      %50 = sbr.rel (0) target = $region29
    $region28: #{tpu_custom_call.1} parent=1 // pred_region
      _
    $region29: #{tpu_custom_call.1} parent=1 // pred_fallthru
      _
    // Predicated region
    $region30: #{tpu_custom_call.1} parent=1 // pred_check
      _
    $region31: #{tpu_custom_call.1} parent=1 // pred_check_branch
      %52 = sbr.rel (0) target = $region33
    $region32: #{tpu_custom_call.1} parent=1 // pred_region
      %54 = dma.done [#allocation3], 2048
    $region33: #{tpu_custom_call.1} parent=1 // pred_fallthru
      _
    // Predicated region
    $region34: #{tpu_custom_call.1} parent=1 // pred_check
      _
    $region35: #{tpu_custom_call.1} parent=1 // pred_check_branch
      %56 = sbr.rel (0) target = $region37
    $region36: #{tpu_custom_call.1} parent=1 // pred_region
      %58 = dma.done [#allocation6], 4096
    $region37: #{tpu_custom_call.1} parent=1 // pred_fallthru
      _
    %v59 = vld [vmem:[%s1] sm:$0xf]
    %v60 = vld [vmem:[#allocation5] sm:$0xff]
    %v61 = vld [vmem:[#allocation5 + $0x8] sm:$0xff]
    %v62 = vld [vmem:[#allocation5 + $0x10] sm:$0xff]
    %v63 = vld [vmem:[#allocation5 + $0x18] sm:$0xff]
    %v64 = vld [vmem:[#allocation5 + $0x20] sm:$0xff]
    %v65 = vld [vmem:[#allocation5 + $0x28] sm:$0xff]
    %v66 = vld [vmem:[#allocation5 + $0x30] sm:$0xff]
    %v67 = vld [vmem:[#allocation5 + $0x38] sm:$0xff]
    %v68 = vld [vmem:[#allocation5 + $0x40] sm:$0xff]
    %v69 = vld [vmem:[#allocation5 + $0x48] sm:$0xff]
    %v70 = vld [vmem:[#allocation5 + $0x50] sm:$0xff]
    %v71 = vld [vmem:[#allocation5 + $0x58] sm:$0xff]
    %v72 = vld [vmem:[#allocation5 + $0x60] sm:$0xff]
    %v73 = vld [vmem:[#allocation5 + $0x68] sm:$0xff]
    %v74 = vld [vmem:[#allocation5 + $0x70] sm:$0xff]
    %v75 = vld [vmem:[#allocation5 + $0x78] sm:$0xff]
    %v76 = vld [vmem:[#allocation5 + $0x80] sm:$0xff]
    %v77 = vld [vmem:[#allocation5 + $0x88] sm:$0xff]
    %v78 = vld [vmem:[#allocation5 + $0x90] sm:$0xff]
    %v79 = vld [vmem:[#allocation5 + $0x98] sm:$0xff]
    %v80 = vld [vmem:[#allocation5 + $0xa0] sm:$0xff]
    %v81 = vld [vmem:[#allocation5 + $0xa8] sm:$0xff]
    %v82 = vld [vmem:[#allocation5 + $0xb0] sm:$0xff]
    %v83 = vld [vmem:[#allocation5 + $0xb8] sm:$0xff]
    %v84 = vld [vmem:[#allocation5 + $0xc0] sm:$0xff]
    %v85 = vld [vmem:[#allocation5 + $0xc8] sm:$0xff]
    %v86 = vld [vmem:[#allocation5 + $0xd0] sm:$0xff]
    %v87 = vld [vmem:[#allocation5 + $0xd8] sm:$0xff]
    %v88 = vld [vmem:[#allocation5 + $0xe0] sm:$0xff]
    %v89 = vld [vmem:[#allocation5 + $0xe8] sm:$0xff]
    %v90 = vld [vmem:[#allocation5 + $0xf0] sm:$0xff]
    %v91 = vld [vmem:[#allocation5 + $0xf8] sm:$0xff]
    %v92 = vld [vmem:[%s4] sm:$0x3]
    %v93 = vld [vmem:[%s4 + $0x2] sm:$0x3]
    %v94 = vld [vmem:[%s4 + $0x4] sm:$0x3]
    %v95 = vld [vmem:[%s4 + $0x6] sm:$0x3]
    %v96 = vld [vmem:[%s5] sm:$0xf]
    %v97 = vld [vmem:[%s6] sm:$0xf]
    %v98 = vld [vmem:[#allocation2] sm:$0xff]
    %v99 = vld [vmem:[#allocation2 + $0x8] sm:$0xff]
    %v100 = vld [vmem:[#allocation2 + $0x10] sm:$0xff]
    %v101 = vld [vmem:[#allocation2 + $0x18] sm:$0xff]
    %v102 = vld [vmem:[#allocation2 + $0x20] sm:$0xff]
    %v103 = vld [vmem:[#allocation2 + $0x28] sm:$0xff]
    %v104 = vld [vmem:[#allocation2 + $0x30] sm:$0xff]
    %v105 = vld [vmem:[#allocation2 + $0x38] sm:$0xff]
    %v106 = vld [vmem:[#allocation2 + $0x40] sm:$0xff]
    %v107 = vld [vmem:[#allocation2 + $0x48] sm:$0xff]
    %v108 = vld [vmem:[#allocation2 + $0x50] sm:$0xff]
    %v109 = vld [vmem:[#allocation2 + $0x58] sm:$0xff]
    %v110 = vld [vmem:[#allocation2 + $0x60] sm:$0xff]
    %v111 = vld [vmem:[#allocation2 + $0x68] sm:$0xff]
    %v112 = vld [vmem:[#allocation2 + $0x70] sm:$0xff]
    %v113 = vld [vmem:[#allocation2 + $0x78] sm:$0xff]
    %v115 = vrot.slane %v59, 1
    %v116 = vrot.slane %v59, 2
    %v117 = vrot.slane %v59, 3
    %v118 = vld [vmem:[%s0] sm:$0xf]
    %v119 = vperm.slane %v118, 0
    %v120 = vlaneseq
    %v121 = vshrl.u32 %v120, 7
    %123 = vset.pattern.permute.xlu0 %v121
    %124 = vperm.xlu0 %123, %v119
    %v125 = vpop.permute.xlu0 %124
    %v126 = vperm.slane %v118, 1
    %v127 = vlaneseq
    %v128 = vshrl.u32 %v127, 7
    %130 = vset.pattern.permute.xlu0 %v128
    %131 = vperm.xlu0 %130, %v126
    %v132 = vpop.permute.xlu0 %131
    %v133 = vperm.slane %v118, 2
    %v134 = vlaneseq
    %v135 = vshrl.u32 %v134, 7
    %137 = vset.pattern.permute.xlu0 %v135
    %138 = vperm.xlu0 %137, %v133
    %v139 = vpop.permute.xlu0 %138
    %v140 = vperm.slane %v118, 3
    %v141 = vlaneseq
    %v142 = vshrl.u32 %v141, 7
    %144 = vset.pattern.permute.xlu0 %v142
    %145 = vperm.xlu0 %144, %v140
    %v146 = vpop.permute.xlu0 %145
    %v147 = vperm.slane %v59, 0
    %v148 = vperm.slane %v115, 0
    %v149 = vperm.slane %v116, 0
    %v150 = vperm.slane %v117, 0
    %v155 = vmul.f32 %v125, %v147
    %v156 = vmul.f32 %v132, %v148
    %v157 = vmul.f32 %v139, %v149
    %v158 = vmul.f32 %v146, %v150
    %v160 = vunpack.c.l.s4 1983009808
    %v161 = vunpack.c.0.s8 %v160
    %v162 = vperm.slane 0.0, %v161
    %v163 = vrot.slane %v162, 4
    %vm164 = vcmask 1047556
    %v165 = vsel %vm164, %v163, %v162
    %v166 = vsel %vm164, %v162, %v163
    %v168 = vunpack.c.l.s4 1934713408
    %v169 = vunpack.c.0.s8 %v168
    %v170 = vperm.slane %v165, %v169
    %v172 = vunpack.c.l.s4 1934713408
    %v173 = vunpack.c.0.s8 %v172
    %v174 = vperm.slane %v166, %v173
    %v175 = vrot.slane %v170, 4
    %v176 = vsel %vm164, 0.0, %v175
    %v177 = vrot.slane %v174, 4
    %v178 = vsel %vm164, 0.0, %v177
    %vm179 = vcmask 261120
    %v181 = vsel %vm179, %v170, 0
    %183 = vmatpush.msra.mxu0 0.0
    %184 = vmatpush.msra.mxu0 0.0
    %185 = vmatpush.msra.mxu0 0.0
    %186 = vmatpush.msra.mxu0 0.0
    %187 = vmatpush.msra.mxu0 0.0
    %188 = vmatpush.msra.mxu0 0.0
    %189 = vmatpush.msra.mxu0 0.0
    %190 = vmatpush.msra.mxu0 0.0
    %191 = vmatpush.msra.mxu0 0.0
    %192 = vmatpush.msra.mxu0 0.0
    %193 = vmatpush.msra.mxu0 0.0
    %194 = vmatpush.msra.mxu0 0.0
    %195 = vmatpush.msra.mxu0 %v63
    %196 = vmatpush.msra.mxu0 %v62
    %197 = vmatpush.msra.mxu0 %v61
    %198 = vmatpush.msra.mxu0 %v60
    %199 = vmatmul.f32.gmra.mxu0 %v181
    %v200 = vpop.f32.mrf.mxu0
    %v201 = vadd.f32 0.0, %v200
    %202 = vdwg.mxu0
    %v204 = vsel %vm179, %v176, 0
    %206 = vmatpush.msra.mxu0 0.0
    %207 = vmatpush.msra.mxu0 0.0
    %208 = vmatpush.msra.mxu0 0.0
    %209 = vmatpush.msra.mxu0 0.0
    %210 = vmatpush.msra.mxu0 0.0
    %211 = vmatpush.msra.mxu0 0.0
    %212 = vmatpush.msra.mxu0 0.0
    %213 = vmatpush.msra.mxu0 0.0
    %214 = vmatpush.msra.mxu0 0.0
    %215 = vmatpush.msra.mxu0 0.0
    %216 = vmatpush.msra.mxu0 0.0
    %217 = vmatpush.msra.mxu0 0.0
    %218 = vmatpush.msra.mxu0 %v71
    %219 = vmatpush.msra.mxu0 %v70
    %220 = vmatpush.msra.mxu0 %v69
    %221 = vmatpush.msra.mxu0 %v68
    %222 = vmatmul.f32.gmra.mxu0 %v204
    %v223 = vpop.f32.mrf.mxu0
    %v224 = vadd.f32 0.0, %v223
    %225 = vdwg.mxu0
    %v227 = vsel %vm179, %v174, 0
    %229 = vmatpush.msra.mxu0 0.0
    %230 = vmatpush.msra.mxu0 0.0
    %231 = vmatpush.msra.mxu0 0.0
    %232 = vmatpush.msra.mxu0 0.0
    %233 = vmatpush.msra.mxu0 0.0
    %234 = vmatpush.msra.mxu0 0.0
    %235 = vmatpush.msra.mxu0 0.0
    %236 = vmatpush.msra.mxu0 0.0
    %237 = vmatpush.msra.mxu0 0.0
    %238 = vmatpush.msra.mxu0 0.0
    %239 = vmatpush.msra.mxu0 0.0
    %240 = vmatpush.msra.mxu0 0.0
    %241 = vmatpush.msra.mxu0 %v79
    %242 = vmatpush.msra.mxu0 %v78
    %243 = vmatpush.msra.mxu0 %v77
    %244 = vmatpush.msra.mxu0 %v76
    %245 = vmatmul.f32.gmra.mxu0 %v227
    %v246 = vpop.f32.mrf.mxu0
    %v247 = vadd.f32 0.0, %v246
    %248 = vdwg.mxu0
    %v250 = vsel %vm179, %v178, 0
    %252 = vmatpush.msra.mxu0 0.0
    %253 = vmatpush.msra.mxu0 0.0
    %254 = vmatpush.msra.mxu0 0.0
    %255 = vmatpush.msra.mxu0 0.0
    %256 = vmatpush.msra.mxu0 0.0
    %257 = vmatpush.msra.mxu0 0.0
    %258 = vmatpush.msra.mxu0 0.0
    %259 = vmatpush.msra.mxu0 0.0
    %260 = vmatpush.msra.mxu0 0.0
    %261 = vmatpush.msra.mxu0 0.0
    %262 = vmatpush.msra.mxu0 0.0
    %263 = vmatpush.msra.mxu0 0.0
    %264 = vmatpush.msra.mxu0 %v87
    %265 = vmatpush.msra.mxu0 %v86
    %266 = vmatpush.msra.mxu0 %v85
    %267 = vmatpush.msra.mxu0 %v84
    %268 = vmatmul.f32.gmra.mxu0 %v250
    %v269 = vpop.f32.mrf.mxu0
    %v270 = vadd.f32 0.0, %v269
    %271 = vdwg.mxu0
    %v272 = vadd.f32 %v155, %v201
    %v273 = vadd.f32 %v156, %v224
    %v274 = vadd.f32 %v157, %v247
    %v275 = vadd.f32 %v158, %v270
    %v276 = vperm.slane %v92, 0
    %v277 = vperm.slane %v93, 0
    %v278 = vperm.slane %v94, 0
    %v279 = vperm.slane %v95, 0
    %v280 = vadd.f32 %v272, %v276
    %v281 = vadd.f32 %v273, %v277
    %v282 = vadd.f32 %v274, %v278
    %v283 = vadd.f32 %v275, %v279
    %v284 = vrot.slane %v282, 4
    %v285 = vsel %vm164, %v284, %v280
    %v287 = vunpack.c.l.s4 1983009808
    %v288 = vunpack.c.0.s8 %v287
    %v289 = vperm.slane %v285, %v288
    %v290 = vrot.slane %v283, 4
    %v291 = vsel %vm164, %v290, %v281
    %v293 = vunpack.c.l.s4 1983009808
    %v294 = vunpack.c.0.s8 %v293
    %v295 = vperm.slane %v291, %v294
    %v296 = vrot.slane %v295, 4
    %v297 = vsel %vm164, %v296, %v289
    %v299 = vunpack.c.l.s4 1934713408
    %v300 = vunpack.c.0.s8 %v299
    %v301 = vperm.slane %v297, %v300
    %v302 = vrot.slane %v301, 4
    %v303 = vsel %vm164, 0.0, %v302
    %v304 = vxor.u32 %v301, 2147483648
    %v305 = vxor.u32 %v303, 2147483648
    %v306 = vmul.f32 %v304, 1.442695
    %v307 = vpow.pop %v306
    %v308 = vmul.f32 %v305, 1.442695
    %v309 = vpow.pop %v308
    %v310 = vadd.f32 %v307, 1.0
    %v311 = vadd.f32 %v309, 1.0
    %v312 = vrcp.pop %v310
    %v313 = vmul.f32 %v310, %v312
    %v314 = vsub.f32 1.0, %v313
    %v315 = vmul.f32 %v312, %v314
    %v316 = vadd.f32 %v312, %v315
    %vm317 = vweird.f32 %v310
    %vm318 = vweird.f32 %v312
    %vm319 = vmor %vm317, %vm318
    %v320 = vsel %vm319, %v312, %v316
    %v321 = vand.u32 2147483647, %v310
    %vm322 = vcmp.eq.f32.partialorder %v321, 8.507059e+37
    %v323 = vand.u32 %v310, 2147483648
    %v324 = vor.u32 1.1754944e-38, %v323
    %v325 = vsel %vm322, %v324, %v320
    %v326 = vmul.f32 1.0, %v325
    %v327 = vrcp.pop %v311
    %v328 = vmul.f32 %v311, %v327
    %v329 = vsub.f32 1.0, %v328
    %v330 = vmul.f32 %v327, %v329
    %v331 = vadd.f32 %v327, %v330
    %vm332 = vweird.f32 %v311
    %vm333 = vweird.f32 %v327
    %vm334 = vmor %vm332, %vm333
    %v335 = vsel %vm334, %v327, %v331
    %v336 = vand.u32 2147483647, %v311
    %vm337 = vcmp.eq.f32.partialorder %v336, 8.507059e+37
    %v338 = vand.u32 %v311, 2147483648
    %v339 = vor.u32 1.1754944e-38, %v338
    %v340 = vsel %vm337, %v339, %v335
    %v341 = vmul.f32 1.0, %v340
    %v342 = vtanh.pop %v301
    %v343 = vtanh.pop %v303
    %v344 = vmul.f32 %v326, 0.0
    %v345 = vmul.f32 %v341, 0.0
    %348 = vrot.lane.b32.xlu0 %v342, 64
    %v349 = vpop.permute.xlu0 %348
    %350 = vrot.lane.b32.xlu0 %v343, 64
    %v351 = vpop.permute.xlu0 %350
    %v354 = vmul.f32 %v326, %v349
    %v355 = vmul.f32 %v341, %v351
    %358 = vrot.lane.b32.xlu0 %v354, 32
    %v359 = vpop.permute.xlu0 %358
    %360 = vrot.lane.b32.xlu0 %v355, 32
    %v361 = vpop.permute.xlu0 %360
    %v364 = vadd.f32 %v344, %v359
    %v365 = vadd.f32 %v345, %v361
    %v366 = vtanh.pop %v364
    %v367 = vtanh.pop %v365
    %370 = vrot.lane.b32.xlu0 %v366, 64
    %v371 = vpop.permute.xlu0 %370
    %372 = vrot.lane.b32.xlu0 %v367, 64
    %v373 = vpop.permute.xlu0 %372
    %v376 = vmul.f32 %v326, %v371
    %v377 = vmul.f32 %v341, %v373
    %378 = vmatpush.msra.mxu0 0.0
    %379 = vmatpush.msra.mxu0 0.0
    %380 = vmatpush.msra.mxu0 0.0
    %381 = vmatpush.msra.mxu0 0.0
    %382 = vmatpush.msra.mxu0 0.0
    %383 = vmatpush.msra.mxu0 0.0
    %384 = vmatpush.msra.mxu0 0.0
    %385 = vmatpush.msra.mxu0 0.0
    %386 = vmatpush.msra.mxu0 0.0
    %387 = vmatpush.msra.mxu0 0.0
    %388 = vmatpush.msra.mxu0 0.0
    %389 = vmatpush.msra.mxu0 0.0
    %390 = vmatpush.msra.mxu0 %v67
    %391 = vmatpush.msra.mxu0 %v66
    %392 = vmatpush.msra.mxu0 %v65
    %393 = vmatpush.msra.mxu0 %v64
    %394 = vmatmul.f32.gmra.mxu0 %v181
    %v395 = vpop.f32.mrf.mxu0
    %v396 = vadd.f32 0.0, %v395
    %397 = vdwg.mxu0
    %398 = vmatpush.msra.mxu0 0.0
    %399 = vmatpush.msra.mxu0 0.0
    %400 = vmatpush.msra.mxu0 0.0
    %401 = vmatpush.msra.mxu0 0.0
    %402 = vmatpush.msra.mxu0 0.0
    %403 = vmatpush.msra.mxu0 0.0
    %404 = vmatpush.msra.mxu0 0.0
    %405 = vmatpush.msra.mxu0 0.0
    %406 = vmatpush.msra.mxu0 0.0
    %407 = vmatpush.msra.mxu0 0.0
    %408 = vmatpush.msra.mxu0 0.0
    %409 = vmatpush.msra.mxu0 0.0
    %410 = vmatpush.msra.mxu0 %v75
    %411 = vmatpush.msra.mxu0 %v74
    %412 = vmatpush.msra.mxu0 %v73
    %413 = vmatpush.msra.mxu0 %v72
    %414 = vmatmul.f32.gmra.mxu0 %v204
    %v415 = vpop.f32.mrf.mxu0
    %v416 = vadd.f32 0.0, %v415
    %417 = vdwg.mxu0
    %418 = vmatpush.msra.mxu0 0.0
    %419 = vmatpush.msra.mxu0 0.0
    %420 = vmatpush.msra.mxu0 0.0
    %421 = vmatpush.msra.mxu0 0.0
    %422 = vmatpush.msra.mxu0 0.0
    %423 = vmatpush.msra.mxu0 0.0
    %424 = vmatpush.msra.mxu0 0.0
    %425 = vmatpush.msra.mxu0 0.0
    %426 = vmatpush.msra.mxu0 0.0
    %427 = vmatpush.msra.mxu0 0.0
    %428 = vmatpush.msra.mxu0 0.0
    %429 = vmatpush.msra.mxu0 0.0
    %430 = vmatpush.msra.mxu0 %v83
    %431 = vmatpush.msra.mxu0 %v82
    %432 = vmatpush.msra.mxu0 %v81
    %433 = vmatpush.msra.mxu0 %v80
    %434 = vmatmul.f32.gmra.mxu0 %v227
    %v435 = vpop.f32.mrf.mxu0
    %v436 = vadd.f32 0.0, %v435
    %437 = vdwg.mxu0
    %438 = vmatpush.msra.mxu0 0.0
    %439 = vmatpush.msra.mxu0 0.0
    %440 = vmatpush.msra.mxu0 0.0
    %441 = vmatpush.msra.mxu0 0.0
    %442 = vmatpush.msra.mxu0 0.0
    %443 = vmatpush.msra.mxu0 0.0
    %444 = vmatpush.msra.mxu0 0.0
    %445 = vmatpush.msra.mxu0 0.0
    %446 = vmatpush.msra.mxu0 0.0
    %447 = vmatpush.msra.mxu0 0.0
    %448 = vmatpush.msra.mxu0 0.0
    %449 = vmatpush.msra.mxu0 0.0
    %450 = vmatpush.msra.mxu0 %v91
    %451 = vmatpush.msra.mxu0 %v90
    %452 = vmatpush.msra.mxu0 %v89
    %453 = vmatpush.msra.mxu0 %v88
    %454 = vmatmul.f32.gmra.mxu0 %v250
    %v455 = vpop.f32.mrf.mxu0
    %v456 = vadd.f32 0.0, %v455
    %457 = vdwg.mxu0
    %460 = vrot.lane.b32.xlu0 %v376, 32
    %v461 = vpop.permute.xlu0 %460
    %462 = vrot.lane.b32.xlu0 %v377, 32
    %v463 = vpop.permute.xlu0 %462
    %v466 = vunpack.c.l.s4 1983009808
    %v467 = vunpack.c.0.s8 %v466
    %v468 = vperm.slane %v461, %v467
    %v471 = vunpack.c.l.s4 1983009808
    %v472 = vunpack.c.0.s8 %v471
    %v473 = vperm.slane %v463, %v472
    %v474 = vrot.slane %v473, 4
    %v475 = vsel %vm164, %v474, %v468
    %v476 = vrot.slane %v468, 4
    %v477 = vsel %vm164, %v473, %v476
    %v479 = vunpack.c.l.s4 1934713408
    %v480 = vunpack.c.0.s8 %v479
    %v481 = vperm.slane %v475, %v480
    %v483 = vunpack.c.l.s4 1934713408
    %v484 = vunpack.c.0.s8 %v483
    %v485 = vperm.slane %v477, %v484
    %v486 = vrot.slane %v481, 4
    %v487 = vsel %vm164, 0.0, %v486
    %v488 = vrot.slane %v485, 4
    %v489 = vsel %vm164, 0.0, %v488
    %v491 = vsel %vm179, %v481, 0
    %493 = vmatpush.msra.mxu0 0.0
    %494 = vmatpush.msra.mxu0 0.0
    %495 = vmatpush.msra.mxu0 0.0
    %496 = vmatpush.msra.mxu0 0.0
    %497 = vmatpush.msra.mxu0 0.0
    %498 = vmatpush.msra.mxu0 0.0
    %499 = vmatpush.msra.mxu0 0.0
    %500 = vmatpush.msra.mxu0 0.0
    %501 = vmatpush.msra.mxu0 0.0
    %502 = vmatpush.msra.mxu0 0.0
    %503 = vmatpush.msra.mxu0 0.0
    %504 = vmatpush.msra.mxu0 0.0
    %505 = vmatpush.msra.mxu0 %v101
    %506 = vmatpush.msra.mxu0 %v100
    %507 = vmatpush.msra.mxu0 %v99
    %508 = vmatpush.msra.mxu0 %v98
    %509 = vmatmul.f32.gmra.mxu0 %v491
    %v510 = vpop.f32.mrf.mxu0
    %v511 = vadd.f32 %v396, %v510
    %512 = vdwg.mxu0
    %v514 = vsel %vm179, %v487, 0
    %516 = vmatpush.msra.mxu0 0.0
    %517 = vmatpush.msra.mxu0 0.0
    %518 = vmatpush.msra.mxu0 0.0
    %519 = vmatpush.msra.mxu0 0.0
    %520 = vmatpush.msra.mxu0 0.0
    %521 = vmatpush.msra.mxu0 0.0
    %522 = vmatpush.msra.mxu0 0.0
    %523 = vmatpush.msra.mxu0 0.0
    %524 = vmatpush.msra.mxu0 0.0
    %525 = vmatpush.msra.mxu0 0.0
    %526 = vmatpush.msra.mxu0 0.0
    %527 = vmatpush.msra.mxu0 0.0
    %528 = vmatpush.msra.mxu0 %v105
    %529 = vmatpush.msra.mxu0 %v104
    %530 = vmatpush.msra.mxu0 %v103
    %531 = vmatpush.msra.mxu0 %v102
    %532 = vmatmul.f32.gmra.mxu0 %v514
    %v533 = vpop.f32.mrf.mxu0
    %v534 = vadd.f32 %v416, %v533
    %535 = vdwg.mxu0
    %v537 = vsel %vm179, %v485, 0
    %539 = vmatpush.msra.mxu0 0.0
    %540 = vmatpush.msra.mxu0 0.0
    %541 = vmatpush.msra.mxu0 0.0
    %542 = vmatpush.msra.mxu0 0.0
    %543 = vmatpush.msra.mxu0 0.0
    %544 = vmatpush.msra.mxu0 0.0
    %545 = vmatpush.msra.mxu0 0.0
    %546 = vmatpush.msra.mxu0 0.0
    %547 = vmatpush.msra.mxu0 0.0
    %548 = vmatpush.msra.mxu0 0.0
    %549 = vmatpush.msra.mxu0 0.0
    %550 = vmatpush.msra.mxu0 0.0
    %551 = vmatpush.msra.mxu0 %v109
    %552 = vmatpush.msra.mxu0 %v108
    %553 = vmatpush.msra.mxu0 %v107
    %554 = vmatpush.msra.mxu0 %v106
    %555 = vmatmul.f32.gmra.mxu0 %v537
    %v556 = vpop.f32.mrf.mxu0
    %v557 = vadd.f32 %v436, %v556
    %558 = vdwg.mxu0
    %v560 = vsel %vm179, %v489, 0
    %562 = vmatpush.msra.mxu0 0.0
    %563 = vmatpush.msra.mxu0 0.0
    %564 = vmatpush.msra.mxu0 0.0
    %565 = vmatpush.msra.mxu0 0.0
    %566 = vmatpush.msra.mxu0 0.0
    %567 = vmatpush.msra.mxu0 0.0
    %568 = vmatpush.msra.mxu0 0.0
    %569 = vmatpush.msra.mxu0 0.0
    %570 = vmatpush.msra.mxu0 0.0
    %571 = vmatpush.msra.mxu0 0.0
    %572 = vmatpush.msra.mxu0 0.0
    %573 = vmatpush.msra.mxu0 0.0
    %574 = vmatpush.msra.mxu0 %v113
    %575 = vmatpush.msra.mxu0 %v112
    %576 = vmatpush.msra.mxu0 %v111
    %577 = vmatpush.msra.mxu0 %v110
    %578 = vmatmul.f32.gmra.mxu0 %v560
    %v579 = vpop.f32.mrf.mxu0
    %v580 = vadd.f32 %v456, %v579
    %581 = vdwg.mxu0
    %v582 = vperm.slane %v92, 1
    %v583 = vperm.slane %v93, 1
    %v584 = vperm.slane %v94, 1
    %v585 = vperm.slane %v95, 1
    %v586 = vadd.f32 %v511, %v582
    %v587 = vadd.f32 %v534, %v583
    %v588 = vadd.f32 %v557, %v584
    %v589 = vadd.f32 %v580, %v585
    %v590 = vrot.slane %v588, 4
    %v591 = vsel %vm164, %v590, %v586
    %v593 = vunpack.c.l.s4 1983009808
    %v594 = vunpack.c.0.s8 %v593
    %v595 = vperm.slane %v591, %v594
    %v596 = vrot.slane %v589, 4
    %v597 = vsel %vm164, %v596, %v587
    %v599 = vunpack.c.l.s4 1983009808
    %v600 = vunpack.c.0.s8 %v599
    %v601 = vperm.slane %v597, %v600
    %v602 = vrot.slane %v601, 4
    %v603 = vsel %vm164, %v602, %v595
    %v605 = vunpack.c.l.s4 1934713408
    %v606 = vunpack.c.0.s8 %v605
    %v607 = vperm.slane %v603, %v606
    %v608 = vrot.slane %v607, 4
    %v609 = vsel %vm164, 0.0, %v608
    %v610 = vxor.u32 %v607, 2147483648
    %v611 = vxor.u32 %v609, 2147483648
    %v612 = vmul.f32 %v610, 1.442695
    %v613 = vpow.pop %v612
    %v614 = vmul.f32 %v611, 1.442695
    %v615 = vpow.pop %v614
    %v616 = vadd.f32 %v613, 1.0
    %v617 = vadd.f32 %v615, 1.0
    %v618 = vrcp.pop %v616
    %v619 = vmul.f32 %v616, %v618
    %v620 = vsub.f32 1.0, %v619
    %v621 = vmul.f32 %v618, %v620
    %v622 = vadd.f32 %v618, %v621
    %vm623 = vweird.f32 %v616
    %vm624 = vweird.f32 %v618
    %vm625 = vmor %vm623, %vm624
    %v626 = vsel %vm625, %v618, %v622
    %v627 = vand.u32 2147483647, %v616
    %vm628 = vcmp.eq.f32.partialorder %v627, 8.507059e+37
    %v629 = vand.u32 %v616, 2147483648
    %v630 = vor.u32 1.1754944e-38, %v629
    %v631 = vsel %vm628, %v630, %v626
    %v632 = vmul.f32 1.0, %v631
    %v633 = vrcp.pop %v617
    %v634 = vmul.f32 %v617, %v633
    %v635 = vsub.f32 1.0, %v634
    %v636 = vmul.f32 %v633, %v635
    %v637 = vadd.f32 %v633, %v636
    %vm638 = vweird.f32 %v617
    %vm639 = vweird.f32 %v633
    %vm640 = vmor %vm638, %vm639
    %v641 = vsel %vm640, %v633, %v637
    %v642 = vand.u32 2147483647, %v617
    %vm643 = vcmp.eq.f32.partialorder %v642, 8.507059e+37
    %v644 = vand.u32 %v617, 2147483648
    %v645 = vor.u32 1.1754944e-38, %v644
    %v646 = vsel %vm643, %v645, %v641
    %v647 = vmul.f32 1.0, %v646
    %v648 = vtanh.pop %v607
    %v649 = vtanh.pop %v609
    %v650 = vmul.f32 %v632, 0.0
    %v651 = vmul.f32 %v647, 0.0
    %654 = vrot.lane.b32.xlu0 %v648, 64
    %v655 = vpop.permute.xlu0 %654
    %656 = vrot.lane.b32.xlu0 %v649, 64
    %v657 = vpop.permute.xlu0 %656
    %v660 = vmul.f32 %v632, %v655
    %v661 = vmul.f32 %v647, %v657
    %664 = vrot.lane.b32.xlu0 %v660, 32
    %v665 = vpop.permute.xlu0 %664
    %666 = vrot.lane.b32.xlu0 %v661, 32
    %v667 = vpop.permute.xlu0 %666
    %v670 = vadd.f32 %v650, %v665
    %v671 = vadd.f32 %v651, %v667
    %v672 = vtanh.pop %v670
    %v673 = vtanh.pop %v671
    %676 = vrot.lane.b32.xlu0 %v672, 64
    %v677 = vpop.permute.xlu0 %676
    %678 = vrot.lane.b32.xlu0 %v673, 64
    %v679 = vpop.permute.xlu0 %678
    %v682 = vmul.f32 %v632, %v677
    %v683 = vmul.f32 %v647, %v679
    %s684 = scalar_lea.vmem %s0, 4
    %v685 = vld [vmem:[%s684] sm:$0xf]
    %v686 = vperm.slane %v685, 0
    %v687 = vlaneseq
    %v688 = vshrl.u32 %v687, 7
    %690 = vset.pattern.permute.xlu0 %v688
    %691 = vperm.xlu0 %690, %v686
    %v692 = vpop.permute.xlu0 %691
    %v693 = vperm.slane %v685, 1
    %v694 = vlaneseq
    %v695 = vshrl.u32 %v694, 7
    %697 = vset.pattern.permute.xlu0 %v695
    %698 = vperm.xlu0 %697, %v693
    %v699 = vpop.permute.xlu0 %698
    %v700 = vperm.slane %v685, 2
    %v701 = vlaneseq
    %v702 = vshrl.u32 %v701, 7
    %704 = vset.pattern.permute.xlu0 %v702
    %705 = vperm.xlu0 %704, %v700
    %v706 = vpop.permute.xlu0 %705
    %v707 = vperm.slane %v685, 3
    %v708 = vlaneseq
    %v709 = vshrl.u32 %v708, 7
    %711 = vset.pattern.permute.xlu0 %v709
    %712 = vperm.xlu0 %711, %v707
    %v713 = vpop.permute.xlu0 %712
    %v714 = vmul.f32 %v692, %v147
    %v715 = vmul.f32 %v699, %v148
    %v716 = vmul.f32 %v706, %v149
    %v717 = vmul.f32 %v713, %v150
    %718 = vmatpush.msra.mxu0 0.0
    %719 = vmatpush.msra.mxu0 0.0
    %720 = vmatpush.msra.mxu0 0.0
    %721 = vmatpush.msra.mxu0 0.0
    %722 = vmatpush.msra.mxu0 0.0
    %723 = vmatpush.msra.mxu0 0.0
    %724 = vmatpush.msra.mxu0 0.0
    %725 = vmatpush.msra.mxu0 0.0
    %726 = vmatpush.msra.mxu0 0.0
    %727 = vmatpush.msra.mxu0 0.0
    %728 = vmatpush.msra.mxu0 0.0
    %729 = vmatpush.msra.mxu0 0.0
    %730 = vmatpush.msra.mxu0 %v63
    %731 = vmatpush.msra.mxu0 %v62
    %732 = vmatpush.msra.mxu0 %v61
    %733 = vmatpush.msra.mxu0 %v60
    %734 = vmatmul.f32.gmra.mxu0 %v491
    %v735 = vpop.f32.mrf.mxu0
    %v736 = vadd.f32 0.0, %v735
    %737 = vdwg.mxu0
    %738 = vmatpush.msra.mxu0 0.0
    %739 = vmatpush.msra.mxu0 0.0
    %740 = vmatpush.msra.mxu0 0.0
    %741 = vmatpush.msra.mxu0 0.0
    %742 = vmatpush.msra.mxu0 0.0
    %743 = vmatpush.msra.mxu0 0.0
    %744 = vmatpush.msra.mxu0 0.0
    %745 = vmatpush.msra.mxu0 0.0
    %746 = vmatpush.msra.mxu0 0.0
    %747 = vmatpush.msra.mxu0 0.0
    %748 = vmatpush.msra.mxu0 0.0
    %749 = vmatpush.msra.mxu0 0.0
    %750 = vmatpush.msra.mxu0 %v71
    %751 = vmatpush.msra.mxu0 %v70
    %752 = vmatpush.msra.mxu0 %v69
    %753 = vmatpush.msra.mxu0 %v68
    %754 = vmatmul.f32.gmra.mxu0 %v514
    %v755 = vpop.f32.mrf.mxu0
    %v756 = vadd.f32 0.0, %v755
    %757 = vdwg.mxu0
    %758 = vmatpush.msra.mxu0 0.0
    %759 = vmatpush.msra.mxu0 0.0
    %760 = vmatpush.msra.mxu0 0.0
    %761 = vmatpush.msra.mxu0 0.0
    %762 = vmatpush.msra.mxu0 0.0
    %763 = vmatpush.msra.mxu0 0.0
    %764 = vmatpush.msra.mxu0 0.0
    %765 = vmatpush.msra.mxu0 0.0
    %766 = vmatpush.msra.mxu0 0.0
    %767 = vmatpush.msra.mxu0 0.0
    %768 = vmatpush.msra.mxu0 0.0
    %769 = vmatpush.msra.mxu0 0.0
    %770 = vmatpush.msra.mxu0 %v79
    %771 = vmatpush.msra.mxu0 %v78
    %772 = vmatpush.msra.mxu0 %v77
    %773 = vmatpush.msra.mxu0 %v76
    %774 = vmatmul.f32.gmra.mxu0 %v537
    %v775 = vpop.f32.mrf.mxu0
    %v776 = vadd.f32 0.0, %v775
    %777 = vdwg.mxu0
    %778 = vmatpush.msra.mxu0 0.0
    %779 = vmatpush.msra.mxu0 0.0
    %780 = vmatpush.msra.mxu0 0.0
    %781 = vmatpush.msra.mxu0 0.0
    %782 = vmatpush.msra.mxu0 0.0
    %783 = vmatpush.msra.mxu0 0.0
    %784 = vmatpush.msra.mxu0 0.0
    %785 = vmatpush.msra.mxu0 0.0
    %786 = vmatpush.msra.mxu0 0.0
    %787 = vmatpush.msra.mxu0 0.0
    %788 = vmatpush.msra.mxu0 0.0
    %789 = vmatpush.msra.mxu0 0.0
    %790 = vmatpush.msra.mxu0 %v87
    %791 = vmatpush.msra.mxu0 %v86
    %792 = vmatpush.msra.mxu0 %v85
    %793 = vmatpush.msra.mxu0 %v84
    %794 = vmatmul.f32.gmra.mxu0 %v560
    %v795 = vpop.f32.mrf.mxu0
    %v796 = vadd.f32 0.0, %v795
    %797 = vdwg.mxu0
    %v798 = vadd.f32 %v714, %v736
    %v799 = vadd.f32 %v715, %v756
    %v800 = vadd.f32 %v716, %v776
    %v801 = vadd.f32 %v717, %v796
    %v802 = vadd.f32 %v798, %v276
    %v803 = vadd.f32 %v799, %v277
    %v804 = vadd.f32 %v800, %v278
    %v805 = vadd.f32 %v801, %v279
    %v806 = vrot.slane %v804, 4
    %v807 = vsel %vm164, %v806, %v802
    %v809 = vunpack.c.l.s4 1983009808
    %v810 = vunpack.c.0.s8 %v809
    %v811 = vperm.slane %v807, %v810
    %v812 = vrot.slane %v805, 4
    %v813 = vsel %vm164, %v812, %v803
    %v815 = vunpack.c.l.s4 1983009808
    %v816 = vunpack.c.0.s8 %v815
    %v817 = vperm.slane %v813, %v816
    %v818 = vrot.slane %v817, 4
    %v819 = vsel %vm164, %v818, %v811
    %v821 = vunpack.c.l.s4 1934713408
    %v822 = vunpack.c.0.s8 %v821
    %v823 = vperm.slane %v819, %v822
    %v824 = vrot.slane %v823, 4
    %v825 = vsel %vm164, 0.0, %v824
    %v826 = vxor.u32 %v823, 2147483648
    %v827 = vxor.u32 %v825, 2147483648
    %v828 = vmul.f32 %v826, 1.442695
    %v829 = vpow.pop %v828
    %v830 = vmul.f32 %v827, 1.442695
    %v831 = vpow.pop %v830
    %v832 = vadd.f32 %v829, 1.0
    %v833 = vadd.f32 %v831, 1.0
    %v834 = vrcp.pop %v832
    %v835 = vmul.f32 %v832, %v834
    %v836 = vsub.f32 1.0, %v835
    %v837 = vmul.f32 %v834, %v836
    %v838 = vadd.f32 %v834, %v837
    %vm839 = vweird.f32 %v832
    %vm840 = vweird.f32 %v834
    %vm841 = vmor %vm839, %vm840
    %v842 = vsel %vm841, %v834, %v838
    %v843 = vand.u32 2147483647, %v832
    %vm844 = vcmp.eq.f32.partialorder %v843, 8.507059e+37
    %v845 = vand.u32 %v832, 2147483648
    %v846 = vor.u32 1.1754944e-38, %v845
    %v847 = vsel %vm844, %v846, %v842
    %v848 = vmul.f32 1.0, %v847
    %v849 = vrcp.pop %v833
    %v850 = vmul.f32 %v833, %v849
    %v851 = vsub.f32 1.0, %v850
    %v852 = vmul.f32 %v849, %v851
    %v853 = vadd.f32 %v849, %v852
    %vm854 = vweird.f32 %v833
    %vm855 = vweird.f32 %v849
    %vm856 = vmor %vm854, %vm855
    %v857 = vsel %vm856, %v849, %v853
    %v858 = vand.u32 2147483647, %v833
    %vm859 = vcmp.eq.f32.partialorder %v858, 8.507059e+37
    %v860 = vand.u32 %v833, 2147483648
    %v861 = vor.u32 1.1754944e-38, %v860
    %v862 = vsel %vm859, %v861, %v857
    %v863 = vmul.f32 1.0, %v862
    %v864 = vtanh.pop %v823
    %v865 = vtanh.pop %v825
    %v866 = vmul.f32 %v848, %v364
    %v867 = vmul.f32 %v863, %v365
    %870 = vrot.lane.b32.xlu0 %v864, 64
    %v871 = vpop.permute.xlu0 %870
    %872 = vrot.lane.b32.xlu0 %v865, 64
    %v873 = vpop.permute.xlu0 %872
    %v876 = vmul.f32 %v848, %v871
    %v877 = vmul.f32 %v863, %v873
    %880 = vrot.lane.b32.xlu0 %v876, 32
    %v881 = vpop.permute.xlu0 %880
    %882 = vrot.lane.b32.xlu0 %v877, 32
    %v883 = vpop.permute.xlu0 %882
    %v886 = vadd.f32 %v866, %v881
    %v887 = vadd.f32 %v867, %v883
    %v888 = vtanh.pop %v886
    %v889 = vtanh.pop %v887
    %892 = vrot.lane.b32.xlu0 %v888, 64
    %v893 = vpop.permute.xlu0 %892
    %894 = vrot.lane.b32.xlu0 %v889, 64
    %v895 = vpop.permute.xlu0 %894
    %v898 = vmul.f32 %v848, %v893
    %v899 = vmul.f32 %v863, %v895
    %902 = vrot.lane.b32.xlu0 %v682, 32
    %v903 = vpop.permute.xlu0 %902
    %904 = vrot.lane.b32.xlu0 %v683, 32
    %v905 = vpop.permute.xlu0 %904
    %v908 = vunpack.c.l.s4 1983009808
    %v909 = vunpack.c.0.s8 %v908
    %v910 = vperm.slane %v903, %v909
    %v913 = vunpack.c.l.s4 1983009808
    %v914 = vunpack.c.0.s8 %v913
    %v915 = vperm.slane %v905, %v914
    %v916 = vrot.slane %v915, 4
    %v917 = vsel %vm164, %v916, %v910
    %v918 = vrot.slane %v910, 4
    %v919 = vsel %vm164, %v915, %v918
    %v921 = vunpack.c.l.s4 1934713408
    %v922 = vunpack.c.0.s8 %v921
    %v923 = vperm.slane %v917, %v922
    %v925 = vunpack.c.l.s4 1934713408
    %v926 = vunpack.c.0.s8 %v925
    %v927 = vperm.slane %v919, %v926
    %v928 = vrot.slane %v923, 4
    %v929 = vsel %vm164, 0.0, %v928
    %v930 = vrot.slane %v927, 4
    %v931 = vsel %vm164, 0.0, %v930
    %v933 = vsel %vm179, %v923, 0
    %935 = vmatpush.msra.mxu0 0.0
    %936 = vmatpush.msra.mxu0 0.0
    %937 = vmatpush.msra.mxu0 0.0
    %938 = vmatpush.msra.mxu0 0.0
    %939 = vmatpush.msra.mxu0 0.0
    %940 = vmatpush.msra.mxu0 0.0
    %941 = vmatpush.msra.mxu0 0.0
    %942 = vmatpush.msra.mxu0 0.0
    %943 = vmatpush.msra.mxu0 0.0
    %944 = vmatpush.msra.mxu0 0.0
    %945 = vmatpush.msra.mxu0 0.0
    %946 = vmatpush.msra.mxu0 0.0
    %947 = vmatpush.msra.mxu0 %v67
    %948 = vmatpush.msra.mxu0 %v66
    %949 = vmatpush.msra.mxu0 %v65
    %950 = vmatpush.msra.mxu0 %v64
    %951 = vmatmul.f32.gmra.mxu0 %v933
    %v952 = vpop.f32.mrf.mxu0
    %v953 = vadd.f32 0.0, %v952
    %954 = vdwg.mxu0
    %v956 = vsel %vm179, %v929, 0
    %958 = vmatpush.msra.mxu0 0.0
    %959 = vmatpush.msra.mxu0 0.0
    %960 = vmatpush.msra.mxu0 0.0
    %961 = vmatpush.msra.mxu0 0.0
    %962 = vmatpush.msra.mxu0 0.0
    %963 = vmatpush.msra.mxu0 0.0
    %964 = vmatpush.msra.mxu0 0.0
    %965 = vmatpush.msra.mxu0 0.0
    %966 = vmatpush.msra.mxu0 0.0
    %967 = vmatpush.msra.mxu0 0.0
    %968 = vmatpush.msra.mxu0 0.0
    %969 = vmatpush.msra.mxu0 0.0
    %970 = vmatpush.msra.mxu0 %v75
    %971 = vmatpush.msra.mxu0 %v74
    %972 = vmatpush.msra.mxu0 %v73
    %973 = vmatpush.msra.mxu0 %v72
    %974 = vmatmul.f32.gmra.mxu0 %v956
    %v975 = vpop.f32.mrf.mxu0
    %v976 = vadd.f32 0.0, %v975
    %977 = vdwg.mxu0
    %v979 = vsel %vm179, %v927, 0
    %981 = vmatpush.msra.mxu0 0.0
    %982 = vmatpush.msra.mxu0 0.0
    %983 = vmatpush.msra.mxu0 0.0
    %984 = vmatpush.msra.mxu0 0.0
    %985 = vmatpush.msra.mxu0 0.0
    %986 = vmatpush.msra.mxu0 0.0
    %987 = vmatpush.msra.mxu0 0.0
    %988 = vmatpush.msra.mxu0 0.0
    %989 = vmatpush.msra.mxu0 0.0
    %990 = vmatpush.msra.mxu0 0.0
    %991 = vmatpush.msra.mxu0 0.0
    %992 = vmatpush.msra.mxu0 0.0
    %993 = vmatpush.msra.mxu0 %v83
    %994 = vmatpush.msra.mxu0 %v82
    %995 = vmatpush.msra.mxu0 %v81
    %996 = vmatpush.msra.mxu0 %v80
    %997 = vmatmul.f32.gmra.mxu0 %v979
    %v998 = vpop.f32.mrf.mxu0
    %v999 = vadd.f32 0.0, %v998
    %1000 = vdwg.mxu0
    %v1002 = vsel %vm179, %v931, 0
    %1004 = vmatpush.msra.mxu0 0.0
    %1005 = vmatpush.msra.mxu0 0.0
    %1006 = vmatpush.msra.mxu0 0.0
    %1007 = vmatpush.msra.mxu0 0.0
    %1008 = vmatpush.msra.mxu0 0.0
    %1009 = vmatpush.msra.mxu0 0.0
    %1010 = vmatpush.msra.mxu0 0.0
    %1011 = vmatpush.msra.mxu0 0.0
    %1012 = vmatpush.msra.mxu0 0.0
    %1013 = vmatpush.msra.mxu0 0.0
    %1014 = vmatpush.msra.mxu0 0.0
    %1015 = vmatpush.msra.mxu0 0.0
    %1016 = vmatpush.msra.mxu0 %v91
    %1017 = vmatpush.msra.mxu0 %v90
    %1018 = vmatpush.msra.mxu0 %v89
    %1019 = vmatpush.msra.mxu0 %v88
    %1020 = vmatmul.f32.gmra.mxu0 %v1002
    %v1021 = vpop.f32.mrf.mxu0
    %v1022 = vadd.f32 0.0, %v1021
    %1023 = vdwg.mxu0
    %1026 = vrot.lane.b32.xlu0 %v898, 32
    %v1027 = vpop.permute.xlu0 %1026
    %1028 = vrot.lane.b32.xlu0 %v899, 32
    %v1029 = vpop.permute.xlu0 %1028
    %v1032 = vunpack.c.l.s4 1983009808
    %v1033 = vunpack.c.0.s8 %v1032
    %v1034 = vperm.slane %v1027, %v1033
    %v1037 = vunpack.c.l.s4 1983009808
    %v1038 = vunpack.c.0.s8 %v1037
    %v1039 = vperm.slane %v1029, %v1038
    %v1040 = vrot.slane %v1039, 4
    %v1041 = vsel %vm164, %v1040, %v1034
    %v1042 = vrot.slane %v1034, 4
    %v1043 = vsel %vm164, %v1039, %v1042
    %v1045 = vunpack.c.l.s4 1934713408
    %v1046 = vunpack.c.0.s8 %v1045
    %v1047 = vperm.slane %v1041, %v1046
    %v1049 = vunpack.c.l.s4 1934713408
    %v1050 = vunpack.c.0.s8 %v1049
    %v1051 = vperm.slane %v1043, %v1050
    %v1052 = vrot.slane %v1047, 4
    %v1053 = vsel %vm164, 0.0, %v1052
    %v1054 = vrot.slane %v1051, 4
    %v1055 = vsel %vm164, 0.0, %v1054
    %v1057 = vsel %vm179, %v1047, 0
    %1059 = vmatpush.msra.mxu0 0.0
    %1060 = vmatpush.msra.mxu0 0.0
    %1061 = vmatpush.msra.mxu0 0.0
    %1062 = vmatpush.msra.mxu0 0.0
    %1063 = vmatpush.msra.mxu0 0.0
    %1064 = vmatpush.msra.mxu0 0.0
    %1065 = vmatpush.msra.mxu0 0.0
    %1066 = vmatpush.msra.mxu0 0.0
    %1067 = vmatpush.msra.mxu0 0.0
    %1068 = vmatpush.msra.mxu0 0.0
    %1069 = vmatpush.msra.mxu0 0.0
    %1070 = vmatpush.msra.mxu0 0.0
    %1071 = vmatpush.msra.mxu0 %v101
    %1072 = vmatpush.msra.mxu0 %v100
    %1073 = vmatpush.msra.mxu0 %v99
    %1074 = vmatpush.msra.mxu0 %v98
    %1075 = vmatmul.f32.gmra.mxu0 %v1057
    %v1076 = vpop.f32.mrf.mxu0
    %v1077 = vadd.f32 %v953, %v1076
    %1078 = vdwg.mxu0
    %v1080 = vsel %vm179, %v1053, 0
    %1082 = vmatpush.msra.mxu0 0.0
    %1083 = vmatpush.msra.mxu0 0.0
    %1084 = vmatpush.msra.mxu0 0.0
    %1085 = vmatpush.msra.mxu0 0.0
    %1086 = vmatpush.msra.mxu0 0.0
    %1087 = vmatpush.msra.mxu0 0.0
    %1088 = vmatpush.msra.mxu0 0.0
    %1089 = vmatpush.msra.mxu0 0.0
    %1090 = vmatpush.msra.mxu0 0.0
    %1091 = vmatpush.msra.mxu0 0.0
    %1092 = vmatpush.msra.mxu0 0.0
    %1093 = vmatpush.msra.mxu0 0.0
    %1094 = vmatpush.msra.mxu0 %v105
    %1095 = vmatpush.msra.mxu0 %v104
    %1096 = vmatpush.msra.mxu0 %v103
    %1097 = vmatpush.msra.mxu0 %v102
    %1098 = vmatmul.f32.gmra.mxu0 %v1080
    %v1099 = vpop.f32.mrf.mxu0
    %v1100 = vadd.f32 %v976, %v1099
    %1101 = vdwg.mxu0
    %v1103 = vsel %vm179, %v1051, 0
    %1105 = vmatpush.msra.mxu0 0.0
    %1106 = vmatpush.msra.mxu0 0.0
    %1107 = vmatpush.msra.mxu0 0.0
    %1108 = vmatpush.msra.mxu0 0.0
    %1109 = vmatpush.msra.mxu0 0.0
    %1110 = vmatpush.msra.mxu0 0.0
    %1111 = vmatpush.msra.mxu0 0.0
    %1112 = vmatpush.msra.mxu0 0.0
    %1113 = vmatpush.msra.mxu0 0.0
    %1114 = vmatpush.msra.mxu0 0.0
    %1115 = vmatpush.msra.mxu0 0.0
    %1116 = vmatpush.msra.mxu0 0.0
    %1117 = vmatpush.msra.mxu0 %v109
    %1118 = vmatpush.msra.mxu0 %v108
    %1119 = vmatpush.msra.mxu0 %v107
    %1120 = vmatpush.msra.mxu0 %v106
    %1121 = vmatmul.f32.gmra.mxu0 %v1103
    %v1122 = vpop.f32.mrf.mxu0
    %v1123 = vadd.f32 %v999, %v1122
    %1124 = vdwg.mxu0
    %v1126 = vsel %vm179, %v1055, 0
    %1128 = vmatpush.msra.mxu0 0.0
    %1129 = vmatpush.msra.mxu0 0.0
    %1130 = vmatpush.msra.mxu0 0.0
    %1131 = vmatpush.msra.mxu0 0.0
    %1132 = vmatpush.msra.mxu0 0.0
    %1133 = vmatpush.msra.mxu0 0.0
    %1134 = vmatpush.msra.mxu0 0.0
    %1135 = vmatpush.msra.mxu0 0.0
    %1136 = vmatpush.msra.mxu0 0.0
    %1137 = vmatpush.msra.mxu0 0.0
    %1138 = vmatpush.msra.mxu0 0.0
    %1139 = vmatpush.msra.mxu0 0.0
    %1140 = vmatpush.msra.mxu0 %v113
    %1141 = vmatpush.msra.mxu0 %v112
    %1142 = vmatpush.msra.mxu0 %v111
    %1143 = vmatpush.msra.mxu0 %v110
    %1144 = vmatmul.f32.gmra.mxu0 %v1126
    %v1145 = vpop.f32.mrf.mxu0
    %v1146 = vadd.f32 %v1022, %v1145
    %1147 = vdwg.mxu0
    %v1148 = vadd.f32 %v1077, %v582
    %v1149 = vadd.f32 %v1100, %v583
    %v1150 = vadd.f32 %v1123, %v584
    %v1151 = vadd.f32 %v1146, %v585
    %v1152 = vrot.slane %v1150, 4
    %v1153 = vsel %vm164, %v1152, %v1148
    %v1155 = vunpack.c.l.s4 1983009808
    %v1156 = vunpack.c.0.s8 %v1155
    %v1157 = vperm.slane %v1153, %v1156
    %v1158 = vrot.slane %v1151, 4
    %v1159 = vsel %vm164, %v1158, %v1149
    %v1161 = vunpack.c.l.s4 1983009808
    %v1162 = vunpack.c.0.s8 %v1161
    %v1163 = vperm.slane %v1159, %v1162
    %v1164 = vrot.slane %v1163, 4
    %v1165 = vsel %vm164, %v1164, %v1157
    %v1167 = vunpack.c.l.s4 1934713408
    %v1168 = vunpack.c.0.s8 %v1167
    %v1169 = vperm.slane %v1165, %v1168
    %v1170 = vrot.slane %v1169, 4
    %v1171 = vsel %vm164, 0.0, %v1170
    %v1172 = vxor.u32 %v1169, 2147483648
    %v1173 = vxor.u32 %v1171, 2147483648
    %v1174 = vmul.f32 %v1172, 1.442695
    %v1175 = vpow.pop %v1174
    %v1176 = vmul.f32 %v1173, 1.442695
    %v1177 = vpow.pop %v1176
    %v1178 = vadd.f32 %v1175, 1.0
    %v1179 = vadd.f32 %v1177, 1.0
    %v1180 = vrcp.pop %v1178
    %v1181 = vmul.f32 %v1178, %v1180
    %v1182 = vsub.f32 1.0, %v1181
    %v1183 = vmul.f32 %v1180, %v1182
    %v1184 = vadd.f32 %v1180, %v1183
    %vm1185 = vweird.f32 %v1178
    %vm1186 = vweird.f32 %v1180
    %vm1187 = vmor %vm1185, %vm1186
    %v1188 = vsel %vm1187, %v1180, %v1184
    %v1189 = vand.u32 2147483647, %v1178
    %vm1190 = vcmp.eq.f32.partialorder %v1189, 8.507059e+37
    %v1191 = vand.u32 %v1178, 2147483648
    %v1192 = vor.u32 1.1754944e-38, %v1191
    %v1193 = vsel %vm1190, %v1192, %v1188
    %v1194 = vmul.f32 1.0, %v1193
    %v1195 = vrcp.pop %v1179
    %v1196 = vmul.f32 %v1179, %v1195
    %v1197 = vsub.f32 1.0, %v1196
    %v1198 = vmul.f32 %v1195, %v1197
    %v1199 = vadd.f32 %v1195, %v1198
    %vm1200 = vweird.f32 %v1179
    %vm1201 = vweird.f32 %v1195
    %vm1202 = vmor %vm1200, %vm1201
    %v1203 = vsel %vm1202, %v1195, %v1199
    %v1204 = vand.u32 2147483647, %v1179
    %vm1205 = vcmp.eq.f32.partialorder %v1204, 8.507059e+37
    %v1206 = vand.u32 %v1179, 2147483648
    %v1207 = vor.u32 1.1754944e-38, %v1206
    %v1208 = vsel %vm1205, %v1207, %v1203
    %v1209 = vmul.f32 1.0, %v1208
    %v1210 = vtanh.pop %v1169
    %v1211 = vtanh.pop %v1171
    %v1212 = vmul.f32 %v1194, %v670
    %v1213 = vmul.f32 %v1209, %v671
    %1216 = vrot.lane.b32.xlu0 %v1210, 64
    %v1217 = vpop.permute.xlu0 %1216
    %1218 = vrot.lane.b32.xlu0 %v1211, 64
    %v1219 = vpop.permute.xlu0 %1218
    %v1222 = vmul.f32 %v1194, %v1217
    %v1223 = vmul.f32 %v1209, %v1219
    %1226 = vrot.lane.b32.xlu0 %v1222, 32
    %v1227 = vpop.permute.xlu0 %1226
    %1228 = vrot.lane.b32.xlu0 %v1223, 32
    %v1229 = vpop.permute.xlu0 %1228
    %v1232 = vadd.f32 %v1212, %v1227
    %v1233 = vadd.f32 %v1213, %v1229
    %v1234 = vtanh.pop %v1232
    %v1235 = vtanh.pop %v1233
    %1238 = vrot.lane.b32.xlu0 %v1234, 64
    %v1239 = vpop.permute.xlu0 %1238
    %1240 = vrot.lane.b32.xlu0 %v1235, 64
    %v1241 = vpop.permute.xlu0 %1240
    %v1244 = vmul.f32 %v1194, %v1239
    %v1245 = vmul.f32 %v1209, %v1241
    %s1246 = scalar_lea.vmem %s0, 8
    %v1247 = vld [vmem:[%s1246] sm:$0xf]
    %v1248 = vperm.slane %v1247, 0
    %v1249 = vlaneseq
    %v1250 = vshrl.u32 %v1249, 7
    %1252 = vset.pattern.permute.xlu0 %v1250
    %1253 = vperm.xlu0 %1252, %v1248
    %v1254 = vpop.permute.xlu0 %1253
    %v1255 = vperm.slane %v1247, 1
    %v1256 = vlaneseq
    %v1257 = vshrl.u32 %v1256, 7
    %1259 = vset.pattern.permute.xlu0 %v1257
    %1260 = vperm.xlu0 %1259, %v1255
    %v1261 = vpop.permute.xlu0 %1260
    %v1262 = vperm.slane %v1247, 2
    %v1263 = vlaneseq
    %v1264 = vshrl.u32 %v1263, 7
    %1266 = vset.pattern.permute.xlu0 %v1264
    %1267 = vperm.xlu0 %1266, %v1262
    %v1268 = vpop.permute.xlu0 %1267
    %v1269 = vperm.slane %v1247, 3
    %v1270 = vlaneseq
    %v1271 = vshrl.u32 %v1270, 7
    %1273 = vset.pattern.permute.xlu0 %v1271
    %1274 = vperm.xlu0 %1273, %v1269
    %v1275 = vpop.permute.xlu0 %1274
    %v1276 = vmul.f32 %v1254, %v147
    %v1277 = vmul.f32 %v1261, %v148
    %v1278 = vmul.f32 %v1268, %v149
    %v1279 = vmul.f32 %v1275, %v150
    %1280 = vmatpush.msra.mxu0 0.0
    %1281 = vmatpush.msra.mxu0 0.0
    %1282 = vmatpush.msra.mxu0 0.0
    %1283 = vmatpush.msra.mxu0 0.0
    %1284 = vmatpush.msra.mxu0 0.0
    %1285 = vmatpush.msra.mxu0 0.0
    %1286 = vmatpush.msra.mxu0 0.0
    %1287 = vmatpush.msra.mxu0 0.0
    %1288 = vmatpush.msra.mxu0 0.0
    %1289 = vmatpush.msra.mxu0 0.0
    %1290 = vmatpush.msra.mxu0 0.0
    %1291 = vmatpush.msra.mxu0 0.0
    %1292 = vmatpush.msra.mxu0 %v63
    %1293 = vmatpush.msra.mxu0 %v62
    %1294 = vmatpush.msra.mxu0 %v61
    %1295 = vmatpush.msra.mxu0 %v60
    %1296 = vmatmul.f32.gmra.mxu0 %v1057
    %v1297 = vpop.f32.mrf.mxu0
    %v1298 = vadd.f32 0.0, %v1297
    %1299 = vdwg.mxu0
    %1300 = vmatpush.msra.mxu0 0.0
    %1301 = vmatpush.msra.mxu0 0.0
    %1302 = vmatpush.msra.mxu0 0.0
    %1303 = vmatpush.msra.mxu0 0.0
    %1304 = vmatpush.msra.mxu0 0.0
    %1305 = vmatpush.msra.mxu0 0.0
    %1306 = vmatpush.msra.mxu0 0.0
    %1307 = vmatpush.msra.mxu0 0.0
    %1308 = vmatpush.msra.mxu0 0.0
    %1309 = vmatpush.msra.mxu0 0.0
    %1310 = vmatpush.msra.mxu0 0.0
    %1311 = vmatpush.msra.mxu0 0.0
    %1312 = vmatpush.msra.mxu0 %v71
    %1313 = vmatpush.msra.mxu0 %v70
    %1314 = vmatpush.msra.mxu0 %v69
    %1315 = vmatpush.msra.mxu0 %v68
    %1316 = vmatmul.f32.gmra.mxu0 %v1080
    %v1317 = vpop.f32.mrf.mxu0
    %v1318 = vadd.f32 0.0, %v1317
    %1319 = vdwg.mxu0
    %1320 = vmatpush.msra.mxu0 0.0
    %1321 = vmatpush.msra.mxu0 0.0
    %1322 = vmatpush.msra.mxu0 0.0
    %1323 = vmatpush.msra.mxu0 0.0
    %1324 = vmatpush.msra.mxu0 0.0
    %1325 = vmatpush.msra.mxu0 0.0
    %1326 = vmatpush.msra.mxu0 0.0
    %1327 = vmatpush.msra.mxu0 0.0
    %1328 = vmatpush.msra.mxu0 0.0
    %1329 = vmatpush.msra.mxu0 0.0
    %1330 = vmatpush.msra.mxu0 0.0
    %1331 = vmatpush.msra.mxu0 0.0
    %1332 = vmatpush.msra.mxu0 %v79
    %1333 = vmatpush.msra.mxu0 %v78
    %1334 = vmatpush.msra.mxu0 %v77
    %1335 = vmatpush.msra.mxu0 %v76
    %1336 = vmatmul.f32.gmra.mxu0 %v1103
    %v1337 = vpop.f32.mrf.mxu0
    %v1338 = vadd.f32 0.0, %v1337
    %1339 = vdwg.mxu0
    %1340 = vmatpush.msra.mxu0 0.0
    %1341 = vmatpush.msra.mxu0 0.0
    %1342 = vmatpush.msra.mxu0 0.0
    %1343 = vmatpush.msra.mxu0 0.0
    %1344 = vmatpush.msra.mxu0 0.0
    %1345 = vmatpush.msra.mxu0 0.0
    %1346 = vmatpush.msra.mxu0 0.0
    %1347 = vmatpush.msra.mxu0 0.0
    %1348 = vmatpush.msra.mxu0 0.0
    %1349 = vmatpush.msra.mxu0 0.0
    %1350 = vmatpush.msra.mxu0 0.0
    %1351 = vmatpush.msra.mxu0 0.0
    %1352 = vmatpush.msra.mxu0 %v87
    %1353 = vmatpush.msra.mxu0 %v86
    %1354 = vmatpush.msra.mxu0 %v85
    %1355 = vmatpush.msra.mxu0 %v84
    %1356 = vmatmul.f32.gmra.mxu0 %v1126
    %v1357 = vpop.f32.mrf.mxu0
    %v1358 = vadd.f32 0.0, %v1357
    %1359 = vdwg.mxu0
    %v1360 = vadd.f32 %v1276, %v1298
    %v1361 = vadd.f32 %v1277, %v1318
    %v1362 = vadd.f32 %v1278, %v1338
    %v1363 = vadd.f32 %v1279, %v1358
    %v1364 = vadd.f32 %v1360, %v276
    %v1365 = vadd.f32 %v1361, %v277
    %v1366 = vadd.f32 %v1362, %v278
    %v1367 = vadd.f32 %v1363, %v279
    %v1368 = vrot.slane %v1366, 4
    %v1369 = vsel %vm164, %v1368, %v1364
    %v1371 = vunpack.c.l.s4 1983009808
    %v1372 = vunpack.c.0.s8 %v1371
    %v1373 = vperm.slane %v1369, %v1372
    %v1374 = vrot.slane %v1367, 4
    %v1375 = vsel %vm164, %v1374, %v1365
    %v1377 = vunpack.c.l.s4 1983009808
    %v1378 = vunpack.c.0.s8 %v1377
    %v1379 = vperm.slane %v1375, %v1378
    %v1380 = vrot.slane %v1379, 4
    %v1381 = vsel %vm164, %v1380, %v1373
    %v1383 = vunpack.c.l.s4 1934713408
    %v1384 = vunpack.c.0.s8 %v1383
    %v1385 = vperm.slane %v1381, %v1384
    %v1386 = vrot.slane %v1385, 4
    %v1387 = vsel %vm164, 0.0, %v1386
    %v1388 = vxor.u32 %v1385, 2147483648
    %v1389 = vxor.u32 %v1387, 2147483648
    %v1390 = vmul.f32 %v1388, 1.442695
    %v1391 = vpow.pop %v1390
    %v1392 = vmul.f32 %v1389, 1.442695
    %v1393 = vpow.pop %v1392
    %v1394 = vadd.f32 %v1391, 1.0
    %v1395 = vadd.f32 %v1393, 1.0
    %v1396 = vrcp.pop %v1394
    %v1397 = vmul.f32 %v1394, %v1396
    %v1398 = vsub.f32 1.0, %v1397
    %v1399 = vmul.f32 %v1396, %v1398
    %v1400 = vadd.f32 %v1396, %v1399
    %vm1401 = vweird.f32 %v1394
    %vm1402 = vweird.f32 %v1396
    %vm1403 = vmor %vm1401, %vm1402
    %v1404 = vsel %vm1403, %v1396, %v1400
    %v1405 = vand.u32 2147483647, %v1394
    %vm1406 = vcmp.eq.f32.partialorder %v1405, 8.507059e+37
    %v1407 = vand.u32 %v1394, 2147483648
    %v1408 = vor.u32 1.1754944e-38, %v1407
    %v1409 = vsel %vm1406, %v1408, %v1404
    %v1410 = vmul.f32 1.0, %v1409
    %v1411 = vrcp.pop %v1395
    %v1412 = vmul.f32 %v1395, %v1411
    %v1413 = vsub.f32 1.0, %v1412
    %v1414 = vmul.f32 %v1411, %v1413
    %v1415 = vadd.f32 %v1411, %v1414
    %vm1416 = vweird.f32 %v1395
    %vm1417 = vweird.f32 %v1411
    %vm1418 = vmor %vm1416, %vm1417
    %v1419 = vsel %vm1418, %v1411, %v1415
    %v1420 = vand.u32 2147483647, %v1395
    %vm1421 = vcmp.eq.f32.partialorder %v1420, 8.507059e+37
    %v1422 = vand.u32 %v1395, 2147483648
    %v1423 = vor.u32 1.1754944e-38, %v1422
    %v1424 = vsel %vm1421, %v1423, %v1419
    %v1425 = vmul.f32 1.0, %v1424
    %v1426 = vtanh.pop %v1385
    %v1427 = vtanh.pop %v1387
    %v1428 = vmul.f32 %v1410, %v886
    %v1429 = vmul.f32 %v1425, %v887
    %1432 = vrot.lane.b32.xlu0 %v1426, 64
    %v1433 = vpop.permute.xlu0 %1432
    %1434 = vrot.lane.b32.xlu0 %v1427, 64
    %v1435 = vpop.permute.xlu0 %1434
    %v1438 = vmul.f32 %v1410, %v1433
    %v1439 = vmul.f32 %v1425, %v1435
    %1442 = vrot.lane.b32.xlu0 %v1438, 32
    %v1443 = vpop.permute.xlu0 %1442
    %1444 = vrot.lane.b32.xlu0 %v1439, 32
    %v1445 = vpop.permute.xlu0 %1444
    %v1448 = vadd.f32 %v1428, %v1443
    %v1449 = vadd.f32 %v1429, %v1445
    %v1450 = vtanh.pop %v1448
    %v1451 = vtanh.pop %v1449
    %1454 = vrot.lane.b32.xlu0 %v1450, 64
    %v1455 = vpop.permute.xlu0 %1454
    %1456 = vrot.lane.b32.xlu0 %v1451, 64
    %v1457 = vpop.permute.xlu0 %1456
    %v1460 = vmul.f32 %v1410, %v1455
    %v1461 = vmul.f32 %v1425, %v1457
    %1464 = vrot.lane.b32.xlu0 %v1244, 32
    %v1465 = vpop.permute.xlu0 %1464
    %1466 = vrot.lane.b32.xlu0 %v1245, 32
    %v1467 = vpop.permute.xlu0 %1466
    %v1470 = vunpack.c.l.s4 1983009808
    %v1471 = vunpack.c.0.s8 %v1470
    %v1472 = vperm.slane %v1465, %v1471
    %v1475 = vunpack.c.l.s4 1983009808
    %v1476 = vunpack.c.0.s8 %v1475
    %v1477 = vperm.slane %v1467, %v1476
    %v1478 = vrot.slane %v1477, 4
    %v1479 = vsel %vm164, %v1478, %v1472
    %v1480 = vrot.slane %v1472, 4
    %v1481 = vsel %vm164, %v1477, %v1480
    %v1483 = vunpack.c.l.s4 1934713408
    %v1484 = vunpack.c.0.s8 %v1483
    %v1485 = vperm.slane %v1479, %v1484
    %v1487 = vunpack.c.l.s4 1934713408
    %v1488 = vunpack.c.0.s8 %v1487
    %v1489 = vperm.slane %v1481, %v1488
    %v1490 = vrot.slane %v1485, 4
    %v1491 = vsel %vm164, 0.0, %v1490
    %v1492 = vrot.slane %v1489, 4
    %v1493 = vsel %vm164, 0.0, %v1492
    %v1495 = vsel %vm179, %v1485, 0
    %1497 = vmatpush.msra.mxu0 0.0
    %1498 = vmatpush.msra.mxu0 0.0
    %1499 = vmatpush.msra.mxu0 0.0
    %1500 = vmatpush.msra.mxu0 0.0
    %1501 = vmatpush.msra.mxu0 0.0
    %1502 = vmatpush.msra.mxu0 0.0
    %1503 = vmatpush.msra.mxu0 0.0
    %1504 = vmatpush.msra.mxu0 0.0
    %1505 = vmatpush.msra.mxu0 0.0
    %1506 = vmatpush.msra.mxu0 0.0
    %1507 = vmatpush.msra.mxu0 0.0
    %1508 = vmatpush.msra.mxu0 0.0
    %1509 = vmatpush.msra.mxu0 %v67
    %1510 = vmatpush.msra.mxu0 %v66
    %1511 = vmatpush.msra.mxu0 %v65
    %1512 = vmatpush.msra.mxu0 %v64
    %1513 = vmatmul.f32.gmra.mxu0 %v1495
    %v1514 = vpop.f32.mrf.mxu0
    %v1515 = vadd.f32 0.0, %v1514
    %1516 = vdwg.mxu0
    %v1518 = vsel %vm179, %v1491, 0
    %1520 = vmatpush.msra.mxu0 0.0
    %1521 = vmatpush.msra.mxu0 0.0
    %1522 = vmatpush.msra.mxu0 0.0
    %1523 = vmatpush.msra.mxu0 0.0
    %1524 = vmatpush.msra.mxu0 0.0
    %1525 = vmatpush.msra.mxu0 0.0
    %1526 = vmatpush.msra.mxu0 0.0
    %1527 = vmatpush.msra.mxu0 0.0
    %1528 = vmatpush.msra.mxu0 0.0
    %1529 = vmatpush.msra.mxu0 0.0
    %1530 = vmatpush.msra.mxu0 0.0
    %1531 = vmatpush.msra.mxu0 0.0
    %1532 = vmatpush.msra.mxu0 %v75
    %1533 = vmatpush.msra.mxu0 %v74
    %1534 = vmatpush.msra.mxu0 %v73
    %1535 = vmatpush.msra.mxu0 %v72
    %1536 = vmatmul.f32.gmra.mxu0 %v1518
    %v1537 = vpop.f32.mrf.mxu0
    %v1538 = vadd.f32 0.0, %v1537
    %1539 = vdwg.mxu0
    %v1541 = vsel %vm179, %v1489, 0
    %1543 = vmatpush.msra.mxu0 0.0
    %1544 = vmatpush.msra.mxu0 0.0
    %1545 = vmatpush.msra.mxu0 0.0
    %1546 = vmatpush.msra.mxu0 0.0
    %1547 = vmatpush.msra.mxu0 0.0
    %1548 = vmatpush.msra.mxu0 0.0
    %1549 = vmatpush.msra.mxu0 0.0
    %1550 = vmatpush.msra.mxu0 0.0
    %1551 = vmatpush.msra.mxu0 0.0
    %1552 = vmatpush.msra.mxu0 0.0
    %1553 = vmatpush.msra.mxu0 0.0
    %1554 = vmatpush.msra.mxu0 0.0
    %1555 = vmatpush.msra.mxu0 %v83
    %1556 = vmatpush.msra.mxu0 %v82
    %1557 = vmatpush.msra.mxu0 %v81
    %1558 = vmatpush.msra.mxu0 %v80
    %1559 = vmatmul.f32.gmra.mxu0 %v1541
    %v1560 = vpop.f32.mrf.mxu0
    %v1561 = vadd.f32 0.0, %v1560
    %1562 = vdwg.mxu0
    %v1564 = vsel %vm179, %v1493, 0
    %1566 = vmatpush.msra.mxu0 0.0
    %1567 = vmatpush.msra.mxu0 0.0
    %1568 = vmatpush.msra.mxu0 0.0
    %1569 = vmatpush.msra.mxu0 0.0
    %1570 = vmatpush.msra.mxu0 0.0
    %1571 = vmatpush.msra.mxu0 0.0
    %1572 = vmatpush.msra.mxu0 0.0
    %1573 = vmatpush.msra.mxu0 0.0
    %1574 = vmatpush.msra.mxu0 0.0
    %1575 = vmatpush.msra.mxu0 0.0
    %1576 = vmatpush.msra.mxu0 0.0
    %1577 = vmatpush.msra.mxu0 0.0
    %1578 = vmatpush.msra.mxu0 %v91
    %1579 = vmatpush.msra.mxu0 %v90
    %1580 = vmatpush.msra.mxu0 %v89
    %1581 = vmatpush.msra.mxu0 %v88
    %1582 = vmatmul.f32.gmra.mxu0 %v1564
    %v1583 = vpop.f32.mrf.mxu0
    %v1584 = vadd.f32 0.0, %v1583
    %1585 = vdwg.mxu0
    %1588 = vrot.lane.b32.xlu0 %v1460, 32
    %v1589 = vpop.permute.xlu0 %1588
    %1590 = vrot.lane.b32.xlu0 %v1461, 32
    %v1591 = vpop.permute.xlu0 %1590
    %v1594 = vunpack.c.l.s4 1983009808
    %v1595 = vunpack.c.0.s8 %v1594
    %v1596 = vperm.slane %v1589, %v1595
    %v1599 = vunpack.c.l.s4 1983009808
    %v1600 = vunpack.c.0.s8 %v1599
    %v1601 = vperm.slane %v1591, %v1600
    %v1602 = vrot.slane %v1601, 4
    %v1603 = vsel %vm164, %v1602, %v1596
    %v1604 = vrot.slane %v1596, 4
    %v1605 = vsel %vm164, %v1601, %v1604
    %v1607 = vunpack.c.l.s4 1934713408
    %v1608 = vunpack.c.0.s8 %v1607
    %v1609 = vperm.slane %v1603, %v1608
    %v1611 = vunpack.c.l.s4 1934713408
    %v1612 = vunpack.c.0.s8 %v1611
    %v1613 = vperm.slane %v1605, %v1612
    %v1614 = vrot.slane %v1609, 4
    %v1615 = vsel %vm164, 0.0, %v1614
    %v1616 = vrot.slane %v1613, 4
    %v1617 = vsel %vm164, 0.0, %v1616
    %v1619 = vsel %vm179, %v1609, 0
    %1621 = vmatpush.msra.mxu0 0.0
    %1622 = vmatpush.msra.mxu0 0.0
    %1623 = vmatpush.msra.mxu0 0.0
    %1624 = vmatpush.msra.mxu0 0.0
    %1625 = vmatpush.msra.mxu0 0.0
    %1626 = vmatpush.msra.mxu0 0.0
    %1627 = vmatpush.msra.mxu0 0.0
    %1628 = vmatpush.msra.mxu0 0.0
    %1629 = vmatpush.msra.mxu0 0.0
    %1630 = vmatpush.msra.mxu0 0.0
    %1631 = vmatpush.msra.mxu0 0.0
    %1632 = vmatpush.msra.mxu0 0.0
    %1633 = vmatpush.msra.mxu0 %v101
    %1634 = vmatpush.msra.mxu0 %v100
    %1635 = vmatpush.msra.mxu0 %v99
    %1636 = vmatpush.msra.mxu0 %v98
    %1637 = vmatmul.f32.gmra.mxu0 %v1619
    %v1638 = vpop.f32.mrf.mxu0
    %v1639 = vadd.f32 %v1515, %v1638
    %1640 = vdwg.mxu0
    %v1642 = vsel %vm179, %v1615, 0
    %1644 = vmatpush.msra.mxu0 0.0
    %1645 = vmatpush.msra.mxu0 0.0
    %1646 = vmatpush.msra.mxu0 0.0
    %1647 = vmatpush.msra.mxu0 0.0
    %1648 = vmatpush.msra.mxu0 0.0
    %1649 = vmatpush.msra.mxu0 0.0
    %1650 = vmatpush.msra.mxu0 0.0
    %1651 = vmatpush.msra.mxu0 0.0
    %1652 = vmatpush.msra.mxu0 0.0
    %1653 = vmatpush.msra.mxu0 0.0
    %1654 = vmatpush.msra.mxu0 0.0
    %1655 = vmatpush.msra.mxu0 0.0
    %1656 = vmatpush.msra.mxu0 %v105
    %1657 = vmatpush.msra.mxu0 %v104
    %1658 = vmatpush.msra.mxu0 %v103
    %1659 = vmatpush.msra.mxu0 %v102
    %1660 = vmatmul.f32.gmra.mxu0 %v1642
    %v1661 = vpop.f32.mrf.mxu0
    %v1662 = vadd.f32 %v1538, %v1661
    %1663 = vdwg.mxu0
    %v1665 = vsel %vm179, %v1613, 0
    %1667 = vmatpush.msra.mxu0 0.0
    %1668 = vmatpush.msra.mxu0 0.0
    %1669 = vmatpush.msra.mxu0 0.0
    %1670 = vmatpush.msra.mxu0 0.0
    %1671 = vmatpush.msra.mxu0 0.0
    %1672 = vmatpush.msra.mxu0 0.0
    %1673 = vmatpush.msra.mxu0 0.0
    %1674 = vmatpush.msra.mxu0 0.0
    %1675 = vmatpush.msra.mxu0 0.0
    %1676 = vmatpush.msra.mxu0 0.0
    %1677 = vmatpush.msra.mxu0 0.0
    %1678 = vmatpush.msra.mxu0 0.0
    %1679 = vmatpush.msra.mxu0 %v109
    %1680 = vmatpush.msra.mxu0 %v108
    %1681 = vmatpush.msra.mxu0 %v107
    %1682 = vmatpush.msra.mxu0 %v106
    %1683 = vmatmul.f32.gmra.mxu0 %v1665
    %v1684 = vpop.f32.mrf.mxu0
    %v1685 = vadd.f32 %v1561, %v1684
    %1686 = vdwg.mxu0
    %v1688 = vsel %vm179, %v1617, 0
    %1690 = vmatpush.msra.mxu0 0.0
    %1691 = vmatpush.msra.mxu0 0.0
    %1692 = vmatpush.msra.mxu0 0.0
    %1693 = vmatpush.msra.mxu0 0.0
    %1694 = vmatpush.msra.mxu0 0.0
    %1695 = vmatpush.msra.mxu0 0.0
    %1696 = vmatpush.msra.mxu0 0.0
    %1697 = vmatpush.msra.mxu0 0.0
    %1698 = vmatpush.msra.mxu0 0.0
    %1699 = vmatpush.msra.mxu0 0.0
    %1700 = vmatpush.msra.mxu0 0.0
    %1701 = vmatpush.msra.mxu0 0.0
    %1702 = vmatpush.msra.mxu0 %v113
    %1703 = vmatpush.msra.mxu0 %v112
    %1704 = vmatpush.msra.mxu0 %v111
    %1705 = vmatpush.msra.mxu0 %v110
    %1706 = vmatmul.f32.gmra.mxu0 %v1688
    %v1707 = vpop.f32.mrf.mxu0
    %v1708 = vadd.f32 %v1584, %v1707
    %1709 = vdwg.mxu0
    %v1710 = vadd.f32 %v1639, %v582
    %v1711 = vadd.f32 %v1662, %v583
    %v1712 = vadd.f32 %v1685, %v584
    %v1713 = vadd.f32 %v1708, %v585
    %v1714 = vrot.slane %v1712, 4
    %v1715 = vsel %vm164, %v1714, %v1710
    %v1717 = vunpack.c.l.s4 1983009808
    %v1718 = vunpack.c.0.s8 %v1717
    %v1719 = vperm.slane %v1715, %v1718
    %v1720 = vrot.slane %v1713, 4
    %v1721 = vsel %vm164, %v1720, %v1711
    %v1723 = vunpack.c.l.s4 1983009808
    %v1724 = vunpack.c.0.s8 %v1723
    %v1725 = vperm.slane %v1721, %v1724
    %v1726 = vrot.slane %v1725, 4
    %v1727 = vsel %vm164, %v1726, %v1719
    %v1729 = vunpack.c.l.s4 1934713408
    %v1730 = vunpack.c.0.s8 %v1729
    %v1731 = vperm.slane %v1727, %v1730
    %v1732 = vrot.slane %v1731, 4
    %v1733 = vsel %vm164, 0.0, %v1732
    %v1734 = vxor.u32 %v1731, 2147483648
    %v1735 = vxor.u32 %v1733, 2147483648
    %v1736 = vmul.f32 %v1734, 1.442695
    %v1737 = vpow.pop %v1736
    %v1738 = vmul.f32 %v1735, 1.442695
    %v1739 = vpow.pop %v1738
    %v1740 = vadd.f32 %v1737, 1.0
    %v1741 = vadd.f32 %v1739, 1.0
    %v1742 = vrcp.pop %v1740
    %v1743 = vmul.f32 %v1740, %v1742
    %v1744 = vsub.f32 1.0, %v1743
    %v1745 = vmul.f32 %v1742, %v1744
    %v1746 = vadd.f32 %v1742, %v1745
    %vm1747 = vweird.f32 %v1740
    %vm1748 = vweird.f32 %v1742
    %vm1749 = vmor %vm1747, %vm1748
    %v1750 = vsel %vm1749, %v1742, %v1746
    %v1751 = vand.u32 2147483647, %v1740
    %vm1752 = vcmp.eq.f32.partialorder %v1751, 8.507059e+37
    %v1753 = vand.u32 %v1740, 2147483648
    %v1754 = vor.u32 1.1754944e-38, %v1753
    %v1755 = vsel %vm1752, %v1754, %v1750
    %v1756 = vmul.f32 1.0, %v1755
    %v1757 = vrcp.pop %v1741
    %v1758 = vmul.f32 %v1741, %v1757
    %v1759 = vsub.f32 1.0, %v1758
    %v1760 = vmul.f32 %v1757, %v1759
    %v1761 = vadd.f32 %v1757, %v1760
    %vm1762 = vweird.f32 %v1741
    %vm1763 = vweird.f32 %v1757
    %vm1764 = vmor %vm1762, %vm1763
    %v1765 = vsel %vm1764, %v1757, %v1761
    %v1766 = vand.u32 2147483647, %v1741
    %vm1767 = vcmp.eq.f32.partialorder %v1766, 8.507059e+37
    %v1768 = vand.u32 %v1741, 2147483648
    %v1769 = vor.u32 1.1754944e-38, %v1768
    %v1770 = vsel %vm1767, %v1769, %v1765
    %v1771 = vmul.f32 1.0, %v1770
    %v1772 = vtanh.pop %v1731
    %v1773 = vtanh.pop %v1733
    %v1774 = vmul.f32 %v1756, %v1232
    %v1775 = vmul.f32 %v1771, %v1233
    %1778 = vrot.lane.b32.xlu0 %v1772, 64
    %v1779 = vpop.permute.xlu0 %1778
    %1780 = vrot.lane.b32.xlu0 %v1773, 64
    %v1781 = vpop.permute.xlu0 %1780
    %v1784 = vmul.f32 %v1756, %v1779
    %v1785 = vmul.f32 %v1771, %v1781
    %1788 = vrot.lane.b32.xlu0 %v1784, 32
    %v1789 = vpop.permute.xlu0 %1788
    %1790 = vrot.lane.b32.xlu0 %v1785, 32
    %v1791 = vpop.permute.xlu0 %1790
    %v1794 = vadd.f32 %v1774, %v1789
    %v1795 = vadd.f32 %v1775, %v1791
    %v1796 = vtanh.pop %v1794
    %v1797 = vtanh.pop %v1795
    %1800 = vrot.lane.b32.xlu0 %v1796, 64
    %v1801 = vpop.permute.xlu0 %1800
    %1802 = vrot.lane.b32.xlu0 %v1797, 64
    %v1803 = vpop.permute.xlu0 %1802
    %v1806 = vmul.f32 %v1756, %v1801
    %v1807 = vmul.f32 %v1771, %v1803
    %s1808 = scalar_lea.vmem %s0, 12
    %v1809 = vld [vmem:[%s1808] sm:$0xf]
    %v1810 = vperm.slane %v1809, 0
    %v1811 = vlaneseq
    %v1812 = vshrl.u32 %v1811, 7
    %1814 = vset.pattern.permute.xlu0 %v1812
    %1815 = vperm.xlu0 %1814, %v1810
    %v1816 = vpop.permute.xlu0 %1815
    %v1817 = vperm.slane %v1809, 1
    %v1818 = vlaneseq
    %v1819 = vshrl.u32 %v1818, 7
    %1821 = vset.pattern.permute.xlu0 %v1819
    %1822 = vperm.xlu0 %1821, %v1817
    %v1823 = vpop.permute.xlu0 %1822
    %v1824 = vperm.slane %v1809, 2
    %v1825 = vlaneseq
    %v1826 = vshrl.u32 %v1825, 7
    %1828 = vset.pattern.permute.xlu0 %v1826
    %1829 = vperm.xlu0 %1828, %v1824
    %v1830 = vpop.permute.xlu0 %1829
    %v1831 = vperm.slane %v1809, 3
    %v1832 = vlaneseq
    %v1833 = vshrl.u32 %v1832, 7
    %1835 = vset.pattern.permute.xlu0 %v1833
    %1836 = vperm.xlu0 %1835, %v1831
    %v1837 = vpop.permute.xlu0 %1836
    %v1838 = vmul.f32 %v1816, %v147
    %v1839 = vmul.f32 %v1823, %v148
    %v1840 = vmul.f32 %v1830, %v149
    %v1841 = vmul.f32 %v1837, %v150
    %1842 = vmatpush.msra.mxu0 0.0
    %1843 = vmatpush.msra.mxu0 0.0
    %1844 = vmatpush.msra.mxu0 0.0
    %1845 = vmatpush.msra.mxu0 0.0
    %1846 = vmatpush.msra.mxu0 0.0
    %1847 = vmatpush.msra.mxu0 0.0
    %1848 = vmatpush.msra.mxu0 0.0
    %1849 = vmatpush.msra.mxu0 0.0
    %1850 = vmatpush.msra.mxu0 0.0
    %1851 = vmatpush.msra.mxu0 0.0
    %1852 = vmatpush.msra.mxu0 0.0
    %1853 = vmatpush.msra.mxu0 0.0
    %1854 = vmatpush.msra.mxu0 %v63
    %1855 = vmatpush.msra.mxu0 %v62
    %1856 = vmatpush.msra.mxu0 %v61
    %1857 = vmatpush.msra.mxu0 %v60
    %1858 = vmatmul.f32.gmra.mxu0 %v1619
    %v1859 = vpop.f32.mrf.mxu0
    %v1860 = vadd.f32 0.0, %v1859
    %1861 = vdwg.mxu0
    %1862 = vmatpush.msra.mxu0 0.0
    %1863 = vmatpush.msra.mxu0 0.0
    %1864 = vmatpush.msra.mxu0 0.0
    %1865 = vmatpush.msra.mxu0 0.0
    %1866 = vmatpush.msra.mxu0 0.0
    %1867 = vmatpush.msra.mxu0 0.0
    %1868 = vmatpush.msra.mxu0 0.0
    %1869 = vmatpush.msra.mxu0 0.0
    %1870 = vmatpush.msra.mxu0 0.0
    %1871 = vmatpush.msra.mxu0 0.0
    %1872 = vmatpush.msra.mxu0 0.0
    %1873 = vmatpush.msra.mxu0 0.0
    %1874 = vmatpush.msra.mxu0 %v71
    %1875 = vmatpush.msra.mxu0 %v70
    %1876 = vmatpush.msra.mxu0 %v69
    %1877 = vmatpush.msra.mxu0 %v68
    %1878 = vmatmul.f32.gmra.mxu0 %v1642
    %v1879 = vpop.f32.mrf.mxu0
    %v1880 = vadd.f32 0.0, %v1879
    %1881 = vdwg.mxu0
    %1882 = vmatpush.msra.mxu0 0.0
    %1883 = vmatpush.msra.mxu0 0.0
    %1884 = vmatpush.msra.mxu0 0.0
    %1885 = vmatpush.msra.mxu0 0.0
    %1886 = vmatpush.msra.mxu0 0.0
    %1887 = vmatpush.msra.mxu0 0.0
    %1888 = vmatpush.msra.mxu0 0.0
    %1889 = vmatpush.msra.mxu0 0.0
    %1890 = vmatpush.msra.mxu0 0.0
    %1891 = vmatpush.msra.mxu0 0.0
    %1892 = vmatpush.msra.mxu0 0.0
    %1893 = vmatpush.msra.mxu0 0.0
    %1894 = vmatpush.msra.mxu0 %v79
    %1895 = vmatpush.msra.mxu0 %v78
    %1896 = vmatpush.msra.mxu0 %v77
    %1897 = vmatpush.msra.mxu0 %v76
    %1898 = vmatmul.f32.gmra.mxu0 %v1665
    %v1899 = vpop.f32.mrf.mxu0
    %v1900 = vadd.f32 0.0, %v1899
    %1901 = vdwg.mxu0
    %1902 = vmatpush.msra.mxu0 0.0
    %1903 = vmatpush.msra.mxu0 0.0
    %1904 = vmatpush.msra.mxu0 0.0
    %1905 = vmatpush.msra.mxu0 0.0
    %1906 = vmatpush.msra.mxu0 0.0
    %1907 = vmatpush.msra.mxu0 0.0
    %1908 = vmatpush.msra.mxu0 0.0
    %1909 = vmatpush.msra.mxu0 0.0
    %1910 = vmatpush.msra.mxu0 0.0
    %1911 = vmatpush.msra.mxu0 0.0
    %1912 = vmatpush.msra.mxu0 0.0
    %1913 = vmatpush.msra.mxu0 0.0
    %1914 = vmatpush.msra.mxu0 %v87
    %1915 = vmatpush.msra.mxu0 %v86
    %1916 = vmatpush.msra.mxu0 %v85
    %1917 = vmatpush.msra.mxu0 %v84
    %1918 = vmatmul.f32.gmra.mxu0 %v1688
    %v1919 = vpop.f32.mrf.mxu0
    %v1920 = vadd.f32 0.0, %v1919
    %1921 = vdwg.mxu0
    %v1922 = vadd.f32 %v1838, %v1860
    %v1923 = vadd.f32 %v1839, %v1880
    %v1924 = vadd.f32 %v1840, %v1900
    %v1925 = vadd.f32 %v1841, %v1920
    %v1926 = vadd.f32 %v1922, %v276
    %v1927 = vadd.f32 %v1923, %v277
    %v1928 = vadd.f32 %v1924, %v278
    %v1929 = vadd.f32 %v1925, %v279
    %v1930 = vrot.slane %v1928, 4
    %v1931 = vsel %vm164, %v1930, %v1926
    %v1933 = vunpack.c.l.s4 1983009808
    %v1934 = vunpack.c.0.s8 %v1933
    %v1935 = vperm.slane %v1931, %v1934
    %v1936 = vrot.slane %v1929, 4
    %v1937 = vsel %vm164, %v1936, %v1927
    %v1939 = vunpack.c.l.s4 1983009808
    %v1940 = vunpack.c.0.s8 %v1939
    %v1941 = vperm.slane %v1937, %v1940
    %v1942 = vrot.slane %v1941, 4
    %v1943 = vsel %vm164, %v1942, %v1935
    %v1945 = vunpack.c.l.s4 1934713408
    %v1946 = vunpack.c.0.s8 %v1945
    %v1947 = vperm.slane %v1943, %v1946
    %v1948 = vrot.slane %v1947, 4
    %v1949 = vsel %vm164, 0.0, %v1948
    %v1950 = vxor.u32 %v1947, 2147483648
    %v1951 = vxor.u32 %v1949, 2147483648
    %v1952 = vmul.f32 %v1950, 1.442695
    %v1953 = vpow.pop %v1952
    %v1954 = vmul.f32 %v1951, 1.442695
    %v1955 = vpow.pop %v1954
    %v1956 = vadd.f32 %v1953, 1.0
    %v1957 = vadd.f32 %v1955, 1.0
    %v1958 = vrcp.pop %v1956
    %v1959 = vmul.f32 %v1956, %v1958
    %v1960 = vsub.f32 1.0, %v1959
    %v1961 = vmul.f32 %v1958, %v1960
    %v1962 = vadd.f32 %v1958, %v1961
    %vm1963 = vweird.f32 %v1956
    %vm1964 = vweird.f32 %v1958
    %vm1965 = vmor %vm1963, %vm1964
    %v1966 = vsel %vm1965, %v1958, %v1962
    %v1967 = vand.u32 2147483647, %v1956
    %vm1968 = vcmp.eq.f32.partialorder %v1967, 8.507059e+37
    %v1969 = vand.u32 %v1956, 2147483648
    %v1970 = vor.u32 1.1754944e-38, %v1969
    %v1971 = vsel %vm1968, %v1970, %v1966
    %v1972 = vmul.f32 1.0, %v1971
    %v1973 = vrcp.pop %v1957
    %v1974 = vmul.f32 %v1957, %v1973
    %v1975 = vsub.f32 1.0, %v1974
    %v1976 = vmul.f32 %v1973, %v1975
    %v1977 = vadd.f32 %v1973, %v1976
    %vm1978 = vweird.f32 %v1957
    %vm1979 = vweird.f32 %v1973
    %vm1980 = vmor %vm1978, %vm1979
    %v1981 = vsel %vm1980, %v1973, %v1977
    %v1982 = vand.u32 2147483647, %v1957
    %vm1983 = vcmp.eq.f32.partialorder %v1982, 8.507059e+37
    %v1984 = vand.u32 %v1957, 2147483648
    %v1985 = vor.u32 1.1754944e-38, %v1984
    %v1986 = vsel %vm1983, %v1985, %v1981
    %v1987 = vmul.f32 1.0, %v1986
    %v1988 = vtanh.pop %v1947
    %v1989 = vtanh.pop %v1949
    %v1990 = vmul.f32 %v1972, %v1448
    %v1991 = vmul.f32 %v1987, %v1449
    %1994 = vrot.lane.b32.xlu0 %v1988, 64
    %v1995 = vpop.permute.xlu0 %1994
    %1996 = vrot.lane.b32.xlu0 %v1989, 64
    %v1997 = vpop.permute.xlu0 %1996
    %v2000 = vmul.f32 %v1972, %v1995
    %v2001 = vmul.f32 %v1987, %v1997
    %2004 = vrot.lane.b32.xlu0 %v2000, 32
    %v2005 = vpop.permute.xlu0 %2004
    %2006 = vrot.lane.b32.xlu0 %v2001, 32
    %v2007 = vpop.permute.xlu0 %2006
    %v2010 = vadd.f32 %v1990, %v2005
    %v2011 = vadd.f32 %v1991, %v2007
    %v2012 = vtanh.pop %v2010
    %v2013 = vtanh.pop %v2011
    %2016 = vrot.lane.b32.xlu0 %v2012, 64
    %v2017 = vpop.permute.xlu0 %2016
    %2018 = vrot.lane.b32.xlu0 %v2013, 64
    %v2019 = vpop.permute.xlu0 %2018
    %v2022 = vmul.f32 %v1972, %v2017
    %v2023 = vmul.f32 %v1987, %v2019
    %2026 = vrot.lane.b32.xlu0 %v1806, 32
    %v2027 = vpop.permute.xlu0 %2026
    %2028 = vrot.lane.b32.xlu0 %v1807, 32
    %v2029 = vpop.permute.xlu0 %2028
    %v2032 = vunpack.c.l.s4 1983009808
    %v2033 = vunpack.c.0.s8 %v2032
    %v2034 = vperm.slane %v2027, %v2033
    %v2037 = vunpack.c.l.s4 1983009808
    %v2038 = vunpack.c.0.s8 %v2037
    %v2039 = vperm.slane %v2029, %v2038
    %v2040 = vrot.slane %v2039, 4
    %v2041 = vsel %vm164, %v2040, %v2034
    %v2042 = vrot.slane %v2034, 4
    %v2043 = vsel %vm164, %v2039, %v2042
    %v2045 = vunpack.c.l.s4 1934713408
    %v2046 = vunpack.c.0.s8 %v2045
    %v2047 = vperm.slane %v2041, %v2046
    %v2049 = vunpack.c.l.s4 1934713408
    %v2050 = vunpack.c.0.s8 %v2049
    %v2051 = vperm.slane %v2043, %v2050
    %v2052 = vrot.slane %v2047, 4
    %v2053 = vsel %vm164, 0.0, %v2052
    %v2054 = vrot.slane %v2051, 4
    %v2055 = vsel %vm164, 0.0, %v2054
    %v2057 = vsel %vm179, %v2047, 0
    %2059 = vmatpush.msra.mxu0 0.0
    %2060 = vmatpush.msra.mxu0 0.0
    %2061 = vmatpush.msra.mxu0 0.0
    %2062 = vmatpush.msra.mxu0 0.0
    %2063 = vmatpush.msra.mxu0 0.0
    %2064 = vmatpush.msra.mxu0 0.0
    %2065 = vmatpush.msra.mxu0 0.0
    %2066 = vmatpush.msra.mxu0 0.0
    %2067 = vmatpush.msra.mxu0 0.0
    %2068 = vmatpush.msra.mxu0 0.0
    %2069 = vmatpush.msra.mxu0 0.0
    %2070 = vmatpush.msra.mxu0 0.0
    %2071 = vmatpush.msra.mxu0 %v67
    %2072 = vmatpush.msra.mxu0 %v66
    %2073 = vmatpush.msra.mxu0 %v65
    %2074 = vmatpush.msra.mxu0 %v64
    %2075 = vmatmul.f32.gmra.mxu0 %v2057
    %v2076 = vpop.f32.mrf.mxu0
    %v2077 = vadd.f32 0.0, %v2076
    %2078 = vdwg.mxu0
    %v2080 = vsel %vm179, %v2053, 0
    %2082 = vmatpush.msra.mxu0 0.0
    %2083 = vmatpush.msra.mxu0 0.0
    %2084 = vmatpush.msra.mxu0 0.0
    %2085 = vmatpush.msra.mxu0 0.0
    %2086 = vmatpush.msra.mxu0 0.0
    %2087 = vmatpush.msra.mxu0 0.0
    %2088 = vmatpush.msra.mxu0 0.0
    %2089 = vmatpush.msra.mxu0 0.0
    %2090 = vmatpush.msra.mxu0 0.0
    %2091 = vmatpush.msra.mxu0 0.0
    %2092 = vmatpush.msra.mxu0 0.0
    %2093 = vmatpush.msra.mxu0 0.0
    %2094 = vmatpush.msra.mxu0 %v75
    %2095 = vmatpush.msra.mxu0 %v74
    %2096 = vmatpush.msra.mxu0 %v73
    %2097 = vmatpush.msra.mxu0 %v72
    %2098 = vmatmul.f32.gmra.mxu0 %v2080
    %v2099 = vpop.f32.mrf.mxu0
    %v2100 = vadd.f32 0.0, %v2099
    %2101 = vdwg.mxu0
    %v2103 = vsel %vm179, %v2051, 0
    %2105 = vmatpush.msra.mxu0 0.0
    %2106 = vmatpush.msra.mxu0 0.0
    %2107 = vmatpush.msra.mxu0 0.0
    %2108 = vmatpush.msra.mxu0 0.0
    %2109 = vmatpush.msra.mxu0 0.0
    %2110 = vmatpush.msra.mxu0 0.0
    %2111 = vmatpush.msra.mxu0 0.0
    %2112 = vmatpush.msra.mxu0 0.0
    %2113 = vmatpush.msra.mxu0 0.0
    %2114 = vmatpush.msra.mxu0 0.0
    %2115 = vmatpush.msra.mxu0 0.0
    %2116 = vmatpush.msra.mxu0 0.0
    %2117 = vmatpush.msra.mxu0 %v83
    %2118 = vmatpush.msra.mxu0 %v82
    %2119 = vmatpush.msra.mxu0 %v81
    %2120 = vmatpush.msra.mxu0 %v80
    %2121 = vmatmul.f32.gmra.mxu0 %v2103
    %v2122 = vpop.f32.mrf.mxu0
    %v2123 = vadd.f32 0.0, %v2122
    %2124 = vdwg.mxu0
    %v2126 = vsel %vm179, %v2055, 0
    %2128 = vmatpush.msra.mxu0 0.0
    %2129 = vmatpush.msra.mxu0 0.0
    %2130 = vmatpush.msra.mxu0 0.0
    %2131 = vmatpush.msra.mxu0 0.0
    %2132 = vmatpush.msra.mxu0 0.0
    %2133 = vmatpush.msra.mxu0 0.0
    %2134 = vmatpush.msra.mxu0 0.0
    %2135 = vmatpush.msra.mxu0 0.0
    %2136 = vmatpush.msra.mxu0 0.0
    %2137 = vmatpush.msra.mxu0 0.0
    %2138 = vmatpush.msra.mxu0 0.0
    %2139 = vmatpush.msra.mxu0 0.0
    %2140 = vmatpush.msra.mxu0 %v91
    %2141 = vmatpush.msra.mxu0 %v90
    %2142 = vmatpush.msra.mxu0 %v89
    %2143 = vmatpush.msra.mxu0 %v88
    %2144 = vmatmul.f32.gmra.mxu0 %v2126
    %v2145 = vpop.f32.mrf.mxu0
    %v2146 = vadd.f32 0.0, %v2145
    %2147 = vdwg.mxu0
    %2150 = vrot.lane.b32.xlu0 %v2022, 32
    %v2151 = vpop.permute.xlu0 %2150
    %2152 = vrot.lane.b32.xlu0 %v2023, 32
    %v2153 = vpop.permute.xlu0 %2152
    %v2156 = vunpack.c.l.s4 1983009808
    %v2157 = vunpack.c.0.s8 %v2156
    %v2158 = vperm.slane %v2151, %v2157
    %v2161 = vunpack.c.l.s4 1983009808
    %v2162 = vunpack.c.0.s8 %v2161
    %v2163 = vperm.slane %v2153, %v2162
    %v2164 = vrot.slane %v2163, 4
    %v2165 = vsel %vm164, %v2164, %v2158
    %v2166 = vrot.slane %v2158, 4
    %v2167 = vsel %vm164, %v2163, %v2166
    %v2169 = vunpack.c.l.s4 1934713408
    %v2170 = vunpack.c.0.s8 %v2169
    %v2171 = vperm.slane %v2165, %v2170
    %v2173 = vunpack.c.l.s4 1934713408
    %v2174 = vunpack.c.0.s8 %v2173
    %v2175 = vperm.slane %v2167, %v2174
    %v2176 = vrot.slane %v2171, 4
    %v2177 = vsel %vm164, 0.0, %v2176
    %v2178 = vrot.slane %v2175, 4
    %v2179 = vsel %vm164, 0.0, %v2178
    %v2181 = vsel %vm179, %v2171, 0
    %2183 = vmatpush.msra.mxu0 0.0
    %2184 = vmatpush.msra.mxu0 0.0
    %2185 = vmatpush.msra.mxu0 0.0
    %2186 = vmatpush.msra.mxu0 0.0
    %2187 = vmatpush.msra.mxu0 0.0
    %2188 = vmatpush.msra.mxu0 0.0
    %2189 = vmatpush.msra.mxu0 0.0
    %2190 = vmatpush.msra.mxu0 0.0
    %2191 = vmatpush.msra.mxu0 0.0
    %2192 = vmatpush.msra.mxu0 0.0
    %2193 = vmatpush.msra.mxu0 0.0
    %2194 = vmatpush.msra.mxu0 0.0
    %2195 = vmatpush.msra.mxu0 %v101
    %2196 = vmatpush.msra.mxu0 %v100
    %2197 = vmatpush.msra.mxu0 %v99
    %2198 = vmatpush.msra.mxu0 %v98
    %2199 = vmatmul.f32.gmra.mxu0 %v2181
    %v2200 = vpop.f32.mrf.mxu0
    %v2201 = vadd.f32 %v2077, %v2200
    %2202 = vdwg.mxu0
    %v2204 = vsel %vm179, %v2177, 0
    %2206 = vmatpush.msra.mxu0 0.0
    %2207 = vmatpush.msra.mxu0 0.0
    %2208 = vmatpush.msra.mxu0 0.0
    %2209 = vmatpush.msra.mxu0 0.0
    %2210 = vmatpush.msra.mxu0 0.0
    %2211 = vmatpush.msra.mxu0 0.0
    %2212 = vmatpush.msra.mxu0 0.0
    %2213 = vmatpush.msra.mxu0 0.0
    %2214 = vmatpush.msra.mxu0 0.0
    %2215 = vmatpush.msra.mxu0 0.0
    %2216 = vmatpush.msra.mxu0 0.0
    %2217 = vmatpush.msra.mxu0 0.0
    %2218 = vmatpush.msra.mxu0 %v105
    %2219 = vmatpush.msra.mxu0 %v104
    %2220 = vmatpush.msra.mxu0 %v103
    %2221 = vmatpush.msra.mxu0 %v102
    %2222 = vmatmul.f32.gmra.mxu0 %v2204
    %v2223 = vpop.f32.mrf.mxu0
    %v2224 = vadd.f32 %v2100, %v2223
    %2225 = vdwg.mxu0
    %v2227 = vsel %vm179, %v2175, 0
    %2229 = vmatpush.msra.mxu0 0.0
    %2230 = vmatpush.msra.mxu0 0.0
    %2231 = vmatpush.msra.mxu0 0.0
    %2232 = vmatpush.msra.mxu0 0.0
    %2233 = vmatpush.msra.mxu0 0.0
    %2234 = vmatpush.msra.mxu0 0.0
    %2235 = vmatpush.msra.mxu0 0.0
    %2236 = vmatpush.msra.mxu0 0.0
    %2237 = vmatpush.msra.mxu0 0.0
    %2238 = vmatpush.msra.mxu0 0.0
    %2239 = vmatpush.msra.mxu0 0.0
    %2240 = vmatpush.msra.mxu0 0.0
    %2241 = vmatpush.msra.mxu0 %v109
    %2242 = vmatpush.msra.mxu0 %v108
    %2243 = vmatpush.msra.mxu0 %v107
    %2244 = vmatpush.msra.mxu0 %v106
    %2245 = vmatmul.f32.gmra.mxu0 %v2227
    %v2246 = vpop.f32.mrf.mxu0
    %v2247 = vadd.f32 %v2123, %v2246
    %2248 = vdwg.mxu0
    %v2250 = vsel %vm179, %v2179, 0
    %2252 = vmatpush.msra.mxu0 0.0
    %2253 = vmatpush.msra.mxu0 0.0
    %2254 = vmatpush.msra.mxu0 0.0
    %2255 = vmatpush.msra.mxu0 0.0
    %2256 = vmatpush.msra.mxu0 0.0
    %2257 = vmatpush.msra.mxu0 0.0
    %2258 = vmatpush.msra.mxu0 0.0
    %2259 = vmatpush.msra.mxu0 0.0
    %2260 = vmatpush.msra.mxu0 0.0
    %2261 = vmatpush.msra.mxu0 0.0
    %2262 = vmatpush.msra.mxu0 0.0
    %2263 = vmatpush.msra.mxu0 0.0
    %2264 = vmatpush.msra.mxu0 %v113
    %2265 = vmatpush.msra.mxu0 %v112
    %2266 = vmatpush.msra.mxu0 %v111
    %2267 = vmatpush.msra.mxu0 %v110
    %2268 = vmatmul.f32.gmra.mxu0 %v2250
    %v2269 = vpop.f32.mrf.mxu0
    %v2270 = vadd.f32 %v2146, %v2269
    %2271 = vdwg.mxu0
    %v2272 = vadd.f32 %v2201, %v582
    %v2273 = vadd.f32 %v2224, %v583
    %v2274 = vadd.f32 %v2247, %v584
    %v2275 = vadd.f32 %v2270, %v585
    %v2276 = vrot.slane %v2274, 4
    %v2277 = vsel %vm164, %v2276, %v2272
    %v2279 = vunpack.c.l.s4 1983009808
    %v2280 = vunpack.c.0.s8 %v2279
    %v2281 = vperm.slane %v2277, %v2280
    %v2282 = vrot.slane %v2275, 4
    %v2283 = vsel %vm164, %v2282, %v2273
    %v2285 = vunpack.c.l.s4 1983009808
    %v2286 = vunpack.c.0.s8 %v2285
    %v2287 = vperm.slane %v2283, %v2286
    %v2288 = vrot.slane %v2287, 4
    %v2289 = vsel %vm164, %v2288, %v2281
    %v2291 = vunpack.c.l.s4 1934713408
    %v2292 = vunpack.c.0.s8 %v2291
    %v2293 = vperm.slane %v2289, %v2292
    %v2294 = vrot.slane %v2293, 4
    %v2295 = vsel %vm164, 0.0, %v2294
    %v2296 = vxor.u32 %v2293, 2147483648
    %v2297 = vxor.u32 %v2295, 2147483648
    %v2298 = vmul.f32 %v2296, 1.442695
    %v2299 = vpow.pop %v2298
    %v2300 = vmul.f32 %v2297, 1.442695
    %v2301 = vpow.pop %v2300
    %v2302 = vadd.f32 %v2299, 1.0
    %v2303 = vadd.f32 %v2301, 1.0
    %v2304 = vrcp.pop %v2302
    %v2305 = vmul.f32 %v2302, %v2304
    %v2306 = vsub.f32 1.0, %v2305
    %v2307 = vmul.f32 %v2304, %v2306
    %v2308 = vadd.f32 %v2304, %v2307
    %vm2309 = vweird.f32 %v2302
    %vm2310 = vweird.f32 %v2304
    %vm2311 = vmor %vm2309, %vm2310
    %v2312 = vsel %vm2311, %v2304, %v2308
    %v2313 = vand.u32 2147483647, %v2302
    %vm2314 = vcmp.eq.f32.partialorder %v2313, 8.507059e+37
    %v2315 = vand.u32 %v2302, 2147483648
    %v2316 = vor.u32 1.1754944e-38, %v2315
    %v2317 = vsel %vm2314, %v2316, %v2312
    %v2318 = vmul.f32 1.0, %v2317
    %v2319 = vrcp.pop %v2303
    %v2320 = vmul.f32 %v2303, %v2319
    %v2321 = vsub.f32 1.0, %v2320
    %v2322 = vmul.f32 %v2319, %v2321
    %v2323 = vadd.f32 %v2319, %v2322
    %vm2324 = vweird.f32 %v2303
    %vm2325 = vweird.f32 %v2319
    %vm2326 = vmor %vm2324, %vm2325
    %v2327 = vsel %vm2326, %v2319, %v2323
    %v2328 = vand.u32 2147483647, %v2303
    %vm2329 = vcmp.eq.f32.partialorder %v2328, 8.507059e+37
    %v2330 = vand.u32 %v2303, 2147483648
    %v2331 = vor.u32 1.1754944e-38, %v2330
    %v2332 = vsel %vm2329, %v2331, %v2327
    %v2333 = vmul.f32 1.0, %v2332
    %v2334 = vtanh.pop %v2293
    %v2335 = vtanh.pop %v2295
    %v2336 = vmul.f32 %v2318, %v1794
    %v2337 = vmul.f32 %v2333, %v1795
    %2340 = vrot.lane.b32.xlu0 %v2334, 64
    %v2341 = vpop.permute.xlu0 %2340
    %2342 = vrot.lane.b32.xlu0 %v2335, 64
    %v2343 = vpop.permute.xlu0 %2342
    %v2346 = vmul.f32 %v2318, %v2341
    %v2347 = vmul.f32 %v2333, %v2343
    %2350 = vrot.lane.b32.xlu0 %v2346, 32
    %v2351 = vpop.permute.xlu0 %2350
    %2352 = vrot.lane.b32.xlu0 %v2347, 32
    %v2353 = vpop.permute.xlu0 %2352
    %v2356 = vadd.f32 %v2336, %v2351
    %v2357 = vadd.f32 %v2337, %v2353
    %v2358 = vtanh.pop %v2356
    %v2359 = vtanh.pop %v2357
    %2362 = vrot.lane.b32.xlu0 %v2358, 64
    %v2363 = vpop.permute.xlu0 %2362
    %2364 = vrot.lane.b32.xlu0 %v2359, 64
    %v2365 = vpop.permute.xlu0 %2364
    %v2368 = vmul.f32 %v2318, %v2363
    %v2369 = vmul.f32 %v2333, %v2365
    %s2370 = scalar_lea.vmem %s0, 16
    %v2371 = vld [vmem:[%s2370] sm:$0xf]
    %v2372 = vperm.slane %v2371, 0
    %v2373 = vlaneseq
    %v2374 = vshrl.u32 %v2373, 7
    %2376 = vset.pattern.permute.xlu0 %v2374
    %2377 = vperm.xlu0 %2376, %v2372
    %v2378 = vpop.permute.xlu0 %2377
    %v2379 = vperm.slane %v2371, 1
    %v2380 = vlaneseq
    %v2381 = vshrl.u32 %v2380, 7
    %2383 = vset.pattern.permute.xlu0 %v2381
    %2384 = vperm.xlu0 %2383, %v2379
    %v2385 = vpop.permute.xlu0 %2384
    %v2386 = vperm.slane %v2371, 2
    %v2387 = vlaneseq
    %v2388 = vshrl.u32 %v2387, 7
    %2390 = vset.pattern.permute.xlu0 %v2388
    %2391 = vperm.xlu0 %2390, %v2386
    %v2392 = vpop.permute.xlu0 %2391
    %v2393 = vperm.slane %v2371, 3
    %v2394 = vlaneseq
    %v2395 = vshrl.u32 %v2394, 7
    %2397 = vset.pattern.permute.xlu0 %v2395
    %2398 = vperm.xlu0 %2397, %v2393
    %v2399 = vpop.permute.xlu0 %2398
    %v2400 = vmul.f32 %v2378, %v147
    %v2401 = vmul.f32 %v2385, %v148
    %v2402 = vmul.f32 %v2392, %v149
    %v2403 = vmul.f32 %v2399, %v150
    %2404 = vmatpush.msra.mxu0 0.0
    %2405 = vmatpush.msra.mxu0 0.0
    %2406 = vmatpush.msra.mxu0 0.0
    %2407 = vmatpush.msra.mxu0 0.0
    %2408 = vmatpush.msra.mxu0 0.0
    %2409 = vmatpush.msra.mxu0 0.0
    %2410 = vmatpush.msra.mxu0 0.0
    %2411 = vmatpush.msra.mxu0 0.0
    %2412 = vmatpush.msra.mxu0 0.0
    %2413 = vmatpush.msra.mxu0 0.0
    %2414 = vmatpush.msra.mxu0 0.0
    %2415 = vmatpush.msra.mxu0 0.0
    %2416 = vmatpush.msra.mxu0 %v63
    %2417 = vmatpush.msra.mxu0 %v62
    %2418 = vmatpush.msra.mxu0 %v61
    %2419 = vmatpush.msra.mxu0 %v60
    %2420 = vmatmul.f32.gmra.mxu0 %v2181
    %v2421 = vpop.f32.mrf.mxu0
    %v2422 = vadd.f32 0.0, %v2421
    %2423 = vdwg.mxu0
    %2424 = vmatpush.msra.mxu0 0.0
    %2425 = vmatpush.msra.mxu0 0.0
    %2426 = vmatpush.msra.mxu0 0.0
    %2427 = vmatpush.msra.mxu0 0.0
    %2428 = vmatpush.msra.mxu0 0.0
    %2429 = vmatpush.msra.mxu0 0.0
    %2430 = vmatpush.msra.mxu0 0.0
    %2431 = vmatpush.msra.mxu0 0.0
    %2432 = vmatpush.msra.mxu0 0.0
    %2433 = vmatpush.msra.mxu0 0.0
    %2434 = vmatpush.msra.mxu0 0.0
    %2435 = vmatpush.msra.mxu0 0.0
    %2436 = vmatpush.msra.mxu0 %v71
    %2437 = vmatpush.msra.mxu0 %v70
    %2438 = vmatpush.msra.mxu0 %v69
    %2439 = vmatpush.msra.mxu0 %v68
    %2440 = vmatmul.f32.gmra.mxu0 %v2204
    %v2441 = vpop.f32.mrf.mxu0
    %v2442 = vadd.f32 0.0, %v2441
    %2443 = vdwg.mxu0
    %2444 = vmatpush.msra.mxu0 0.0
    %2445 = vmatpush.msra.mxu0 0.0
    %2446 = vmatpush.msra.mxu0 0.0
    %2447 = vmatpush.msra.mxu0 0.0
    %2448 = vmatpush.msra.mxu0 0.0
    %2449 = vmatpush.msra.mxu0 0.0
    %2450 = vmatpush.msra.mxu0 0.0
    %2451 = vmatpush.msra.mxu0 0.0
    %2452 = vmatpush.msra.mxu0 0.0
    %2453 = vmatpush.msra.mxu0 0.0
    %2454 = vmatpush.msra.mxu0 0.0
    %2455 = vmatpush.msra.mxu0 0.0
    %2456 = vmatpush.msra.mxu0 %v79
    %2457 = vmatpush.msra.mxu0 %v78
    %2458 = vmatpush.msra.mxu0 %v77
    %2459 = vmatpush.msra.mxu0 %v76
    %2460 = vmatmul.f32.gmra.mxu0 %v2227
    %v2461 = vpop.f32.mrf.mxu0
    %v2462 = vadd.f32 0.0, %v2461
    %2463 = vdwg.mxu0
    %2464 = vmatpush.msra.mxu0 0.0
    %2465 = vmatpush.msra.mxu0 0.0
    %2466 = vmatpush.msra.mxu0 0.0
    %2467 = vmatpush.msra.mxu0 0.0
    %2468 = vmatpush.msra.mxu0 0.0
    %2469 = vmatpush.msra.mxu0 0.0
    %2470 = vmatpush.msra.mxu0 0.0
    %2471 = vmatpush.msra.mxu0 0.0
    %2472 = vmatpush.msra.mxu0 0.0
    %2473 = vmatpush.msra.mxu0 0.0
    %2474 = vmatpush.msra.mxu0 0.0
    %2475 = vmatpush.msra.mxu0 0.0
    %2476 = vmatpush.msra.mxu0 %v87
    %2477 = vmatpush.msra.mxu0 %v86
    %2478 = vmatpush.msra.mxu0 %v85
    %2479 = vmatpush.msra.mxu0 %v84
    %2480 = vmatmul.f32.gmra.mxu0 %v2250
    %v2481 = vpop.f32.mrf.mxu0
    %v2482 = vadd.f32 0.0, %v2481
    %2483 = vdwg.mxu0
    %v2484 = vadd.f32 %v2400, %v2422
    %v2485 = vadd.f32 %v2401, %v2442
    %v2486 = vadd.f32 %v2402, %v2462
    %v2487 = vadd.f32 %v2403, %v2482
    %v2488 = vadd.f32 %v2484, %v276
    %v2489 = vadd.f32 %v2485, %v277
    %v2490 = vadd.f32 %v2486, %v278
    %v2491 = vadd.f32 %v2487, %v279
    %v2492 = vrot.slane %v2490, 4
    %v2493 = vsel %vm164, %v2492, %v2488
    %v2495 = vunpack.c.l.s4 1983009808
    %v2496 = vunpack.c.0.s8 %v2495
    %v2497 = vperm.slane %v2493, %v2496
    %v2498 = vrot.slane %v2491, 4
    %v2499 = vsel %vm164, %v2498, %v2489
    %v2501 = vunpack.c.l.s4 1983009808
    %v2502 = vunpack.c.0.s8 %v2501
    %v2503 = vperm.slane %v2499, %v2502
    %v2504 = vrot.slane %v2503, 4
    %v2505 = vsel %vm164, %v2504, %v2497
    %v2507 = vunpack.c.l.s4 1934713408
    %v2508 = vunpack.c.0.s8 %v2507
    %v2509 = vperm.slane %v2505, %v2508
    %v2510 = vrot.slane %v2509, 4
    %v2511 = vsel %vm164, 0.0, %v2510
    %v2512 = vxor.u32 %v2509, 2147483648
    %v2513 = vxor.u32 %v2511, 2147483648
    %v2514 = vmul.f32 %v2512, 1.442695
    %v2515 = vpow.pop %v2514
    %v2516 = vmul.f32 %v2513, 1.442695
    %v2517 = vpow.pop %v2516
    %v2518 = vadd.f32 %v2515, 1.0
    %v2519 = vadd.f32 %v2517, 1.0
    %v2520 = vrcp.pop %v2518
    %v2521 = vmul.f32 %v2518, %v2520
    %v2522 = vsub.f32 1.0, %v2521
    %v2523 = vmul.f32 %v2520, %v2522
    %v2524 = vadd.f32 %v2520, %v2523
    %vm2525 = vweird.f32 %v2518
    %vm2526 = vweird.f32 %v2520
    %vm2527 = vmor %vm2525, %vm2526
    %v2528 = vsel %vm2527, %v2520, %v2524
    %v2529 = vand.u32 2147483647, %v2518
    %vm2530 = vcmp.eq.f32.partialorder %v2529, 8.507059e+37
    %v2531 = vand.u32 %v2518, 2147483648
    %v2532 = vor.u32 1.1754944e-38, %v2531
    %v2533 = vsel %vm2530, %v2532, %v2528
    %v2534 = vmul.f32 1.0, %v2533
    %v2535 = vrcp.pop %v2519
    %v2536 = vmul.f32 %v2519, %v2535
    %v2537 = vsub.f32 1.0, %v2536
    %v2538 = vmul.f32 %v2535, %v2537
    %v2539 = vadd.f32 %v2535, %v2538
    %vm2540 = vweird.f32 %v2519
    %vm2541 = vweird.f32 %v2535
    %vm2542 = vmor %vm2540, %vm2541
    %v2543 = vsel %vm2542, %v2535, %v2539
    %v2544 = vand.u32 2147483647, %v2519
    %vm2545 = vcmp.eq.f32.partialorder %v2544, 8.507059e+37
    %v2546 = vand.u32 %v2519, 2147483648
    %v2547 = vor.u32 1.1754944e-38, %v2546
    %v2548 = vsel %vm2545, %v2547, %v2543
    %v2549 = vmul.f32 1.0, %v2548
    %v2550 = vtanh.pop %v2509
    %v2551 = vtanh.pop %v2511
    %v2552 = vmul.f32 %v2534, %v2010
    %v2553 = vmul.f32 %v2549, %v2011
    %2556 = vrot.lane.b32.xlu0 %v2550, 64
    %v2557 = vpop.permute.xlu0 %2556
    %2558 = vrot.lane.b32.xlu0 %v2551, 64
    %v2559 = vpop.permute.xlu0 %2558
    %v2562 = vmul.f32 %v2534, %v2557
    %v2563 = vmul.f32 %v2549, %v2559
    %2566 = vrot.lane.b32.xlu0 %v2562, 32
    %v2567 = vpop.permute.xlu0 %2566
    %2568 = vrot.lane.b32.xlu0 %v2563, 32
    %v2569 = vpop.permute.xlu0 %2568
    %v2572 = vadd.f32 %v2552, %v2567
    %v2573 = vadd.f32 %v2553, %v2569
    %v2574 = vtanh.pop %v2572
    %v2575 = vtanh.pop %v2573
    %2578 = vrot.lane.b32.xlu0 %v2574, 64
    %v2579 = vpop.permute.xlu0 %2578
    %2580 = vrot.lane.b32.xlu0 %v2575, 64
    %v2581 = vpop.permute.xlu0 %2580
    %v2584 = vmul.f32 %v2534, %v2579
    %v2585 = vmul.f32 %v2549, %v2581
    %2588 = vrot.lane.b32.xlu0 %v2368, 32
    %v2589 = vpop.permute.xlu0 %2588
    %2590 = vrot.lane.b32.xlu0 %v2369, 32
    %v2591 = vpop.permute.xlu0 %2590
    %v2594 = vunpack.c.l.s4 1983009808
    %v2595 = vunpack.c.0.s8 %v2594
    %v2596 = vperm.slane %v2589, %v2595
    %v2599 = vunpack.c.l.s4 1983009808
    %v2600 = vunpack.c.0.s8 %v2599
    %v2601 = vperm.slane %v2591, %v2600
    %v2602 = vrot.slane %v2601, 4
    %v2603 = vsel %vm164, %v2602, %v2596
    %v2604 = vrot.slane %v2596, 4
    %v2605 = vsel %vm164, %v2601, %v2604
    %v2607 = vunpack.c.l.s4 1934713408
    %v2608 = vunpack.c.0.s8 %v2607
    %v2609 = vperm.slane %v2603, %v2608
    %v2611 = vunpack.c.l.s4 1934713408
    %v2612 = vunpack.c.0.s8 %v2611
    %v2613 = vperm.slane %v2605, %v2612
    %v2614 = vrot.slane %v2609, 4
    %v2615 = vsel %vm164, 0.0, %v2614
    %v2616 = vrot.slane %v2613, 4
    %v2617 = vsel %vm164, 0.0, %v2616
    %v2619 = vsel %vm179, %v2609, 0
    %2621 = vmatpush.msra.mxu0 0.0
    %2622 = vmatpush.msra.mxu0 0.0
    %2623 = vmatpush.msra.mxu0 0.0
    %2624 = vmatpush.msra.mxu0 0.0
    %2625 = vmatpush.msra.mxu0 0.0
    %2626 = vmatpush.msra.mxu0 0.0
    %2627 = vmatpush.msra.mxu0 0.0
    %2628 = vmatpush.msra.mxu0 0.0
    %2629 = vmatpush.msra.mxu0 0.0
    %2630 = vmatpush.msra.mxu0 0.0
    %2631 = vmatpush.msra.mxu0 0.0
    %2632 = vmatpush.msra.mxu0 0.0
    %2633 = vmatpush.msra.mxu0 %v67
    %2634 = vmatpush.msra.mxu0 %v66
    %2635 = vmatpush.msra.mxu0 %v65
    %2636 = vmatpush.msra.mxu0 %v64
    %2637 = vmatmul.f32.gmra.mxu0 %v2619
    %v2638 = vpop.f32.mrf.mxu0
    %v2639 = vadd.f32 0.0, %v2638
    %2640 = vdwg.mxu0
    %v2642 = vsel %vm179, %v2615, 0
    %2644 = vmatpush.msra.mxu0 0.0
    %2645 = vmatpush.msra.mxu0 0.0
    %2646 = vmatpush.msra.mxu0 0.0
    %2647 = vmatpush.msra.mxu0 0.0
    %2648 = vmatpush.msra.mxu0 0.0
    %2649 = vmatpush.msra.mxu0 0.0
    %2650 = vmatpush.msra.mxu0 0.0
    %2651 = vmatpush.msra.mxu0 0.0
    %2652 = vmatpush.msra.mxu0 0.0
    %2653 = vmatpush.msra.mxu0 0.0
    %2654 = vmatpush.msra.mxu0 0.0
    %2655 = vmatpush.msra.mxu0 0.0
    %2656 = vmatpush.msra.mxu0 %v75
    %2657 = vmatpush.msra.mxu0 %v74
    %2658 = vmatpush.msra.mxu0 %v73
    %2659 = vmatpush.msra.mxu0 %v72
    %2660 = vmatmul.f32.gmra.mxu0 %v2642
    %v2661 = vpop.f32.mrf.mxu0
    %v2662 = vadd.f32 0.0, %v2661
    %2663 = vdwg.mxu0
    %v2665 = vsel %vm179, %v2613, 0
    %2667 = vmatpush.msra.mxu0 0.0
    %2668 = vmatpush.msra.mxu0 0.0
    %2669 = vmatpush.msra.mxu0 0.0
    %2670 = vmatpush.msra.mxu0 0.0
    %2671 = vmatpush.msra.mxu0 0.0
    %2672 = vmatpush.msra.mxu0 0.0
    %2673 = vmatpush.msra.mxu0 0.0
    %2674 = vmatpush.msra.mxu0 0.0
    %2675 = vmatpush.msra.mxu0 0.0
    %2676 = vmatpush.msra.mxu0 0.0
    %2677 = vmatpush.msra.mxu0 0.0
    %2678 = vmatpush.msra.mxu0 0.0
    %2679 = vmatpush.msra.mxu0 %v83
    %2680 = vmatpush.msra.mxu0 %v82
    %2681 = vmatpush.msra.mxu0 %v81
    %2682 = vmatpush.msra.mxu0 %v80
    %2683 = vmatmul.f32.gmra.mxu0 %v2665
    %v2684 = vpop.f32.mrf.mxu0
    %v2685 = vadd.f32 0.0, %v2684
    %2686 = vdwg.mxu0
    %v2688 = vsel %vm179, %v2617, 0
    %2690 = vmatpush.msra.mxu0 0.0
    %2691 = vmatpush.msra.mxu0 0.0
    %2692 = vmatpush.msra.mxu0 0.0
    %2693 = vmatpush.msra.mxu0 0.0
    %2694 = vmatpush.msra.mxu0 0.0
    %2695 = vmatpush.msra.mxu0 0.0
    %2696 = vmatpush.msra.mxu0 0.0
    %2697 = vmatpush.msra.mxu0 0.0
    %2698 = vmatpush.msra.mxu0 0.0
    %2699 = vmatpush.msra.mxu0 0.0
    %2700 = vmatpush.msra.mxu0 0.0
    %2701 = vmatpush.msra.mxu0 0.0
    %2702 = vmatpush.msra.mxu0 %v91
    %2703 = vmatpush.msra.mxu0 %v90
    %2704 = vmatpush.msra.mxu0 %v89
    %2705 = vmatpush.msra.mxu0 %v88
    %2706 = vmatmul.f32.gmra.mxu0 %v2688
    %v2707 = vpop.f32.mrf.mxu0
    %v2708 = vadd.f32 0.0, %v2707
    %2709 = vdwg.mxu0
    %2712 = vrot.lane.b32.xlu0 %v2584, 32
    %v2713 = vpop.permute.xlu0 %2712
    %2714 = vrot.lane.b32.xlu0 %v2585, 32
    %v2715 = vpop.permute.xlu0 %2714
    %v2718 = vunpack.c.l.s4 1983009808
    %v2719 = vunpack.c.0.s8 %v2718
    %v2720 = vperm.slane %v2713, %v2719
    %v2723 = vunpack.c.l.s4 1983009808
    %v2724 = vunpack.c.0.s8 %v2723
    %v2725 = vperm.slane %v2715, %v2724
    %v2726 = vrot.slane %v2725, 4
    %v2727 = vsel %vm164, %v2726, %v2720
    %v2728 = vrot.slane %v2720, 4
    %v2729 = vsel %vm164, %v2725, %v2728
    %v2731 = vunpack.c.l.s4 1934713408
    %v2732 = vunpack.c.0.s8 %v2731
    %v2733 = vperm.slane %v2727, %v2732
    %v2735 = vunpack.c.l.s4 1934713408
    %v2736 = vunpack.c.0.s8 %v2735
    %v2737 = vperm.slane %v2729, %v2736
    %v2738 = vrot.slane %v2733, 4
    %v2739 = vsel %vm164, 0.0, %v2738
    %v2740 = vrot.slane %v2737, 4
    %v2741 = vsel %vm164, 0.0, %v2740
    %v2743 = vsel %vm179, %v2733, 0
    %2745 = vmatpush.msra.mxu0 0.0
    %2746 = vmatpush.msra.mxu0 0.0
    %2747 = vmatpush.msra.mxu0 0.0
    %2748 = vmatpush.msra.mxu0 0.0
    %2749 = vmatpush.msra.mxu0 0.0
    %2750 = vmatpush.msra.mxu0 0.0
    %2751 = vmatpush.msra.mxu0 0.0
    %2752 = vmatpush.msra.mxu0 0.0
    %2753 = vmatpush.msra.mxu0 0.0
    %2754 = vmatpush.msra.mxu0 0.0
    %2755 = vmatpush.msra.mxu0 0.0
    %2756 = vmatpush.msra.mxu0 0.0
    %2757 = vmatpush.msra.mxu0 %v101
    %2758 = vmatpush.msra.mxu0 %v100
    %2759 = vmatpush.msra.mxu0 %v99
    %2760 = vmatpush.msra.mxu0 %v98
    %2761 = vmatmul.f32.gmra.mxu0 %v2743
    %v2762 = vpop.f32.mrf.mxu0
    %v2763 = vadd.f32 %v2639, %v2762
    %2764 = vdwg.mxu0
    %v2766 = vsel %vm179, %v2739, 0
    %2768 = vmatpush.msra.mxu0 0.0
    %2769 = vmatpush.msra.mxu0 0.0
    %2770 = vmatpush.msra.mxu0 0.0
    %2771 = vmatpush.msra.mxu0 0.0
    %2772 = vmatpush.msra.mxu0 0.0
    %2773 = vmatpush.msra.mxu0 0.0
    %2774 = vmatpush.msra.mxu0 0.0
    %2775 = vmatpush.msra.mxu0 0.0
    %2776 = vmatpush.msra.mxu0 0.0
    %2777 = vmatpush.msra.mxu0 0.0
    %2778 = vmatpush.msra.mxu0 0.0
    %2779 = vmatpush.msra.mxu0 0.0
    %2780 = vmatpush.msra.mxu0 %v105
    %2781 = vmatpush.msra.mxu0 %v104
    %2782 = vmatpush.msra.mxu0 %v103
    %2783 = vmatpush.msra.mxu0 %v102
    %2784 = vmatmul.f32.gmra.mxu0 %v2766
    %v2785 = vpop.f32.mrf.mxu0
    %v2786 = vadd.f32 %v2662, %v2785
    %2787 = vdwg.mxu0
    %v2789 = vsel %vm179, %v2737, 0
    %2791 = vmatpush.msra.mxu0 0.0
    %2792 = vmatpush.msra.mxu0 0.0
    %2793 = vmatpush.msra.mxu0 0.0
    %2794 = vmatpush.msra.mxu0 0.0
    %2795 = vmatpush.msra.mxu0 0.0
    %2796 = vmatpush.msra.mxu0 0.0
    %2797 = vmatpush.msra.mxu0 0.0
    %2798 = vmatpush.msra.mxu0 0.0
    %2799 = vmatpush.msra.mxu0 0.0
    %2800 = vmatpush.msra.mxu0 0.0
    %2801 = vmatpush.msra.mxu0 0.0
    %2802 = vmatpush.msra.mxu0 0.0
    %2803 = vmatpush.msra.mxu0 %v109
    %2804 = vmatpush.msra.mxu0 %v108
    %2805 = vmatpush.msra.mxu0 %v107
    %2806 = vmatpush.msra.mxu0 %v106
    %2807 = vmatmul.f32.gmra.mxu0 %v2789
    %v2808 = vpop.f32.mrf.mxu0
    %v2809 = vadd.f32 %v2685, %v2808
    %2810 = vdwg.mxu0
    %v2812 = vsel %vm179, %v2741, 0
    %2814 = vmatpush.msra.mxu0 0.0
    %2815 = vmatpush.msra.mxu0 0.0
    %2816 = vmatpush.msra.mxu0 0.0
    %2817 = vmatpush.msra.mxu0 0.0
    %2818 = vmatpush.msra.mxu0 0.0
    %2819 = vmatpush.msra.mxu0 0.0
    %2820 = vmatpush.msra.mxu0 0.0
    %2821 = vmatpush.msra.mxu0 0.0
    %2822 = vmatpush.msra.mxu0 0.0
    %2823 = vmatpush.msra.mxu0 0.0
    %2824 = vmatpush.msra.mxu0 0.0
    %2825 = vmatpush.msra.mxu0 0.0
    %2826 = vmatpush.msra.mxu0 %v113
    %2827 = vmatpush.msra.mxu0 %v112
    %2828 = vmatpush.msra.mxu0 %v111
    %2829 = vmatpush.msra.mxu0 %v110
    %2830 = vmatmul.f32.gmra.mxu0 %v2812
    %v2831 = vpop.f32.mrf.mxu0
    %v2832 = vadd.f32 %v2708, %v2831
    %2833 = vdwg.mxu0
    %v2834 = vadd.f32 %v2763, %v582
    %v2835 = vadd.f32 %v2786, %v583
    %v2836 = vadd.f32 %v2809, %v584
    %v2837 = vadd.f32 %v2832, %v585
    %v2838 = vrot.slane %v2836, 4
    %v2839 = vsel %vm164, %v2838, %v2834
    %v2841 = vunpack.c.l.s4 1983009808
    %v2842 = vunpack.c.0.s8 %v2841
    %v2843 = vperm.slane %v2839, %v2842
    %v2844 = vrot.slane %v2837, 4
    %v2845 = vsel %vm164, %v2844, %v2835
    %v2847 = vunpack.c.l.s4 1983009808
    %v2848 = vunpack.c.0.s8 %v2847
    %v2849 = vperm.slane %v2845, %v2848
    %v2850 = vrot.slane %v2849, 4
    %v2851 = vsel %vm164, %v2850, %v2843
    %v2853 = vunpack.c.l.s4 1934713408
    %v2854 = vunpack.c.0.s8 %v2853
    %v2855 = vperm.slane %v2851, %v2854
    %v2856 = vrot.slane %v2855, 4
    %v2857 = vsel %vm164, 0.0, %v2856
    %v2858 = vxor.u32 %v2855, 2147483648
    %v2859 = vxor.u32 %v2857, 2147483648
    %v2860 = vmul.f32 %v2858, 1.442695
    %v2861 = vpow.pop %v2860
    %v2862 = vmul.f32 %v2859, 1.442695
    %v2863 = vpow.pop %v2862
    %v2864 = vadd.f32 %v2861, 1.0
    %v2865 = vadd.f32 %v2863, 1.0
    %v2866 = vrcp.pop %v2864
    %v2867 = vmul.f32 %v2864, %v2866
    %v2868 = vsub.f32 1.0, %v2867
    %v2869 = vmul.f32 %v2866, %v2868
    %v2870 = vadd.f32 %v2866, %v2869
    %vm2871 = vweird.f32 %v2864
    %vm2872 = vweird.f32 %v2866
    %vm2873 = vmor %vm2871, %vm2872
    %v2874 = vsel %vm2873, %v2866, %v2870
    %v2875 = vand.u32 2147483647, %v2864
    %vm2876 = vcmp.eq.f32.partialorder %v2875, 8.507059e+37
    %v2877 = vand.u32 %v2864, 2147483648
    %v2878 = vor.u32 1.1754944e-38, %v2877
    %v2879 = vsel %vm2876, %v2878, %v2874
    %v2880 = vmul.f32 1.0, %v2879
    %v2881 = vrcp.pop %v2865
    %v2882 = vmul.f32 %v2865, %v2881
    %v2883 = vsub.f32 1.0, %v2882
    %v2884 = vmul.f32 %v2881, %v2883
    %v2885 = vadd.f32 %v2881, %v2884
    %vm2886 = vweird.f32 %v2865
    %vm2887 = vweird.f32 %v2881
    %vm2888 = vmor %vm2886, %vm2887
    %v2889 = vsel %vm2888, %v2881, %v2885
    %v2890 = vand.u32 2147483647, %v2865
    %vm2891 = vcmp.eq.f32.partialorder %v2890, 8.507059e+37
    %v2892 = vand.u32 %v2865, 2147483648
    %v2893 = vor.u32 1.1754944e-38, %v2892
    %v2894 = vsel %vm2891, %v2893, %v2889
    %v2895 = vmul.f32 1.0, %v2894
    %v2896 = vtanh.pop %v2855
    %v2897 = vtanh.pop %v2857
    %v2898 = vmul.f32 %v2880, %v2356
    %v2899 = vmul.f32 %v2895, %v2357
    %2902 = vrot.lane.b32.xlu0 %v2896, 64
    %v2903 = vpop.permute.xlu0 %2902
    %2904 = vrot.lane.b32.xlu0 %v2897, 64
    %v2905 = vpop.permute.xlu0 %2904
    %v2908 = vmul.f32 %v2880, %v2903
    %v2909 = vmul.f32 %v2895, %v2905
    %2912 = vrot.lane.b32.xlu0 %v2908, 32
    %v2913 = vpop.permute.xlu0 %2912
    %2914 = vrot.lane.b32.xlu0 %v2909, 32
    %v2915 = vpop.permute.xlu0 %2914
    %v2918 = vadd.f32 %v2898, %v2913
    %v2919 = vadd.f32 %v2899, %v2915
    %v2920 = vtanh.pop %v2918
    %v2921 = vtanh.pop %v2919
    %2924 = vrot.lane.b32.xlu0 %v2920, 64
    %v2925 = vpop.permute.xlu0 %2924
    %2926 = vrot.lane.b32.xlu0 %v2921, 64
    %v2927 = vpop.permute.xlu0 %2926
    %v2930 = vmul.f32 %v2880, %v2925
    %v2931 = vmul.f32 %v2895, %v2927
    %s2932 = scalar_lea.vmem %s0, 20
    %v2933 = vld [vmem:[%s2932] sm:$0xf]
    %v2934 = vperm.slane %v2933, 0
    %v2935 = vlaneseq
    %v2936 = vshrl.u32 %v2935, 7
    %2938 = vset.pattern.permute.xlu0 %v2936
    %2939 = vperm.xlu0 %2938, %v2934
    %v2940 = vpop.permute.xlu0 %2939
    %v2941 = vperm.slane %v2933, 1
    %v2942 = vlaneseq
    %v2943 = vshrl.u32 %v2942, 7
    %2945 = vset.pattern.permute.xlu0 %v2943
    %2946 = vperm.xlu0 %2945, %v2941
    %v2947 = vpop.permute.xlu0 %2946
    %v2948 = vperm.slane %v2933, 2
    %v2949 = vlaneseq
    %v2950 = vshrl.u32 %v2949, 7
    %2952 = vset.pattern.permute.xlu0 %v2950
    %2953 = vperm.xlu0 %2952, %v2948
    %v2954 = vpop.permute.xlu0 %2953
    %v2955 = vperm.slane %v2933, 3
    %v2956 = vlaneseq
    %v2957 = vshrl.u32 %v2956, 7
    %2959 = vset.pattern.permute.xlu0 %v2957
    %2960 = vperm.xlu0 %2959, %v2955
    %v2961 = vpop.permute.xlu0 %2960
    %v2962 = vmul.f32 %v2940, %v147
    %v2963 = vmul.f32 %v2947, %v148
    %v2964 = vmul.f32 %v2954, %v149
    %v2965 = vmul.f32 %v2961, %v150
    %2966 = vmatpush.msra.mxu0 0.0
    %2967 = vmatpush.msra.mxu0 0.0
    %2968 = vmatpush.msra.mxu0 0.0
    %2969 = vmatpush.msra.mxu0 0.0
    %2970 = vmatpush.msra.mxu0 0.0
    %2971 = vmatpush.msra.mxu0 0.0
    %2972 = vmatpush.msra.mxu0 0.0
    %2973 = vmatpush.msra.mxu0 0.0
    %2974 = vmatpush.msra.mxu0 0.0
    %2975 = vmatpush.msra.mxu0 0.0
    %2976 = vmatpush.msra.mxu0 0.0
    %2977 = vmatpush.msra.mxu0 0.0
    %2978 = vmatpush.msra.mxu0 %v63
    %2979 = vmatpush.msra.mxu0 %v62
    %2980 = vmatpush.msra.mxu0 %v61
    %2981 = vmatpush.msra.mxu0 %v60
    %2982 = vmatmul.f32.gmra.mxu0 %v2743
    %v2983 = vpop.f32.mrf.mxu0
    %v2984 = vadd.f32 0.0, %v2983
    %2985 = vdwg.mxu0
    %2986 = vmatpush.msra.mxu0 0.0
    %2987 = vmatpush.msra.mxu0 0.0
    %2988 = vmatpush.msra.mxu0 0.0
    %2989 = vmatpush.msra.mxu0 0.0
    %2990 = vmatpush.msra.mxu0 0.0
    %2991 = vmatpush.msra.mxu0 0.0
    %2992 = vmatpush.msra.mxu0 0.0
    %2993 = vmatpush.msra.mxu0 0.0
    %2994 = vmatpush.msra.mxu0 0.0
    %2995 = vmatpush.msra.mxu0 0.0
    %2996 = vmatpush.msra.mxu0 0.0
    %2997 = vmatpush.msra.mxu0 0.0
    %2998 = vmatpush.msra.mxu0 %v71
    %2999 = vmatpush.msra.mxu0 %v70
    %3000 = vmatpush.msra.mxu0 %v69
    %3001 = vmatpush.msra.mxu0 %v68
    %3002 = vmatmul.f32.gmra.mxu0 %v2766
    %v3003 = vpop.f32.mrf.mxu0
    %v3004 = vadd.f32 0.0, %v3003
    %3005 = vdwg.mxu0
    %3006 = vmatpush.msra.mxu0 0.0
    %3007 = vmatpush.msra.mxu0 0.0
    %3008 = vmatpush.msra.mxu0 0.0
    %3009 = vmatpush.msra.mxu0 0.0
    %3010 = vmatpush.msra.mxu0 0.0
    %3011 = vmatpush.msra.mxu0 0.0
    %3012 = vmatpush.msra.mxu0 0.0
    %3013 = vmatpush.msra.mxu0 0.0
    %3014 = vmatpush.msra.mxu0 0.0
    %3015 = vmatpush.msra.mxu0 0.0
    %3016 = vmatpush.msra.mxu0 0.0
    %3017 = vmatpush.msra.mxu0 0.0
    %3018 = vmatpush.msra.mxu0 %v79
    %3019 = vmatpush.msra.mxu0 %v78
    %3020 = vmatpush.msra.mxu0 %v77
    %3021 = vmatpush.msra.mxu0 %v76
    %3022 = vmatmul.f32.gmra.mxu0 %v2789
    %v3023 = vpop.f32.mrf.mxu0
    %v3024 = vadd.f32 0.0, %v3023
    %3025 = vdwg.mxu0
    %3026 = vmatpush.msra.mxu0 0.0
    %3027 = vmatpush.msra.mxu0 0.0
    %3028 = vmatpush.msra.mxu0 0.0
    %3029 = vmatpush.msra.mxu0 0.0
    %3030 = vmatpush.msra.mxu0 0.0
    %3031 = vmatpush.msra.mxu0 0.0
    %3032 = vmatpush.msra.mxu0 0.0
    %3033 = vmatpush.msra.mxu0 0.0
    %3034 = vmatpush.msra.mxu0 0.0
    %3035 = vmatpush.msra.mxu0 0.0
    %3036 = vmatpush.msra.mxu0 0.0
    %3037 = vmatpush.msra.mxu0 0.0
    %3038 = vmatpush.msra.mxu0 %v87
    %3039 = vmatpush.msra.mxu0 %v86
    %3040 = vmatpush.msra.mxu0 %v85
    %3041 = vmatpush.msra.mxu0 %v84
    %3042 = vmatmul.f32.gmra.mxu0 %v2812
    %v3043 = vpop.f32.mrf.mxu0
    %v3044 = vadd.f32 0.0, %v3043
    %3045 = vdwg.mxu0
    %v3046 = vadd.f32 %v2962, %v2984
    %v3047 = vadd.f32 %v2963, %v3004
    %v3048 = vadd.f32 %v2964, %v3024
    %v3049 = vadd.f32 %v2965, %v3044
    %v3050 = vadd.f32 %v3046, %v276
    %v3051 = vadd.f32 %v3047, %v277
    %v3052 = vadd.f32 %v3048, %v278
    %v3053 = vadd.f32 %v3049, %v279
    %v3054 = vrot.slane %v3052, 4
    %v3055 = vsel %vm164, %v3054, %v3050
    %v3057 = vunpack.c.l.s4 1983009808
    %v3058 = vunpack.c.0.s8 %v3057
    %v3059 = vperm.slane %v3055, %v3058
    %v3060 = vrot.slane %v3053, 4
    %v3061 = vsel %vm164, %v3060, %v3051
    %v3063 = vunpack.c.l.s4 1983009808
    %v3064 = vunpack.c.0.s8 %v3063
    %v3065 = vperm.slane %v3061, %v3064
    %v3066 = vrot.slane %v3065, 4
    %v3067 = vsel %vm164, %v3066, %v3059
    %v3069 = vunpack.c.l.s4 1934713408
    %v3070 = vunpack.c.0.s8 %v3069
    %v3071 = vperm.slane %v3067, %v3070
    %v3072 = vrot.slane %v3071, 4
    %v3073 = vsel %vm164, 0.0, %v3072
    %v3074 = vxor.u32 %v3071, 2147483648
    %v3075 = vxor.u32 %v3073, 2147483648
    %v3076 = vmul.f32 %v3074, 1.442695
    %v3077 = vpow.pop %v3076
    %v3078 = vmul.f32 %v3075, 1.442695
    %v3079 = vpow.pop %v3078
    %v3080 = vadd.f32 %v3077, 1.0
    %v3081 = vadd.f32 %v3079, 1.0
    %v3082 = vrcp.pop %v3080
    %v3083 = vmul.f32 %v3080, %v3082
    %v3084 = vsub.f32 1.0, %v3083
    %v3085 = vmul.f32 %v3082, %v3084
    %v3086 = vadd.f32 %v3082, %v3085
    %vm3087 = vweird.f32 %v3080
    %vm3088 = vweird.f32 %v3082
    %vm3089 = vmor %vm3087, %vm3088
    %v3090 = vsel %vm3089, %v3082, %v3086
    %v3091 = vand.u32 2147483647, %v3080
    %vm3092 = vcmp.eq.f32.partialorder %v3091, 8.507059e+37
    %v3093 = vand.u32 %v3080, 2147483648
    %v3094 = vor.u32 1.1754944e-38, %v3093
    %v3095 = vsel %vm3092, %v3094, %v3090
    %v3096 = vmul.f32 1.0, %v3095
    %v3097 = vrcp.pop %v3081
    %v3098 = vmul.f32 %v3081, %v3097
    %v3099 = vsub.f32 1.0, %v3098
    %v3100 = vmul.f32 %v3097, %v3099
    %v3101 = vadd.f32 %v3097, %v3100
    %vm3102 = vweird.f32 %v3081
    %vm3103 = vweird.f32 %v3097
    %vm3104 = vmor %vm3102, %vm3103
    %v3105 = vsel %vm3104, %v3097, %v3101
    %v3106 = vand.u32 2147483647, %v3081
    %vm3107 = vcmp.eq.f32.partialorder %v3106, 8.507059e+37
    %v3108 = vand.u32 %v3081, 2147483648
    %v3109 = vor.u32 1.1754944e-38, %v3108
    %v3110 = vsel %vm3107, %v3109, %v3105
    %v3111 = vmul.f32 1.0, %v3110
    %v3112 = vtanh.pop %v3071
    %v3113 = vtanh.pop %v3073
    %v3114 = vmul.f32 %v3096, %v2572
    %v3115 = vmul.f32 %v3111, %v2573
    %3118 = vrot.lane.b32.xlu0 %v3112, 64
    %v3119 = vpop.permute.xlu0 %3118
    %3120 = vrot.lane.b32.xlu0 %v3113, 64
    %v3121 = vpop.permute.xlu0 %3120
    %v3124 = vmul.f32 %v3096, %v3119
    %v3125 = vmul.f32 %v3111, %v3121
    %3128 = vrot.lane.b32.xlu0 %v3124, 32
    %v3129 = vpop.permute.xlu0 %3128
    %3130 = vrot.lane.b32.xlu0 %v3125, 32
    %v3131 = vpop.permute.xlu0 %3130
    %v3134 = vadd.f32 %v3114, %v3129
    %v3135 = vadd.f32 %v3115, %v3131
    %v3136 = vtanh.pop %v3134
    %v3137 = vtanh.pop %v3135
    %3140 = vrot.lane.b32.xlu0 %v3136, 64
    %v3141 = vpop.permute.xlu0 %3140
    %3142 = vrot.lane.b32.xlu0 %v3137, 64
    %v3143 = vpop.permute.xlu0 %3142
    %v3146 = vmul.f32 %v3096, %v3141
    %v3147 = vmul.f32 %v3111, %v3143
    %3150 = vrot.lane.b32.xlu0 %v2930, 32
    %v3151 = vpop.permute.xlu0 %3150
    %3152 = vrot.lane.b32.xlu0 %v2931, 32
    %v3153 = vpop.permute.xlu0 %3152
    %v3156 = vunpack.c.l.s4 1983009808
    %v3157 = vunpack.c.0.s8 %v3156
    %v3158 = vperm.slane %v3151, %v3157
    %v3161 = vunpack.c.l.s4 1983009808
    %v3162 = vunpack.c.0.s8 %v3161
    %v3163 = vperm.slane %v3153, %v3162
    %v3164 = vrot.slane %v3163, 4
    %v3165 = vsel %vm164, %v3164, %v3158
    %v3166 = vrot.slane %v3158, 4
    %v3167 = vsel %vm164, %v3163, %v3166
    %v3169 = vunpack.c.l.s4 1934713408
    %v3170 = vunpack.c.0.s8 %v3169
    %v3171 = vperm.slane %v3165, %v3170
    %v3173 = vunpack.c.l.s4 1934713408
    %v3174 = vunpack.c.0.s8 %v3173
    %v3175 = vperm.slane %v3167, %v3174
    %v3176 = vrot.slane %v3171, 4
    %v3177 = vsel %vm164, 0.0, %v3176
    %v3178 = vrot.slane %v3175, 4
    %v3179 = vsel %vm164, 0.0, %v3178
    %v3181 = vsel %vm179, %v3171, 0
    %3183 = vmatpush.msra.mxu0 0.0
    %3184 = vmatpush.msra.mxu0 0.0
    %3185 = vmatpush.msra.mxu0 0.0
    %3186 = vmatpush.msra.mxu0 0.0
    %3187 = vmatpush.msra.mxu0 0.0
    %3188 = vmatpush.msra.mxu0 0.0
    %3189 = vmatpush.msra.mxu0 0.0
    %3190 = vmatpush.msra.mxu0 0.0
    %3191 = vmatpush.msra.mxu0 0.0
    %3192 = vmatpush.msra.mxu0 0.0
    %3193 = vmatpush.msra.mxu0 0.0
    %3194 = vmatpush.msra.mxu0 0.0
    %3195 = vmatpush.msra.mxu0 %v67
    %3196 = vmatpush.msra.mxu0 %v66
    %3197 = vmatpush.msra.mxu0 %v65
    %3198 = vmatpush.msra.mxu0 %v64
    %3199 = vmatmul.f32.gmra.mxu0 %v3181
    %v3200 = vpop.f32.mrf.mxu0
    %v3201 = vadd.f32 0.0, %v3200
    %3202 = vdwg.mxu0
    %v3204 = vsel %vm179, %v3177, 0
    %3206 = vmatpush.msra.mxu0 0.0
    %3207 = vmatpush.msra.mxu0 0.0
    %3208 = vmatpush.msra.mxu0 0.0
    %3209 = vmatpush.msra.mxu0 0.0
    %3210 = vmatpush.msra.mxu0 0.0
    %3211 = vmatpush.msra.mxu0 0.0
    %3212 = vmatpush.msra.mxu0 0.0
    %3213 = vmatpush.msra.mxu0 0.0
    %3214 = vmatpush.msra.mxu0 0.0
    %3215 = vmatpush.msra.mxu0 0.0
    %3216 = vmatpush.msra.mxu0 0.0
    %3217 = vmatpush.msra.mxu0 0.0
    %3218 = vmatpush.msra.mxu0 %v75
    %3219 = vmatpush.msra.mxu0 %v74
    %3220 = vmatpush.msra.mxu0 %v73
    %3221 = vmatpush.msra.mxu0 %v72
    %3222 = vmatmul.f32.gmra.mxu0 %v3204
    %v3223 = vpop.f32.mrf.mxu0
    %v3224 = vadd.f32 0.0, %v3223
    %3225 = vdwg.mxu0
    %v3227 = vsel %vm179, %v3175, 0
    %3229 = vmatpush.msra.mxu0 0.0
    %3230 = vmatpush.msra.mxu0 0.0
    %3231 = vmatpush.msra.mxu0 0.0
    %3232 = vmatpush.msra.mxu0 0.0
    %3233 = vmatpush.msra.mxu0 0.0
    %3234 = vmatpush.msra.mxu0 0.0
    %3235 = vmatpush.msra.mxu0 0.0
    %3236 = vmatpush.msra.mxu0 0.0
    %3237 = vmatpush.msra.mxu0 0.0
    %3238 = vmatpush.msra.mxu0 0.0
    %3239 = vmatpush.msra.mxu0 0.0
    %3240 = vmatpush.msra.mxu0 0.0
    %3241 = vmatpush.msra.mxu0 %v83
    %3242 = vmatpush.msra.mxu0 %v82
    %3243 = vmatpush.msra.mxu0 %v81
    %3244 = vmatpush.msra.mxu0 %v80
    %3245 = vmatmul.f32.gmra.mxu0 %v3227
    %v3246 = vpop.f32.mrf.mxu0
    %v3247 = vadd.f32 0.0, %v3246
    %3248 = vdwg.mxu0
    %v3250 = vsel %vm179, %v3179, 0
    %3252 = vmatpush.msra.mxu0 0.0
    %3253 = vmatpush.msra.mxu0 0.0
    %3254 = vmatpush.msra.mxu0 0.0
    %3255 = vmatpush.msra.mxu0 0.0
    %3256 = vmatpush.msra.mxu0 0.0
    %3257 = vmatpush.msra.mxu0 0.0
    %3258 = vmatpush.msra.mxu0 0.0
    %3259 = vmatpush.msra.mxu0 0.0
    %3260 = vmatpush.msra.mxu0 0.0
    %3261 = vmatpush.msra.mxu0 0.0
    %3262 = vmatpush.msra.mxu0 0.0
    %3263 = vmatpush.msra.mxu0 0.0
    %3264 = vmatpush.msra.mxu0 %v91
    %3265 = vmatpush.msra.mxu0 %v90
    %3266 = vmatpush.msra.mxu0 %v89
    %3267 = vmatpush.msra.mxu0 %v88
    %3268 = vmatmul.f32.gmra.mxu0 %v3250
    %v3269 = vpop.f32.mrf.mxu0
    %v3270 = vadd.f32 0.0, %v3269
    %3271 = vdwg.mxu0
    %3274 = vrot.lane.b32.xlu0 %v3146, 32
    %v3275 = vpop.permute.xlu0 %3274
    %3276 = vrot.lane.b32.xlu0 %v3147, 32
    %v3277 = vpop.permute.xlu0 %3276
    %v3280 = vunpack.c.l.s4 1983009808
    %v3281 = vunpack.c.0.s8 %v3280
    %v3282 = vperm.slane %v3275, %v3281
    %v3285 = vunpack.c.l.s4 1983009808
    %v3286 = vunpack.c.0.s8 %v3285
    %v3287 = vperm.slane %v3277, %v3286
    %v3288 = vrot.slane %v3287, 4
    %v3289 = vsel %vm164, %v3288, %v3282
    %v3290 = vrot.slane %v3282, 4
    %v3291 = vsel %vm164, %v3287, %v3290
    %v3293 = vunpack.c.l.s4 1934713408
    %v3294 = vunpack.c.0.s8 %v3293
    %v3295 = vperm.slane %v3289, %v3294
    %v3297 = vunpack.c.l.s4 1934713408
    %v3298 = vunpack.c.0.s8 %v3297
    %v3299 = vperm.slane %v3291, %v3298
    %v3300 = vrot.slane %v3295, 4
    %v3301 = vsel %vm164, 0.0, %v3300
    %v3302 = vrot.slane %v3299, 4
    %v3303 = vsel %vm164, 0.0, %v3302
    %v3305 = vsel %vm179, %v3295, 0
    %3307 = vmatpush.msra.mxu0 0.0
    %3308 = vmatpush.msra.mxu0 0.0
    %3309 = vmatpush.msra.mxu0 0.0
    %3310 = vmatpush.msra.mxu0 0.0
    %3311 = vmatpush.msra.mxu0 0.0
    %3312 = vmatpush.msra.mxu0 0.0
    %3313 = vmatpush.msra.mxu0 0.0
    %3314 = vmatpush.msra.mxu0 0.0
    %3315 = vmatpush.msra.mxu0 0.0
    %3316 = vmatpush.msra.mxu0 0.0
    %3317 = vmatpush.msra.mxu0 0.0
    %3318 = vmatpush.msra.mxu0 0.0
    %3319 = vmatpush.msra.mxu0 %v101
    %3320 = vmatpush.msra.mxu0 %v100
    %3321 = vmatpush.msra.mxu0 %v99
    %3322 = vmatpush.msra.mxu0 %v98
    %3323 = vmatmul.f32.gmra.mxu0 %v3305
    %v3324 = vpop.f32.mrf.mxu0
    %v3325 = vadd.f32 %v3201, %v3324
    %3326 = vdwg.mxu0
    %v3328 = vsel %vm179, %v3301, 0
    %3330 = vmatpush.msra.mxu0 0.0
    %3331 = vmatpush.msra.mxu0 0.0
    %3332 = vmatpush.msra.mxu0 0.0
    %3333 = vmatpush.msra.mxu0 0.0
    %3334 = vmatpush.msra.mxu0 0.0
    %3335 = vmatpush.msra.mxu0 0.0
    %3336 = vmatpush.msra.mxu0 0.0
    %3337 = vmatpush.msra.mxu0 0.0
    %3338 = vmatpush.msra.mxu0 0.0
    %3339 = vmatpush.msra.mxu0 0.0
    %3340 = vmatpush.msra.mxu0 0.0
    %3341 = vmatpush.msra.mxu0 0.0
    %3342 = vmatpush.msra.mxu0 %v105
    %3343 = vmatpush.msra.mxu0 %v104
    %3344 = vmatpush.msra.mxu0 %v103
    %3345 = vmatpush.msra.mxu0 %v102
    %3346 = vmatmul.f32.gmra.mxu0 %v3328
    %v3347 = vpop.f32.mrf.mxu0
    %v3348 = vadd.f32 %v3224, %v3347
    %3349 = vdwg.mxu0
    %v3351 = vsel %vm179, %v3299, 0
    %3353 = vmatpush.msra.mxu0 0.0
    %3354 = vmatpush.msra.mxu0 0.0
    %3355 = vmatpush.msra.mxu0 0.0
    %3356 = vmatpush.msra.mxu0 0.0
    %3357 = vmatpush.msra.mxu0 0.0
    %3358 = vmatpush.msra.mxu0 0.0
    %3359 = vmatpush.msra.mxu0 0.0
    %3360 = vmatpush.msra.mxu0 0.0
    %3361 = vmatpush.msra.mxu0 0.0
    %3362 = vmatpush.msra.mxu0 0.0
    %3363 = vmatpush.msra.mxu0 0.0
    %3364 = vmatpush.msra.mxu0 0.0
    %3365 = vmatpush.msra.mxu0 %v109
    %3366 = vmatpush.msra.mxu0 %v108
    %3367 = vmatpush.msra.mxu0 %v107
    %3368 = vmatpush.msra.mxu0 %v106
    %3369 = vmatmul.f32.gmra.mxu0 %v3351
    %v3370 = vpop.f32.mrf.mxu0
    %v3371 = vadd.f32 %v3247, %v3370
    %3372 = vdwg.mxu0
    %v3374 = vsel %vm179, %v3303, 0
    %3376 = vmatpush.msra.mxu0 0.0
    %3377 = vmatpush.msra.mxu0 0.0
    %3378 = vmatpush.msra.mxu0 0.0
    %3379 = vmatpush.msra.mxu0 0.0
    %3380 = vmatpush.msra.mxu0 0.0
    %3381 = vmatpush.msra.mxu0 0.0
    %3382 = vmatpush.msra.mxu0 0.0
    %3383 = vmatpush.msra.mxu0 0.0
    %3384 = vmatpush.msra.mxu0 0.0
    %3385 = vmatpush.msra.mxu0 0.0
    %3386 = vmatpush.msra.mxu0 0.0
    %3387 = vmatpush.msra.mxu0 0.0
    %3388 = vmatpush.msra.mxu0 %v113
    %3389 = vmatpush.msra.mxu0 %v112
    %3390 = vmatpush.msra.mxu0 %v111
    %3391 = vmatpush.msra.mxu0 %v110
    %3392 = vmatmul.f32.gmra.mxu0 %v3374
    %v3393 = vpop.f32.mrf.mxu0
    %v3394 = vadd.f32 %v3270, %v3393
    %3395 = vdwg.mxu0
    %v3396 = vadd.f32 %v3325, %v582
    %v3397 = vadd.f32 %v3348, %v583
    %v3398 = vadd.f32 %v3371, %v584
    %v3399 = vadd.f32 %v3394, %v585
    %v3400 = vrot.slane %v3398, 4
    %v3401 = vsel %vm164, %v3400, %v3396
    %v3403 = vunpack.c.l.s4 1983009808
    %v3404 = vunpack.c.0.s8 %v3403
    %v3405 = vperm.slane %v3401, %v3404
    %v3406 = vrot.slane %v3399, 4
    %v3407 = vsel %vm164, %v3406, %v3397
    %v3409 = vunpack.c.l.s4 1983009808
    %v3410 = vunpack.c.0.s8 %v3409
    %v3411 = vperm.slane %v3407, %v3410
    %v3412 = vrot.slane %v3411, 4
    %v3413 = vsel %vm164, %v3412, %v3405
    %v3415 = vunpack.c.l.s4 1934713408
    %v3416 = vunpack.c.0.s8 %v3415
    %v3417 = vperm.slane %v3413, %v3416
    %v3418 = vrot.slane %v3417, 4
    %v3419 = vsel %vm164, 0.0, %v3418
    %v3420 = vxor.u32 %v3417, 2147483648
    %v3421 = vxor.u32 %v3419, 2147483648
    %v3422 = vmul.f32 %v3420, 1.442695
    %v3423 = vpow.pop %v3422
    %v3424 = vmul.f32 %v3421, 1.442695
    %v3425 = vpow.pop %v3424
    %v3426 = vadd.f32 %v3423, 1.0
    %v3427 = vadd.f32 %v3425, 1.0
    %v3428 = vrcp.pop %v3426
    %v3429 = vmul.f32 %v3426, %v3428
    %v3430 = vsub.f32 1.0, %v3429
    %v3431 = vmul.f32 %v3428, %v3430
    %v3432 = vadd.f32 %v3428, %v3431
    %vm3433 = vweird.f32 %v3426
    %vm3434 = vweird.f32 %v3428
    %vm3435 = vmor %vm3433, %vm3434
    %v3436 = vsel %vm3435, %v3428, %v3432
    %v3437 = vand.u32 2147483647, %v3426
    %vm3438 = vcmp.eq.f32.partialorder %v3437, 8.507059e+37
    %v3439 = vand.u32 %v3426, 2147483648
    %v3440 = vor.u32 1.1754944e-38, %v3439
    %v3441 = vsel %vm3438, %v3440, %v3436
    %v3442 = vmul.f32 1.0, %v3441
    %v3443 = vrcp.pop %v3427
    %v3444 = vmul.f32 %v3427, %v3443
    %v3445 = vsub.f32 1.0, %v3444
    %v3446 = vmul.f32 %v3443, %v3445
    %v3447 = vadd.f32 %v3443, %v3446
    %vm3448 = vweird.f32 %v3427
    %vm3449 = vweird.f32 %v3443
    %vm3450 = vmor %vm3448, %vm3449
    %v3451 = vsel %vm3450, %v3443, %v3447
    %v3452 = vand.u32 2147483647, %v3427
    %vm3453 = vcmp.eq.f32.partialorder %v3452, 8.507059e+37
    %v3454 = vand.u32 %v3427, 2147483648
    %v3455 = vor.u32 1.1754944e-38, %v3454
    %v3456 = vsel %vm3453, %v3455, %v3451
    %v3457 = vmul.f32 1.0, %v3456
    %v3458 = vtanh.pop %v3417
    %v3459 = vtanh.pop %v3419
    %v3460 = vmul.f32 %v3442, %v2918
    %v3461 = vmul.f32 %v3457, %v2919
    %3464 = vrot.lane.b32.xlu0 %v3458, 64
    %v3465 = vpop.permute.xlu0 %3464
    %3466 = vrot.lane.b32.xlu0 %v3459, 64
    %v3467 = vpop.permute.xlu0 %3466
    %v3470 = vmul.f32 %v3442, %v3465
    %v3471 = vmul.f32 %v3457, %v3467
    %3474 = vrot.lane.b32.xlu0 %v3470, 32
    %v3475 = vpop.permute.xlu0 %3474
    %3476 = vrot.lane.b32.xlu0 %v3471, 32
    %v3477 = vpop.permute.xlu0 %3476
    %v3480 = vadd.f32 %v3460, %v3475
    %v3481 = vadd.f32 %v3461, %v3477
    %v3482 = vtanh.pop %v3480
    %v3483 = vtanh.pop %v3481
    %3486 = vrot.lane.b32.xlu0 %v3482, 64
    %v3487 = vpop.permute.xlu0 %3486
    %3488 = vrot.lane.b32.xlu0 %v3483, 64
    %v3489 = vpop.permute.xlu0 %3488
    %v3492 = vmul.f32 %v3442, %v3487
    %v3493 = vmul.f32 %v3457, %v3489
    %s3494 = scalar_lea.vmem %s0, 24
    %v3495 = vld [vmem:[%s3494] sm:$0xf]
    %v3496 = vperm.slane %v3495, 0
    %v3497 = vlaneseq
    %v3498 = vshrl.u32 %v3497, 7
    %3500 = vset.pattern.permute.xlu0 %v3498
    %3501 = vperm.xlu0 %3500, %v3496
    %v3502 = vpop.permute.xlu0 %3501
    %v3503 = vperm.slane %v3495, 1
    %v3504 = vlaneseq
    %v3505 = vshrl.u32 %v3504, 7
    %3507 = vset.pattern.permute.xlu0 %v3505
    %3508 = vperm.xlu0 %3507, %v3503
    %v3509 = vpop.permute.xlu0 %3508
    %v3510 = vperm.slane %v3495, 2
    %v3511 = vlaneseq
    %v3512 = vshrl.u32 %v3511, 7
    %3514 = vset.pattern.permute.xlu0 %v3512
    %3515 = vperm.xlu0 %3514, %v3510
    %v3516 = vpop.permute.xlu0 %3515
    %v3517 = vperm.slane %v3495, 3
    %v3518 = vlaneseq
    %v3519 = vshrl.u32 %v3518, 7
    %3521 = vset.pattern.permute.xlu0 %v3519
    %3522 = vperm.xlu0 %3521, %v3517
    %v3523 = vpop.permute.xlu0 %3522
    %v3524 = vmul.f32 %v3502, %v147
    %v3525 = vmul.f32 %v3509, %v148
    %v3526 = vmul.f32 %v3516, %v149
    %v3527 = vmul.f32 %v3523, %v150
    %3528 = vmatpush.msra.mxu0 0.0
    %3529 = vmatpush.msra.mxu0 0.0
    %3530 = vmatpush.msra.mxu0 0.0
    %3531 = vmatpush.msra.mxu0 0.0
    %3532 = vmatpush.msra.mxu0 0.0
    %3533 = vmatpush.msra.mxu0 0.0
    %3534 = vmatpush.msra.mxu0 0.0
    %3535 = vmatpush.msra.mxu0 0.0
    %3536 = vmatpush.msra.mxu0 0.0
    %3537 = vmatpush.msra.mxu0 0.0
    %3538 = vmatpush.msra.mxu0 0.0
    %3539 = vmatpush.msra.mxu0 0.0
    %3540 = vmatpush.msra.mxu0 %v63
    %3541 = vmatpush.msra.mxu0 %v62
    %3542 = vmatpush.msra.mxu0 %v61
    %3543 = vmatpush.msra.mxu0 %v60
    %3544 = vmatmul.f32.gmra.mxu0 %v3305
    %v3545 = vpop.f32.mrf.mxu0
    %v3546 = vadd.f32 0.0, %v3545
    %3547 = vdwg.mxu0
    %3548 = vmatpush.msra.mxu0 0.0
    %3549 = vmatpush.msra.mxu0 0.0
    %3550 = vmatpush.msra.mxu0 0.0
    %3551 = vmatpush.msra.mxu0 0.0
    %3552 = vmatpush.msra.mxu0 0.0
    %3553 = vmatpush.msra.mxu0 0.0
    %3554 = vmatpush.msra.mxu0 0.0
    %3555 = vmatpush.msra.mxu0 0.0
    %3556 = vmatpush.msra.mxu0 0.0
    %3557 = vmatpush.msra.mxu0 0.0
    %3558 = vmatpush.msra.mxu0 0.0
    %3559 = vmatpush.msra.mxu0 0.0
    %3560 = vmatpush.msra.mxu0 %v71
    %3561 = vmatpush.msra.mxu0 %v70
    %3562 = vmatpush.msra.mxu0 %v69
    %3563 = vmatpush.msra.mxu0 %v68
    %3564 = vmatmul.f32.gmra.mxu0 %v3328
    %v3565 = vpop.f32.mrf.mxu0
    %v3566 = vadd.f32 0.0, %v3565
    %3567 = vdwg.mxu0
    %3568 = vmatpush.msra.mxu0 0.0
    %3569 = vmatpush.msra.mxu0 0.0
    %3570 = vmatpush.msra.mxu0 0.0
    %3571 = vmatpush.msra.mxu0 0.0
    %3572 = vmatpush.msra.mxu0 0.0
    %3573 = vmatpush.msra.mxu0 0.0
    %3574 = vmatpush.msra.mxu0 0.0
    %3575 = vmatpush.msra.mxu0 0.0
    %3576 = vmatpush.msra.mxu0 0.0
    %3577 = vmatpush.msra.mxu0 0.0
    %3578 = vmatpush.msra.mxu0 0.0
    %3579 = vmatpush.msra.mxu0 0.0
    %3580 = vmatpush.msra.mxu0 %v79
    %3581 = vmatpush.msra.mxu0 %v78
    %3582 = vmatpush.msra.mxu0 %v77
    %3583 = vmatpush.msra.mxu0 %v76
    %3584 = vmatmul.f32.gmra.mxu0 %v3351
    %v3585 = vpop.f32.mrf.mxu0
    %v3586 = vadd.f32 0.0, %v3585
    %3587 = vdwg.mxu0
    %3588 = vmatpush.msra.mxu0 0.0
    %3589 = vmatpush.msra.mxu0 0.0
    %3590 = vmatpush.msra.mxu0 0.0
    %3591 = vmatpush.msra.mxu0 0.0
    %3592 = vmatpush.msra.mxu0 0.0
    %3593 = vmatpush.msra.mxu0 0.0
    %3594 = vmatpush.msra.mxu0 0.0
    %3595 = vmatpush.msra.mxu0 0.0
    %3596 = vmatpush.msra.mxu0 0.0
    %3597 = vmatpush.msra.mxu0 0.0
    %3598 = vmatpush.msra.mxu0 0.0
    %3599 = vmatpush.msra.mxu0 0.0
    %3600 = vmatpush.msra.mxu0 %v87
    %3601 = vmatpush.msra.mxu0 %v86
    %3602 = vmatpush.msra.mxu0 %v85
    %3603 = vmatpush.msra.mxu0 %v84
    %3604 = vmatmul.f32.gmra.mxu0 %v3374
    %v3605 = vpop.f32.mrf.mxu0
    %v3606 = vadd.f32 0.0, %v3605
    %3607 = vdwg.mxu0
    %v3608 = vadd.f32 %v3524, %v3546
    %v3609 = vadd.f32 %v3525, %v3566
    %v3610 = vadd.f32 %v3526, %v3586
    %v3611 = vadd.f32 %v3527, %v3606
    %v3612 = vadd.f32 %v3608, %v276
    %v3613 = vadd.f32 %v3609, %v277
    %v3614 = vadd.f32 %v3610, %v278
    %v3615 = vadd.f32 %v3611, %v279
    %v3616 = vrot.slane %v3614, 4
    %v3617 = vsel %vm164, %v3616, %v3612
    %v3619 = vunpack.c.l.s4 1983009808
    %v3620 = vunpack.c.0.s8 %v3619
    %v3621 = vperm.slane %v3617, %v3620
    %v3622 = vrot.slane %v3615, 4
    %v3623 = vsel %vm164, %v3622, %v3613
    %v3625 = vunpack.c.l.s4 1983009808
    %v3626 = vunpack.c.0.s8 %v3625
    %v3627 = vperm.slane %v3623, %v3626
    %v3628 = vrot.slane %v3627, 4
    %v3629 = vsel %vm164, %v3628, %v3621
    %v3631 = vunpack.c.l.s4 1934713408
    %v3632 = vunpack.c.0.s8 %v3631
    %v3633 = vperm.slane %v3629, %v3632
    %v3634 = vrot.slane %v3633, 4
    %v3635 = vsel %vm164, 0.0, %v3634
    %v3636 = vxor.u32 %v3633, 2147483648
    %v3637 = vxor.u32 %v3635, 2147483648
    %v3638 = vmul.f32 %v3636, 1.442695
    %v3639 = vpow.pop %v3638
    %v3640 = vmul.f32 %v3637, 1.442695
    %v3641 = vpow.pop %v3640
    %v3642 = vadd.f32 %v3639, 1.0
    %v3643 = vadd.f32 %v3641, 1.0
    %v3644 = vrcp.pop %v3642
    %v3645 = vmul.f32 %v3642, %v3644
    %v3646 = vsub.f32 1.0, %v3645
    %v3647 = vmul.f32 %v3644, %v3646
    %v3648 = vadd.f32 %v3644, %v3647
    %vm3649 = vweird.f32 %v3642
    %vm3650 = vweird.f32 %v3644
    %vm3651 = vmor %vm3649, %vm3650
    %v3652 = vsel %vm3651, %v3644, %v3648
    %v3653 = vand.u32 2147483647, %v3642
    %vm3654 = vcmp.eq.f32.partialorder %v3653, 8.507059e+37
    %v3655 = vand.u32 %v3642, 2147483648
    %v3656 = vor.u32 1.1754944e-38, %v3655
    %v3657 = vsel %vm3654, %v3656, %v3652
    %v3658 = vmul.f32 1.0, %v3657
    %v3659 = vrcp.pop %v3643
    %v3660 = vmul.f32 %v3643, %v3659
    %v3661 = vsub.f32 1.0, %v3660
    %v3662 = vmul.f32 %v3659, %v3661
    %v3663 = vadd.f32 %v3659, %v3662
    %vm3664 = vweird.f32 %v3643
    %vm3665 = vweird.f32 %v3659
    %vm3666 = vmor %vm3664, %vm3665
    %v3667 = vsel %vm3666, %v3659, %v3663
    %v3668 = vand.u32 2147483647, %v3643
    %vm3669 = vcmp.eq.f32.partialorder %v3668, 8.507059e+37
    %v3670 = vand.u32 %v3643, 2147483648
    %v3671 = vor.u32 1.1754944e-38, %v3670
    %v3672 = vsel %vm3669, %v3671, %v3667
    %v3673 = vmul.f32 1.0, %v3672
    %v3674 = vtanh.pop %v3633
    %v3675 = vtanh.pop %v3635
    %v3676 = vmul.f32 %v3658, %v3134
    %v3677 = vmul.f32 %v3673, %v3135
    %3680 = vrot.lane.b32.xlu0 %v3674, 64
    %v3681 = vpop.permute.xlu0 %3680
    %3682 = vrot.lane.b32.xlu0 %v3675, 64
    %v3683 = vpop.permute.xlu0 %3682
    %v3686 = vmul.f32 %v3658, %v3681
    %v3687 = vmul.f32 %v3673, %v3683
    %3690 = vrot.lane.b32.xlu0 %v3686, 32
    %v3691 = vpop.permute.xlu0 %3690
    %3692 = vrot.lane.b32.xlu0 %v3687, 32
    %v3693 = vpop.permute.xlu0 %3692
    %v3696 = vadd.f32 %v3676, %v3691
    %v3697 = vadd.f32 %v3677, %v3693
    %v3698 = vtanh.pop %v3696
    %v3699 = vtanh.pop %v3697
    %3702 = vrot.lane.b32.xlu0 %v3698, 64
    %v3703 = vpop.permute.xlu0 %3702
    %3704 = vrot.lane.b32.xlu0 %v3699, 64
    %v3705 = vpop.permute.xlu0 %3704
    %v3708 = vmul.f32 %v3658, %v3703
    %v3709 = vmul.f32 %v3673, %v3705
    %3712 = vrot.lane.b32.xlu0 %v3492, 32
    %v3713 = vpop.permute.xlu0 %3712
    %3714 = vrot.lane.b32.xlu0 %v3493, 32
    %v3715 = vpop.permute.xlu0 %3714
    %v3718 = vunpack.c.l.s4 1983009808
    %v3719 = vunpack.c.0.s8 %v3718
    %v3720 = vperm.slane %v3713, %v3719
    %v3723 = vunpack.c.l.s4 1983009808
    %v3724 = vunpack.c.0.s8 %v3723
    %v3725 = vperm.slane %v3715, %v3724
    %v3726 = vrot.slane %v3725, 4
    %v3727 = vsel %vm164, %v3726, %v3720
    %v3728 = vrot.slane %v3720, 4
    %v3729 = vsel %vm164, %v3725, %v3728
    %v3731 = vunpack.c.l.s4 1934713408
    %v3732 = vunpack.c.0.s8 %v3731
    %v3733 = vperm.slane %v3727, %v3732
    %v3735 = vunpack.c.l.s4 1934713408
    %v3736 = vunpack.c.0.s8 %v3735
    %v3737 = vperm.slane %v3729, %v3736
    %v3738 = vrot.slane %v3733, 4
    %v3739 = vsel %vm164, 0.0, %v3738
    %v3740 = vrot.slane %v3737, 4
    %v3741 = vsel %vm164, 0.0, %v3740
    %v3743 = vsel %vm179, %v3733, 0
    %3745 = vmatpush.msra.mxu0 0.0
    %3746 = vmatpush.msra.mxu0 0.0
    %3747 = vmatpush.msra.mxu0 0.0
    %3748 = vmatpush.msra.mxu0 0.0
    %3749 = vmatpush.msra.mxu0 0.0
    %3750 = vmatpush.msra.mxu0 0.0
    %3751 = vmatpush.msra.mxu0 0.0
    %3752 = vmatpush.msra.mxu0 0.0
    %3753 = vmatpush.msra.mxu0 0.0
    %3754 = vmatpush.msra.mxu0 0.0
    %3755 = vmatpush.msra.mxu0 0.0
    %3756 = vmatpush.msra.mxu0 0.0
    %3757 = vmatpush.msra.mxu0 %v67
    %3758 = vmatpush.msra.mxu0 %v66
    %3759 = vmatpush.msra.mxu0 %v65
    %3760 = vmatpush.msra.mxu0 %v64
    %3761 = vmatmul.f32.gmra.mxu0 %v3743
    %v3762 = vpop.f32.mrf.mxu0
    %v3763 = vadd.f32 0.0, %v3762
    %3764 = vdwg.mxu0
    %v3766 = vsel %vm179, %v3739, 0
    %3768 = vmatpush.msra.mxu0 0.0
    %3769 = vmatpush.msra.mxu0 0.0
    %3770 = vmatpush.msra.mxu0 0.0
    %3771 = vmatpush.msra.mxu0 0.0
    %3772 = vmatpush.msra.mxu0 0.0
    %3773 = vmatpush.msra.mxu0 0.0
    %3774 = vmatpush.msra.mxu0 0.0
    %3775 = vmatpush.msra.mxu0 0.0
    %3776 = vmatpush.msra.mxu0 0.0
    %3777 = vmatpush.msra.mxu0 0.0
    %3778 = vmatpush.msra.mxu0 0.0
    %3779 = vmatpush.msra.mxu0 0.0
    %3780 = vmatpush.msra.mxu0 %v75
    %3781 = vmatpush.msra.mxu0 %v74
    %3782 = vmatpush.msra.mxu0 %v73
    %3783 = vmatpush.msra.mxu0 %v72
    %3784 = vmatmul.f32.gmra.mxu0 %v3766
    %v3785 = vpop.f32.mrf.mxu0
    %v3786 = vadd.f32 0.0, %v3785
    %3787 = vdwg.mxu0
    %v3789 = vsel %vm179, %v3737, 0
    %3791 = vmatpush.msra.mxu0 0.0
    %3792 = vmatpush.msra.mxu0 0.0
    %3793 = vmatpush.msra.mxu0 0.0
    %3794 = vmatpush.msra.mxu0 0.0
    %3795 = vmatpush.msra.mxu0 0.0
    %3796 = vmatpush.msra.mxu0 0.0
    %3797 = vmatpush.msra.mxu0 0.0
    %3798 = vmatpush.msra.mxu0 0.0
    %3799 = vmatpush.msra.mxu0 0.0
    %3800 = vmatpush.msra.mxu0 0.0
    %3801 = vmatpush.msra.mxu0 0.0
    %3802 = vmatpush.msra.mxu0 0.0
    %3803 = vmatpush.msra.mxu0 %v83
    %3804 = vmatpush.msra.mxu0 %v82
    %3805 = vmatpush.msra.mxu0 %v81
    %3806 = vmatpush.msra.mxu0 %v80
    %3807 = vmatmul.f32.gmra.mxu0 %v3789
    %v3808 = vpop.f32.mrf.mxu0
    %v3809 = vadd.f32 0.0, %v3808
    %3810 = vdwg.mxu0
    %v3812 = vsel %vm179, %v3741, 0
    %3814 = vmatpush.msra.mxu0 0.0
    %3815 = vmatpush.msra.mxu0 0.0
    %3816 = vmatpush.msra.mxu0 0.0
    %3817 = vmatpush.msra.mxu0 0.0
    %3818 = vmatpush.msra.mxu0 0.0
    %3819 = vmatpush.msra.mxu0 0.0
    %3820 = vmatpush.msra.mxu0 0.0
    %3821 = vmatpush.msra.mxu0 0.0
    %3822 = vmatpush.msra.mxu0 0.0
    %3823 = vmatpush.msra.mxu0 0.0
    %3824 = vmatpush.msra.mxu0 0.0
    %3825 = vmatpush.msra.mxu0 0.0
    %3826 = vmatpush.msra.mxu0 %v91
    %3827 = vmatpush.msra.mxu0 %v90
    %3828 = vmatpush.msra.mxu0 %v89
    %3829 = vmatpush.msra.mxu0 %v88
    %3830 = vmatmul.f32.gmra.mxu0 %v3812
    %v3831 = vpop.f32.mrf.mxu0
    %v3832 = vadd.f32 0.0, %v3831
    %3833 = vdwg.mxu0
    %3836 = vrot.lane.b32.xlu0 %v3708, 32
    %v3837 = vpop.permute.xlu0 %3836
    %3838 = vrot.lane.b32.xlu0 %v3709, 32
    %v3839 = vpop.permute.xlu0 %3838
    %v3842 = vunpack.c.l.s4 1983009808
    %v3843 = vunpack.c.0.s8 %v3842
    %v3844 = vperm.slane %v3837, %v3843
    %v3847 = vunpack.c.l.s4 1983009808
    %v3848 = vunpack.c.0.s8 %v3847
    %v3849 = vperm.slane %v3839, %v3848
    %v3850 = vrot.slane %v3849, 4
    %v3851 = vsel %vm164, %v3850, %v3844
    %v3852 = vrot.slane %v3844, 4
    %v3853 = vsel %vm164, %v3849, %v3852
    %v3855 = vunpack.c.l.s4 1934713408
    %v3856 = vunpack.c.0.s8 %v3855
    %v3857 = vperm.slane %v3851, %v3856
    %v3859 = vunpack.c.l.s4 1934713408
    %v3860 = vunpack.c.0.s8 %v3859
    %v3861 = vperm.slane %v3853, %v3860
    %v3862 = vrot.slane %v3857, 4
    %v3863 = vsel %vm164, 0.0, %v3862
    %v3864 = vrot.slane %v3861, 4
    %v3865 = vsel %vm164, 0.0, %v3864
    %v3867 = vsel %vm179, %v3857, 0
    %3869 = vmatpush.msra.mxu0 0.0
    %3870 = vmatpush.msra.mxu0 0.0
    %3871 = vmatpush.msra.mxu0 0.0
    %3872 = vmatpush.msra.mxu0 0.0
    %3873 = vmatpush.msra.mxu0 0.0
    %3874 = vmatpush.msra.mxu0 0.0
    %3875 = vmatpush.msra.mxu0 0.0
    %3876 = vmatpush.msra.mxu0 0.0
    %3877 = vmatpush.msra.mxu0 0.0
    %3878 = vmatpush.msra.mxu0 0.0
    %3879 = vmatpush.msra.mxu0 0.0
    %3880 = vmatpush.msra.mxu0 0.0
    %3881 = vmatpush.msra.mxu0 %v101
    %3882 = vmatpush.msra.mxu0 %v100
    %3883 = vmatpush.msra.mxu0 %v99
    %3884 = vmatpush.msra.mxu0 %v98
    %3885 = vmatmul.f32.gmra.mxu0 %v3867
    %v3886 = vpop.f32.mrf.mxu0
    %v3887 = vadd.f32 %v3763, %v3886
    %3888 = vdwg.mxu0
    %v3890 = vsel %vm179, %v3863, 0
    %3892 = vmatpush.msra.mxu0 0.0
    %3893 = vmatpush.msra.mxu0 0.0
    %3894 = vmatpush.msra.mxu0 0.0
    %3895 = vmatpush.msra.mxu0 0.0
    %3896 = vmatpush.msra.mxu0 0.0
    %3897 = vmatpush.msra.mxu0 0.0
    %3898 = vmatpush.msra.mxu0 0.0
    %3899 = vmatpush.msra.mxu0 0.0
    %3900 = vmatpush.msra.mxu0 0.0
    %3901 = vmatpush.msra.mxu0 0.0
    %3902 = vmatpush.msra.mxu0 0.0
    %3903 = vmatpush.msra.mxu0 0.0
    %3904 = vmatpush.msra.mxu0 %v105
    %3905 = vmatpush.msra.mxu0 %v104
    %3906 = vmatpush.msra.mxu0 %v103
    %3907 = vmatpush.msra.mxu0 %v102
    %3908 = vmatmul.f32.gmra.mxu0 %v3890
    %v3909 = vpop.f32.mrf.mxu0
    %v3910 = vadd.f32 %v3786, %v3909
    %3911 = vdwg.mxu0
    %v3913 = vsel %vm179, %v3861, 0
    %3915 = vmatpush.msra.mxu0 0.0
    %3916 = vmatpush.msra.mxu0 0.0
    %3917 = vmatpush.msra.mxu0 0.0
    %3918 = vmatpush.msra.mxu0 0.0
    %3919 = vmatpush.msra.mxu0 0.0
    %3920 = vmatpush.msra.mxu0 0.0
    %3921 = vmatpush.msra.mxu0 0.0
    %3922 = vmatpush.msra.mxu0 0.0
    %3923 = vmatpush.msra.mxu0 0.0
    %3924 = vmatpush.msra.mxu0 0.0
    %3925 = vmatpush.msra.mxu0 0.0
    %3926 = vmatpush.msra.mxu0 0.0
    %3927 = vmatpush.msra.mxu0 %v109
    %3928 = vmatpush.msra.mxu0 %v108
    %3929 = vmatpush.msra.mxu0 %v107
    %3930 = vmatpush.msra.mxu0 %v106
    %3931 = vmatmul.f32.gmra.mxu0 %v3913
    %v3932 = vpop.f32.mrf.mxu0
    %v3933 = vadd.f32 %v3809, %v3932
    %3934 = vdwg.mxu0
    %v3936 = vsel %vm179, %v3865, 0
    %3938 = vmatpush.msra.mxu0 0.0
    %3939 = vmatpush.msra.mxu0 0.0
    %3940 = vmatpush.msra.mxu0 0.0
    %3941 = vmatpush.msra.mxu0 0.0
    %3942 = vmatpush.msra.mxu0 0.0
    %3943 = vmatpush.msra.mxu0 0.0
    %3944 = vmatpush.msra.mxu0 0.0
    %3945 = vmatpush.msra.mxu0 0.0
    %3946 = vmatpush.msra.mxu0 0.0
    %3947 = vmatpush.msra.mxu0 0.0
    %3948 = vmatpush.msra.mxu0 0.0
    %3949 = vmatpush.msra.mxu0 0.0
    %3950 = vmatpush.msra.mxu0 %v113
    %3951 = vmatpush.msra.mxu0 %v112
    %3952 = vmatpush.msra.mxu0 %v111
    %3953 = vmatpush.msra.mxu0 %v110
    %3954 = vmatmul.f32.gmra.mxu0 %v3936
    %v3955 = vpop.f32.mrf.mxu0
    %v3956 = vadd.f32 %v3832, %v3955
    %3957 = vdwg.mxu0
    %v3958 = vadd.f32 %v3887, %v582
    %v3959 = vadd.f32 %v3910, %v583
    %v3960 = vadd.f32 %v3933, %v584
    %v3961 = vadd.f32 %v3956, %v585
    %v3962 = vrot.slane %v3960, 4
    %v3963 = vsel %vm164, %v3962, %v3958
    %v3965 = vunpack.c.l.s4 1983009808
    %v3966 = vunpack.c.0.s8 %v3965
    %v3967 = vperm.slane %v3963, %v3966
    %v3968 = vrot.slane %v3961, 4
    %v3969 = vsel %vm164, %v3968, %v3959
    %v3971 = vunpack.c.l.s4 1983009808
    %v3972 = vunpack.c.0.s8 %v3971
    %v3973 = vperm.slane %v3969, %v3972
    %v3974 = vrot.slane %v3973, 4
    %v3975 = vsel %vm164, %v3974, %v3967
    %v3977 = vunpack.c.l.s4 1934713408
    %v3978 = vunpack.c.0.s8 %v3977
    %v3979 = vperm.slane %v3975, %v3978
    %v3980 = vrot.slane %v3979, 4
    %v3981 = vsel %vm164, 0.0, %v3980
    %v3982 = vxor.u32 %v3979, 2147483648
    %v3983 = vxor.u32 %v3981, 2147483648
    %v3984 = vmul.f32 %v3982, 1.442695
    %v3985 = vpow.pop %v3984
    %v3986 = vmul.f32 %v3983, 1.442695
    %v3987 = vpow.pop %v3986
    %v3988 = vadd.f32 %v3985, 1.0
    %v3989 = vadd.f32 %v3987, 1.0
    %v3990 = vrcp.pop %v3988
    %v3991 = vmul.f32 %v3988, %v3990
    %v3992 = vsub.f32 1.0, %v3991
    %v3993 = vmul.f32 %v3990, %v3992
    %v3994 = vadd.f32 %v3990, %v3993
    %vm3995 = vweird.f32 %v3988
    %vm3996 = vweird.f32 %v3990
    %vm3997 = vmor %vm3995, %vm3996
    %v3998 = vsel %vm3997, %v3990, %v3994
    %v3999 = vand.u32 2147483647, %v3988
    %vm4000 = vcmp.eq.f32.partialorder %v3999, 8.507059e+37
    %v4001 = vand.u32 %v3988, 2147483648
    %v4002 = vor.u32 1.1754944e-38, %v4001
    %v4003 = vsel %vm4000, %v4002, %v3998
    %v4004 = vmul.f32 1.0, %v4003
    %v4005 = vrcp.pop %v3989
    %v4006 = vmul.f32 %v3989, %v4005
    %v4007 = vsub.f32 1.0, %v4006
    %v4008 = vmul.f32 %v4005, %v4007
    %v4009 = vadd.f32 %v4005, %v4008
    %vm4010 = vweird.f32 %v3989
    %vm4011 = vweird.f32 %v4005
    %vm4012 = vmor %vm4010, %vm4011
    %v4013 = vsel %vm4012, %v4005, %v4009
    %v4014 = vand.u32 2147483647, %v3989
    %vm4015 = vcmp.eq.f32.partialorder %v4014, 8.507059e+37
    %v4016 = vand.u32 %v3989, 2147483648
    %v4017 = vor.u32 1.1754944e-38, %v4016
    %v4018 = vsel %vm4015, %v4017, %v4013
    %v4019 = vmul.f32 1.0, %v4018
    %v4020 = vtanh.pop %v3979
    %v4021 = vtanh.pop %v3981
    %v4022 = vmul.f32 %v4004, %v3480
    %v4023 = vmul.f32 %v4019, %v3481
    %4026 = vrot.lane.b32.xlu0 %v4020, 64
    %v4027 = vpop.permute.xlu0 %4026
    %4028 = vrot.lane.b32.xlu0 %v4021, 64
    %v4029 = vpop.permute.xlu0 %4028
    %v4032 = vmul.f32 %v4004, %v4027
    %v4033 = vmul.f32 %v4019, %v4029
    %4036 = vrot.lane.b32.xlu0 %v4032, 32
    %v4037 = vpop.permute.xlu0 %4036
    %4038 = vrot.lane.b32.xlu0 %v4033, 32
    %v4039 = vpop.permute.xlu0 %4038
    %v4042 = vadd.f32 %v4022, %v4037
    %v4043 = vadd.f32 %v4023, %v4039
    %v4044 = vtanh.pop %v4042
    %v4045 = vtanh.pop %v4043
    %4048 = vrot.lane.b32.xlu0 %v4044, 64
    %v4049 = vpop.permute.xlu0 %4048
    %4050 = vrot.lane.b32.xlu0 %v4045, 64
    %v4051 = vpop.permute.xlu0 %4050
    %v4054 = vmul.f32 %v4004, %v4049
    %v4055 = vmul.f32 %v4019, %v4051
    %s4056 = scalar_lea.vmem %s0, 28
    %v4057 = vld [vmem:[%s4056] sm:$0xf]
    %v4058 = vperm.slane %v4057, 0
    %v4059 = vlaneseq
    %v4060 = vshrl.u32 %v4059, 7
    %4062 = vset.pattern.permute.xlu0 %v4060
    %4063 = vperm.xlu0 %4062, %v4058
    %v4064 = vpop.permute.xlu0 %4063
    %v4065 = vperm.slane %v4057, 1
    %v4066 = vlaneseq
    %v4067 = vshrl.u32 %v4066, 7
    %4069 = vset.pattern.permute.xlu0 %v4067
    %4070 = vperm.xlu0 %4069, %v4065
    %v4071 = vpop.permute.xlu0 %4070
    %v4072 = vperm.slane %v4057, 2
    %v4073 = vlaneseq
    %v4074 = vshrl.u32 %v4073, 7
    %4076 = vset.pattern.permute.xlu0 %v4074
    %4077 = vperm.xlu0 %4076, %v4072
    %v4078 = vpop.permute.xlu0 %4077
    %v4079 = vperm.slane %v4057, 3
    %v4080 = vlaneseq
    %v4081 = vshrl.u32 %v4080, 7
    %4083 = vset.pattern.permute.xlu0 %v4081
    %4084 = vperm.xlu0 %4083, %v4079
    %v4085 = vpop.permute.xlu0 %4084
    %v4086 = vmul.f32 %v4064, %v147
    %v4087 = vmul.f32 %v4071, %v148
    %v4088 = vmul.f32 %v4078, %v149
    %v4089 = vmul.f32 %v4085, %v150
    %4090 = vmatpush.msra.mxu0 0.0
    %4091 = vmatpush.msra.mxu0 0.0
    %4092 = vmatpush.msra.mxu0 0.0
    %4093 = vmatpush.msra.mxu0 0.0
    %4094 = vmatpush.msra.mxu0 0.0
    %4095 = vmatpush.msra.mxu0 0.0
    %4096 = vmatpush.msra.mxu0 0.0
    %4097 = vmatpush.msra.mxu0 0.0
    %4098 = vmatpush.msra.mxu0 0.0
    %4099 = vmatpush.msra.mxu0 0.0
    %4100 = vmatpush.msra.mxu0 0.0
    %4101 = vmatpush.msra.mxu0 0.0
    %4102 = vmatpush.msra.mxu0 %v63
    %4103 = vmatpush.msra.mxu0 %v62
    %4104 = vmatpush.msra.mxu0 %v61
    %4105 = vmatpush.msra.mxu0 %v60
    %4106 = vmatmul.f32.gmra.mxu0 %v3867
    %v4107 = vpop.f32.mrf.mxu0
    %v4108 = vadd.f32 0.0, %v4107
    %4109 = vdwg.mxu0
    %4110 = vmatpush.msra.mxu0 0.0
    %4111 = vmatpush.msra.mxu0 0.0
    %4112 = vmatpush.msra.mxu0 0.0
    %4113 = vmatpush.msra.mxu0 0.0
    %4114 = vmatpush.msra.mxu0 0.0
    %4115 = vmatpush.msra.mxu0 0.0
    %4116 = vmatpush.msra.mxu0 0.0
    %4117 = vmatpush.msra.mxu0 0.0
    %4118 = vmatpush.msra.mxu0 0.0
    %4119 = vmatpush.msra.mxu0 0.0
    %4120 = vmatpush.msra.mxu0 0.0
    %4121 = vmatpush.msra.mxu0 0.0
    %4122 = vmatpush.msra.mxu0 %v71
    %4123 = vmatpush.msra.mxu0 %v70
    %4124 = vmatpush.msra.mxu0 %v69
    %4125 = vmatpush.msra.mxu0 %v68
    %4126 = vmatmul.f32.gmra.mxu0 %v3890
    %v4127 = vpop.f32.mrf.mxu0
    %v4128 = vadd.f32 0.0, %v4127
    %4129 = vdwg.mxu0
    %4130 = vmatpush.msra.mxu0 0.0
    %4131 = vmatpush.msra.mxu0 0.0
    %4132 = vmatpush.msra.mxu0 0.0
    %4133 = vmatpush.msra.mxu0 0.0
    %4134 = vmatpush.msra.mxu0 0.0
    %4135 = vmatpush.msra.mxu0 0.0
    %4136 = vmatpush.msra.mxu0 0.0
    %4137 = vmatpush.msra.mxu0 0.0
    %4138 = vmatpush.msra.mxu0 0.0
    %4139 = vmatpush.msra.mxu0 0.0
    %4140 = vmatpush.msra.mxu0 0.0
    %4141 = vmatpush.msra.mxu0 0.0
    %4142 = vmatpush.msra.mxu0 %v79
    %4143 = vmatpush.msra.mxu0 %v78
    %4144 = vmatpush.msra.mxu0 %v77
    %4145 = vmatpush.msra.mxu0 %v76
    %4146 = vmatmul.f32.gmra.mxu0 %v3913
    %v4147 = vpop.f32.mrf.mxu0
    %v4148 = vadd.f32 0.0, %v4147
    %4149 = vdwg.mxu0
    %4150 = vmatpush.msra.mxu0 0.0
    %4151 = vmatpush.msra.mxu0 0.0
    %4152 = vmatpush.msra.mxu0 0.0
    %4153 = vmatpush.msra.mxu0 0.0
    %4154 = vmatpush.msra.mxu0 0.0
    %4155 = vmatpush.msra.mxu0 0.0
    %4156 = vmatpush.msra.mxu0 0.0
    %4157 = vmatpush.msra.mxu0 0.0
    %4158 = vmatpush.msra.mxu0 0.0
    %4159 = vmatpush.msra.mxu0 0.0
    %4160 = vmatpush.msra.mxu0 0.0
    %4161 = vmatpush.msra.mxu0 0.0
    %4162 = vmatpush.msra.mxu0 %v87
    %4163 = vmatpush.msra.mxu0 %v86
    %4164 = vmatpush.msra.mxu0 %v85
    %4165 = vmatpush.msra.mxu0 %v84
    %4166 = vmatmul.f32.gmra.mxu0 %v3936
    %v4167 = vpop.f32.mrf.mxu0
    %v4168 = vadd.f32 0.0, %v4167
    %4169 = vdwg.mxu0
    %v4170 = vadd.f32 %v4086, %v4108
    %v4171 = vadd.f32 %v4087, %v4128
    %v4172 = vadd.f32 %v4088, %v4148
    %v4173 = vadd.f32 %v4089, %v4168
    %v4174 = vadd.f32 %v4170, %v276
    %v4175 = vadd.f32 %v4171, %v277
    %v4176 = vadd.f32 %v4172, %v278
    %v4177 = vadd.f32 %v4173, %v279
    %v4178 = vrot.slane %v4176, 4
    %v4179 = vsel %vm164, %v4178, %v4174
    %v4181 = vunpack.c.l.s4 1983009808
    %v4182 = vunpack.c.0.s8 %v4181
    %v4183 = vperm.slane %v4179, %v4182
    %v4184 = vrot.slane %v4177, 4
    %v4185 = vsel %vm164, %v4184, %v4175
    %v4187 = vunpack.c.l.s4 1983009808
    %v4188 = vunpack.c.0.s8 %v4187
    %v4189 = vperm.slane %v4185, %v4188
    %v4190 = vrot.slane %v4189, 4
    %v4191 = vsel %vm164, %v4190, %v4183
    %v4193 = vunpack.c.l.s4 1934713408
    %v4194 = vunpack.c.0.s8 %v4193
    %v4195 = vperm.slane %v4191, %v4194
    %v4196 = vrot.slane %v4195, 4
    %v4197 = vsel %vm164, 0.0, %v4196
    %v4198 = vxor.u32 %v4195, 2147483648
    %v4199 = vxor.u32 %v4197, 2147483648
    %v4200 = vmul.f32 %v4198, 1.442695
    %v4201 = vpow.pop %v4200
    %v4202 = vmul.f32 %v4199, 1.442695
    %v4203 = vpow.pop %v4202
    %v4204 = vadd.f32 %v4201, 1.0
    %v4205 = vadd.f32 %v4203, 1.0
    %v4206 = vrcp.pop %v4204
    %v4207 = vmul.f32 %v4204, %v4206
    %v4208 = vsub.f32 1.0, %v4207
    %v4209 = vmul.f32 %v4206, %v4208
    %v4210 = vadd.f32 %v4206, %v4209
    %vm4211 = vweird.f32 %v4204
    %vm4212 = vweird.f32 %v4206
    %vm4213 = vmor %vm4211, %vm4212
    %v4214 = vsel %vm4213, %v4206, %v4210
    %v4215 = vand.u32 2147483647, %v4204
    %vm4216 = vcmp.eq.f32.partialorder %v4215, 8.507059e+37
    %v4217 = vand.u32 %v4204, 2147483648
    %v4218 = vor.u32 1.1754944e-38, %v4217
    %v4219 = vsel %vm4216, %v4218, %v4214
    %v4220 = vmul.f32 1.0, %v4219
    %v4221 = vrcp.pop %v4205
    %v4222 = vmul.f32 %v4205, %v4221
    %v4223 = vsub.f32 1.0, %v4222
    %v4224 = vmul.f32 %v4221, %v4223
    %v4225 = vadd.f32 %v4221, %v4224
    %vm4226 = vweird.f32 %v4205
    %vm4227 = vweird.f32 %v4221
    %vm4228 = vmor %vm4226, %vm4227
    %v4229 = vsel %vm4228, %v4221, %v4225
    %v4230 = vand.u32 2147483647, %v4205
    %vm4231 = vcmp.eq.f32.partialorder %v4230, 8.507059e+37
    %v4232 = vand.u32 %v4205, 2147483648
    %v4233 = vor.u32 1.1754944e-38, %v4232
    %v4234 = vsel %vm4231, %v4233, %v4229
    %v4235 = vmul.f32 1.0, %v4234
    %v4236 = vtanh.pop %v4195
    %v4237 = vtanh.pop %v4197
    %v4238 = vmul.f32 %v4220, %v3696
    %v4239 = vmul.f32 %v4235, %v3697
    %4242 = vrot.lane.b32.xlu0 %v4236, 64
    %v4243 = vpop.permute.xlu0 %4242
    %4244 = vrot.lane.b32.xlu0 %v4237, 64
    %v4245 = vpop.permute.xlu0 %4244
    %v4248 = vmul.f32 %v4220, %v4243
    %v4249 = vmul.f32 %v4235, %v4245
    %4252 = vrot.lane.b32.xlu0 %v4248, 32
    %v4253 = vpop.permute.xlu0 %4252
    %4254 = vrot.lane.b32.xlu0 %v4249, 32
    %v4255 = vpop.permute.xlu0 %4254
    %v4258 = vadd.f32 %v4238, %v4253
    %v4259 = vadd.f32 %v4239, %v4255
    %v4260 = vtanh.pop %v4258
    %v4261 = vtanh.pop %v4259
    %4264 = vrot.lane.b32.xlu0 %v4260, 64
    %v4265 = vpop.permute.xlu0 %4264
    %4266 = vrot.lane.b32.xlu0 %v4261, 64
    %v4267 = vpop.permute.xlu0 %4266
    %v4270 = vmul.f32 %v4220, %v4265
    %v4271 = vmul.f32 %v4235, %v4267
    %4274 = vrot.lane.b32.xlu0 %v4054, 32
    %v4275 = vpop.permute.xlu0 %4274
    %4276 = vrot.lane.b32.xlu0 %v4055, 32
    %v4277 = vpop.permute.xlu0 %4276
    %v4280 = vunpack.c.l.s4 1983009808
    %v4281 = vunpack.c.0.s8 %v4280
    %v4282 = vperm.slane %v4275, %v4281
    %v4285 = vunpack.c.l.s4 1983009808
    %v4286 = vunpack.c.0.s8 %v4285
    %v4287 = vperm.slane %v4277, %v4286
    %v4288 = vrot.slane %v4287, 4
    %v4289 = vsel %vm164, %v4288, %v4282
    %v4290 = vrot.slane %v4282, 4
    %v4291 = vsel %vm164, %v4287, %v4290
    %v4293 = vunpack.c.l.s4 1934713408
    %v4294 = vunpack.c.0.s8 %v4293
    %v4295 = vperm.slane %v4289, %v4294
    %v4297 = vunpack.c.l.s4 1934713408
    %v4298 = vunpack.c.0.s8 %v4297
    %v4299 = vperm.slane %v4291, %v4298
    %v4300 = vrot.slane %v4295, 4
    %v4301 = vsel %vm164, 0.0, %v4300
    %v4302 = vrot.slane %v4299, 4
    %v4303 = vsel %vm164, 0.0, %v4302
    %v4305 = vsel %vm179, %v4295, 0
    %4307 = vmatpush.msra.mxu0 0.0
    %4308 = vmatpush.msra.mxu0 0.0
    %4309 = vmatpush.msra.mxu0 0.0
    %4310 = vmatpush.msra.mxu0 0.0
    %4311 = vmatpush.msra.mxu0 0.0
    %4312 = vmatpush.msra.mxu0 0.0
    %4313 = vmatpush.msra.mxu0 0.0
    %4314 = vmatpush.msra.mxu0 0.0
    %4315 = vmatpush.msra.mxu0 0.0
    %4316 = vmatpush.msra.mxu0 0.0
    %4317 = vmatpush.msra.mxu0 0.0
    %4318 = vmatpush.msra.mxu0 0.0
    %4319 = vmatpush.msra.mxu0 %v67
    %4320 = vmatpush.msra.mxu0 %v66
    %4321 = vmatpush.msra.mxu0 %v65
    %4322 = vmatpush.msra.mxu0 %v64
    %4323 = vmatmul.f32.gmra.mxu0 %v4305
    %v4324 = vpop.f32.mrf.mxu0
    %v4325 = vadd.f32 0.0, %v4324
    %4326 = vdwg.mxu0
    %v4328 = vsel %vm179, %v4301, 0
    %4330 = vmatpush.msra.mxu0 0.0
    %4331 = vmatpush.msra.mxu0 0.0
    %4332 = vmatpush.msra.mxu0 0.0
    %4333 = vmatpush.msra.mxu0 0.0
    %4334 = vmatpush.msra.mxu0 0.0
    %4335 = vmatpush.msra.mxu0 0.0
    %4336 = vmatpush.msra.mxu0 0.0
    %4337 = vmatpush.msra.mxu0 0.0
    %4338 = vmatpush.msra.mxu0 0.0
    %4339 = vmatpush.msra.mxu0 0.0
    %4340 = vmatpush.msra.mxu0 0.0
    %4341 = vmatpush.msra.mxu0 0.0
    %4342 = vmatpush.msra.mxu0 %v75
    %4343 = vmatpush.msra.mxu0 %v74
    %4344 = vmatpush.msra.mxu0 %v73
    %4345 = vmatpush.msra.mxu0 %v72
    %4346 = vmatmul.f32.gmra.mxu0 %v4328
    %v4347 = vpop.f32.mrf.mxu0
    %v4348 = vadd.f32 0.0, %v4347
    %4349 = vdwg.mxu0
    %v4351 = vsel %vm179, %v4299, 0
    %4353 = vmatpush.msra.mxu0 0.0
    %4354 = vmatpush.msra.mxu0 0.0
    %4355 = vmatpush.msra.mxu0 0.0
    %4356 = vmatpush.msra.mxu0 0.0
    %4357 = vmatpush.msra.mxu0 0.0
    %4358 = vmatpush.msra.mxu0 0.0
    %4359 = vmatpush.msra.mxu0 0.0
    %4360 = vmatpush.msra.mxu0 0.0
    %4361 = vmatpush.msra.mxu0 0.0
    %4362 = vmatpush.msra.mxu0 0.0
    %4363 = vmatpush.msra.mxu0 0.0
    %4364 = vmatpush.msra.mxu0 0.0
    %4365 = vmatpush.msra.mxu0 %v83
    %4366 = vmatpush.msra.mxu0 %v82
    %4367 = vmatpush.msra.mxu0 %v81
    %4368 = vmatpush.msra.mxu0 %v80
    %4369 = vmatmul.f32.gmra.mxu0 %v4351
    %v4370 = vpop.f32.mrf.mxu0
    %v4371 = vadd.f32 0.0, %v4370
    %4372 = vdwg.mxu0
    %v4374 = vsel %vm179, %v4303, 0
    %4376 = vmatpush.msra.mxu0 0.0
    %4377 = vmatpush.msra.mxu0 0.0
    %4378 = vmatpush.msra.mxu0 0.0
    %4379 = vmatpush.msra.mxu0 0.0
    %4380 = vmatpush.msra.mxu0 0.0
    %4381 = vmatpush.msra.mxu0 0.0
    %4382 = vmatpush.msra.mxu0 0.0
    %4383 = vmatpush.msra.mxu0 0.0
    %4384 = vmatpush.msra.mxu0 0.0
    %4385 = vmatpush.msra.mxu0 0.0
    %4386 = vmatpush.msra.mxu0 0.0
    %4387 = vmatpush.msra.mxu0 0.0
    %4388 = vmatpush.msra.mxu0 %v91
    %4389 = vmatpush.msra.mxu0 %v90
    %4390 = vmatpush.msra.mxu0 %v89
    %4391 = vmatpush.msra.mxu0 %v88
    %4392 = vmatmul.f32.gmra.mxu0 %v4374
    %v4393 = vpop.f32.mrf.mxu0
    %v4394 = vadd.f32 0.0, %v4393
    %4395 = vdwg.mxu0
    %4398 = vrot.lane.b32.xlu0 %v4270, 32
    %v4399 = vpop.permute.xlu0 %4398
    %4400 = vrot.lane.b32.xlu0 %v4271, 32
    %v4401 = vpop.permute.xlu0 %4400
    %v4404 = vunpack.c.l.s4 1983009808
    %v4405 = vunpack.c.0.s8 %v4404
    %v4406 = vperm.slane %v4399, %v4405
    %v4409 = vunpack.c.l.s4 1983009808
    %v4410 = vunpack.c.0.s8 %v4409
    %v4411 = vperm.slane %v4401, %v4410
    %v4412 = vrot.slane %v4411, 4
    %v4413 = vsel %vm164, %v4412, %v4406
    %v4414 = vrot.slane %v4406, 4
    %v4415 = vsel %vm164, %v4411, %v4414
    %v4417 = vunpack.c.l.s4 1934713408
    %v4418 = vunpack.c.0.s8 %v4417
    %v4419 = vperm.slane %v4413, %v4418
    %v4421 = vunpack.c.l.s4 1934713408
    %v4422 = vunpack.c.0.s8 %v4421
    %v4423 = vperm.slane %v4415, %v4422
    %v4424 = vrot.slane %v4419, 4
    %v4425 = vsel %vm164, 0.0, %v4424
    %v4426 = vrot.slane %v4423, 4
    %v4427 = vsel %vm164, 0.0, %v4426
    %v4429 = vsel %vm179, %v4419, 0
    %4431 = vmatpush.msra.mxu0 0.0
    %4432 = vmatpush.msra.mxu0 0.0
    %4433 = vmatpush.msra.mxu0 0.0
    %4434 = vmatpush.msra.mxu0 0.0
    %4435 = vmatpush.msra.mxu0 0.0
    %4436 = vmatpush.msra.mxu0 0.0
    %4437 = vmatpush.msra.mxu0 0.0
    %4438 = vmatpush.msra.mxu0 0.0
    %4439 = vmatpush.msra.mxu0 0.0
    %4440 = vmatpush.msra.mxu0 0.0
    %4441 = vmatpush.msra.mxu0 0.0
    %4442 = vmatpush.msra.mxu0 0.0
    %4443 = vmatpush.msra.mxu0 %v101
    %4444 = vmatpush.msra.mxu0 %v100
    %4445 = vmatpush.msra.mxu0 %v99
    %4446 = vmatpush.msra.mxu0 %v98
    %4447 = vmatmul.f32.gmra.mxu0 %v4429
    %v4448 = vpop.f32.mrf.mxu0
    %v4449 = vadd.f32 %v4325, %v4448
    %4450 = vdwg.mxu0
    %v4452 = vsel %vm179, %v4425, 0
    %4454 = vmatpush.msra.mxu0 0.0
    %4455 = vmatpush.msra.mxu0 0.0
    %4456 = vmatpush.msra.mxu0 0.0
    %4457 = vmatpush.msra.mxu0 0.0
    %4458 = vmatpush.msra.mxu0 0.0
    %4459 = vmatpush.msra.mxu0 0.0
    %4460 = vmatpush.msra.mxu0 0.0
    %4461 = vmatpush.msra.mxu0 0.0
    %4462 = vmatpush.msra.mxu0 0.0
    %4463 = vmatpush.msra.mxu0 0.0
    %4464 = vmatpush.msra.mxu0 0.0
    %4465 = vmatpush.msra.mxu0 0.0
    %4466 = vmatpush.msra.mxu0 %v105
    %4467 = vmatpush.msra.mxu0 %v104
    %4468 = vmatpush.msra.mxu0 %v103
    %4469 = vmatpush.msra.mxu0 %v102
    %4470 = vmatmul.f32.gmra.mxu0 %v4452
    %v4471 = vpop.f32.mrf.mxu0
    %v4472 = vadd.f32 %v4348, %v4471
    %4473 = vdwg.mxu0
    %v4475 = vsel %vm179, %v4423, 0
    %4477 = vmatpush.msra.mxu0 0.0
    %4478 = vmatpush.msra.mxu0 0.0
    %4479 = vmatpush.msra.mxu0 0.0
    %4480 = vmatpush.msra.mxu0 0.0
    %4481 = vmatpush.msra.mxu0 0.0
    %4482 = vmatpush.msra.mxu0 0.0
    %4483 = vmatpush.msra.mxu0 0.0
    %4484 = vmatpush.msra.mxu0 0.0
    %4485 = vmatpush.msra.mxu0 0.0
    %4486 = vmatpush.msra.mxu0 0.0
    %4487 = vmatpush.msra.mxu0 0.0
    %4488 = vmatpush.msra.mxu0 0.0
    %4489 = vmatpush.msra.mxu0 %v109
    %4490 = vmatpush.msra.mxu0 %v108
    %4491 = vmatpush.msra.mxu0 %v107
    %4492 = vmatpush.msra.mxu0 %v106
    %4493 = vmatmul.f32.gmra.mxu0 %v4475
    %v4494 = vpop.f32.mrf.mxu0
    %v4495 = vadd.f32 %v4371, %v4494
    %4496 = vdwg.mxu0
    %v4498 = vsel %vm179, %v4427, 0
    %4500 = vmatpush.msra.mxu0 0.0
    %4501 = vmatpush.msra.mxu0 0.0
    %4502 = vmatpush.msra.mxu0 0.0
    %4503 = vmatpush.msra.mxu0 0.0
    %4504 = vmatpush.msra.mxu0 0.0
    %4505 = vmatpush.msra.mxu0 0.0
    %4506 = vmatpush.msra.mxu0 0.0
    %4507 = vmatpush.msra.mxu0 0.0
    %4508 = vmatpush.msra.mxu0 0.0
    %4509 = vmatpush.msra.mxu0 0.0
    %4510 = vmatpush.msra.mxu0 0.0
    %4511 = vmatpush.msra.mxu0 0.0
    %4512 = vmatpush.msra.mxu0 %v113
    %4513 = vmatpush.msra.mxu0 %v112
    %4514 = vmatpush.msra.mxu0 %v111
    %4515 = vmatpush.msra.mxu0 %v110
    %4516 = vmatmul.f32.gmra.mxu0 %v4498
    %v4517 = vpop.f32.mrf.mxu0
    %v4518 = vadd.f32 %v4394, %v4517
    %4519 = vdwg.mxu0
    %v4520 = vadd.f32 %v4449, %v582
    %v4521 = vadd.f32 %v4472, %v583
    %v4522 = vadd.f32 %v4495, %v584
    %v4523 = vadd.f32 %v4518, %v585
    %v4524 = vrot.slane %v4522, 4
    %v4525 = vsel %vm164, %v4524, %v4520
    %v4527 = vunpack.c.l.s4 1983009808
    %v4528 = vunpack.c.0.s8 %v4527
    %v4529 = vperm.slane %v4525, %v4528
    %v4530 = vrot.slane %v4523, 4
    %v4531 = vsel %vm164, %v4530, %v4521
    %v4533 = vunpack.c.l.s4 1983009808
    %v4534 = vunpack.c.0.s8 %v4533
    %v4535 = vperm.slane %v4531, %v4534
    %v4536 = vrot.slane %v4535, 4
    %v4537 = vsel %vm164, %v4536, %v4529
    %v4539 = vunpack.c.l.s4 1934713408
    %v4540 = vunpack.c.0.s8 %v4539
    %v4541 = vperm.slane %v4537, %v4540
    %v4542 = vrot.slane %v4541, 4
    %v4543 = vsel %vm164, 0.0, %v4542
    %v4544 = vxor.u32 %v4541, 2147483648
    %v4545 = vxor.u32 %v4543, 2147483648
    %v4546 = vmul.f32 %v4544, 1.442695
    %v4547 = vpow.pop %v4546
    %v4548 = vmul.f32 %v4545, 1.442695
    %v4549 = vpow.pop %v4548
    %v4550 = vadd.f32 %v4547, 1.0
    %v4551 = vadd.f32 %v4549, 1.0
    %v4552 = vrcp.pop %v4550
    %v4553 = vmul.f32 %v4550, %v4552
    %v4554 = vsub.f32 1.0, %v4553
    %v4555 = vmul.f32 %v4552, %v4554
    %v4556 = vadd.f32 %v4552, %v4555
    %vm4557 = vweird.f32 %v4550
    %vm4558 = vweird.f32 %v4552
    %vm4559 = vmor %vm4557, %vm4558
    %v4560 = vsel %vm4559, %v4552, %v4556
    %v4561 = vand.u32 2147483647, %v4550
    %vm4562 = vcmp.eq.f32.partialorder %v4561, 8.507059e+37
    %v4563 = vand.u32 %v4550, 2147483648
    %v4564 = vor.u32 1.1754944e-38, %v4563
    %v4565 = vsel %vm4562, %v4564, %v4560
    %v4566 = vmul.f32 1.0, %v4565
    %v4567 = vrcp.pop %v4551
    %v4568 = vmul.f32 %v4551, %v4567
    %v4569 = vsub.f32 1.0, %v4568
    %v4570 = vmul.f32 %v4567, %v4569
    %v4571 = vadd.f32 %v4567, %v4570
    %vm4572 = vweird.f32 %v4551
    %vm4573 = vweird.f32 %v4567
    %vm4574 = vmor %vm4572, %vm4573
    %v4575 = vsel %vm4574, %v4567, %v4571
    %v4576 = vand.u32 2147483647, %v4551
    %vm4577 = vcmp.eq.f32.partialorder %v4576, 8.507059e+37
    %v4578 = vand.u32 %v4551, 2147483648
    %v4579 = vor.u32 1.1754944e-38, %v4578
    %v4580 = vsel %vm4577, %v4579, %v4575
    %v4581 = vmul.f32 1.0, %v4580
    %v4582 = vtanh.pop %v4541
    %v4583 = vtanh.pop %v4543
    %v4584 = vmul.f32 %v4566, %v4042
    %v4585 = vmul.f32 %v4581, %v4043
    %4588 = vrot.lane.b32.xlu0 %v4582, 64
    %v4589 = vpop.permute.xlu0 %4588
    %4590 = vrot.lane.b32.xlu0 %v4583, 64
    %v4591 = vpop.permute.xlu0 %4590
    %v4594 = vmul.f32 %v4566, %v4589
    %v4595 = vmul.f32 %v4581, %v4591
    %4598 = vrot.lane.b32.xlu0 %v4594, 32
    %v4599 = vpop.permute.xlu0 %4598
    %4600 = vrot.lane.b32.xlu0 %v4595, 32
    %v4601 = vpop.permute.xlu0 %4600
    %v4604 = vadd.f32 %v4584, %v4599
    %v4605 = vadd.f32 %v4585, %v4601
    %v4606 = vtanh.pop %v4604
    %v4607 = vtanh.pop %v4605
    %4610 = vrot.lane.b32.xlu0 %v4606, 64
    %v4611 = vpop.permute.xlu0 %4610
    %4612 = vrot.lane.b32.xlu0 %v4607, 64
    %v4613 = vpop.permute.xlu0 %4612
    %v4616 = vmul.f32 %v4566, %v4611
    %v4617 = vmul.f32 %v4581, %v4613
    %4620 = vrot.lane.b32.xlu0 %v4616, 32
    %v4621 = vpop.permute.xlu0 %4620
    %4622 = vrot.lane.b32.xlu0 %v4617, 32
    %v4623 = vpop.permute.xlu0 %4622
    %vm4626 = vcmask 257024
    %4627 = vst.msk [vmem:[#allocation7] sm:$0xf] %vm4626, %v4621
    %4628 = vst.msk [vmem:[#allocation7 + $0xc] sm:$0xf] %vm4626, %v4623
    %4630 = vrot.lane.b32.xlu0 %v96, 96
    %v4631 = vpop.permute.xlu0 %4630
    %v4633 = vmul.f32 %v4616, %v4631
    %v4634 = vmul.f32 %v4617, %v4631
    %4637 = vrot.lane.b32.xlu0 %v4633, 32
    %v4638 = vpop.permute.xlu0 %4637
    %4639 = vrot.lane.b32.xlu0 %v4634, 32
    %v4640 = vpop.permute.xlu0 %4639
    %v4643 = vsel %vm4626, %v4638, 0.0
    %4644 = vadd.xlane.f32.xlu0 %v4643
    %v4645 = vpop.xlane.xlu0 %4644
    %v4646 = vsel %vm4626, %v4640, 0.0
    %4647 = vadd.xlane.f32.xlu0 %v4646
    %v4648 = vpop.xlane.xlu0 %4647
    %v4649 = vadd.f32 %v4645, %v97
    %v4651 = vunpack.c.l.s4 1983009808
    %v4652 = vunpack.c.0.s8 %v4651
    %v4653 = vperm.slane %v4649, %v4652
    %v4654 = vadd.f32 %v4648, %v97
    %v4656 = vunpack.c.l.s4 1983009808
    %v4657 = vunpack.c.0.s8 %v4656
    %v4658 = vperm.slane %v4654, %v4657
    %v4659 = vrot.slane %v4658, 4
    %v4660 = vsel %vm164, %v4659, %v4653
    %v4661 = vrot.slane %v4653, 4
    %v4662 = vsel %vm164, %v4658, %v4661
    %v4664 = vunpack.c.l.s4 1934713408
    %v4665 = vunpack.c.0.s8 %v4664
    %v4666 = vperm.slane %v4660, %v4665
    %v4668 = vunpack.c.l.s4 1934713408
    %v4669 = vunpack.c.0.s8 %v4668
    %v4670 = vperm.slane %v4662, %v4669
    %v4671 = vrot.slane %v4666, 4
    %v4672 = vsel %vm164, 0.0, %v4671
    %v4673 = vrot.slane %v4670, 4
    %v4674 = vsel %vm164, 0.0, %v4673
    %4676 = vset.pattern.permute.xlu0 0
    %4677 = vperm.xlu0 %4676, %v4666
    %v4678 = vpop.permute.xlu0 %4677
    %4681 = vset.pattern.permute.xlu0 0
    %4682 = vperm.xlu0 %4681, %v4672
    %v4683 = vpop.permute.xlu0 %4682
    %4686 = vset.pattern.permute.xlu0 0
    %4687 = vperm.xlu0 %4686, %v4670
    %v4688 = vpop.permute.xlu0 %4687
    %4691 = vset.pattern.permute.xlu0 0
    %4692 = vperm.xlu0 %4691, %v4674
    %v4693 = vpop.permute.xlu0 %4692
    %v4695 = vmul.f32 %v4678, %v147
    %v4696 = vmul.f32 %v4683, %v148
    %v4697 = vmul.f32 %v4688, %v149
    %v4698 = vmul.f32 %v4693, %v150
    %4699 = vmatpush.msra.mxu0 0.0
    %4700 = vmatpush.msra.mxu0 0.0
    %4701 = vmatpush.msra.mxu0 0.0
    %4702 = vmatpush.msra.mxu0 0.0
    %4703 = vmatpush.msra.mxu0 0.0
    %4704 = vmatpush.msra.mxu0 0.0
    %4705 = vmatpush.msra.mxu0 0.0
    %4706 = vmatpush.msra.mxu0 0.0
    %4707 = vmatpush.msra.mxu0 0.0
    %4708 = vmatpush.msra.mxu0 0.0
    %4709 = vmatpush.msra.mxu0 0.0
    %4710 = vmatpush.msra.mxu0 0.0
    %4711 = vmatpush.msra.mxu0 %v63
    %4712 = vmatpush.msra.mxu0 %v62
    %4713 = vmatpush.msra.mxu0 %v61
    %4714 = vmatpush.msra.mxu0 %v60
    %4715 = vmatmul.f32.gmra.mxu0 %v4429
    %v4716 = vpop.f32.mrf.mxu0
    %v4717 = vadd.f32 0.0, %v4716
    %4718 = vdwg.mxu0
    %4719 = vmatpush.msra.mxu0 0.0
    %4720 = vmatpush.msra.mxu0 0.0
    %4721 = vmatpush.msra.mxu0 0.0
    %4722 = vmatpush.msra.mxu0 0.0
    %4723 = vmatpush.msra.mxu0 0.0
    %4724 = vmatpush.msra.mxu0 0.0
    %4725 = vmatpush.msra.mxu0 0.0
    %4726 = vmatpush.msra.mxu0 0.0
    %4727 = vmatpush.msra.mxu0 0.0
    %4728 = vmatpush.msra.mxu0 0.0
    %4729 = vmatpush.msra.mxu0 0.0
    %4730 = vmatpush.msra.mxu0 0.0
    %4731 = vmatpush.msra.mxu0 %v71
    %4732 = vmatpush.msra.mxu0 %v70
    %4733 = vmatpush.msra.mxu0 %v69
    %4734 = vmatpush.msra.mxu0 %v68
    %4735 = vmatmul.f32.gmra.mxu0 %v4452
    %v4736 = vpop.f32.mrf.mxu0
    %v4737 = vadd.f32 0.0, %v4736
    %4738 = vdwg.mxu0
    %4739 = vmatpush.msra.mxu0 0.0
    %4740 = vmatpush.msra.mxu0 0.0
    %4741 = vmatpush.msra.mxu0 0.0
    %4742 = vmatpush.msra.mxu0 0.0
    %4743 = vmatpush.msra.mxu0 0.0
    %4744 = vmatpush.msra.mxu0 0.0
    %4745 = vmatpush.msra.mxu0 0.0
    %4746 = vmatpush.msra.mxu0 0.0
    %4747 = vmatpush.msra.mxu0 0.0
    %4748 = vmatpush.msra.mxu0 0.0
    %4749 = vmatpush.msra.mxu0 0.0
    %4750 = vmatpush.msra.mxu0 0.0
    %4751 = vmatpush.msra.mxu0 %v79
    %4752 = vmatpush.msra.mxu0 %v78
    %4753 = vmatpush.msra.mxu0 %v77
    %4754 = vmatpush.msra.mxu0 %v76
    %4755 = vmatmul.f32.gmra.mxu0 %v4475
    %v4756 = vpop.f32.mrf.mxu0
    %v4757 = vadd.f32 0.0, %v4756
    %4758 = vdwg.mxu0
    %4759 = vmatpush.msra.mxu0 0.0
    %4760 = vmatpush.msra.mxu0 0.0
    %4761 = vmatpush.msra.mxu0 0.0
    %4762 = vmatpush.msra.mxu0 0.0
    %4763 = vmatpush.msra.mxu0 0.0
    %4764 = vmatpush.msra.mxu0 0.0
    %4765 = vmatpush.msra.mxu0 0.0
    %4766 = vmatpush.msra.mxu0 0.0
    %4767 = vmatpush.msra.mxu0 0.0
    %4768 = vmatpush.msra.mxu0 0.0
    %4769 = vmatpush.msra.mxu0 0.0
    %4770 = vmatpush.msra.mxu0 0.0
    %4771 = vmatpush.msra.mxu0 %v87
    %4772 = vmatpush.msra.mxu0 %v86
    %4773 = vmatpush.msra.mxu0 %v85
    %4774 = vmatpush.msra.mxu0 %v84
    %4775 = vmatmul.f32.gmra.mxu0 %v4498
    %v4776 = vpop.f32.mrf.mxu0
    %v4777 = vadd.f32 0.0, %v4776
    %4778 = vdwg.mxu0
    %v4779 = vadd.f32 %v4695, %v4717
    %v4780 = vadd.f32 %v4696, %v4737
    %v4781 = vadd.f32 %v4697, %v4757
    %v4782 = vadd.f32 %v4698, %v4777
    %v4783 = vadd.f32 %v4779, %v276
    %v4784 = vadd.f32 %v4780, %v277
    %v4785 = vadd.f32 %v4781, %v278
    %v4786 = vadd.f32 %v4782, %v279
    %v4787 = vrot.slane %v4785, 4
    %v4788 = vsel %vm164, %v4787, %v4783
    %v4790 = vunpack.c.l.s4 1983009808
    %v4791 = vunpack.c.0.s8 %v4790
    %v4792 = vperm.slane %v4788, %v4791
    %v4793 = vrot.slane %v4786, 4
    %v4794 = vsel %vm164, %v4793, %v4784
    %v4796 = vunpack.c.l.s4 1983009808
    %v4797 = vunpack.c.0.s8 %v4796
    %v4798 = vperm.slane %v4794, %v4797
    %v4799 = vrot.slane %v4798, 4
    %v4800 = vsel %vm164, %v4799, %v4792
    %v4802 = vunpack.c.l.s4 1934713408
    %v4803 = vunpack.c.0.s8 %v4802
    %v4804 = vperm.slane %v4800, %v4803
    %v4805 = vrot.slane %v4804, 4
    %v4806 = vsel %vm164, 0.0, %v4805
    %v4807 = vxor.u32 %v4804, 2147483648
    %v4808 = vxor.u32 %v4806, 2147483648
    %v4809 = vmul.f32 %v4807, 1.442695
    %v4810 = vpow.pop %v4809
    %v4811 = vmul.f32 %v4808, 1.442695
    %v4812 = vpow.pop %v4811
    %v4813 = vadd.f32 %v4810, 1.0
    %v4814 = vadd.f32 %v4812, 1.0
    %v4815 = vrcp.pop %v4813
    %v4816 = vmul.f32 %v4813, %v4815
    %v4817 = vsub.f32 1.0, %v4816
    %v4818 = vmul.f32 %v4815, %v4817
    %v4819 = vadd.f32 %v4815, %v4818
    %vm4820 = vweird.f32 %v4813
    %vm4821 = vweird.f32 %v4815
    %vm4822 = vmor %vm4820, %vm4821
    %v4823 = vsel %vm4822, %v4815, %v4819
    %v4824 = vand.u32 2147483647, %v4813
    %vm4825 = vcmp.eq.f32.partialorder %v4824, 8.507059e+37
    %v4826 = vand.u32 %v4813, 2147483648
    %v4827 = vor.u32 1.1754944e-38, %v4826
    %v4828 = vsel %vm4825, %v4827, %v4823
    %v4829 = vmul.f32 1.0, %v4828
    %v4830 = vrcp.pop %v4814
    %v4831 = vmul.f32 %v4814, %v4830
    %v4832 = vsub.f32 1.0, %v4831
    %v4833 = vmul.f32 %v4830, %v4832
    %v4834 = vadd.f32 %v4830, %v4833
    %vm4835 = vweird.f32 %v4814
    %vm4836 = vweird.f32 %v4830
    %vm4837 = vmor %vm4835, %vm4836
    %v4838 = vsel %vm4837, %v4830, %v4834
    %v4839 = vand.u32 2147483647, %v4814
    %vm4840 = vcmp.eq.f32.partialorder %v4839, 8.507059e+37
    %v4841 = vand.u32 %v4814, 2147483648
    %v4842 = vor.u32 1.1754944e-38, %v4841
    %v4843 = vsel %vm4840, %v4842, %v4838
    %v4844 = vmul.f32 1.0, %v4843
    %v4845 = vtanh.pop %v4804
    %v4846 = vtanh.pop %v4806
    %v4847 = vmul.f32 %v4829, %v4258
    %v4848 = vmul.f32 %v4844, %v4259
    %4851 = vrot.lane.b32.xlu0 %v4845, 64
    %v4852 = vpop.permute.xlu0 %4851
    %4853 = vrot.lane.b32.xlu0 %v4846, 64
    %v4854 = vpop.permute.xlu0 %4853
    %v4857 = vmul.f32 %v4829, %v4852
    %v4858 = vmul.f32 %v4844, %v4854
    %4861 = vrot.lane.b32.xlu0 %v4857, 32
    %v4862 = vpop.permute.xlu0 %4861
    %4863 = vrot.lane.b32.xlu0 %v4858, 32
    %v4864 = vpop.permute.xlu0 %4863
    %v4867 = vadd.f32 %v4847, %v4862
    %v4868 = vadd.f32 %v4848, %v4864
    %v4869 = vtanh.pop %v4867
    %v4870 = vtanh.pop %v4868
    %4873 = vrot.lane.b32.xlu0 %v4869, 64
    %v4874 = vpop.permute.xlu0 %4873
    %4875 = vrot.lane.b32.xlu0 %v4870, 64
    %v4876 = vpop.permute.xlu0 %4875
    %v4879 = vmul.f32 %v4829, %v4874
    %v4880 = vmul.f32 %v4844, %v4876
    %v4882 = vunpack.c.l.s4 1983009808
    %v4883 = vunpack.c.0.s8 %v4882
    %v4884 = vperm.slane %v4621, %v4883
    %v4886 = vunpack.c.l.s4 1983009808
    %v4887 = vunpack.c.0.s8 %v4886
    %v4888 = vperm.slane %v4623, %v4887
    %v4889 = vrot.slane %v4888, 4
    %v4890 = vsel %vm164, %v4889, %v4884
    %v4891 = vrot.slane %v4884, 4
    %v4892 = vsel %vm164, %v4888, %v4891
    %v4894 = vunpack.c.l.s4 1934713408
    %v4895 = vunpack.c.0.s8 %v4894
    %v4896 = vperm.slane %v4890, %v4895
    %v4898 = vunpack.c.l.s4 1934713408
    %v4899 = vunpack.c.0.s8 %v4898
    %v4900 = vperm.slane %v4892, %v4899
    %v4901 = vrot.slane %v4896, 4
    %v4902 = vsel %vm164, 0.0, %v4901
    %v4903 = vrot.slane %v4900, 4
    %v4904 = vsel %vm164, 0.0, %v4903
    %v4906 = vsel %vm179, %v4896, 0
    %4908 = vmatpush.msra.mxu0 0.0
    %4909 = vmatpush.msra.mxu0 0.0
    %4910 = vmatpush.msra.mxu0 0.0
    %4911 = vmatpush.msra.mxu0 0.0
    %4912 = vmatpush.msra.mxu0 0.0
    %4913 = vmatpush.msra.mxu0 0.0
    %4914 = vmatpush.msra.mxu0 0.0
    %4915 = vmatpush.msra.mxu0 0.0
    %4916 = vmatpush.msra.mxu0 0.0
    %4917 = vmatpush.msra.mxu0 0.0
    %4918 = vmatpush.msra.mxu0 0.0
    %4919 = vmatpush.msra.mxu0 0.0
    %4920 = vmatpush.msra.mxu0 %v67
    %4921 = vmatpush.msra.mxu0 %v66
    %4922 = vmatpush.msra.mxu0 %v65
    %4923 = vmatpush.msra.mxu0 %v64
    %4924 = vmatmul.f32.gmra.mxu0 %v4906
    %v4925 = vpop.f32.mrf.mxu0
    %v4926 = vadd.f32 0.0, %v4925
    %4927 = vdwg.mxu0
    %v4929 = vsel %vm179, %v4902, 0
    %4931 = vmatpush.msra.mxu0 0.0
    %4932 = vmatpush.msra.mxu0 0.0
    %4933 = vmatpush.msra.mxu0 0.0
    %4934 = vmatpush.msra.mxu0 0.0
    %4935 = vmatpush.msra.mxu0 0.0
    %4936 = vmatpush.msra.mxu0 0.0
    %4937 = vmatpush.msra.mxu0 0.0
    %4938 = vmatpush.msra.mxu0 0.0
    %4939 = vmatpush.msra.mxu0 0.0
    %4940 = vmatpush.msra.mxu0 0.0
    %4941 = vmatpush.msra.mxu0 0.0
    %4942 = vmatpush.msra.mxu0 0.0
    %4943 = vmatpush.msra.mxu0 %v75
    %4944 = vmatpush.msra.mxu0 %v74
    %4945 = vmatpush.msra.mxu0 %v73
    %4946 = vmatpush.msra.mxu0 %v72
    %4947 = vmatmul.f32.gmra.mxu0 %v4929
    %v4948 = vpop.f32.mrf.mxu0
    %v4949 = vadd.f32 0.0, %v4948
    %4950 = vdwg.mxu0
    %v4952 = vsel %vm179, %v4900, 0
    %4954 = vmatpush.msra.mxu0 0.0
    %4955 = vmatpush.msra.mxu0 0.0
    %4956 = vmatpush.msra.mxu0 0.0
    %4957 = vmatpush.msra.mxu0 0.0
    %4958 = vmatpush.msra.mxu0 0.0
    %4959 = vmatpush.msra.mxu0 0.0
    %4960 = vmatpush.msra.mxu0 0.0
    %4961 = vmatpush.msra.mxu0 0.0
    %4962 = vmatpush.msra.mxu0 0.0
    %4963 = vmatpush.msra.mxu0 0.0
    %4964 = vmatpush.msra.mxu0 0.0
    %4965 = vmatpush.msra.mxu0 0.0
    %4966 = vmatpush.msra.mxu0 %v83
    %4967 = vmatpush.msra.mxu0 %v82
    %4968 = vmatpush.msra.mxu0 %v81
    %4969 = vmatpush.msra.mxu0 %v80
    %4970 = vmatmul.f32.gmra.mxu0 %v4952
    %v4971 = vpop.f32.mrf.mxu0
    %v4972 = vadd.f32 0.0, %v4971
    %4973 = vdwg.mxu0
    %v4975 = vsel %vm179, %v4904, 0
    %4977 = vmatpush.msra.mxu0 0.0
    %4978 = vmatpush.msra.mxu0 0.0
    %4979 = vmatpush.msra.mxu0 0.0
    %4980 = vmatpush.msra.mxu0 0.0
    %4981 = vmatpush.msra.mxu0 0.0
    %4982 = vmatpush.msra.mxu0 0.0
    %4983 = vmatpush.msra.mxu0 0.0
    %4984 = vmatpush.msra.mxu0 0.0
    %4985 = vmatpush.msra.mxu0 0.0
    %4986 = vmatpush.msra.mxu0 0.0
    %4987 = vmatpush.msra.mxu0 0.0
    %4988 = vmatpush.msra.mxu0 0.0
    %4989 = vmatpush.msra.mxu0 %v91
    %4990 = vmatpush.msra.mxu0 %v90
    %4991 = vmatpush.msra.mxu0 %v89
    %4992 = vmatpush.msra.mxu0 %v88
    %4993 = vmatmul.f32.gmra.mxu0 %v4975
    %v4994 = vpop.f32.mrf.mxu0
    %v4995 = vadd.f32 0.0, %v4994
    %4996 = vdwg.mxu0
    %4999 = vrot.lane.b32.xlu0 %v4879, 32
    %v5000 = vpop.permute.xlu0 %4999
    %5001 = vrot.lane.b32.xlu0 %v4880, 32
    %v5002 = vpop.permute.xlu0 %5001
    %v5005 = vunpack.c.l.s4 1983009808
    %v5006 = vunpack.c.0.s8 %v5005
    %v5007 = vperm.slane %v5000, %v5006
    %v5010 = vunpack.c.l.s4 1983009808
    %v5011 = vunpack.c.0.s8 %v5010
    %v5012 = vperm.slane %v5002, %v5011
    %v5013 = vrot.slane %v5012, 4
    %v5014 = vsel %vm164, %v5013, %v5007
    %v5015 = vrot.slane %v5007, 4
    %v5016 = vsel %vm164, %v5012, %v5015
    %v5018 = vunpack.c.l.s4 1934713408
    %v5019 = vunpack.c.0.s8 %v5018
    %v5020 = vperm.slane %v5014, %v5019
    %v5022 = vunpack.c.l.s4 1934713408
    %v5023 = vunpack.c.0.s8 %v5022
    %v5024 = vperm.slane %v5016, %v5023
    %v5025 = vrot.slane %v5020, 4
    %v5026 = vsel %vm164, 0.0, %v5025
    %v5027 = vrot.slane %v5024, 4
    %v5028 = vsel %vm164, 0.0, %v5027
    %v5030 = vsel %vm179, %v5020, 0
    %5032 = vmatpush.msra.mxu0 0.0
    %5033 = vmatpush.msra.mxu0 0.0
    %5034 = vmatpush.msra.mxu0 0.0
    %5035 = vmatpush.msra.mxu0 0.0
    %5036 = vmatpush.msra.mxu0 0.0
    %5037 = vmatpush.msra.mxu0 0.0
    %5038 = vmatpush.msra.mxu0 0.0
    %5039 = vmatpush.msra.mxu0 0.0
    %5040 = vmatpush.msra.mxu0 0.0
    %5041 = vmatpush.msra.mxu0 0.0
    %5042 = vmatpush.msra.mxu0 0.0
    %5043 = vmatpush.msra.mxu0 0.0
    %5044 = vmatpush.msra.mxu0 %v101
    %5045 = vmatpush.msra.mxu0 %v100
    %5046 = vmatpush.msra.mxu0 %v99
    %5047 = vmatpush.msra.mxu0 %v98
    %5048 = vmatmul.f32.gmra.mxu0 %v5030
    %v5049 = vpop.f32.mrf.mxu0
    %v5050 = vadd.f32 %v4926, %v5049
    %5051 = vdwg.mxu0
    %v5053 = vsel %vm179, %v5026, 0
    %5055 = vmatpush.msra.mxu0 0.0
    %5056 = vmatpush.msra.mxu0 0.0
    %5057 = vmatpush.msra.mxu0 0.0
    %5058 = vmatpush.msra.mxu0 0.0
    %5059 = vmatpush.msra.mxu0 0.0
    %5060 = vmatpush.msra.mxu0 0.0
    %5061 = vmatpush.msra.mxu0 0.0
    %5062 = vmatpush.msra.mxu0 0.0
    %5063 = vmatpush.msra.mxu0 0.0
    %5064 = vmatpush.msra.mxu0 0.0
    %5065 = vmatpush.msra.mxu0 0.0
    %5066 = vmatpush.msra.mxu0 0.0
    %5067 = vmatpush.msra.mxu0 %v105
    %5068 = vmatpush.msra.mxu0 %v104
    %5069 = vmatpush.msra.mxu0 %v103
    %5070 = vmatpush.msra.mxu0 %v102
    %5071 = vmatmul.f32.gmra.mxu0 %v5053
    %v5072 = vpop.f32.mrf.mxu0
    %v5073 = vadd.f32 %v4949, %v5072
    %5074 = vdwg.mxu0
    %v5076 = vsel %vm179, %v5024, 0
    %5078 = vmatpush.msra.mxu0 0.0
    %5079 = vmatpush.msra.mxu0 0.0
    %5080 = vmatpush.msra.mxu0 0.0
    %5081 = vmatpush.msra.mxu0 0.0
    %5082 = vmatpush.msra.mxu0 0.0
    %5083 = vmatpush.msra.mxu0 0.0
    %5084 = vmatpush.msra.mxu0 0.0
    %5085 = vmatpush.msra.mxu0 0.0
    %5086 = vmatpush.msra.mxu0 0.0
    %5087 = vmatpush.msra.mxu0 0.0
    %5088 = vmatpush.msra.mxu0 0.0
    %5089 = vmatpush.msra.mxu0 0.0
    %5090 = vmatpush.msra.mxu0 %v109
    %5091 = vmatpush.msra.mxu0 %v108
    %5092 = vmatpush.msra.mxu0 %v107
    %5093 = vmatpush.msra.mxu0 %v106
    %5094 = vmatmul.f32.gmra.mxu0 %v5076
    %v5095 = vpop.f32.mrf.mxu0
    %v5096 = vadd.f32 %v4972, %v5095
    %5097 = vdwg.mxu0
    %v5099 = vsel %vm179, %v5028, 0
    %5101 = vmatpush.msra.mxu0 0.0
    %5102 = vmatpush.msra.mxu0 0.0
    %5103 = vmatpush.msra.mxu0 0.0
    %5104 = vmatpush.msra.mxu0 0.0
    %5105 = vmatpush.msra.mxu0 0.0
    %5106 = vmatpush.msra.mxu0 0.0
    %5107 = vmatpush.msra.mxu0 0.0
    %5108 = vmatpush.msra.mxu0 0.0
    %5109 = vmatpush.msra.mxu0 0.0
    %5110 = vmatpush.msra.mxu0 0.0
    %5111 = vmatpush.msra.mxu0 0.0
    %5112 = vmatpush.msra.mxu0 0.0
    %5113 = vmatpush.msra.mxu0 %v113
    %5114 = vmatpush.msra.mxu0 %v112
    %5115 = vmatpush.msra.mxu0 %v111
    %5116 = vmatpush.msra.mxu0 %v110
    %5117 = vmatmul.f32.gmra.mxu0 %v5099
    %v5118 = vpop.f32.mrf.mxu0
    %v5119 = vadd.f32 %v4995, %v5118
    %5120 = vdwg.mxu0
    %v5121 = vadd.f32 %v5050, %v582
    %v5122 = vadd.f32 %v5073, %v583
    %v5123 = vadd.f32 %v5096, %v584
    %v5124 = vadd.f32 %v5119, %v585
    %v5125 = vrot.slane %v5123, 4
    %v5126 = vsel %vm164, %v5125, %v5121
    %v5128 = vunpack.c.l.s4 1983009808
    %v5129 = vunpack.c.0.s8 %v5128
    %v5130 = vperm.slane %v5126, %v5129
    %v5131 = vrot.slane %v5124, 4
    %v5132 = vsel %vm164, %v5131, %v5122
    %v5134 = vunpack.c.l.s4 1983009808
    %v5135 = vunpack.c.0.s8 %v5134
    %v5136 = vperm.slane %v5132, %v5135
    %v5137 = vrot.slane %v5136, 4
    %v5138 = vsel %vm164, %v5137, %v5130
    %v5140 = vunpack.c.l.s4 1934713408
    %v5141 = vunpack.c.0.s8 %v5140
    %v5142 = vperm.slane %v5138, %v5141
    %v5143 = vrot.slane %v5142, 4
    %v5144 = vsel %vm164, 0.0, %v5143
    %v5145 = vxor.u32 %v5142, 2147483648
    %v5146 = vxor.u32 %v5144, 2147483648
    %v5147 = vmul.f32 %v5145, 1.442695
    %v5148 = vpow.pop %v5147
    %v5149 = vmul.f32 %v5146, 1.442695
    %v5150 = vpow.pop %v5149
    %v5151 = vadd.f32 %v5148, 1.0
    %v5152 = vadd.f32 %v5150, 1.0
    %v5153 = vrcp.pop %v5151
    %v5154 = vmul.f32 %v5151, %v5153
    %v5155 = vsub.f32 1.0, %v5154
    %v5156 = vmul.f32 %v5153, %v5155
    %v5157 = vadd.f32 %v5153, %v5156
    %vm5158 = vweird.f32 %v5151
    %vm5159 = vweird.f32 %v5153
    %vm5160 = vmor %vm5158, %vm5159
    %v5161 = vsel %vm5160, %v5153, %v5157
    %v5162 = vand.u32 2147483647, %v5151
    %vm5163 = vcmp.eq.f32.partialorder %v5162, 8.507059e+37
    %v5164 = vand.u32 %v5151, 2147483648
    %v5165 = vor.u32 1.1754944e-38, %v5164
    %v5166 = vsel %vm5163, %v5165, %v5161
    %v5167 = vmul.f32 1.0, %v5166
    %v5168 = vrcp.pop %v5152
    %v5169 = vmul.f32 %v5152, %v5168
    %v5170 = vsub.f32 1.0, %v5169
    %v5171 = vmul.f32 %v5168, %v5170
    %v5172 = vadd.f32 %v5168, %v5171
    %vm5173 = vweird.f32 %v5152
    %vm5174 = vweird.f32 %v5168
    %vm5175 = vmor %vm5173, %vm5174
    %v5176 = vsel %vm5175, %v5168, %v5172
    %v5177 = vand.u32 2147483647, %v5152
    %vm5178 = vcmp.eq.f32.partialorder %v5177, 8.507059e+37
    %v5179 = vand.u32 %v5152, 2147483648
    %v5180 = vor.u32 1.1754944e-38, %v5179
    %v5181 = vsel %vm5178, %v5180, %v5176
    %v5182 = vmul.f32 1.0, %v5181
    %v5183 = vtanh.pop %v5142
    %v5184 = vtanh.pop %v5144
    %v5185 = vmul.f32 %v5167, %v4604
    %v5186 = vmul.f32 %v5182, %v4605
    %5189 = vrot.lane.b32.xlu0 %v5183, 64
    %v5190 = vpop.permute.xlu0 %5189
    %5191 = vrot.lane.b32.xlu0 %v5184, 64
    %v5192 = vpop.permute.xlu0 %5191
    %v5195 = vmul.f32 %v5167, %v5190
    %v5196 = vmul.f32 %v5182, %v5192
    %5199 = vrot.lane.b32.xlu0 %v5195, 32
    %v5200 = vpop.permute.xlu0 %5199
    %5201 = vrot.lane.b32.xlu0 %v5196, 32
    %v5202 = vpop.permute.xlu0 %5201
    %v5205 = vadd.f32 %v5185, %v5200
    %v5206 = vadd.f32 %v5186, %v5202
    %v5207 = vtanh.pop %v5205
    %v5208 = vtanh.pop %v5206
    %5211 = vrot.lane.b32.xlu0 %v5207, 64
    %v5212 = vpop.permute.xlu0 %5211
    %5213 = vrot.lane.b32.xlu0 %v5208, 64
    %v5214 = vpop.permute.xlu0 %5213
    %v5217 = vmul.f32 %v5167, %v5212
    %v5218 = vmul.f32 %v5182, %v5214
    %5221 = vrot.lane.b32.xlu0 %v5217, 32
    %v5222 = vpop.permute.xlu0 %5221
    %5223 = vrot.lane.b32.xlu0 %v5218, 32
    %v5224 = vpop.permute.xlu0 %5223
    %s5227 = scalar_lea.vmem [#allocation7], 4
    %5228 = vst.msk [vmem:[%s5227] sm:$0xf] %vm4626, %v5222
    %5229 = vst.msk [vmem:[%s5227 + $0xc] sm:$0xf] %vm4626, %v5224
    %v5230 = vmul.f32 %v5217, %v4631
    %v5231 = vmul.f32 %v5218, %v4631
    %5234 = vrot.lane.b32.xlu0 %v5230, 32
    %v5235 = vpop.permute.xlu0 %5234
    %5236 = vrot.lane.b32.xlu0 %v5231, 32
    %v5237 = vpop.permute.xlu0 %5236
    %v5240 = vsel %vm4626, %v5235, 0.0
    %5241 = vadd.xlane.f32.xlu0 %v5240
    %v5242 = vpop.xlane.xlu0 %5241
    %v5243 = vsel %vm4626, %v5237, 0.0
    %5244 = vadd.xlane.f32.xlu0 %v5243
    %v5245 = vpop.xlane.xlu0 %5244
    %v5246 = vadd.f32 %v5242, %v97
    %v5248 = vunpack.c.l.s4 1983009808
    %v5249 = vunpack.c.0.s8 %v5248
    %v5250 = vperm.slane %v5246, %v5249
    %v5251 = vadd.f32 %v5245, %v97
    %v5253 = vunpack.c.l.s4 1983009808
    %v5254 = vunpack.c.0.s8 %v5253
    %v5255 = vperm.slane %v5251, %v5254
    %v5256 = vrot.slane %v5255, 4
    %v5257 = vsel %vm164, %v5256, %v5250
    %v5258 = vrot.slane %v5250, 4
    %v5259 = vsel %vm164, %v5255, %v5258
    %v5261 = vunpack.c.l.s4 1934713408
    %v5262 = vunpack.c.0.s8 %v5261
    %v5263 = vperm.slane %v5257, %v5262
    %v5265 = vunpack.c.l.s4 1934713408
    %v5266 = vunpack.c.0.s8 %v5265
    %v5267 = vperm.slane %v5259, %v5266
    %v5268 = vrot.slane %v5263, 4
    %v5269 = vsel %vm164, 0.0, %v5268
    %v5270 = vrot.slane %v5267, 4
    %v5271 = vsel %vm164, 0.0, %v5270
    %5273 = vset.pattern.permute.xlu0 0
    %5274 = vperm.xlu0 %5273, %v5263
    %v5275 = vpop.permute.xlu0 %5274
    %5278 = vset.pattern.permute.xlu0 0
    %5279 = vperm.xlu0 %5278, %v5269
    %v5280 = vpop.permute.xlu0 %5279
    %5283 = vset.pattern.permute.xlu0 0
    %5284 = vperm.xlu0 %5283, %v5267
    %v5285 = vpop.permute.xlu0 %5284
    %5288 = vset.pattern.permute.xlu0 0
    %5289 = vperm.xlu0 %5288, %v5271
    %v5290 = vpop.permute.xlu0 %5289
    %v5292 = vmul.f32 %v5275, %v147
    %v5293 = vmul.f32 %v5280, %v148
    %v5294 = vmul.f32 %v5285, %v149
    %v5295 = vmul.f32 %v5290, %v150
    %5296 = vmatpush.msra.mxu0 0.0
    %5297 = vmatpush.msra.mxu0 0.0
    %5298 = vmatpush.msra.mxu0 0.0
    %5299 = vmatpush.msra.mxu0 0.0
    %5300 = vmatpush.msra.mxu0 0.0
    %5301 = vmatpush.msra.mxu0 0.0
    %5302 = vmatpush.msra.mxu0 0.0
    %5303 = vmatpush.msra.mxu0 0.0
    %5304 = vmatpush.msra.mxu0 0.0
    %5305 = vmatpush.msra.mxu0 0.0
    %5306 = vmatpush.msra.mxu0 0.0
    %5307 = vmatpush.msra.mxu0 0.0
    %5308 = vmatpush.msra.mxu0 %v63
    %5309 = vmatpush.msra.mxu0 %v62
    %5310 = vmatpush.msra.mxu0 %v61
    %5311 = vmatpush.msra.mxu0 %v60
    %5312 = vmatmul.f32.gmra.mxu0 %v5030
    %v5313 = vpop.f32.mrf.mxu0
    %v5314 = vadd.f32 0.0, %v5313
    %5315 = vdwg.mxu0
    %5316 = vmatpush.msra.mxu0 0.0
    %5317 = vmatpush.msra.mxu0 0.0
    %5318 = vmatpush.msra.mxu0 0.0
    %5319 = vmatpush.msra.mxu0 0.0
    %5320 = vmatpush.msra.mxu0 0.0
    %5321 = vmatpush.msra.mxu0 0.0
    %5322 = vmatpush.msra.mxu0 0.0
    %5323 = vmatpush.msra.mxu0 0.0
    %5324 = vmatpush.msra.mxu0 0.0
    %5325 = vmatpush.msra.mxu0 0.0
    %5326 = vmatpush.msra.mxu0 0.0
    %5327 = vmatpush.msra.mxu0 0.0
    %5328 = vmatpush.msra.mxu0 %v71
    %5329 = vmatpush.msra.mxu0 %v70
    %5330 = vmatpush.msra.mxu0 %v69
    %5331 = vmatpush.msra.mxu0 %v68
    %5332 = vmatmul.f32.gmra.mxu0 %v5053
    %v5333 = vpop.f32.mrf.mxu0
    %v5334 = vadd.f32 0.0, %v5333
    %5335 = vdwg.mxu0
    %5336 = vmatpush.msra.mxu0 0.0
    %5337 = vmatpush.msra.mxu0 0.0
    %5338 = vmatpush.msra.mxu0 0.0
    %5339 = vmatpush.msra.mxu0 0.0
    %5340 = vmatpush.msra.mxu0 0.0
    %5341 = vmatpush.msra.mxu0 0.0
    %5342 = vmatpush.msra.mxu0 0.0
    %5343 = vmatpush.msra.mxu0 0.0
    %5344 = vmatpush.msra.mxu0 0.0
    %5345 = vmatpush.msra.mxu0 0.0
    %5346 = vmatpush.msra.mxu0 0.0
    %5347 = vmatpush.msra.mxu0 0.0
    %5348 = vmatpush.msra.mxu0 %v79
    %5349 = vmatpush.msra.mxu0 %v78
    %5350 = vmatpush.msra.mxu0 %v77
    %5351 = vmatpush.msra.mxu0 %v76
    %5352 = vmatmul.f32.gmra.mxu0 %v5076
    %v5353 = vpop.f32.mrf.mxu0
    %v5354 = vadd.f32 0.0, %v5353
    %5355 = vdwg.mxu0
    %5356 = vmatpush.msra.mxu0 0.0
    %5357 = vmatpush.msra.mxu0 0.0
    %5358 = vmatpush.msra.mxu0 0.0
    %5359 = vmatpush.msra.mxu0 0.0
    %5360 = vmatpush.msra.mxu0 0.0
    %5361 = vmatpush.msra.mxu0 0.0
    %5362 = vmatpush.msra.mxu0 0.0
    %5363 = vmatpush.msra.mxu0 0.0
    %5364 = vmatpush.msra.mxu0 0.0
    %5365 = vmatpush.msra.mxu0 0.0
    %5366 = vmatpush.msra.mxu0 0.0
    %5367 = vmatpush.msra.mxu0 0.0
    %5368 = vmatpush.msra.mxu0 %v87
    %5369 = vmatpush.msra.mxu0 %v86
    %5370 = vmatpush.msra.mxu0 %v85
    %5371 = vmatpush.msra.mxu0 %v84
    %5372 = vmatmul.f32.gmra.mxu0 %v5099
    %v5373 = vpop.f32.mrf.mxu0
    %v5374 = vadd.f32 0.0, %v5373
    %5375 = vdwg.mxu0
    %v5376 = vadd.f32 %v5292, %v5314
    %v5377 = vadd.f32 %v5293, %v5334
    %v5378 = vadd.f32 %v5294, %v5354
    %v5379 = vadd.f32 %v5295, %v5374
    %v5380 = vadd.f32 %v5376, %v276
    %v5381 = vadd.f32 %v5377, %v277
    %v5382 = vadd.f32 %v5378, %v278
    %v5383 = vadd.f32 %v5379, %v279
    %v5384 = vrot.slane %v5382, 4
    %v5385 = vsel %vm164, %v5384, %v5380
    %v5387 = vunpack.c.l.s4 1983009808
    %v5388 = vunpack.c.0.s8 %v5387
    %v5389 = vperm.slane %v5385, %v5388
    %v5390 = vrot.slane %v5383, 4
    %v5391 = vsel %vm164, %v5390, %v5381
    %v5393 = vunpack.c.l.s4 1983009808
    %v5394 = vunpack.c.0.s8 %v5393
    %v5395 = vperm.slane %v5391, %v5394
    %v5396 = vrot.slane %v5395, 4
    %v5397 = vsel %vm164, %v5396, %v5389
    %v5399 = vunpack.c.l.s4 1934713408
    %v5400 = vunpack.c.0.s8 %v5399
    %v5401 = vperm.slane %v5397, %v5400
    %v5402 = vrot.slane %v5401, 4
    %v5403 = vsel %vm164, 0.0, %v5402
    %v5404 = vxor.u32 %v5401, 2147483648
    %v5405 = vxor.u32 %v5403, 2147483648
    %v5406 = vmul.f32 %v5404, 1.442695
    %v5407 = vpow.pop %v5406
    %v5408 = vmul.f32 %v5405, 1.442695
    %v5409 = vpow.pop %v5408
    %v5410 = vadd.f32 %v5407, 1.0
    %v5411 = vadd.f32 %v5409, 1.0
    %v5412 = vrcp.pop %v5410
    %v5413 = vmul.f32 %v5410, %v5412
    %v5414 = vsub.f32 1.0, %v5413
    %v5415 = vmul.f32 %v5412, %v5414
    %v5416 = vadd.f32 %v5412, %v5415
    %vm5417 = vweird.f32 %v5410
    %vm5418 = vweird.f32 %v5412
    %vm5419 = vmor %vm5417, %vm5418
    %v5420 = vsel %vm5419, %v5412, %v5416
    %v5421 = vand.u32 2147483647, %v5410
    %vm5422 = vcmp.eq.f32.partialorder %v5421, 8.507059e+37
    %v5423 = vand.u32 %v5410, 2147483648
    %v5424 = vor.u32 1.1754944e-38, %v5423
    %v5425 = vsel %vm5422, %v5424, %v5420
    %v5426 = vmul.f32 1.0, %v5425
    %v5427 = vrcp.pop %v5411
    %v5428 = vmul.f32 %v5411, %v5427
    %v5429 = vsub.f32 1.0, %v5428
    %v5430 = vmul.f32 %v5427, %v5429
    %v5431 = vadd.f32 %v5427, %v5430
    %vm5432 = vweird.f32 %v5411
    %vm5433 = vweird.f32 %v5427
    %vm5434 = vmor %vm5432, %vm5433
    %v5435 = vsel %vm5434, %v5427, %v5431
    %v5436 = vand.u32 2147483647, %v5411
    %vm5437 = vcmp.eq.f32.partialorder %v5436, 8.507059e+37
    %v5438 = vand.u32 %v5411, 2147483648
    %v5439 = vor.u32 1.1754944e-38, %v5438
    %v5440 = vsel %vm5437, %v5439, %v5435
    %v5441 = vmul.f32 1.0, %v5440
    %v5442 = vtanh.pop %v5401
    %v5443 = vtanh.pop %v5403
    %v5444 = vmul.f32 %v5426, %v4867
    %v5445 = vmul.f32 %v5441, %v4868
    %5448 = vrot.lane.b32.xlu0 %v5442, 64
    %v5449 = vpop.permute.xlu0 %5448
    %5450 = vrot.lane.b32.xlu0 %v5443, 64
    %v5451 = vpop.permute.xlu0 %5450
    %v5454 = vmul.f32 %v5426, %v5449
    %v5455 = vmul.f32 %v5441, %v5451
    %5458 = vrot.lane.b32.xlu0 %v5454, 32
    %v5459 = vpop.permute.xlu0 %5458
    %5460 = vrot.lane.b32.xlu0 %v5455, 32
    %v5461 = vpop.permute.xlu0 %5460
    %v5464 = vadd.f32 %v5444, %v5459
    %v5465 = vadd.f32 %v5445, %v5461
    %v5466 = vtanh.pop %v5464
    %v5467 = vtanh.pop %v5465
    %5470 = vrot.lane.b32.xlu0 %v5466, 64
    %v5471 = vpop.permute.xlu0 %5470
    %5472 = vrot.lane.b32.xlu0 %v5467, 64
    %v5473 = vpop.permute.xlu0 %5472
    %v5476 = vmul.f32 %v5426, %v5471
    %v5477 = vmul.f32 %v5441, %v5473
    %v5479 = vunpack.c.l.s4 1983009808
    %v5480 = vunpack.c.0.s8 %v5479
    %v5481 = vperm.slane %v5222, %v5480
    %v5483 = vunpack.c.l.s4 1983009808
    %v5484 = vunpack.c.0.s8 %v5483
    %v5485 = vperm.slane %v5224, %v5484
    %v5486 = vrot.slane %v5485, 4
    %v5487 = vsel %vm164, %v5486, %v5481
    %v5488 = vrot.slane %v5481, 4
    %v5489 = vsel %vm164, %v5485, %v5488
    %v5491 = vunpack.c.l.s4 1934713408
    %v5492 = vunpack.c.0.s8 %v5491
    %v5493 = vperm.slane %v5487, %v5492
    %v5495 = vunpack.c.l.s4 1934713408
    %v5496 = vunpack.c.0.s8 %v5495
    %v5497 = vperm.slane %v5489, %v5496
    %v5498 = vrot.slane %v5493, 4
    %v5499 = vsel %vm164, 0.0, %v5498
    %v5500 = vrot.slane %v5497, 4
    %v5501 = vsel %vm164, 0.0, %v5500
    %v5503 = vsel %vm179, %v5493, 0
    %5505 = vmatpush.msra.mxu0 0.0
    %5506 = vmatpush.msra.mxu0 0.0
    %5507 = vmatpush.msra.mxu0 0.0
    %5508 = vmatpush.msra.mxu0 0.0
    %5509 = vmatpush.msra.mxu0 0.0
    %5510 = vmatpush.msra.mxu0 0.0
    %5511 = vmatpush.msra.mxu0 0.0
    %5512 = vmatpush.msra.mxu0 0.0
    %5513 = vmatpush.msra.mxu0 0.0
    %5514 = vmatpush.msra.mxu0 0.0
    %5515 = vmatpush.msra.mxu0 0.0
    %5516 = vmatpush.msra.mxu0 0.0
    %5517 = vmatpush.msra.mxu0 %v67
    %5518 = vmatpush.msra.mxu0 %v66
    %5519 = vmatpush.msra.mxu0 %v65
    %5520 = vmatpush.msra.mxu0 %v64
    %5521 = vmatmul.f32.gmra.mxu0 %v5503
    %v5522 = vpop.f32.mrf.mxu0
    %v5523 = vadd.f32 0.0, %v5522
    %5524 = vdwg.mxu0
    %v5526 = vsel %vm179, %v5499, 0
    %5528 = vmatpush.msra.mxu0 0.0
    %5529 = vmatpush.msra.mxu0 0.0
    %5530 = vmatpush.msra.mxu0 0.0
    %5531 = vmatpush.msra.mxu0 0.0
    %5532 = vmatpush.msra.mxu0 0.0
    %5533 = vmatpush.msra.mxu0 0.0
    %5534 = vmatpush.msra.mxu0 0.0
    %5535 = vmatpush.msra.mxu0 0.0
    %5536 = vmatpush.msra.mxu0 0.0
    %5537 = vmatpush.msra.mxu0 0.0
    %5538 = vmatpush.msra.mxu0 0.0
    %5539 = vmatpush.msra.mxu0 0.0
    %5540 = vmatpush.msra.mxu0 %v75
    %5541 = vmatpush.msra.mxu0 %v74
    %5542 = vmatpush.msra.mxu0 %v73
    %5543 = vmatpush.msra.mxu0 %v72
    %5544 = vmatmul.f32.gmra.mxu0 %v5526
    %v5545 = vpop.f32.mrf.mxu0
    %v5546 = vadd.f32 0.0, %v5545
    %5547 = vdwg.mxu0
    %v5549 = vsel %vm179, %v5497, 0
    %5551 = vmatpush.msra.mxu0 0.0
    %5552 = vmatpush.msra.mxu0 0.0
    %5553 = vmatpush.msra.mxu0 0.0
    %5554 = vmatpush.msra.mxu0 0.0
    %5555 = vmatpush.msra.mxu0 0.0
    %5556 = vmatpush.msra.mxu0 0.0
    %5557 = vmatpush.msra.mxu0 0.0
    %5558 = vmatpush.msra.mxu0 0.0
    %5559 = vmatpush.msra.mxu0 0.0
    %5560 = vmatpush.msra.mxu0 0.0
    %5561 = vmatpush.msra.mxu0 0.0
    %5562 = vmatpush.msra.mxu0 0.0
    %5563 = vmatpush.msra.mxu0 %v83
    %5564 = vmatpush.msra.mxu0 %v82
    %5565 = vmatpush.msra.mxu0 %v81
    %5566 = vmatpush.msra.mxu0 %v80
    %5567 = vmatmul.f32.gmra.mxu0 %v5549
    %v5568 = vpop.f32.mrf.mxu0
    %v5569 = vadd.f32 0.0, %v5568
    %5570 = vdwg.mxu0
    %v5572 = vsel %vm179, %v5501, 0
    %5574 = vmatpush.msra.mxu0 0.0
    %5575 = vmatpush.msra.mxu0 0.0
    %5576 = vmatpush.msra.mxu0 0.0
    %5577 = vmatpush.msra.mxu0 0.0
    %5578 = vmatpush.msra.mxu0 0.0
    %5579 = vmatpush.msra.mxu0 0.0
    %5580 = vmatpush.msra.mxu0 0.0
    %5581 = vmatpush.msra.mxu0 0.0
    %5582 = vmatpush.msra.mxu0 0.0
    %5583 = vmatpush.msra.mxu0 0.0
    %5584 = vmatpush.msra.mxu0 0.0
    %5585 = vmatpush.msra.mxu0 0.0
    %5586 = vmatpush.msra.mxu0 %v91
    %5587 = vmatpush.msra.mxu0 %v90
    %5588 = vmatpush.msra.mxu0 %v89
    %5589 = vmatpush.msra.mxu0 %v88
    %5590 = vmatmul.f32.gmra.mxu0 %v5572
    %v5591 = vpop.f32.mrf.mxu0
    %v5592 = vadd.f32 0.0, %v5591
    %5593 = vdwg.mxu0
    %5596 = vrot.lane.b32.xlu0 %v5476, 32
    %v5597 = vpop.permute.xlu0 %5596
    %5598 = vrot.lane.b32.xlu0 %v5477, 32
    %v5599 = vpop.permute.xlu0 %5598
    %v5602 = vunpack.c.l.s4 1983009808
    %v5603 = vunpack.c.0.s8 %v5602
    %v5604 = vperm.slane %v5597, %v5603
    %v5607 = vunpack.c.l.s4 1983009808
    %v5608 = vunpack.c.0.s8 %v5607
    %v5609 = vperm.slane %v5599, %v5608
    %v5610 = vrot.slane %v5609, 4
    %v5611 = vsel %vm164, %v5610, %v5604
    %v5612 = vrot.slane %v5604, 4
    %v5613 = vsel %vm164, %v5609, %v5612
    %v5615 = vunpack.c.l.s4 1934713408
    %v5616 = vunpack.c.0.s8 %v5615
    %v5617 = vperm.slane %v5611, %v5616
    %v5619 = vunpack.c.l.s4 1934713408
    %v5620 = vunpack.c.0.s8 %v5619
    %v5621 = vperm.slane %v5613, %v5620
    %v5622 = vrot.slane %v5617, 4
    %v5623 = vsel %vm164, 0.0, %v5622
    %v5624 = vrot.slane %v5621, 4
    %v5625 = vsel %vm164, 0.0, %v5624
    %v5627 = vsel %vm179, %v5617, 0
    %5629 = vmatpush.msra.mxu0 0.0
    %5630 = vmatpush.msra.mxu0 0.0
    %5631 = vmatpush.msra.mxu0 0.0
    %5632 = vmatpush.msra.mxu0 0.0
    %5633 = vmatpush.msra.mxu0 0.0
    %5634 = vmatpush.msra.mxu0 0.0
    %5635 = vmatpush.msra.mxu0 0.0
    %5636 = vmatpush.msra.mxu0 0.0
    %5637 = vmatpush.msra.mxu0 0.0
    %5638 = vmatpush.msra.mxu0 0.0
    %5639 = vmatpush.msra.mxu0 0.0
    %5640 = vmatpush.msra.mxu0 0.0
    %5641 = vmatpush.msra.mxu0 %v101
    %5642 = vmatpush.msra.mxu0 %v100
    %5643 = vmatpush.msra.mxu0 %v99
    %5644 = vmatpush.msra.mxu0 %v98
    %5645 = vmatmul.f32.gmra.mxu0 %v5627
    %v5646 = vpop.f32.mrf.mxu0
    %v5647 = vadd.f32 %v5523, %v5646
    %5648 = vdwg.mxu0
    %v5650 = vsel %vm179, %v5623, 0
    %5652 = vmatpush.msra.mxu0 0.0
    %5653 = vmatpush.msra.mxu0 0.0
    %5654 = vmatpush.msra.mxu0 0.0
    %5655 = vmatpush.msra.mxu0 0.0
    %5656 = vmatpush.msra.mxu0 0.0
    %5657 = vmatpush.msra.mxu0 0.0
    %5658 = vmatpush.msra.mxu0 0.0
    %5659 = vmatpush.msra.mxu0 0.0
    %5660 = vmatpush.msra.mxu0 0.0
    %5661 = vmatpush.msra.mxu0 0.0
    %5662 = vmatpush.msra.mxu0 0.0
    %5663 = vmatpush.msra.mxu0 0.0
    %5664 = vmatpush.msra.mxu0 %v105
    %5665 = vmatpush.msra.mxu0 %v104
    %5666 = vmatpush.msra.mxu0 %v103
    %5667 = vmatpush.msra.mxu0 %v102
    %5668 = vmatmul.f32.gmra.mxu0 %v5650
    %v5669 = vpop.f32.mrf.mxu0
    %v5670 = vadd.f32 %v5546, %v5669
    %5671 = vdwg.mxu0
    %v5673 = vsel %vm179, %v5621, 0
    %5675 = vmatpush.msra.mxu0 0.0
    %5676 = vmatpush.msra.mxu0 0.0
    %5677 = vmatpush.msra.mxu0 0.0
    %5678 = vmatpush.msra.mxu0 0.0
    %5679 = vmatpush.msra.mxu0 0.0
    %5680 = vmatpush.msra.mxu0 0.0
    %5681 = vmatpush.msra.mxu0 0.0
    %5682 = vmatpush.msra.mxu0 0.0
    %5683 = vmatpush.msra.mxu0 0.0
    %5684 = vmatpush.msra.mxu0 0.0
    %5685 = vmatpush.msra.mxu0 0.0
    %5686 = vmatpush.msra.mxu0 0.0
    %5687 = vmatpush.msra.mxu0 %v109
    %5688 = vmatpush.msra.mxu0 %v108
    %5689 = vmatpush.msra.mxu0 %v107
    %5690 = vmatpush.msra.mxu0 %v106
    %5691 = vmatmul.f32.gmra.mxu0 %v5673
    %v5692 = vpop.f32.mrf.mxu0
    %v5693 = vadd.f32 %v5569, %v5692
    %5694 = vdwg.mxu0
    %v5696 = vsel %vm179, %v5625, 0
    %5698 = vmatpush.msra.mxu0 0.0
    %5699 = vmatpush.msra.mxu0 0.0
    %5700 = vmatpush.msra.mxu0 0.0
    %5701 = vmatpush.msra.mxu0 0.0
    %5702 = vmatpush.msra.mxu0 0.0
    %5703 = vmatpush.msra.mxu0 0.0
    %5704 = vmatpush.msra.mxu0 0.0
    %5705 = vmatpush.msra.mxu0 0.0
    %5706 = vmatpush.msra.mxu0 0.0
    %5707 = vmatpush.msra.mxu0 0.0
    %5708 = vmatpush.msra.mxu0 0.0
    %5709 = vmatpush.msra.mxu0 0.0
    %5710 = vmatpush.msra.mxu0 %v113
    %5711 = vmatpush.msra.mxu0 %v112
    %5712 = vmatpush.msra.mxu0 %v111
    %5713 = vmatpush.msra.mxu0 %v110
    %5714 = vmatmul.f32.gmra.mxu0 %v5696
    %v5715 = vpop.f32.mrf.mxu0
    %v5716 = vadd.f32 %v5592, %v5715
    %5717 = vdwg.mxu0
    %v5718 = vadd.f32 %v5647, %v582
    %v5719 = vadd.f32 %v5670, %v583
    %v5720 = vadd.f32 %v5693, %v584
    %v5721 = vadd.f32 %v5716, %v585
    %v5722 = vrot.slane %v5720, 4
    %v5723 = vsel %vm164, %v5722, %v5718
    %v5725 = vunpack.c.l.s4 1983009808
    %v5726 = vunpack.c.0.s8 %v5725
    %v5727 = vperm.slane %v5723, %v5726
    %v5728 = vrot.slane %v5721, 4
    %v5729 = vsel %vm164, %v5728, %v5719
    %v5731 = vunpack.c.l.s4 1983009808
    %v5732 = vunpack.c.0.s8 %v5731
    %v5733 = vperm.slane %v5729, %v5732
    %v5734 = vrot.slane %v5733, 4
    %v5735 = vsel %vm164, %v5734, %v5727
    %v5737 = vunpack.c.l.s4 1934713408
    %v5738 = vunpack.c.0.s8 %v5737
    %v5739 = vperm.slane %v5735, %v5738
    %v5740 = vrot.slane %v5739, 4
    %v5741 = vsel %vm164, 0.0, %v5740
    %v5742 = vxor.u32 %v5739, 2147483648
    %v5743 = vxor.u32 %v5741, 2147483648
    %v5744 = vmul.f32 %v5742, 1.442695
    %v5745 = vpow.pop %v5744
    %v5746 = vmul.f32 %v5743, 1.442695
    %v5747 = vpow.pop %v5746
    %v5748 = vadd.f32 %v5745, 1.0
    %v5749 = vadd.f32 %v5747, 1.0
    %v5750 = vrcp.pop %v5748
    %v5751 = vmul.f32 %v5748, %v5750
    %v5752 = vsub.f32 1.0, %v5751
    %v5753 = vmul.f32 %v5750, %v5752
    %v5754 = vadd.f32 %v5750, %v5753
    %vm5755 = vweird.f32 %v5748
    %vm5756 = vweird.f32 %v5750
    %vm5757 = vmor %vm5755, %vm5756
    %v5758 = vsel %vm5757, %v5750, %v5754
    %v5759 = vand.u32 2147483647, %v5748
    %vm5760 = vcmp.eq.f32.partialorder %v5759, 8.507059e+37
    %v5761 = vand.u32 %v5748, 2147483648
    %v5762 = vor.u32 1.1754944e-38, %v5761
    %v5763 = vsel %vm5760, %v5762, %v5758
    %v5764 = vmul.f32 1.0, %v5763
    %v5765 = vrcp.pop %v5749
    %v5766 = vmul.f32 %v5749, %v5765
    %v5767 = vsub.f32 1.0, %v5766
    %v5768 = vmul.f32 %v5765, %v5767
    %v5769 = vadd.f32 %v5765, %v5768
    %vm5770 = vweird.f32 %v5749
    %vm5771 = vweird.f32 %v5765
    %vm5772 = vmor %vm5770, %vm5771
    %v5773 = vsel %vm5772, %v5765, %v5769
    %v5774 = vand.u32 2147483647, %v5749
    %vm5775 = vcmp.eq.f32.partialorder %v5774, 8.507059e+37
    %v5776 = vand.u32 %v5749, 2147483648
    %v5777 = vor.u32 1.1754944e-38, %v5776
    %v5778 = vsel %vm5775, %v5777, %v5773
    %v5779 = vmul.f32 1.0, %v5778
    %v5780 = vtanh.pop %v5739
    %v5781 = vtanh.pop %v5741
    %v5782 = vmul.f32 %v5764, %v5205
    %v5783 = vmul.f32 %v5779, %v5206
    %5786 = vrot.lane.b32.xlu0 %v5780, 64
    %v5787 = vpop.permute.xlu0 %5786
    %5788 = vrot.lane.b32.xlu0 %v5781, 64
    %v5789 = vpop.permute.xlu0 %5788
    %v5792 = vmul.f32 %v5764, %v5787
    %v5793 = vmul.f32 %v5779, %v5789
    %5796 = vrot.lane.b32.xlu0 %v5792, 32
    %v5797 = vpop.permute.xlu0 %5796
    %5798 = vrot.lane.b32.xlu0 %v5793, 32
    %v5799 = vpop.permute.xlu0 %5798
    %v5802 = vadd.f32 %v5782, %v5797
    %v5803 = vadd.f32 %v5783, %v5799
    %v5804 = vtanh.pop %v5802
    %v5805 = vtanh.pop %v5803
    %5808 = vrot.lane.b32.xlu0 %v5804, 64
    %v5809 = vpop.permute.xlu0 %5808
    %5810 = vrot.lane.b32.xlu0 %v5805, 64
    %v5811 = vpop.permute.xlu0 %5810
    %v5814 = vmul.f32 %v5764, %v5809
    %v5815 = vmul.f32 %v5779, %v5811
    %5818 = vrot.lane.b32.xlu0 %v5814, 32
    %v5819 = vpop.permute.xlu0 %5818
    %5820 = vrot.lane.b32.xlu0 %v5815, 32
    %v5821 = vpop.permute.xlu0 %5820
    %s5824 = scalar_lea.vmem [#allocation7], 8
    %5825 = vst.msk [vmem:[%s5824] sm:$0xf] %vm4626, %v5819
    %5826 = vst.msk [vmem:[%s5824 + $0xc] sm:$0xf] %vm4626, %v5821
    // Predicated region
    $region38: #{tpu_custom_call.1} parent=1 // pred_check
      _
    $region39: #{tpu_custom_call.1} parent=1 // pred_check_branch
      %5828 = sbr.rel (0) target = $region41
    $region40: #{tpu_custom_call.1} parent=1 // pred_region
      %5830 = vsyncadd [#allocation4], 0
      %s5831 = sshll.u32 [#allocation7], 4
      %s5832 = int_to_ptr.vmem [resolvable:$true] %s5831
      %s5833 = sshll.u32 %s7, 4
      %s5834 = int_to_ptr.hbm [resolvable:$true] %s5833
      %5839 = dma.vmem_to_hbm [thread:$0]  %s5832, 384, %s5834, [#allocation4], 64, 64, 4
    $region41: #{tpu_custom_call.1} parent=1 // pred_fallthru
      _
    // Predicated region
    $region42: #{tpu_custom_call.1} parent=1 // pred_check
      _
    $region43: #{tpu_custom_call.1} parent=1 // pred_check_branch
      %5841 = sbr.rel (0) target = $region45
    $region44: #{tpu_custom_call.1} parent=1 // pred_region
      %5843 = dma.done [#allocation4], 384
    $region45: #{tpu_custom_call.1} parent=1 // pred_fallthru
      _
    %5844 = vsyncpa [#allocation3], 1
    %5845 = vsyncpa [#allocation6], 1
    %5846 = vsyncpa [#allocation4], 1

</llo_original>
